<compile_context>
chip_gen: v7x
topology: tpu7x:2x2x1
jax: 0.10.0
libtpu: 0.0.40
codegen_flags: <defaults>
</compile_context>

<pallas_src>
import functools

import jax
import jax.numpy as jnp
from jax.experimental import pallas as pl
from jax.experimental.pallas import tpu as pltpu


def cbam_kernel(x_ref, w1t_ref, b1_ref, w2_ref, b2_ref, ws_ref, bs_ref,
                o_ref, pad_ref, acc_ref, *, W):
    # x_ref:   (C, H*W)                 VMEM  (one batch element, spatial on lanes)
    # w1t_ref: (C, hidden)              VMEM  (1x1 conv1 weights, transposed)
    # b1_ref:  (1, hidden)              VMEM
    # w2_ref:  (C, hidden)              VMEM  (1x1 conv2 weights)
    # b2_ref:  (C, 1)                   VMEM
    # ws_ref:  (2*7*7,)                 SMEM  (7x7 spatial conv weights, [in, kh, kw])
    # bs_ref:  (1,)                     SMEM  (spatial conv bias)
    # pad_ref: (2, 1, H*W + 2*(3W+3))   VMEM scratch (flat zero-halo'd maps)
    # acc_ref: (1, H*W)                 VMEM scratch (spatial conv accumulator)
    C, HW = x_ref.shape
    K, P = 7, 3
    PADF = P * W + P                      # worst-case flat tap shift == zero halo

    x = x_ref[...].astype(jnp.float32)                            # (C, HW)

    # ---- channel attention: global average pool + 1x1-conv MLP + sigmoid ----
    pooled = jnp.mean(x, axis=1, keepdims=True)                   # (C, 1)  lane reduce
    # Tiny MLP (hidden = C // 16): broadcast-multiply + reduce.
    # TODO(synk): for production channel counts (C >= 256) route the two
    # contractions through jnp.dot so the otherwise-idle MXU does them.
    h = jnp.sum(w1t_ref[...] * pooled, axis=0, keepdims=True) + b1_ref[...]   # (1, hid)
    h = jnp.maximum(h, 0.0)
    s = jnp.sum(w2_ref[...] * h, axis=1, keepdims=True) + b2_ref[...]         # (C, 1)
    s = jax.nn.sigmoid(s)
    ca = x * s                                                    # (C, HW) sublane bcast

    # ---- spatial attention: channel-wise mean/max -> 7x7 conv -> sigmoid ----
    avg = jnp.mean(ca, axis=0, keepdims=True)                     # (1, HW) sublane reduce
    mx = jnp.max(ca, axis=0, keepdims=True)                       # (1, HW)

    # Flat zero halo: vertically out-of-image taps land in the halo (-> 0);
    # horizontally out-of-image taps (row wrap) are killed by the column mask.
    pad_ref[...] = jnp.zeros_like(pad_ref)
    pad_ref[0, :, PADF:PADF + HW] = avg                           # in-channel order [avg, max]
    pad_ref[1, :, PADF:PADF + HW] = mx

    col = jax.lax.broadcasted_iota(jnp.int32, (1, HW), 1) % W
    col_ok = [jnp.logical_and(col + dx >= 0, col + dx < W) for dx in range(-P, P + 1)]

    acc_ref[...] = jnp.zeros((1, HW), jnp.float32) + bs_ref[0]
    for ci in range(2):
        for ki in range(K):
            dy = ki - P
            for kj in range(K):
                dx = kj - P
                off = PADF + dy * W + dx                          # static lane offset
                tap = pad_ref[ci, :, off:off + HW]                # (1, HW)
                wgt = ws_ref[ci * K * K + ki * K + kj]            # SMEM scalar read
                acc_ref[...] += wgt * jnp.where(col_ok[kj], tap, 0.0)

    sa = jax.nn.sigmoid(acc_ref[...])                             # (1, HW)
    o_ref[...] = (ca * sa).astype(o_ref.dtype)                    # lane-dense store


@jax.jit
def cbam_pallas(x_nchw, w1, b1, w2, b2, ws, bs):
    """x_nchw: (B, C, H, W); params in PyTorch shapes:
       w1 (hid, C, 1, 1), b1 (hid,), w2 (C, hid, 1, 1), b2 (C,),
       ws (1, 2, 7, 7), bs (1,)."""
    B, C, H, W = x_nchw.shape
    hidden = w1.shape[0]
    HW = H * W
    PADF = 3 * W + 3

    # NCHW -> (B, C, H*W) is a contiguous, metadata-only reshape: no HBM traffic.
    x_flat = x_nchw.reshape(B, C, HW)

    w1t = jnp.transpose(w1.reshape(hidden, C)).astype(jnp.float32)   # (C, hidden)
    b1r = b1.reshape(1, hidden).astype(jnp.float32)
    w2m = w2.reshape(C, hidden).astype(jnp.float32)                  # (C, hidden)
    b2c = b2.reshape(C, 1).astype(jnp.float32)
    ws_flat = ws.reshape(-1).astype(jnp.float32)                     # (2*7*7,)
    bs_flat = bs.reshape(-1).astype(jnp.float32)                     # (1,)

    # VMEM budget: double-buffered in + out tiles + scratch + margin for params.
    elem = jnp.dtype(x_nchw.dtype).itemsize
    tile_bytes = C * HW * elem
    scratch_bytes = 4 * (2 * (HW + 2 * PADF) + HW)
    vmem_limit = int(min(96 << 20,
                         max(4 << 20, 4 * tile_bytes + scratch_bytes + (2 << 20))))

    out_flat = pl.pallas_call(
        functools.partial(cbam_kernel, W=W),
        out_shape=jax.ShapeDtypeStruct((B, C, HW), x_nchw.dtype),
        grid=(B,),
        in_specs=[
            pl.BlockSpec((None, C, HW), lambda b: (b, 0, 0)),
            pl.BlockSpec((C, hidden), lambda b: (0, 0)),
            pl.BlockSpec((1, hidden), lambda b: (0, 0)),
            pl.BlockSpec((C, hidden), lambda b: (0, 0)),
            pl.BlockSpec((C, 1), lambda b: (0, 0)),
            pl.BlockSpec(memory_space=pltpu.MemorySpace.SMEM),
            pl.BlockSpec(memory_space=pltpu.MemorySpace.SMEM),
        ],
        out_specs=pl.BlockSpec((None, C, HW), lambda b: (b, 0, 0)),
        scratch_shapes=[
            pltpu.VMEM((2, 1, HW + 2 * PADF), jnp.float32),
            pltpu.VMEM((1, HW), jnp.float32),
        ],
        compiler_params=pltpu.CompilerParams(
            dimension_semantics=("parallel",),
            vmem_limit_bytes=vmem_limit,
        ),
    )(x_flat, w1t, b1r, w2m, b2c, ws_flat, bs_flat)

    # (B, C, H*W) -> NCHW: free reshape.
    return out_flat.reshape(B, C, H, W)


def cbam_ref(x, w1, b1, w2, b2, ws, bs):
    """Pure-JAX reference matching the PyTorch module (NCHW)."""
    w1m = w1.reshape(w1.shape[0], w1.shape[1])
    w2m = w2.reshape(w2.shape[0], w2.shape[1])
    pooled = jnp.mean(x, axis=(2, 3), keepdims=True)                # (B,C,1,1)
    h = jnp.einsum('bcxy,oc->boxy', pooled, w1m) + b1[None, :, None, None]
    h = jax.nn.relu(h)
    s = jnp.einsum('bhxy,ch->bcxy', h, w2m) + b2[None, :, None, None]
    s = jax.nn.sigmoid(s)
    ca = s * x
    avg = jnp.mean(ca, axis=1, keepdims=True)
    mx = jnp.max(ca, axis=1, keepdims=True)
    sp_in = jnp.concatenate([avg, mx], axis=1)                      # (B,2,H,W)
    conv = jax.lax.conv_general_dilated(
        sp_in, ws, window_strides=(1, 1), padding=((3, 3), (3, 3)),
        dimension_numbers=('NCHW', 'OIHW', 'NCHW')) + bs[None, :, None, None]
    sa = jax.nn.sigmoid(conv)
    return sa * ca


if __name__ == "__main__":
    key = jax.random.PRNGKey(0)
    kx, k1, k2, k3, k4, k5, k6 = jax.random.split(key, 7)

    B, C, H, W = 2, 32, 16, 16
    reduction_ratio = 16
    hidden = C // reduction_ratio                                   # = 2

    x = jax.random.normal(kx, (B, C, H, W), jnp.float32)
    w1 = jax.random.normal(k1, (hidden, C, 1, 1), jnp.float32) * 0.2
    b1 = jax.random.normal(k2, (hidden,), jnp.float32) * 0.1
    w2 = jax.random.normal(k3, (C, hidden, 1, 1), jnp.float32) * 0.2
    b2 = jax.random.normal(k4, (C,), jnp.float32) * 0.1
    ws = jax.random.normal(k5, (1, 2, 7, 7), jnp.float32) * 0.1
    bs = jax.random.normal(k6, (1,), jnp.float32) * 0.1

    out = cbam_pallas(x, w1, b1, w2, b2, ws, bs)
    out = jax.block_until_ready(out)

    ref = cbam_ref(x, w1, b1, w2, b2, ws, bs)
    assert out.shape == (B, C, H, W)
    err = float(jnp.max(jnp.abs(out - ref)))
    assert err < 1e-3, f"max abs error {err}"
    print("KERNEL_OK")
</pallas_src>

<mosaic_0001>
module attributes {stable_mosaic.version = 11 : i64} {
  func.func @cbam_kernel(%arg0: i32, %arg1: memref<1x32x256xf32, #tpu.memory_space<vmem>>, %arg2: memref<32x2xf32, #tpu.memory_space<vmem>>, %arg3: memref<1x2xf32, #tpu.memory_space<vmem>>, %arg4: memref<32x2xf32, #tpu.memory_space<vmem>>, %arg5: memref<32x1xf32, #tpu.memory_space<vmem>>, %arg6: memref<98xf32, #tpu.memory_space<smem>>, %arg7: memref<1xf32, #tpu.memory_space<smem>>, %arg8: memref<1x32x256xf32, #tpu.memory_space<vmem>>, %arg9: memref<2x1x358xf32, #tpu.memory_space<vmem>>, %arg10: memref<1x256xf32, #tpu.memory_space<vmem>>) attributes {dimension_semantics = [#tpu.dimension_semantics<parallel>], iteration_bounds = array<i64: 2>, scalar_prefetch = 0 : i64, scratch_operands = 2 : i64, tpu.core_type = #tpu.core_type<tc>, window_params = [{transform_indices = @transform_0, window_bounds = array<i64: 1, 32, 256>}, {pipeline_mode = #tpu.pipeline_mode<synchronous>, transform_indices = @transform_1, window_bounds = array<i64: 32, 2>}, {pipeline_mode = #tpu.pipeline_mode<synchronous>, transform_indices = @transform_2, window_bounds = array<i64: 1, 2>}, {pipeline_mode = #tpu.pipeline_mode<synchronous>, transform_indices = @transform_3, window_bounds = array<i64: 32, 2>}, {pipeline_mode = #tpu.pipeline_mode<synchronous>, transform_indices = @transform_4, window_bounds = array<i64: 32, 1>}, {transform_indices = @transform_5, window_bounds = array<i64: 98>}, {transform_indices = @transform_6, window_bounds = array<i64: 1>}, {transform_indices = @transform_7, window_bounds = array<i64: 1, 32, 256>}]} {
    %c0 = arith.constant 0 : index
    %c0_0 = arith.constant 0 : index
    %c0_1 = arith.constant 0 : index
    %0 = vector.load %arg1[%c0, %c0_0, %c0_1] : memref<1x32x256xf32, #tpu.memory_space<vmem>>, vector<1x32x256xf32>
    %1 = vector.shape_cast %0 : vector<1x32x256xf32> to vector<32x256xf32>
    %cst = arith.constant dense<0.000000e+00> : vector<32xf32>
    %2 = vector.multi_reduction <add>, %1, %cst [1] : vector<32x256xf32> to vector<32xf32>
    %3 = vector.shape_cast %2 : vector<32xf32> to vector<32x1xf32>
    %cst_2 = arith.constant 2.560000e+02 : f32
    %4 = vector.broadcast %cst_2 : f32 to vector<32x1xf32>
    %5 = arith.divf %3, %4 : vector<32x1xf32>
    %c0_3 = arith.constant 0 : index
    %c0_4 = arith.constant 0 : index
    %6 = vector.load %arg2[%c0_3, %c0_4] : memref<32x2xf32, #tpu.memory_space<vmem>>, vector<32x2xf32>
    %7 = vector.broadcast %5 : vector<32x1xf32> to vector<32x2xf32>
    %8 = arith.mulf %6, %7 : vector<32x2xf32>
    %cst_5 = arith.constant dense<0.000000e+00> : vector<2xf32>
    %9 = vector.multi_reduction <add>, %8, %cst_5 [0] : vector<32x2xf32> to vector<2xf32>
    %10 = vector.shape_cast %9 : vector<2xf32> to vector<1x2xf32>
    %c0_6 = arith.constant 0 : index
    %c0_7 = arith.constant 0 : index
    %11 = vector.load %arg3[%c0_6, %c0_7] : memref<1x2xf32, #tpu.memory_space<vmem>>, vector<1x2xf32>
    %12 = arith.addf %10, %11 : vector<1x2xf32>
    %cst_8 = arith.constant 0.000000e+00 : f32
    %13 = vector.broadcast %cst_8 : f32 to vector<1x2xf32>
    %14 = arith.maximumf %12, %13 : vector<1x2xf32>
    %c0_9 = arith.constant 0 : index
    %c0_10 = arith.constant 0 : index
    %15 = vector.load %arg4[%c0_9, %c0_10] : memref<32x2xf32, #tpu.memory_space<vmem>>, vector<32x2xf32>
    %16 = vector.broadcast %14 : vector<1x2xf32> to vector<32x2xf32>
    %17 = arith.mulf %15, %16 : vector<32x2xf32>
    %cst_11 = arith.constant dense<0.000000e+00> : vector<32xf32>
    %18 = vector.multi_reduction <add>, %17, %cst_11 [1] : vector<32x2xf32> to vector<32xf32>
    %19 = vector.shape_cast %18 : vector<32xf32> to vector<32x1xf32>
    %c0_12 = arith.constant 0 : index
    %c0_13 = arith.constant 0 : index
    %20 = vector.load %arg5[%c0_12, %c0_13] : memref<32x1xf32, #tpu.memory_space<vmem>>, vector<32x1xf32>
    %21 = arith.addf %19, %20 : vector<32x1xf32>
    %22 = arith.negf %21 : vector<32x1xf32>
    %23 = math.exp %22 : vector<32x1xf32>
    %cst_14 = arith.constant 1.000000e+00 : f32
    %24 = vector.broadcast %cst_14 : f32 to vector<32x1xf32>
    %25 = arith.addf %24, %23 : vector<32x1xf32>
    %26 = arith.divf %24, %25 : vector<32x1xf32>
    %27 = vector.broadcast %26 : vector<32x1xf32> to vector<32x256xf32>
    %28 = arith.mulf %1, %27 : vector<32x256xf32>
    %cst_15 = arith.constant dense<0.000000e+00> : vector<256xf32>
    %29 = vector.multi_reduction <add>, %28, %cst_15 [0] : vector<32x256xf32> to vector<256xf32>
    %30 = vector.shape_cast %29 : vector<256xf32> to vector<1x256xf32>
    %cst_16 = arith.constant 3.200000e+01 : f32
    %31 = vector.broadcast %cst_16 : f32 to vector<1x256xf32>
    %32 = arith.divf %30, %31 : vector<1x256xf32>
    %cst_17 = arith.constant dense<0xFF800000> : vector<256xf32>
    %33 = vector.multi_reduction <maximumf>, %28, %cst_17 [0] : vector<32x256xf32> to vector<256xf32>
    %34 = vector.shape_cast %33 : vector<256xf32> to vector<1x256xf32>
    %cst_18 = arith.constant 0.000000e+00 : f32
    %35 = vector.broadcast %cst_18 : f32 to vector<2x1x358xf32>
    %c0_19 = arith.constant 0 : index
    %c0_20 = arith.constant 0 : index
    %c0_21 = arith.constant 0 : index
    %36 = vector.load %arg9[%c0_19, %c0_20, %c0_21] : memref<2x1x358xf32, #tpu.memory_space<vmem>>, vector<2x1x358xf32>
    tpu.vector_store %arg9[%c0_19, %c0_20, %c0_21], %35 {strides = array<i32>} : memref<2x1x358xf32, #tpu.memory_space<vmem>>, vector<2x1x358xf32>,
    %c0_22 = arith.constant 0 : index
    %c0_23 = arith.constant 0 : index
    %c51 = arith.constant 51 : index
    %37 = vector.load %arg9[%c0_22, %c0_23, %c51] : memref<2x1x358xf32, #tpu.memory_space<vmem>>, vector<1x1x256xf32>
    %38 = vector.shape_cast %37 : vector<1x1x256xf32> to vector<1x256xf32>
    %39 = vector.shape_cast %32 : vector<1x256xf32> to vector<1x1x256xf32>
    tpu.vector_store %arg9[%c0_22, %c0_23, %c51], %39 {strides = array<i32>} : memref<2x1x358xf32, #tpu.memory_space<vmem>>, vector<1x1x256xf32>,
    %c1 = arith.constant 1 : index
    %c0_24 = arith.constant 0 : index
    %c51_25 = arith.constant 51 : index
    %40 = vector.load %arg9[%c1, %c0_24, %c51_25] : memref<2x1x358xf32, #tpu.memory_space<vmem>>, vector<1x1x256xf32>
    %41 = vector.shape_cast %40 : vector<1x1x256xf32> to vector<1x256xf32>
    %42 = vector.shape_cast %34 : vector<1x256xf32> to vector<1x1x256xf32>
    tpu.vector_store %arg9[%c1, %c0_24, %c51_25], %42 {strides = array<i32>} : memref<2x1x358xf32, #tpu.memory_space<vmem>>, vector<1x1x256xf32>,
    %43 = tpu.iota {dimensions = array<i32: 1>} : vector<1x256xi32>
    %c16_i32 = arith.constant 16 : i32
    %c0_i32 = arith.constant 0 : i32
    %44 = arith.cmpi eq, %c16_i32, %c0_i32 : i32
    %c1_i32 = arith.constant 1 : i32
    %45 = arith.select %44, %c1_i32, %c16_i32 : i32
    %46 = vector.broadcast %45 : i32 to vector<1x256xi32>
    %47 = arith.remsi %43, %46 : vector<1x256xi32>
    %c0_i32_26 = arith.constant 0 : i32
    %48 = vector.broadcast %c0_i32_26 : i32 to vector<1x256xi32>
    %49 = arith.cmpi ne, %47, %48 : vector<1x256xi32>
    %c0_i32_27 = arith.constant 0 : i32
    %50 = vector.broadcast %c0_i32_27 : i32 to vector<1x256xi32>
    %51 = arith.cmpi slt, %47, %50 : vector<1x256xi32>
    %c0_i32_28 = arith.constant 0 : i32
    %52 = arith.cmpi slt, %45, %c0_i32_28 : i32
    %53 = vector.broadcast %52 : i1 to vector<1x256xi1>
    %54 = vector.broadcast %53 : vector<1x256xi1> to vector<1x256xi1>
    %55 = arith.xori %51, %54 : vector<1x256xi1>
    %56 = arith.andi %55, %49 : vector<1x256xi1>
    %57 = vector.broadcast %45 : i32 to vector<1x256xi32>
    %58 = arith.addi %47, %57 : vector<1x256xi32>
    %59 = arith.select %56, %58, %47 : vector<1x256xi1>, vector<1x256xi32>
    %c-3_i32 = arith.constant -3 : i32
    %60 = vector.broadcast %c-3_i32 : i32 to vector<1x256xi32>
    %61 = arith.addi %59, %60 : vector<1x256xi32>
    %c0_i32_29 = arith.constant 0 : i32
    %62 = vector.broadcast %c0_i32_29 : i32 to vector<1x256xi32>
    %63 = arith.cmpi sge, %61, %62 : vector<1x256xi32>
    %c-3_i32_30 = arith.constant -3 : i32
    %64 = vector.broadcast %c-3_i32_30 : i32 to vector<1x256xi32>
    %65 = arith.addi %59, %64 : vector<1x256xi32>
    %c16_i32_31 = arith.constant 16 : i32
    %66 = vector.broadcast %c16_i32_31 : i32 to vector<1x256xi32>
    %67 = arith.cmpi slt, %65, %66 : vector<1x256xi32>
    %68 = arith.andi %63, %67 : vector<1x256xi1>
    %c-2_i32 = arith.constant -2 : i32
    %69 = vector.broadcast %c-2_i32 : i32 to vector<1x256xi32>
    %70 = arith.addi %59, %69 : vector<1x256xi32>
    %c0_i32_32 = arith.constant 0 : i32
    %71 = vector.broadcast %c0_i32_32 : i32 to vector<1x256xi32>
    %72 = arith.cmpi sge, %70, %71 : vector<1x256xi32>
    %c-2_i32_33 = arith.constant -2 : i32
    %73 = vector.broadcast %c-2_i32_33 : i32 to vector<1x256xi32>
    %74 = arith.addi %59, %73 : vector<1x256xi32>
    %c16_i32_34 = arith.constant 16 : i32
    %75 = vector.broadcast %c16_i32_34 : i32 to vector<1x256xi32>
    %76 = arith.cmpi slt, %74, %75 : vector<1x256xi32>
    %77 = arith.andi %72, %76 : vector<1x256xi1>
    %c-1_i32 = arith.constant -1 : i32
    %78 = vector.broadcast %c-1_i32 : i32 to vector<1x256xi32>
    %79 = arith.addi %59, %78 : vector<1x256xi32>
    %c0_i32_35 = arith.constant 0 : i32
    %80 = vector.broadcast %c0_i32_35 : i32 to vector<1x256xi32>
    %81 = arith.cmpi sge, %79, %80 : vector<1x256xi32>
    %c-1_i32_36 = arith.constant -1 : i32
    %82 = vector.broadcast %c-1_i32_36 : i32 to vector<1x256xi32>
    %83 = arith.addi %59, %82 : vector<1x256xi32>
    %c16_i32_37 = arith.constant 16 : i32
    %84 = vector.broadcast %c16_i32_37 : i32 to vector<1x256xi32>
    %85 = arith.cmpi slt, %83, %84 : vector<1x256xi32>
    %86 = arith.andi %81, %85 : vector<1x256xi1>
    %c0_i32_38 = arith.constant 0 : i32
    %87 = vector.broadcast %c0_i32_38 : i32 to vector<1x256xi32>
    %88 = arith.addi %59, %87 : vector<1x256xi32>
    %c0_i32_39 = arith.constant 0 : i32
    %89 = vector.broadcast %c0_i32_39 : i32 to vector<1x256xi32>
    %90 = arith.cmpi sge, %88, %89 : vector<1x256xi32>
    %c0_i32_40 = arith.constant 0 : i32
    %91 = vector.broadcast %c0_i32_40 : i32 to vector<1x256xi32>
    %92 = arith.addi %59, %91 : vector<1x256xi32>
    %c16_i32_41 = arith.constant 16 : i32
    %93 = vector.broadcast %c16_i32_41 : i32 to vector<1x256xi32>
    %94 = arith.cmpi slt, %92, %93 : vector<1x256xi32>
    %95 = arith.andi %90, %94 : vector<1x256xi1>
    %c1_i32_42 = arith.constant 1 : i32
    %96 = vector.broadcast %c1_i32_42 : i32 to vector<1x256xi32>
    %97 = arith.addi %59, %96 : vector<1x256xi32>
    %c0_i32_43 = arith.constant 0 : i32
    %98 = vector.broadcast %c0_i32_43 : i32 to vector<1x256xi32>
    %99 = arith.cmpi sge, %97, %98 : vector<1x256xi32>
    %c1_i32_44 = arith.constant 1 : i32
    %100 = vector.broadcast %c1_i32_44 : i32 to vector<1x256xi32>
    %101 = arith.addi %59, %100 : vector<1x256xi32>
    %c16_i32_45 = arith.constant 16 : i32
    %102 = vector.broadcast %c16_i32_45 : i32 to vector<1x256xi32>
    %103 = arith.cmpi slt, %101, %102 : vector<1x256xi32>
    %104 = arith.andi %99, %103 : vector<1x256xi1>
    %c2_i32 = arith.constant 2 : i32
    %105 = vector.broadcast %c2_i32 : i32 to vector<1x256xi32>
    %106 = arith.addi %59, %105 : vector<1x256xi32>
    %c0_i32_46 = arith.constant 0 : i32
    %107 = vector.broadcast %c0_i32_46 : i32 to vector<1x256xi32>
    %108 = arith.cmpi sge, %106, %107 : vector<1x256xi32>
    %c2_i32_47 = arith.constant 2 : i32
    %109 = vector.broadcast %c2_i32_47 : i32 to vector<1x256xi32>
    %110 = arith.addi %59, %109 : vector<1x256xi32>
    %c16_i32_48 = arith.constant 16 : i32
    %111 = vector.broadcast %c16_i32_48 : i32 to vector<1x256xi32>
    %112 = arith.cmpi slt, %110, %111 : vector<1x256xi32>
    %113 = arith.andi %108, %112 : vector<1x256xi1>
    %c3_i32 = arith.constant 3 : i32
    %114 = vector.broadcast %c3_i32 : i32 to vector<1x256xi32>
    %115 = arith.addi %59, %114 : vector<1x256xi32>
    %c0_i32_49 = arith.constant 0 : i32
    %116 = vector.broadcast %c0_i32_49 : i32 to vector<1x256xi32>
    %117 = arith.cmpi sge, %115, %116 : vector<1x256xi32>
    %c3_i32_50 = arith.constant 3 : i32
    %118 = vector.broadcast %c3_i32_50 : i32 to vector<1x256xi32>
    %119 = arith.addi %59, %118 : vector<1x256xi32>
    %c16_i32_51 = arith.constant 16 : i32
    %120 = vector.broadcast %c16_i32_51 : i32 to vector<1x256xi32>
    %121 = arith.cmpi slt, %119, %120 : vector<1x256xi32>
    %122 = arith.andi %117, %121 : vector<1x256xi1>
    %cst_52 = arith.constant 0.000000e+00 : f32
    %123 = vector.broadcast %cst_52 : f32 to vector<1x256xf32>
    %c0_53 = arith.constant 0 : index
    %124 = memref.load %arg7[%c0_53] : memref<1xf32, #tpu.memory_space<smem>>
    %125 = vector.broadcast %124 : f32 to vector<1x256xf32>
    %126 = arith.addf %123, %125 : vector<1x256xf32>
    %c0_54 = arith.constant 0 : index
    %c0_55 = arith.constant 0 : index
    %127 = vector.load %arg10[%c0_54, %c0_55] : memref<1x256xf32, #tpu.memory_space<vmem>>, vector<1x256xf32>
    tpu.vector_store %arg10[%c0_54, %c0_55], %126 {strides = array<i32>} : memref<1x256xf32, #tpu.memory_space<vmem>>, vector<1x256xf32>,
    %c0_56 = arith.constant 0 : index
    %c0_57 = arith.constant 0 : index
    %c0_58 = arith.constant 0 : index
    %128 = vector.load %arg9[%c0_56, %c0_57, %c0_58] : memref<2x1x358xf32, #tpu.memory_space<vmem>>, vector<1x1x256xf32>
    %129 = vector.shape_cast %128 : vector<1x1x256xf32> to vector<1x256xf32>
    %c0_59 = arith.constant 0 : index
    %130 = memref.load %arg6[%c0_59] : memref<98xf32, #tpu.memory_space<smem>>
    %c0_60 = arith.constant 0 : index
    %c0_61 = arith.constant 0 : index
    %131 = vector.load %arg10[%c0_60, %c0_61] : memref<1x256xf32, #tpu.memory_space<vmem>>, vector<1x256xf32>
    %cst_62 = arith.constant 0.000000e+00 : f32
    %132 = vector.broadcast %cst_62 : f32 to vector<1x256xf32>
    %133 = arith.select %68, %129, %132 : vector<1x256xi1>, vector<1x256xf32>
    %134 = vector.broadcast %130 : f32 to vector<1x256xf32>
    %135 = arith.mulf %134, %133 : vector<1x256xf32>
    %136 = arith.addf %131, %135 : vector<1x256xf32>
    %c0_63 = arith.constant 0 : index
    %c0_64 = arith.constant 0 : index
    %137 = vector.load %arg10[%c0_63, %c0_64] : memref<1x256xf32, #tpu.memory_space<vmem>>, vector<1x256xf32>
    tpu.vector_store %arg10[%c0_63, %c0_64], %136 {strides = array<i32>} : memref<1x256xf32, #tpu.memory_space<vmem>>, vector<1x256xf32>,
    %c0_65 = arith.constant 0 : index
    %c0_66 = arith.constant 0 : index
    %c1_67 = arith.constant 1 : index
    %138 = vector.load %arg9[%c0_65, %c0_66, %c1_67] : memref<2x1x358xf32, #tpu.memory_space<vmem>>, vector<1x1x256xf32>
    %139 = vector.shape_cast %138 : vector<1x1x256xf32> to vector<1x256xf32>
    %c1_68 = arith.constant 1 : index
    %140 = memref.load %arg6[%c1_68] : memref<98xf32, #tpu.memory_space<smem>>
    %c0_69 = arith.constant 0 : index
    %c0_70 = arith.constant 0 : index
    %141 = vector.load %arg10[%c0_69, %c0_70] : memref<1x256xf32, #tpu.memory_space<vmem>>, vector<1x256xf32>
    %cst_71 = arith.constant 0.000000e+00 : f32
    %142 = vector.broadcast %cst_71 : f32 to vector<1x256xf32>
    %143 = arith.select %77, %139, %142 : vector<1x256xi1>, vector<1x256xf32>
    %144 = vector.broadcast %140 : f32 to vector<1x256xf32>
    %145 = arith.mulf %144, %143 : vector<1x256xf32>
    %146 = arith.addf %141, %145 : vector<1x256xf32>
    %c0_72 = arith.constant 0 : index
    %c0_73 = arith.constant 0 : index
    %147 = vector.load %arg10[%c0_72, %c0_73] : memref<1x256xf32, #tpu.memory_space<vmem>>, vector<1x256xf32>
    tpu.vector_store %arg10[%c0_72, %c0_73], %146 {strides = array<i32>} : memref<1x256xf32, #tpu.memory_space<vmem>>, vector<1x256xf32>,
    %c0_74 = arith.constant 0 : index
    %c0_75 = arith.constant 0 : index
    %c2 = arith.constant 2 : index
    %148 = vector.load %arg9[%c0_74, %c0_75, %c2] : memref<2x1x358xf32, #tpu.memory_space<vmem>>, vector<1x1x256xf32>
    %149 = vector.shape_cast %148 : vector<1x1x256xf32> to vector<1x256xf32>
    %c2_76 = arith.constant 2 : index
    %150 = memref.load %arg6[%c2_76] : memref<98xf32, #tpu.memory_space<smem>>
    %c0_77 = arith.constant 0 : index
    %c0_78 = arith.constant 0 : index
    %151 = vector.load %arg10[%c0_77, %c0_78] : memref<1x256xf32, #tpu.memory_space<vmem>>, vector<1x256xf32>
    %cst_79 = arith.constant 0.000000e+00 : f32
    %152 = vector.broadcast %cst_79 : f32 to vector<1x256xf32>
    %153 = arith.select %86, %149, %152 : vector<1x256xi1>, vector<1x256xf32>
    %154 = vector.broadcast %150 : f32 to vector<1x256xf32>
    %155 = arith.mulf %154, %153 : vector<1x256xf32>
    %156 = arith.addf %151, %155 : vector<1x256xf32>
    %c0_80 = arith.constant 0 : index
    %c0_81 = arith.constant 0 : index
    %157 = vector.load %arg10[%c0_80, %c0_81] : memref<1x256xf32, #tpu.memory_space<vmem>>, vector<1x256xf32>
    tpu.vector_store %arg10[%c0_80, %c0_81], %156 {strides = array<i32>} : memref<1x256xf32, #tpu.memory_space<vmem>>, vector<1x256xf32>,
    %c0_82 = arith.constant 0 : index
    %c0_83 = arith.constant 0 : index
    %c3 = arith.constant 3 : index
    %158 = vector.load %arg9[%c0_82, %c0_83, %c3] : memref<2x1x358xf32, #tpu.memory_space<vmem>>, vector<1x1x256xf32>
    %159 = vector.shape_cast %158 : vector<1x1x256xf32> to vector<1x256xf32>
    %c3_84 = arith.constant 3 : index
    %160 = memref.load %arg6[%c3_84] : memref<98xf32, #tpu.memory_space<smem>>
    %c0_85 = arith.constant 0 : index
    %c0_86 = arith.constant 0 : index
    %161 = vector.load %arg10[%c0_85, %c0_86] : memref<1x256xf32, #tpu.memory_space<vmem>>, vector<1x256xf32>
    %cst_87 = arith.constant 0.000000e+00 : f32
    %162 = vector.broadcast %cst_87 : f32 to vector<1x256xf32>
    %163 = arith.select %95, %159, %162 : vector<1x256xi1>, vector<1x256xf32>
    %164 = vector.broadcast %160 : f32 to vector<1x256xf32>
    %165 = arith.mulf %164, %163 : vector<1x256xf32>
    %166 = arith.addf %161, %165 : vector<1x256xf32>
    %c0_88 = arith.constant 0 : index
    %c0_89 = arith.constant 0 : index
    %167 = vector.load %arg10[%c0_88, %c0_89] : memref<1x256xf32, #tpu.memory_space<vmem>>, vector<1x256xf32>
    tpu.vector_store %arg10[%c0_88, %c0_89], %166 {strides = array<i32>} : memref<1x256xf32, #tpu.memory_space<vmem>>, vector<1x256xf32>,
    %c0_90 = arith.constant 0 : index
    %c0_91 = arith.constant 0 : index
    %c4 = arith.constant 4 : index
    %168 = vector.load %arg9[%c0_90, %c0_91, %c4] : memref<2x1x358xf32, #tpu.memory_space<vmem>>, vector<1x1x256xf32>
    %169 = vector.shape_cast %168 : vector<1x1x256xf32> to vector<1x256xf32>
    %c4_92 = arith.constant 4 : index
    %170 = memref.load %arg6[%c4_92] : memref<98xf32, #tpu.memory_space<smem>>
    %c0_93 = arith.constant 0 : index
    %c0_94 = arith.constant 0 : index
    %171 = vector.load %arg10[%c0_93, %c0_94] : memref<1x256xf32, #tpu.memory_space<vmem>>, vector<1x256xf32>
    %cst_95 = arith.constant 0.000000e+00 : f32
    %172 = vector.broadcast %cst_95 : f32 to vector<1x256xf32>
    %173 = arith.select %104, %169, %172 : vector<1x256xi1>, vector<1x256xf32>
    %174 = vector.broadcast %170 : f32 to vector<1x256xf32>
    %175 = arith.mulf %174, %173 : vector<1x256xf32>
    %176 = arith.addf %171, %175 : vector<1x256xf32>
    %c0_96 = arith.constant 0 : index
    %c0_97 = arith.constant 0 : index
    %177 = vector.load %arg10[%c0_96, %c0_97] : memref<1x256xf32, #tpu.memory_space<vmem>>, vector<1x256xf32>
    tpu.vector_store %arg10[%c0_96, %c0_97], %176 {strides = array<i32>} : memref<1x256xf32, #tpu.memory_space<vmem>>, vector<1x256xf32>,
    %c0_98 = arith.constant 0 : index
    %c0_99 = arith.constant 0 : index
    %c5 = arith.constant 5 : index
    %178 = vector.load %arg9[%c0_98, %c0_99, %c5] : memref<2x1x358xf32, #tpu.memory_space<vmem>>, vector<1x1x256xf32>
    %179 = vector.shape_cast %178 : vector<1x1x256xf32> to vector<1x256xf32>
    %c5_100 = arith.constant 5 : index
    %180 = memref.load %arg6[%c5_100] : memref<98xf32, #tpu.memory_space<smem>>
    %c0_101 = arith.constant 0 : index
    %c0_102 = arith.constant 0 : index
    %181 = vector.load %arg10[%c0_101, %c0_102] : memref<1x256xf32, #tpu.memory_space<vmem>>, vector<1x256xf32>
    %cst_103 = arith.constant 0.000000e+00 : f32
    %182 = vector.broadcast %cst_103 : f32 to vector<1x256xf32>
    %183 = arith.select %113, %179, %182 : vector<1x256xi1>, vector<1x256xf32>
    %184 = vector.broadcast %180 : f32 to vector<1x256xf32>
    %185 = arith.mulf %184, %183 : vector<1x256xf32>
    %186 = arith.addf %181, %185 : vector<1x256xf32>
    %c0_104 = arith.constant 0 : index
    %c0_105 = arith.constant 0 : index
    %187 = vector.load %arg10[%c0_104, %c0_105] : memref<1x256xf32, #tpu.memory_space<vmem>>, vector<1x256xf32>
    tpu.vector_store %arg10[%c0_104, %c0_105], %186 {strides = array<i32>} : memref<1x256xf32, #tpu.memory_space<vmem>>, vector<1x256xf32>,
    %c0_106 = arith.constant 0 : index
    %c0_107 = arith.constant 0 : index
    %c6 = arith.constant 6 : index
    %188 = vector.load %arg9[%c0_106, %c0_107, %c6] : memref<2x1x358xf32, #tpu.memory_space<vmem>>, vector<1x1x256xf32>
    %189 = vector.shape_cast %188 : vector<1x1x256xf32> to vector<1x256xf32>
    %c6_108 = arith.constant 6 : index
    %190 = memref.load %arg6[%c6_108] : memref<98xf32, #tpu.memory_space<smem>>
    %c0_109 = arith.constant 0 : index
    %c0_110 = arith.constant 0 : index
    %191 = vector.load %arg10[%c0_109, %c0_110] : memref<1x256xf32, #tpu.memory_space<vmem>>, vector<1x256xf32>
    %cst_111 = arith.constant 0.000000e+00 : f32
    %192 = vector.broadcast %cst_111 : f32 to vector<1x256xf32>
    %193 = arith.select %122, %189, %192 : vector<1x256xi1>, vector<1x256xf32>
    %194 = vector.broadcast %190 : f32 to vector<1x256xf32>
    %195 = arith.mulf %194, %193 : vector<1x256xf32>
    %196 = arith.addf %191, %195 : vector<1x256xf32>
    %c0_112 = arith.constant 0 : index
    %c0_113 = arith.constant 0 : index
    %197 = vector.load %arg10[%c0_112, %c0_113] : memref<1x256xf32, #tpu.memory_space<vmem>>, vector<1x256xf32>
    tpu.vector_store %arg10[%c0_112, %c0_113], %196 {strides = array<i32>} : memref<1x256xf32, #tpu.memory_space<vmem>>, vector<1x256xf32>,
    %c0_114 = arith.constant 0 : index
    %c0_115 = arith.constant 0 : index
    %c16 = arith.constant 16 : index
    %198 = vector.load %arg9[%c0_114, %c0_115, %c16] : memref<2x1x358xf32, #tpu.memory_space<vmem>>, vector<1x1x256xf32>
    %199 = vector.shape_cast %198 : vector<1x1x256xf32> to vector<1x256xf32>
    %c7 = arith.constant 7 : index
    %200 = memref.load %arg6[%c7] : memref<98xf32, #tpu.memory_space<smem>>
    %c0_116 = arith.constant 0 : index
    %c0_117 = arith.constant 0 : index
    %201 = vector.load %arg10[%c0_116, %c0_117] : memref<1x256xf32, #tpu.memory_space<vmem>>, vector<1x256xf32>
    %cst_118 = arith.constant 0.000000e+00 : f32
    %202 = vector.broadcast %cst_118 : f32 to vector<1x256xf32>
    %203 = arith.select %68, %199, %202 : vector<1x256xi1>, vector<1x256xf32>
    %204 = vector.broadcast %200 : f32 to vector<1x256xf32>
    %205 = arith.mulf %204, %203 : vector<1x256xf32>
    %206 = arith.addf %201, %205 : vector<1x256xf32>
    %c0_119 = arith.constant 0 : index
    %c0_120 = arith.constant 0 : index
    %207 = vector.load %arg10[%c0_119, %c0_120] : memref<1x256xf32, #tpu.memory_space<vmem>>, vector<1x256xf32>
    tpu.vector_store %arg10[%c0_119, %c0_120], %206 {strides = array<i32>} : memref<1x256xf32, #tpu.memory_space<vmem>>, vector<1x256xf32>,
    %c0_121 = arith.constant 0 : index
    %c0_122 = arith.constant 0 : index
    %c17 = arith.constant 17 : index
    %208 = vector.load %arg9[%c0_121, %c0_122, %c17] : memref<2x1x358xf32, #tpu.memory_space<vmem>>, vector<1x1x256xf32>
    %209 = vector.shape_cast %208 : vector<1x1x256xf32> to vector<1x256xf32>
    %c8 = arith.constant 8 : index
    %210 = memref.load %arg6[%c8] : memref<98xf32, #tpu.memory_space<smem>>
    %c0_123 = arith.constant 0 : index
    %c0_124 = arith.constant 0 : index
    %211 = vector.load %arg10[%c0_123, %c0_124] : memref<1x256xf32, #tpu.memory_space<vmem>>, vector<1x256xf32>
    %cst_125 = arith.constant 0.000000e+00 : f32
    %212 = vector.broadcast %cst_125 : f32 to vector<1x256xf32>
    %213 = arith.select %77, %209, %212 : vector<1x256xi1>, vector<1x256xf32>
    %214 = vector.broadcast %210 : f32 to vector<1x256xf32>
    %215 = arith.mulf %214, %213 : vector<1x256xf32>
    %216 = arith.addf %211, %215 : vector<1x256xf32>
    %c0_126 = arith.constant 0 : index
    %c0_127 = arith.constant 0 : index
    %217 = vector.load %arg10[%c0_126, %c0_127] : memref<1x256xf32, #tpu.memory_space<vmem>>, vector<1x256xf32>
    tpu.vector_store %arg10[%c0_126, %c0_127], %216 {strides = array<i32>} : memref<1x256xf32, #tpu.memory_space<vmem>>, vector<1x256xf32>,
    %c0_128 = arith.constant 0 : index
    %c0_129 = arith.constant 0 : index
    %c18 = arith.constant 18 : index
    %218 = vector.load %arg9[%c0_128, %c0_129, %c18] : memref<2x1x358xf32, #tpu.memory_space<vmem>>, vector<1x1x256xf32>
    %219 = vector.shape_cast %218 : vector<1x1x256xf32> to vector<1x256xf32>
    %c9 = arith.constant 9 : index
    %220 = memref.load %arg6[%c9] : memref<98xf32, #tpu.memory_space<smem>>
    %c0_130 = arith.constant 0 : index
    %c0_131 = arith.constant 0 : index
    %221 = vector.load %arg10[%c0_130, %c0_131] : memref<1x256xf32, #tpu.memory_space<vmem>>, vector<1x256xf32>
    %cst_132 = arith.constant 0.000000e+00 : f32
    %222 = vector.broadcast %cst_132 : f32 to vector<1x256xf32>
    %223 = arith.select %86, %219, %222 : vector<1x256xi1>, vector<1x256xf32>
    %224 = vector.broadcast %220 : f32 to vector<1x256xf32>
    %225 = arith.mulf %224, %223 : vector<1x256xf32>
    %226 = arith.addf %221, %225 : vector<1x256xf32>
    %c0_133 = arith.constant 0 : index
    %c0_134 = arith.constant 0 : index
    %227 = vector.load %arg10[%c0_133, %c0_134] : memref<1x256xf32, #tpu.memory_space<vmem>>, vector<1x256xf32>
    tpu.vector_store %arg10[%c0_133, %c0_134], %226 {strides = array<i32>} : memref<1x256xf32, #tpu.memory_space<vmem>>, vector<1x256xf32>,
    %c0_135 = arith.constant 0 : index
    %c0_136 = arith.constant 0 : index
    %c19 = arith.constant 19 : index
    %228 = vector.load %arg9[%c0_135, %c0_136, %c19] : memref<2x1x358xf32, #tpu.memory_space<vmem>>, vector<1x1x256xf32>
    %229 = vector.shape_cast %228 : vector<1x1x256xf32> to vector<1x256xf32>
    %c10 = arith.constant 10 : index
    %230 = memref.load %arg6[%c10] : memref<98xf32, #tpu.memory_space<smem>>
    %c0_137 = arith.constant 0 : index
    %c0_138 = arith.constant 0 : index
    %231 = vector.load %arg10[%c0_137, %c0_138] : memref<1x256xf32, #tpu.memory_space<vmem>>, vector<1x256xf32>
    %cst_139 = arith.constant 0.000000e+00 : f32
    %232 = vector.broadcast %cst_139 : f32 to vector<1x256xf32>
    %233 = arith.select %95, %229, %232 : vector<1x256xi1>, vector<1x256xf32>
    %234 = vector.broadcast %230 : f32 to vector<1x256xf32>
    %235 = arith.mulf %234, %233 : vector<1x256xf32>
    %236 = arith.addf %231, %235 : vector<1x256xf32>
    %c0_140 = arith.constant 0 : index
    %c0_141 = arith.constant 0 : index
    %237 = vector.load %arg10[%c0_140, %c0_141] : memref<1x256xf32, #tpu.memory_space<vmem>>, vector<1x256xf32>
    tpu.vector_store %arg10[%c0_140, %c0_141], %236 {strides = array<i32>} : memref<1x256xf32, #tpu.memory_space<vmem>>, vector<1x256xf32>,
    %c0_142 = arith.constant 0 : index
    %c0_143 = arith.constant 0 : index
    %c20 = arith.constant 20 : index
    %238 = vector.load %arg9[%c0_142, %c0_143, %c20] : memref<2x1x358xf32, #tpu.memory_space<vmem>>, vector<1x1x256xf32>
    %239 = vector.shape_cast %238 : vector<1x1x256xf32> to vector<1x256xf32>
    %c11 = arith.constant 11 : index
    %240 = memref.load %arg6[%c11] : memref<98xf32, #tpu.memory_space<smem>>
    %c0_144 = arith.constant 0 : index
    %c0_145 = arith.constant 0 : index
    %241 = vector.load %arg10[%c0_144, %c0_145] : memref<1x256xf32, #tpu.memory_space<vmem>>, vector<1x256xf32>
    %cst_146 = arith.constant 0.000000e+00 : f32
    %242 = vector.broadcast %cst_146 : f32 to vector<1x256xf32>
    %243 = arith.select %104, %239, %242 : vector<1x256xi1>, vector<1x256xf32>
    %244 = vector.broadcast %240 : f32 to vector<1x256xf32>
    %245 = arith.mulf %244, %243 : vector<1x256xf32>
    %246 = arith.addf %241, %245 : vector<1x256xf32>
    %c0_147 = arith.constant 0 : index
    %c0_148 = arith.constant 0 : index
    %247 = vector.load %arg10[%c0_147, %c0_148] : memref<1x256xf32, #tpu.memory_space<vmem>>, vector<1x256xf32>
    tpu.vector_store %arg10[%c0_147, %c0_148], %246 {strides = array<i32>} : memref<1x256xf32, #tpu.memory_space<vmem>>, vector<1x256xf32>,
    %c0_149 = arith.constant 0 : index
    %c0_150 = arith.constant 0 : index
    %c21 = arith.constant 21 : index
    %248 = vector.load %arg9[%c0_149, %c0_150, %c21] : memref<2x1x358xf32, #tpu.memory_space<vmem>>, vector<1x1x256xf32>
    %249 = vector.shape_cast %248 : vector<1x1x256xf32> to vector<1x256xf32>
    %c12 = arith.constant 12 : index
    %250 = memref.load %arg6[%c12] : memref<98xf32, #tpu.memory_space<smem>>
    %c0_151 = arith.constant 0 : index
    %c0_152 = arith.constant 0 : index
    %251 = vector.load %arg10[%c0_151, %c0_152] : memref<1x256xf32, #tpu.memory_space<vmem>>, vector<1x256xf32>
    %cst_153 = arith.constant 0.000000e+00 : f32
    %252 = vector.broadcast %cst_153 : f32 to vector<1x256xf32>
    %253 = arith.select %113, %249, %252 : vector<1x256xi1>, vector<1x256xf32>
    %254 = vector.broadcast %250 : f32 to vector<1x256xf32>
    %255 = arith.mulf %254, %253 : vector<1x256xf32>
    %256 = arith.addf %251, %255 : vector<1x256xf32>
    %c0_154 = arith.constant 0 : index
    %c0_155 = arith.constant 0 : index
    %257 = vector.load %arg10[%c0_154, %c0_155] : memref<1x256xf32, #tpu.memory_space<vmem>>, vector<1x256xf32>
    tpu.vector_store %arg10[%c0_154, %c0_155], %256 {strides = array<i32>} : memref<1x256xf32, #tpu.memory_space<vmem>>, vector<1x256xf32>,
    %c0_156 = arith.constant 0 : index
    %c0_157 = arith.constant 0 : index
    %c22 = arith.constant 22 : index
    %258 = vector.load %arg9[%c0_156, %c0_157, %c22] : memref<2x1x358xf32, #tpu.memory_space<vmem>>, vector<1x1x256xf32>
    %259 = vector.shape_cast %258 : vector<1x1x256xf32> to vector<1x256xf32>
    %c13 = arith.constant 13 : index
    %260 = memref.load %arg6[%c13] : memref<98xf32, #tpu.memory_space<smem>>
    %c0_158 = arith.constant 0 : index
    %c0_159 = arith.constant 0 : index
    %261 = vector.load %arg10[%c0_158, %c0_159] : memref<1x256xf32, #tpu.memory_space<vmem>>, vector<1x256xf32>
    %cst_160 = arith.constant 0.000000e+00 : f32
    %262 = vector.broadcast %cst_160 : f32 to vector<1x256xf32>
    %263 = arith.select %122, %259, %262 : vector<1x256xi1>, vector<1x256xf32>
    %264 = vector.broadcast %260 : f32 to vector<1x256xf32>
    %265 = arith.mulf %264, %263 : vector<1x256xf32>
    %266 = arith.addf %261, %265 : vector<1x256xf32>
    %c0_161 = arith.constant 0 : index
    %c0_162 = arith.constant 0 : index
    %267 = vector.load %arg10[%c0_161, %c0_162] : memref<1x256xf32, #tpu.memory_space<vmem>>, vector<1x256xf32>
    tpu.vector_store %arg10[%c0_161, %c0_162], %266 {strides = array<i32>} : memref<1x256xf32, #tpu.memory_space<vmem>>, vector<1x256xf32>,
    %c0_163 = arith.constant 0 : index
    %c0_164 = arith.constant 0 : index
    %c32 = arith.constant 32 : index
    %268 = vector.load %arg9[%c0_163, %c0_164, %c32] : memref<2x1x358xf32, #tpu.memory_space<vmem>>, vector<1x1x256xf32>
    %269 = vector.shape_cast %268 : vector<1x1x256xf32> to vector<1x256xf32>
    %c14 = arith.constant 14 : index
    %270 = memref.load %arg6[%c14] : memref<98xf32, #tpu.memory_space<smem>>
    %c0_165 = arith.constant 0 : index
    %c0_166 = arith.constant 0 : index
    %271 = vector.load %arg10[%c0_165, %c0_166] : memref<1x256xf32, #tpu.memory_space<vmem>>, vector<1x256xf32>
    %cst_167 = arith.constant 0.000000e+00 : f32
    %272 = vector.broadcast %cst_167 : f32 to vector<1x256xf32>
    %273 = arith.select %68, %269, %272 : vector<1x256xi1>, vector<1x256xf32>
    %274 = vector.broadcast %270 : f32 to vector<1x256xf32>
    %275 = arith.mulf %274, %273 : vector<1x256xf32>
    %276 = arith.addf %271, %275 : vector<1x256xf32>
    %c0_168 = arith.constant 0 : index
    %c0_169 = arith.constant 0 : index
    %277 = vector.load %arg10[%c0_168, %c0_169] : memref<1x256xf32, #tpu.memory_space<vmem>>, vector<1x256xf32>
    tpu.vector_store %arg10[%c0_168, %c0_169], %276 {strides = array<i32>} : memref<1x256xf32, #tpu.memory_space<vmem>>, vector<1x256xf32>,
    %c0_170 = arith.constant 0 : index
    %c0_171 = arith.constant 0 : index
    %c33 = arith.constant 33 : index
    %278 = vector.load %arg9[%c0_170, %c0_171, %c33] : memref<2x1x358xf32, #tpu.memory_space<vmem>>, vector<1x1x256xf32>
    %279 = vector.shape_cast %278 : vector<1x1x256xf32> to vector<1x256xf32>
    %c15 = arith.constant 15 : index
    %280 = memref.load %arg6[%c15] : memref<98xf32, #tpu.memory_space<smem>>
    %c0_172 = arith.constant 0 : index
    %c0_173 = arith.constant 0 : index
    %281 = vector.load %arg10[%c0_172, %c0_173] : memref<1x256xf32, #tpu.memory_space<vmem>>, vector<1x256xf32>
    %cst_174 = arith.constant 0.000000e+00 : f32
    %282 = vector.broadcast %cst_174 : f32 to vector<1x256xf32>
    %283 = arith.select %77, %279, %282 : vector<1x256xi1>, vector<1x256xf32>
    %284 = vector.broadcast %280 : f32 to vector<1x256xf32>
    %285 = arith.mulf %284, %283 : vector<1x256xf32>
    %286 = arith.addf %281, %285 : vector<1x256xf32>
    %c0_175 = arith.constant 0 : index
    %c0_176 = arith.constant 0 : index
    %287 = vector.load %arg10[%c0_175, %c0_176] : memref<1x256xf32, #tpu.memory_space<vmem>>, vector<1x256xf32>
    tpu.vector_store %arg10[%c0_175, %c0_176], %286 {strides = array<i32>} : memref<1x256xf32, #tpu.memory_space<vmem>>, vector<1x256xf32>,
    %c0_177 = arith.constant 0 : index
    %c0_178 = arith.constant 0 : index
    %c34 = arith.constant 34 : index
    %288 = vector.load %arg9[%c0_177, %c0_178, %c34] : memref<2x1x358xf32, #tpu.memory_space<vmem>>, vector<1x1x256xf32>
    %289 = vector.shape_cast %288 : vector<1x1x256xf32> to vector<1x256xf32>
    %c16_179 = arith.constant 16 : index
    %290 = memref.load %arg6[%c16_179] : memref<98xf32, #tpu.memory_space<smem>>
    %c0_180 = arith.constant 0 : index
    %c0_181 = arith.constant 0 : index
    %291 = vector.load %arg10[%c0_180, %c0_181] : memref<1x256xf32, #tpu.memory_space<vmem>>, vector<1x256xf32>
    %cst_182 = arith.constant 0.000000e+00 : f32
    %292 = vector.broadcast %cst_182 : f32 to vector<1x256xf32>
    %293 = arith.select %86, %289, %292 : vector<1x256xi1>, vector<1x256xf32>
    %294 = vector.broadcast %290 : f32 to vector<1x256xf32>
    %295 = arith.mulf %294, %293 : vector<1x256xf32>
    %296 = arith.addf %291, %295 : vector<1x256xf32>
    %c0_183 = arith.constant 0 : index
    %c0_184 = arith.constant 0 : index
    %297 = vector.load %arg10[%c0_183, %c0_184] : memref<1x256xf32, #tpu.memory_space<vmem>>, vector<1x256xf32>
    tpu.vector_store %arg10[%c0_183, %c0_184], %296 {strides = array<i32>} : memref<1x256xf32, #tpu.memory_space<vmem>>, vector<1x256xf32>,
    %c0_185 = arith.constant 0 : index
    %c0_186 = arith.constant 0 : index
    %c35 = arith.constant 35 : index
    %298 = vector.load %arg9[%c0_185, %c0_186, %c35] : memref<2x1x358xf32, #tpu.memory_space<vmem>>, vector<1x1x256xf32>
    %299 = vector.shape_cast %298 : vector<1x1x256xf32> to vector<1x256xf32>
    %c17_187 = arith.constant 17 : index
    %300 = memref.load %arg6[%c17_187] : memref<98xf32, #tpu.memory_space<smem>>
    %c0_188 = arith.constant 0 : index
    %c0_189 = arith.constant 0 : index
    %301 = vector.load %arg10[%c0_188, %c0_189] : memref<1x256xf32, #tpu.memory_space<vmem>>, vector<1x256xf32>
    %cst_190 = arith.constant 0.000000e+00 : f32
    %302 = vector.broadcast %cst_190 : f32 to vector<1x256xf32>
    %303 = arith.select %95, %299, %302 : vector<1x256xi1>, vector<1x256xf32>
    %304 = vector.broadcast %300 : f32 to vector<1x256xf32>
    %305 = arith.mulf %304, %303 : vector<1x256xf32>
    %306 = arith.addf %301, %305 : vector<1x256xf32>
    %c0_191 = arith.constant 0 : index
    %c0_192 = arith.constant 0 : index
    %307 = vector.load %arg10[%c0_191, %c0_192] : memref<1x256xf32, #tpu.memory_space<vmem>>, vector<1x256xf32>
    tpu.vector_store %arg10[%c0_191, %c0_192], %306 {strides = array<i32>} : memref<1x256xf32, #tpu.memory_space<vmem>>, vector<1x256xf32>,
    %c0_193 = arith.constant 0 : index
    %c0_194 = arith.constant 0 : index
    %c36 = arith.constant 36 : index
    %308 = vector.load %arg9[%c0_193, %c0_194, %c36] : memref<2x1x358xf32, #tpu.memory_space<vmem>>, vector<1x1x256xf32>
    %309 = vector.shape_cast %308 : vector<1x1x256xf32> to vector<1x256xf32>
    %c18_195 = arith.constant 18 : index
    %310 = memref.load %arg6[%c18_195] : memref<98xf32, #tpu.memory_space<smem>>
    %c0_196 = arith.constant 0 : index
    %c0_197 = arith.constant 0 : index
    %311 = vector.load %arg10[%c0_196, %c0_197] : memref<1x256xf32, #tpu.memory_space<vmem>>, vector<1x256xf32>
    %cst_198 = arith.constant 0.000000e+00 : f32
    %312 = vector.broadcast %cst_198 : f32 to vector<1x256xf32>
    %313 = arith.select %104, %309, %312 : vector<1x256xi1>, vector<1x256xf32>
    %314 = vector.broadcast %310 : f32 to vector<1x256xf32>
    %315 = arith.mulf %314, %313 : vector<1x256xf32>
    %316 = arith.addf %311, %315 : vector<1x256xf32>
    %c0_199 = arith.constant 0 : index
    %c0_200 = arith.constant 0 : index
    %317 = vector.load %arg10[%c0_199, %c0_200] : memref<1x256xf32, #tpu.memory_space<vmem>>, vector<1x256xf32>
    tpu.vector_store %arg10[%c0_199, %c0_200], %316 {strides = array<i32>} : memref<1x256xf32, #tpu.memory_space<vmem>>, vector<1x256xf32>,
    %c0_201 = arith.constant 0 : index
    %c0_202 = arith.constant 0 : index
    %c37 = arith.constant 37 : index
    %318 = vector.load %arg9[%c0_201, %c0_202, %c37] : memref<2x1x358xf32, #tpu.memory_space<vmem>>, vector<1x1x256xf32>
    %319 = vector.shape_cast %318 : vector<1x1x256xf32> to vector<1x256xf32>
    %c19_203 = arith.constant 19 : index
    %320 = memref.load %arg6[%c19_203] : memref<98xf32, #tpu.memory_space<smem>>
    %c0_204 = arith.constant 0 : index
    %c0_205 = arith.constant 0 : index
    %321 = vector.load %arg10[%c0_204, %c0_205] : memref<1x256xf32, #tpu.memory_space<vmem>>, vector<1x256xf32>
    %cst_206 = arith.constant 0.000000e+00 : f32
    %322 = vector.broadcast %cst_206 : f32 to vector<1x256xf32>
    %323 = arith.select %113, %319, %322 : vector<1x256xi1>, vector<1x256xf32>
    %324 = vector.broadcast %320 : f32 to vector<1x256xf32>
    %325 = arith.mulf %324, %323 : vector<1x256xf32>
    %326 = arith.addf %321, %325 : vector<1x256xf32>
    %c0_207 = arith.constant 0 : index
    %c0_208 = arith.constant 0 : index
    %327 = vector.load %arg10[%c0_207, %c0_208] : memref<1x256xf32, #tpu.memory_space<vmem>>, vector<1x256xf32>
    tpu.vector_store %arg10[%c0_207, %c0_208], %326 {strides = array<i32>} : memref<1x256xf32, #tpu.memory_space<vmem>>, vector<1x256xf32>,
    %c0_209 = arith.constant 0 : index
    %c0_210 = arith.constant 0 : index
    %c38 = arith.constant 38 : index
    %328 = vector.load %arg9[%c0_209, %c0_210, %c38] : memref<2x1x358xf32, #tpu.memory_space<vmem>>, vector<1x1x256xf32>
    %329 = vector.shape_cast %328 : vector<1x1x256xf32> to vector<1x256xf32>
    %c20_211 = arith.constant 20 : index
    %330 = memref.load %arg6[%c20_211] : memref<98xf32, #tpu.memory_space<smem>>
    %c0_212 = arith.constant 0 : index
    %c0_213 = arith.constant 0 : index
    %331 = vector.load %arg10[%c0_212, %c0_213] : memref<1x256xf32, #tpu.memory_space<vmem>>, vector<1x256xf32>
    %cst_214 = arith.constant 0.000000e+00 : f32
    %332 = vector.broadcast %cst_214 : f32 to vector<1x256xf32>
    %333 = arith.select %122, %329, %332 : vector<1x256xi1>, vector<1x256xf32>
    %334 = vector.broadcast %330 : f32 to vector<1x256xf32>
    %335 = arith.mulf %334, %333 : vector<1x256xf32>
    %336 = arith.addf %331, %335 : vector<1x256xf32>
    %c0_215 = arith.constant 0 : index
    %c0_216 = arith.constant 0 : index
    %337 = vector.load %arg10[%c0_215, %c0_216] : memref<1x256xf32, #tpu.memory_space<vmem>>, vector<1x256xf32>
    tpu.vector_store %arg10[%c0_215, %c0_216], %336 {strides = array<i32>} : memref<1x256xf32, #tpu.memory_space<vmem>>, vector<1x256xf32>,
    %c0_217 = arith.constant 0 : index
    %c0_218 = arith.constant 0 : index
    %c48 = arith.constant 48 : index
    %338 = vector.load %arg9[%c0_217, %c0_218, %c48] : memref<2x1x358xf32, #tpu.memory_space<vmem>>, vector<1x1x256xf32>
    %339 = vector.shape_cast %338 : vector<1x1x256xf32> to vector<1x256xf32>
    %c21_219 = arith.constant 21 : index
    %340 = memref.load %arg6[%c21_219] : memref<98xf32, #tpu.memory_space<smem>>
    %c0_220 = arith.constant 0 : index
    %c0_221 = arith.constant 0 : index
    %341 = vector.load %arg10[%c0_220, %c0_221] : memref<1x256xf32, #tpu.memory_space<vmem>>, vector<1x256xf32>
    %cst_222 = arith.constant 0.000000e+00 : f32
    %342 = vector.broadcast %cst_222 : f32 to vector<1x256xf32>
    %343 = arith.select %68, %339, %342 : vector<1x256xi1>, vector<1x256xf32>
    %344 = vector.broadcast %340 : f32 to vector<1x256xf32>
    %345 = arith.mulf %344, %343 : vector<1x256xf32>
    %346 = arith.addf %341, %345 : vector<1x256xf32>
    %c0_223 = arith.constant 0 : index
    %c0_224 = arith.constant 0 : index
    %347 = vector.load %arg10[%c0_223, %c0_224] : memref<1x256xf32, #tpu.memory_space<vmem>>, vector<1x256xf32>
    tpu.vector_store %arg10[%c0_223, %c0_224], %346 {strides = array<i32>} : memref<1x256xf32, #tpu.memory_space<vmem>>, vector<1x256xf32>,
    %c0_225 = arith.constant 0 : index
    %c0_226 = arith.constant 0 : index
    %c49 = arith.constant 49 : index
    %348 = vector.load %arg9[%c0_225, %c0_226, %c49] : memref<2x1x358xf32, #tpu.memory_space<vmem>>, vector<1x1x256xf32>
    %349 = vector.shape_cast %348 : vector<1x1x256xf32> to vector<1x256xf32>
    %c22_227 = arith.constant 22 : index
    %350 = memref.load %arg6[%c22_227] : memref<98xf32, #tpu.memory_space<smem>>
    %c0_228 = arith.constant 0 : index
    %c0_229 = arith.constant 0 : index
    %351 = vector.load %arg10[%c0_228, %c0_229] : memref<1x256xf32, #tpu.memory_space<vmem>>, vector<1x256xf32>
    %cst_230 = arith.constant 0.000000e+00 : f32
    %352 = vector.broadcast %cst_230 : f32 to vector<1x256xf32>
    %353 = arith.select %77, %349, %352 : vector<1x256xi1>, vector<1x256xf32>
    %354 = vector.broadcast %350 : f32 to vector<1x256xf32>
    %355 = arith.mulf %354, %353 : vector<1x256xf32>
    %356 = arith.addf %351, %355 : vector<1x256xf32>
    %c0_231 = arith.constant 0 : index
    %c0_232 = arith.constant 0 : index
    %357 = vector.load %arg10[%c0_231, %c0_232] : memref<1x256xf32, #tpu.memory_space<vmem>>, vector<1x256xf32>
    tpu.vector_store %arg10[%c0_231, %c0_232], %356 {strides = array<i32>} : memref<1x256xf32, #tpu.memory_space<vmem>>, vector<1x256xf32>,
    %c0_233 = arith.constant 0 : index
    %c0_234 = arith.constant 0 : index
    %c50 = arith.constant 50 : index
    %358 = vector.load %arg9[%c0_233, %c0_234, %c50] : memref<2x1x358xf32, #tpu.memory_space<vmem>>, vector<1x1x256xf32>
    %359 = vector.shape_cast %358 : vector<1x1x256xf32> to vector<1x256xf32>
    %c23 = arith.constant 23 : index
    %360 = memref.load %arg6[%c23] : memref<98xf32, #tpu.memory_space<smem>>
    %c0_235 = arith.constant 0 : index
    %c0_236 = arith.constant 0 : index
    %361 = vector.load %arg10[%c0_235, %c0_236] : memref<1x256xf32, #tpu.memory_space<vmem>>, vector<1x256xf32>
    %cst_237 = arith.constant 0.000000e+00 : f32
    %362 = vector.broadcast %cst_237 : f32 to vector<1x256xf32>
    %363 = arith.select %86, %359, %362 : vector<1x256xi1>, vector<1x256xf32>
    %364 = vector.broadcast %360 : f32 to vector<1x256xf32>
    %365 = arith.mulf %364, %363 : vector<1x256xf32>
    %366 = arith.addf %361, %365 : vector<1x256xf32>
    %c0_238 = arith.constant 0 : index
    %c0_239 = arith.constant 0 : index
    %367 = vector.load %arg10[%c0_238, %c0_239] : memref<1x256xf32, #tpu.memory_space<vmem>>, vector<1x256xf32>
    tpu.vector_store %arg10[%c0_238, %c0_239], %366 {strides = array<i32>} : memref<1x256xf32, #tpu.memory_space<vmem>>, vector<1x256xf32>,
    %c0_240 = arith.constant 0 : index
    %c0_241 = arith.constant 0 : index
    %c51_242 = arith.constant 51 : index
    %368 = vector.load %arg9[%c0_240, %c0_241, %c51_242] : memref<2x1x358xf32, #tpu.memory_space<vmem>>, vector<1x1x256xf32>
    %369 = vector.shape_cast %368 : vector<1x1x256xf32> to vector<1x256xf32>
    %c24 = arith.constant 24 : index
    %370 = memref.load %arg6[%c24] : memref<98xf32, #tpu.memory_space<smem>>
    %c0_243 = arith.constant 0 : index
    %c0_244 = arith.constant 0 : index
    %371 = vector.load %arg10[%c0_243, %c0_244] : memref<1x256xf32, #tpu.memory_space<vmem>>, vector<1x256xf32>
    %cst_245 = arith.constant 0.000000e+00 : f32
    %372 = vector.broadcast %cst_245 : f32 to vector<1x256xf32>
    %373 = arith.select %95, %369, %372 : vector<1x256xi1>, vector<1x256xf32>
    %374 = vector.broadcast %370 : f32 to vector<1x256xf32>
    %375 = arith.mulf %374, %373 : vector<1x256xf32>
    %376 = arith.addf %371, %375 : vector<1x256xf32>
    %c0_246 = arith.constant 0 : index
    %c0_247 = arith.constant 0 : index
    %377 = vector.load %arg10[%c0_246, %c0_247] : memref<1x256xf32, #tpu.memory_space<vmem>>, vector<1x256xf32>
    tpu.vector_store %arg10[%c0_246, %c0_247], %376 {strides = array<i32>} : memref<1x256xf32, #tpu.memory_space<vmem>>, vector<1x256xf32>,
    %c0_248 = arith.constant 0 : index
    %c0_249 = arith.constant 0 : index
    %c52 = arith.constant 52 : index
    %378 = vector.load %arg9[%c0_248, %c0_249, %c52] : memref<2x1x358xf32, #tpu.memory_space<vmem>>, vector<1x1x256xf32>
    %379 = vector.shape_cast %378 : vector<1x1x256xf32> to vector<1x256xf32>
    %c25 = arith.constant 25 : index
    %380 = memref.load %arg6[%c25] : memref<98xf32, #tpu.memory_space<smem>>
    %c0_250 = arith.constant 0 : index
    %c0_251 = arith.constant 0 : index
    %381 = vector.load %arg10[%c0_250, %c0_251] : memref<1x256xf32, #tpu.memory_space<vmem>>, vector<1x256xf32>
    %cst_252 = arith.constant 0.000000e+00 : f32
    %382 = vector.broadcast %cst_252 : f32 to vector<1x256xf32>
    %383 = arith.select %104, %379, %382 : vector<1x256xi1>, vector<1x256xf32>
    %384 = vector.broadcast %380 : f32 to vector<1x256xf32>
    %385 = arith.mulf %384, %383 : vector<1x256xf32>
    %386 = arith.addf %381, %385 : vector<1x256xf32>
    %c0_253 = arith.constant 0 : index
    %c0_254 = arith.constant 0 : index
    %387 = vector.load %arg10[%c0_253, %c0_254] : memref<1x256xf32, #tpu.memory_space<vmem>>, vector<1x256xf32>
    tpu.vector_store %arg10[%c0_253, %c0_254], %386 {strides = array<i32>} : memref<1x256xf32, #tpu.memory_space<vmem>>, vector<1x256xf32>,
    %c0_255 = arith.constant 0 : index
    %c0_256 = arith.constant 0 : index
    %c53 = arith.constant 53 : index
    %388 = vector.load %arg9[%c0_255, %c0_256, %c53] : memref<2x1x358xf32, #tpu.memory_space<vmem>>, vector<1x1x256xf32>
    %389 = vector.shape_cast %388 : vector<1x1x256xf32> to vector<1x256xf32>
    %c26 = arith.constant 26 : index
    %390 = memref.load %arg6[%c26] : memref<98xf32, #tpu.memory_space<smem>>
    %c0_257 = arith.constant 0 : index
    %c0_258 = arith.constant 0 : index
    %391 = vector.load %arg10[%c0_257, %c0_258] : memref<1x256xf32, #tpu.memory_space<vmem>>, vector<1x256xf32>
    %cst_259 = arith.constant 0.000000e+00 : f32
    %392 = vector.broadcast %cst_259 : f32 to vector<1x256xf32>
    %393 = arith.select %113, %389, %392 : vector<1x256xi1>, vector<1x256xf32>
    %394 = vector.broadcast %390 : f32 to vector<1x256xf32>
    %395 = arith.mulf %394, %393 : vector<1x256xf32>
    %396 = arith.addf %391, %395 : vector<1x256xf32>
    %c0_260 = arith.constant 0 : index
    %c0_261 = arith.constant 0 : index
    %397 = vector.load %arg10[%c0_260, %c0_261] : memref<1x256xf32, #tpu.memory_space<vmem>>, vector<1x256xf32>
    tpu.vector_store %arg10[%c0_260, %c0_261], %396 {strides = array<i32>} : memref<1x256xf32, #tpu.memory_space<vmem>>, vector<1x256xf32>,
    %c0_262 = arith.constant 0 : index
    %c0_263 = arith.constant 0 : index
    %c54 = arith.constant 54 : index
    %398 = vector.load %arg9[%c0_262, %c0_263, %c54] : memref<2x1x358xf32, #tpu.memory_space<vmem>>, vector<1x1x256xf32>
    %399 = vector.shape_cast %398 : vector<1x1x256xf32> to vector<1x256xf32>
    %c27 = arith.constant 27 : index
    %400 = memref.load %arg6[%c27] : memref<98xf32, #tpu.memory_space<smem>>
    %c0_264 = arith.constant 0 : index
    %c0_265 = arith.constant 0 : index
    %401 = vector.load %arg10[%c0_264, %c0_265] : memref<1x256xf32, #tpu.memory_space<vmem>>, vector<1x256xf32>
    %cst_266 = arith.constant 0.000000e+00 : f32
    %402 = vector.broadcast %cst_266 : f32 to vector<1x256xf32>
    %403 = arith.select %122, %399, %402 : vector<1x256xi1>, vector<1x256xf32>
    %404 = vector.broadcast %400 : f32 to vector<1x256xf32>
    %405 = arith.mulf %404, %403 : vector<1x256xf32>
    %406 = arith.addf %401, %405 : vector<1x256xf32>
    %c0_267 = arith.constant 0 : index
    %c0_268 = arith.constant 0 : index
    %407 = vector.load %arg10[%c0_267, %c0_268] : memref<1x256xf32, #tpu.memory_space<vmem>>, vector<1x256xf32>
    tpu.vector_store %arg10[%c0_267, %c0_268], %406 {strides = array<i32>} : memref<1x256xf32, #tpu.memory_space<vmem>>, vector<1x256xf32>,
    %c0_269 = arith.constant 0 : index
    %c0_270 = arith.constant 0 : index
    %c64 = arith.constant 64 : index
    %408 = vector.load %arg9[%c0_269, %c0_270, %c64] : memref<2x1x358xf32, #tpu.memory_space<vmem>>, vector<1x1x256xf32>
    %409 = vector.shape_cast %408 : vector<1x1x256xf32> to vector<1x256xf32>
    %c28 = arith.constant 28 : index
    %410 = memref.load %arg6[%c28] : memref<98xf32, #tpu.memory_space<smem>>
    %c0_271 = arith.constant 0 : index
    %c0_272 = arith.constant 0 : index
    %411 = vector.load %arg10[%c0_271, %c0_272] : memref<1x256xf32, #tpu.memory_space<vmem>>, vector<1x256xf32>
    %cst_273 = arith.constant 0.000000e+00 : f32
    %412 = vector.broadcast %cst_273 : f32 to vector<1x256xf32>
    %413 = arith.select %68, %409, %412 : vector<1x256xi1>, vector<1x256xf32>
    %414 = vector.broadcast %410 : f32 to vector<1x256xf32>
    %415 = arith.mulf %414, %413 : vector<1x256xf32>
    %416 = arith.addf %411, %415 : vector<1x256xf32>
    %c0_274 = arith.constant 0 : index
    %c0_275 = arith.constant 0 : index
    %417 = vector.load %arg10[%c0_274, %c0_275] : memref<1x256xf32, #tpu.memory_space<vmem>>, vector<1x256xf32>
    tpu.vector_store %arg10[%c0_274, %c0_275], %416 {strides = array<i32>} : memref<1x256xf32, #tpu.memory_space<vmem>>, vector<1x256xf32>,
    %c0_276 = arith.constant 0 : index
    %c0_277 = arith.constant 0 : index
    %c65 = arith.constant 65 : index
    %418 = vector.load %arg9[%c0_276, %c0_277, %c65] : memref<2x1x358xf32, #tpu.memory_space<vmem>>, vector<1x1x256xf32>
    %419 = vector.shape_cast %418 : vector<1x1x256xf32> to vector<1x256xf32>
    %c29 = arith.constant 29 : index
    %420 = memref.load %arg6[%c29] : memref<98xf32, #tpu.memory_space<smem>>
    %c0_278 = arith.constant 0 : index
    %c0_279 = arith.constant 0 : index
    %421 = vector.load %arg10[%c0_278, %c0_279] : memref<1x256xf32, #tpu.memory_space<vmem>>, vector<1x256xf32>
    %cst_280 = arith.constant 0.000000e+00 : f32
    %422 = vector.broadcast %cst_280 : f32 to vector<1x256xf32>
    %423 = arith.select %77, %419, %422 : vector<1x256xi1>, vector<1x256xf32>
    %424 = vector.broadcast %420 : f32 to vector<1x256xf32>
    %425 = arith.mulf %424, %423 : vector<1x256xf32>
    %426 = arith.addf %421, %425 : vector<1x256xf32>
    %c0_281 = arith.constant 0 : index
    %c0_282 = arith.constant 0 : index
    %427 = vector.load %arg10[%c0_281, %c0_282] : memref<1x256xf32, #tpu.memory_space<vmem>>, vector<1x256xf32>
    tpu.vector_store %arg10[%c0_281, %c0_282], %426 {strides = array<i32>} : memref<1x256xf32, #tpu.memory_space<vmem>>, vector<1x256xf32>,
    %c0_283 = arith.constant 0 : index
    %c0_284 = arith.constant 0 : index
    %c66 = arith.constant 66 : index
    %428 = vector.load %arg9[%c0_283, %c0_284, %c66] : memref<2x1x358xf32, #tpu.memory_space<vmem>>, vector<1x1x256xf32>
    %429 = vector.shape_cast %428 : vector<1x1x256xf32> to vector<1x256xf32>
    %c30 = arith.constant 30 : index
    %430 = memref.load %arg6[%c30] : memref<98xf32, #tpu.memory_space<smem>>
    %c0_285 = arith.constant 0 : index
    %c0_286 = arith.constant 0 : index
    %431 = vector.load %arg10[%c0_285, %c0_286] : memref<1x256xf32, #tpu.memory_space<vmem>>, vector<1x256xf32>
    %cst_287 = arith.constant 0.000000e+00 : f32
    %432 = vector.broadcast %cst_287 : f32 to vector<1x256xf32>
    %433 = arith.select %86, %429, %432 : vector<1x256xi1>, vector<1x256xf32>
    %434 = vector.broadcast %430 : f32 to vector<1x256xf32>
    %435 = arith.mulf %434, %433 : vector<1x256xf32>
    %436 = arith.addf %431, %435 : vector<1x256xf32>
    %c0_288 = arith.constant 0 : index
    %c0_289 = arith.constant 0 : index
    %437 = vector.load %arg10[%c0_288, %c0_289] : memref<1x256xf32, #tpu.memory_space<vmem>>, vector<1x256xf32>
    tpu.vector_store %arg10[%c0_288, %c0_289], %436 {strides = array<i32>} : memref<1x256xf32, #tpu.memory_space<vmem>>, vector<1x256xf32>,
    %c0_290 = arith.constant 0 : index
    %c0_291 = arith.constant 0 : index
    %c67 = arith.constant 67 : index
    %438 = vector.load %arg9[%c0_290, %c0_291, %c67] : memref<2x1x358xf32, #tpu.memory_space<vmem>>, vector<1x1x256xf32>
    %439 = vector.shape_cast %438 : vector<1x1x256xf32> to vector<1x256xf32>
    %c31 = arith.constant 31 : index
    %440 = memref.load %arg6[%c31] : memref<98xf32, #tpu.memory_space<smem>>
    %c0_292 = arith.constant 0 : index
    %c0_293 = arith.constant 0 : index
    %441 = vector.load %arg10[%c0_292, %c0_293] : memref<1x256xf32, #tpu.memory_space<vmem>>, vector<1x256xf32>
    %cst_294 = arith.constant 0.000000e+00 : f32
    %442 = vector.broadcast %cst_294 : f32 to vector<1x256xf32>
    %443 = arith.select %95, %439, %442 : vector<1x256xi1>, vector<1x256xf32>
    %444 = vector.broadcast %440 : f32 to vector<1x256xf32>
    %445 = arith.mulf %444, %443 : vector<1x256xf32>
    %446 = arith.addf %441, %445 : vector<1x256xf32>
    %c0_295 = arith.constant 0 : index
    %c0_296 = arith.constant 0 : index
    %447 = vector.load %arg10[%c0_295, %c0_296] : memref<1x256xf32, #tpu.memory_space<vmem>>, vector<1x256xf32>
    tpu.vector_store %arg10[%c0_295, %c0_296], %446 {strides = array<i32>} : memref<1x256xf32, #tpu.memory_space<vmem>>, vector<1x256xf32>,
    %c0_297 = arith.constant 0 : index
    %c0_298 = arith.constant 0 : index
    %c68 = arith.constant 68 : index
    %448 = vector.load %arg9[%c0_297, %c0_298, %c68] : memref<2x1x358xf32, #tpu.memory_space<vmem>>, vector<1x1x256xf32>
    %449 = vector.shape_cast %448 : vector<1x1x256xf32> to vector<1x256xf32>
    %c32_299 = arith.constant 32 : index
    %450 = memref.load %arg6[%c32_299] : memref<98xf32, #tpu.memory_space<smem>>
    %c0_300 = arith.constant 0 : index
    %c0_301 = arith.constant 0 : index
    %451 = vector.load %arg10[%c0_300, %c0_301] : memref<1x256xf32, #tpu.memory_space<vmem>>, vector<1x256xf32>
    %cst_302 = arith.constant 0.000000e+00 : f32
    %452 = vector.broadcast %cst_302 : f32 to vector<1x256xf32>
    %453 = arith.select %104, %449, %452 : vector<1x256xi1>, vector<1x256xf32>
    %454 = vector.broadcast %450 : f32 to vector<1x256xf32>
    %455 = arith.mulf %454, %453 : vector<1x256xf32>
    %456 = arith.addf %451, %455 : vector<1x256xf32>
    %c0_303 = arith.constant 0 : index
    %c0_304 = arith.constant 0 : index
    %457 = vector.load %arg10[%c0_303, %c0_304] : memref<1x256xf32, #tpu.memory_space<vmem>>, vector<1x256xf32>
    tpu.vector_store %arg10[%c0_303, %c0_304], %456 {strides = array<i32>} : memref<1x256xf32, #tpu.memory_space<vmem>>, vector<1x256xf32>,
    %c0_305 = arith.constant 0 : index
    %c0_306 = arith.constant 0 : index
    %c69 = arith.constant 69 : index
    %458 = vector.load %arg9[%c0_305, %c0_306, %c69] : memref<2x1x358xf32, #tpu.memory_space<vmem>>, vector<1x1x256xf32>
    %459 = vector.shape_cast %458 : vector<1x1x256xf32> to vector<1x256xf32>
    %c33_307 = arith.constant 33 : index
    %460 = memref.load %arg6[%c33_307] : memref<98xf32, #tpu.memory_space<smem>>
    %c0_308 = arith.constant 0 : index
    %c0_309 = arith.constant 0 : index
    %461 = vector.load %arg10[%c0_308, %c0_309] : memref<1x256xf32, #tpu.memory_space<vmem>>, vector<1x256xf32>
    %cst_310 = arith.constant 0.000000e+00 : f32
    %462 = vector.broadcast %cst_310 : f32 to vector<1x256xf32>
    %463 = arith.select %113, %459, %462 : vector<1x256xi1>, vector<1x256xf32>
    %464 = vector.broadcast %460 : f32 to vector<1x256xf32>
    %465 = arith.mulf %464, %463 : vector<1x256xf32>
    %466 = arith.addf %461, %465 : vector<1x256xf32>
    %c0_311 = arith.constant 0 : index
    %c0_312 = arith.constant 0 : index
    %467 = vector.load %arg10[%c0_311, %c0_312] : memref<1x256xf32, #tpu.memory_space<vmem>>, vector<1x256xf32>
    tpu.vector_store %arg10[%c0_311, %c0_312], %466 {strides = array<i32>} : memref<1x256xf32, #tpu.memory_space<vmem>>, vector<1x256xf32>,
    %c0_313 = arith.constant 0 : index
    %c0_314 = arith.constant 0 : index
    %c70 = arith.constant 70 : index
    %468 = vector.load %arg9[%c0_313, %c0_314, %c70] : memref<2x1x358xf32, #tpu.memory_space<vmem>>, vector<1x1x256xf32>
    %469 = vector.shape_cast %468 : vector<1x1x256xf32> to vector<1x256xf32>
    %c34_315 = arith.constant 34 : index
    %470 = memref.load %arg6[%c34_315] : memref<98xf32, #tpu.memory_space<smem>>
    %c0_316 = arith.constant 0 : index
    %c0_317 = arith.constant 0 : index
    %471 = vector.load %arg10[%c0_316, %c0_317] : memref<1x256xf32, #tpu.memory_space<vmem>>, vector<1x256xf32>
    %cst_318 = arith.constant 0.000000e+00 : f32
    %472 = vector.broadcast %cst_318 : f32 to vector<1x256xf32>
    %473 = arith.select %122, %469, %472 : vector<1x256xi1>, vector<1x256xf32>
    %474 = vector.broadcast %470 : f32 to vector<1x256xf32>
    %475 = arith.mulf %474, %473 : vector<1x256xf32>
    %476 = arith.addf %471, %475 : vector<1x256xf32>
    %c0_319 = arith.constant 0 : index
    %c0_320 = arith.constant 0 : index
    %477 = vector.load %arg10[%c0_319, %c0_320] : memref<1x256xf32, #tpu.memory_space<vmem>>, vector<1x256xf32>
    tpu.vector_store %arg10[%c0_319, %c0_320], %476 {strides = array<i32>} : memref<1x256xf32, #tpu.memory_space<vmem>>, vector<1x256xf32>,
    %c0_321 = arith.constant 0 : index
    %c0_322 = arith.constant 0 : index
    %c80 = arith.constant 80 : index
    %478 = vector.load %arg9[%c0_321, %c0_322, %c80] : memref<2x1x358xf32, #tpu.memory_space<vmem>>, vector<1x1x256xf32>
    %479 = vector.shape_cast %478 : vector<1x1x256xf32> to vector<1x256xf32>
    %c35_323 = arith.constant 35 : index
    %480 = memref.load %arg6[%c35_323] : memref<98xf32, #tpu.memory_space<smem>>
    %c0_324 = arith.constant 0 : index
    %c0_325 = arith.constant 0 : index
    %481 = vector.load %arg10[%c0_324, %c0_325] : memref<1x256xf32, #tpu.memory_space<vmem>>, vector<1x256xf32>
    %cst_326 = arith.constant 0.000000e+00 : f32
    %482 = vector.broadcast %cst_326 : f32 to vector<1x256xf32>
    %483 = arith.select %68, %479, %482 : vector<1x256xi1>, vector<1x256xf32>
    %484 = vector.broadcast %480 : f32 to vector<1x256xf32>
    %485 = arith.mulf %484, %483 : vector<1x256xf32>
    %486 = arith.addf %481, %485 : vector<1x256xf32>
    %c0_327 = arith.constant 0 : index
    %c0_328 = arith.constant 0 : index
    %487 = vector.load %arg10[%c0_327, %c0_328] : memref<1x256xf32, #tpu.memory_space<vmem>>, vector<1x256xf32>
    tpu.vector_store %arg10[%c0_327, %c0_328], %486 {strides = array<i32>} : memref<1x256xf32, #tpu.memory_space<vmem>>, vector<1x256xf32>,
    %c0_329 = arith.constant 0 : index
    %c0_330 = arith.constant 0 : index
    %c81 = arith.constant 81 : index
    %488 = vector.load %arg9[%c0_329, %c0_330, %c81] : memref<2x1x358xf32, #tpu.memory_space<vmem>>, vector<1x1x256xf32>
    %489 = vector.shape_cast %488 : vector<1x1x256xf32> to vector<1x256xf32>
    %c36_331 = arith.constant 36 : index
    %490 = memref.load %arg6[%c36_331] : memref<98xf32, #tpu.memory_space<smem>>
    %c0_332 = arith.constant 0 : index
    %c0_333 = arith.constant 0 : index
    %491 = vector.load %arg10[%c0_332, %c0_333] : memref<1x256xf32, #tpu.memory_space<vmem>>, vector<1x256xf32>
    %cst_334 = arith.constant 0.000000e+00 : f32
    %492 = vector.broadcast %cst_334 : f32 to vector<1x256xf32>
    %493 = arith.select %77, %489, %492 : vector<1x256xi1>, vector<1x256xf32>
    %494 = vector.broadcast %490 : f32 to vector<1x256xf32>
    %495 = arith.mulf %494, %493 : vector<1x256xf32>
    %496 = arith.addf %491, %495 : vector<1x256xf32>
    %c0_335 = arith.constant 0 : index
    %c0_336 = arith.constant 0 : index
    %497 = vector.load %arg10[%c0_335, %c0_336] : memref<1x256xf32, #tpu.memory_space<vmem>>, vector<1x256xf32>
    tpu.vector_store %arg10[%c0_335, %c0_336], %496 {strides = array<i32>} : memref<1x256xf32, #tpu.memory_space<vmem>>, vector<1x256xf32>,
    %c0_337 = arith.constant 0 : index
    %c0_338 = arith.constant 0 : index
    %c82 = arith.constant 82 : index
    %498 = vector.load %arg9[%c0_337, %c0_338, %c82] : memref<2x1x358xf32, #tpu.memory_space<vmem>>, vector<1x1x256xf32>
    %499 = vector.shape_cast %498 : vector<1x1x256xf32> to vector<1x256xf32>
    %c37_339 = arith.constant 37 : index
    %500 = memref.load %arg6[%c37_339] : memref<98xf32, #tpu.memory_space<smem>>
    %c0_340 = arith.constant 0 : index
    %c0_341 = arith.constant 0 : index
    %501 = vector.load %arg10[%c0_340, %c0_341] : memref<1x256xf32, #tpu.memory_space<vmem>>, vector<1x256xf32>
    %cst_342 = arith.constant 0.000000e+00 : f32
    %502 = vector.broadcast %cst_342 : f32 to vector<1x256xf32>
    %503 = arith.select %86, %499, %502 : vector<1x256xi1>, vector<1x256xf32>
    %504 = vector.broadcast %500 : f32 to vector<1x256xf32>
    %505 = arith.mulf %504, %503 : vector<1x256xf32>
    %506 = arith.addf %501, %505 : vector<1x256xf32>
    %c0_343 = arith.constant 0 : index
    %c0_344 = arith.constant 0 : index
    %507 = vector.load %arg10[%c0_343, %c0_344] : memref<1x256xf32, #tpu.memory_space<vmem>>, vector<1x256xf32>
    tpu.vector_store %arg10[%c0_343, %c0_344], %506 {strides = array<i32>} : memref<1x256xf32, #tpu.memory_space<vmem>>, vector<1x256xf32>,
    %c0_345 = arith.constant 0 : index
    %c0_346 = arith.constant 0 : index
    %c83 = arith.constant 83 : index
    %508 = vector.load %arg9[%c0_345, %c0_346, %c83] : memref<2x1x358xf32, #tpu.memory_space<vmem>>, vector<1x1x256xf32>
    %509 = vector.shape_cast %508 : vector<1x1x256xf32> to vector<1x256xf32>
    %c38_347 = arith.constant 38 : index
    %510 = memref.load %arg6[%c38_347] : memref<98xf32, #tpu.memory_space<smem>>
    %c0_348 = arith.constant 0 : index
    %c0_349 = arith.constant 0 : index
    %511 = vector.load %arg10[%c0_348, %c0_349] : memref<1x256xf32, #tpu.memory_space<vmem>>, vector<1x256xf32>
    %cst_350 = arith.constant 0.000000e+00 : f32
    %512 = vector.broadcast %cst_350 : f32 to vector<1x256xf32>
    %513 = arith.select %95, %509, %512 : vector<1x256xi1>, vector<1x256xf32>
    %514 = vector.broadcast %510 : f32 to vector<1x256xf32>
    %515 = arith.mulf %514, %513 : vector<1x256xf32>
    %516 = arith.addf %511, %515 : vector<1x256xf32>
    %c0_351 = arith.constant 0 : index
    %c0_352 = arith.constant 0 : index
    %517 = vector.load %arg10[%c0_351, %c0_352] : memref<1x256xf32, #tpu.memory_space<vmem>>, vector<1x256xf32>
    tpu.vector_store %arg10[%c0_351, %c0_352], %516 {strides = array<i32>} : memref<1x256xf32, #tpu.memory_space<vmem>>, vector<1x256xf32>,
    %c0_353 = arith.constant 0 : index
    %c0_354 = arith.constant 0 : index
    %c84 = arith.constant 84 : index
    %518 = vector.load %arg9[%c0_353, %c0_354, %c84] : memref<2x1x358xf32, #tpu.memory_space<vmem>>, vector<1x1x256xf32>
    %519 = vector.shape_cast %518 : vector<1x1x256xf32> to vector<1x256xf32>
    %c39 = arith.constant 39 : index
    %520 = memref.load %arg6[%c39] : memref<98xf32, #tpu.memory_space<smem>>
    %c0_355 = arith.constant 0 : index
    %c0_356 = arith.constant 0 : index
    %521 = vector.load %arg10[%c0_355, %c0_356] : memref<1x256xf32, #tpu.memory_space<vmem>>, vector<1x256xf32>
    %cst_357 = arith.constant 0.000000e+00 : f32
    %522 = vector.broadcast %cst_357 : f32 to vector<1x256xf32>
    %523 = arith.select %104, %519, %522 : vector<1x256xi1>, vector<1x256xf32>
    %524 = vector.broadcast %520 : f32 to vector<1x256xf32>
    %525 = arith.mulf %524, %523 : vector<1x256xf32>
    %526 = arith.addf %521, %525 : vector<1x256xf32>
    %c0_358 = arith.constant 0 : index
    %c0_359 = arith.constant 0 : index
    %527 = vector.load %arg10[%c0_358, %c0_359] : memref<1x256xf32, #tpu.memory_space<vmem>>, vector<1x256xf32>
    tpu.vector_store %arg10[%c0_358, %c0_359], %526 {strides = array<i32>} : memref<1x256xf32, #tpu.memory_space<vmem>>, vector<1x256xf32>,
    %c0_360 = arith.constant 0 : index
    %c0_361 = arith.constant 0 : index
    %c85 = arith.constant 85 : index
    %528 = vector.load %arg9[%c0_360, %c0_361, %c85] : memref<2x1x358xf32, #tpu.memory_space<vmem>>, vector<1x1x256xf32>
    %529 = vector.shape_cast %528 : vector<1x1x256xf32> to vector<1x256xf32>
    %c40 = arith.constant 40 : index
    %530 = memref.load %arg6[%c40] : memref<98xf32, #tpu.memory_space<smem>>
    %c0_362 = arith.constant 0 : index
    %c0_363 = arith.constant 0 : index
    %531 = vector.load %arg10[%c0_362, %c0_363] : memref<1x256xf32, #tpu.memory_space<vmem>>, vector<1x256xf32>
    %cst_364 = arith.constant 0.000000e+00 : f32
    %532 = vector.broadcast %cst_364 : f32 to vector<1x256xf32>
    %533 = arith.select %113, %529, %532 : vector<1x256xi1>, vector<1x256xf32>
    %534 = vector.broadcast %530 : f32 to vector<1x256xf32>
    %535 = arith.mulf %534, %533 : vector<1x256xf32>
    %536 = arith.addf %531, %535 : vector<1x256xf32>
    %c0_365 = arith.constant 0 : index
    %c0_366 = arith.constant 0 : index
    %537 = vector.load %arg10[%c0_365, %c0_366] : memref<1x256xf32, #tpu.memory_space<vmem>>, vector<1x256xf32>
    tpu.vector_store %arg10[%c0_365, %c0_366], %536 {strides = array<i32>} : memref<1x256xf32, #tpu.memory_space<vmem>>, vector<1x256xf32>,
    %c0_367 = arith.constant 0 : index
    %c0_368 = arith.constant 0 : index
    %c86 = arith.constant 86 : index
    %538 = vector.load %arg9[%c0_367, %c0_368, %c86] : memref<2x1x358xf32, #tpu.memory_space<vmem>>, vector<1x1x256xf32>
    %539 = vector.shape_cast %538 : vector<1x1x256xf32> to vector<1x256xf32>
    %c41 = arith.constant 41 : index
    %540 = memref.load %arg6[%c41] : memref<98xf32, #tpu.memory_space<smem>>
    %c0_369 = arith.constant 0 : index
    %c0_370 = arith.constant 0 : index
    %541 = vector.load %arg10[%c0_369, %c0_370] : memref<1x256xf32, #tpu.memory_space<vmem>>, vector<1x256xf32>
    %cst_371 = arith.constant 0.000000e+00 : f32
    %542 = vector.broadcast %cst_371 : f32 to vector<1x256xf32>
    %543 = arith.select %122, %539, %542 : vector<1x256xi1>, vector<1x256xf32>
    %544 = vector.broadcast %540 : f32 to vector<1x256xf32>
    %545 = arith.mulf %544, %543 : vector<1x256xf32>
    %546 = arith.addf %541, %545 : vector<1x256xf32>
    %c0_372 = arith.constant 0 : index
    %c0_373 = arith.constant 0 : index
    %547 = vector.load %arg10[%c0_372, %c0_373] : memref<1x256xf32, #tpu.memory_space<vmem>>, vector<1x256xf32>
    tpu.vector_store %arg10[%c0_372, %c0_373], %546 {strides = array<i32>} : memref<1x256xf32, #tpu.memory_space<vmem>>, vector<1x256xf32>,
    %c0_374 = arith.constant 0 : index
    %c0_375 = arith.constant 0 : index
    %c96 = arith.constant 96 : index
    %548 = vector.load %arg9[%c0_374, %c0_375, %c96] : memref<2x1x358xf32, #tpu.memory_space<vmem>>, vector<1x1x256xf32>
    %549 = vector.shape_cast %548 : vector<1x1x256xf32> to vector<1x256xf32>
    %c42 = arith.constant 42 : index
    %550 = memref.load %arg6[%c42] : memref<98xf32, #tpu.memory_space<smem>>
    %c0_376 = arith.constant 0 : index
    %c0_377 = arith.constant 0 : index
    %551 = vector.load %arg10[%c0_376, %c0_377] : memref<1x256xf32, #tpu.memory_space<vmem>>, vector<1x256xf32>
    %cst_378 = arith.constant 0.000000e+00 : f32
    %552 = vector.broadcast %cst_378 : f32 to vector<1x256xf32>
    %553 = arith.select %68, %549, %552 : vector<1x256xi1>, vector<1x256xf32>
    %554 = vector.broadcast %550 : f32 to vector<1x256xf32>
    %555 = arith.mulf %554, %553 : vector<1x256xf32>
    %556 = arith.addf %551, %555 : vector<1x256xf32>
    %c0_379 = arith.constant 0 : index
    %c0_380 = arith.constant 0 : index
    %557 = vector.load %arg10[%c0_379, %c0_380] : memref<1x256xf32, #tpu.memory_space<vmem>>, vector<1x256xf32>
    tpu.vector_store %arg10[%c0_379, %c0_380], %556 {strides = array<i32>} : memref<1x256xf32, #tpu.memory_space<vmem>>, vector<1x256xf32>,
    %c0_381 = arith.constant 0 : index
    %c0_382 = arith.constant 0 : index
    %c97 = arith.constant 97 : index
    %558 = vector.load %arg9[%c0_381, %c0_382, %c97] : memref<2x1x358xf32, #tpu.memory_space<vmem>>, vector<1x1x256xf32>
    %559 = vector.shape_cast %558 : vector<1x1x256xf32> to vector<1x256xf32>
    %c43 = arith.constant 43 : index
    %560 = memref.load %arg6[%c43] : memref<98xf32, #tpu.memory_space<smem>>
    %c0_383 = arith.constant 0 : index
    %c0_384 = arith.constant 0 : index
    %561 = vector.load %arg10[%c0_383, %c0_384] : memref<1x256xf32, #tpu.memory_space<vmem>>, vector<1x256xf32>
    %cst_385 = arith.constant 0.000000e+00 : f32
    %562 = vector.broadcast %cst_385 : f32 to vector<1x256xf32>
    %563 = arith.select %77, %559, %562 : vector<1x256xi1>, vector<1x256xf32>
    %564 = vector.broadcast %560 : f32 to vector<1x256xf32>
    %565 = arith.mulf %564, %563 : vector<1x256xf32>
    %566 = arith.addf %561, %565 : vector<1x256xf32>
    %c0_386 = arith.constant 0 : index
    %c0_387 = arith.constant 0 : index
    %567 = vector.load %arg10[%c0_386, %c0_387] : memref<1x256xf32, #tpu.memory_space<vmem>>, vector<1x256xf32>
    tpu.vector_store %arg10[%c0_386, %c0_387], %566 {strides = array<i32>} : memref<1x256xf32, #tpu.memory_space<vmem>>, vector<1x256xf32>,
    %c0_388 = arith.constant 0 : index
    %c0_389 = arith.constant 0 : index
    %c98 = arith.constant 98 : index
    %568 = vector.load %arg9[%c0_388, %c0_389, %c98] : memref<2x1x358xf32, #tpu.memory_space<vmem>>, vector<1x1x256xf32>
    %569 = vector.shape_cast %568 : vector<1x1x256xf32> to vector<1x256xf32>
    %c44 = arith.constant 44 : index
    %570 = memref.load %arg6[%c44] : memref<98xf32, #tpu.memory_space<smem>>
    %c0_390 = arith.constant 0 : index
    %c0_391 = arith.constant 0 : index
    %571 = vector.load %arg10[%c0_390, %c0_391] : memref<1x256xf32, #tpu.memory_space<vmem>>, vector<1x256xf32>
    %cst_392 = arith.constant 0.000000e+00 : f32
    %572 = vector.broadcast %cst_392 : f32 to vector<1x256xf32>
    %573 = arith.select %86, %569, %572 : vector<1x256xi1>, vector<1x256xf32>
    %574 = vector.broadcast %570 : f32 to vector<1x256xf32>
    %575 = arith.mulf %574, %573 : vector<1x256xf32>
    %576 = arith.addf %571, %575 : vector<1x256xf32>
    %c0_393 = arith.constant 0 : index
    %c0_394 = arith.constant 0 : index
    %577 = vector.load %arg10[%c0_393, %c0_394] : memref<1x256xf32, #tpu.memory_space<vmem>>, vector<1x256xf32>
    tpu.vector_store %arg10[%c0_393, %c0_394], %576 {strides = array<i32>} : memref<1x256xf32, #tpu.memory_space<vmem>>, vector<1x256xf32>,
    %c0_395 = arith.constant 0 : index
    %c0_396 = arith.constant 0 : index
    %c99 = arith.constant 99 : index
    %578 = vector.load %arg9[%c0_395, %c0_396, %c99] : memref<2x1x358xf32, #tpu.memory_space<vmem>>, vector<1x1x256xf32>
    %579 = vector.shape_cast %578 : vector<1x1x256xf32> to vector<1x256xf32>
    %c45 = arith.constant 45 : index
    %580 = memref.load %arg6[%c45] : memref<98xf32, #tpu.memory_space<smem>>
    %c0_397 = arith.constant 0 : index
    %c0_398 = arith.constant 0 : index
    %581 = vector.load %arg10[%c0_397, %c0_398] : memref<1x256xf32, #tpu.memory_space<vmem>>, vector<1x256xf32>
    %cst_399 = arith.constant 0.000000e+00 : f32
    %582 = vector.broadcast %cst_399 : f32 to vector<1x256xf32>
    %583 = arith.select %95, %579, %582 : vector<1x256xi1>, vector<1x256xf32>
    %584 = vector.broadcast %580 : f32 to vector<1x256xf32>
    %585 = arith.mulf %584, %583 : vector<1x256xf32>
    %586 = arith.addf %581, %585 : vector<1x256xf32>
    %c0_400 = arith.constant 0 : index
    %c0_401 = arith.constant 0 : index
    %587 = vector.load %arg10[%c0_400, %c0_401] : memref<1x256xf32, #tpu.memory_space<vmem>>, vector<1x256xf32>
    tpu.vector_store %arg10[%c0_400, %c0_401], %586 {strides = array<i32>} : memref<1x256xf32, #tpu.memory_space<vmem>>, vector<1x256xf32>,
    %c0_402 = arith.constant 0 : index
    %c0_403 = arith.constant 0 : index
    %c100 = arith.constant 100 : index
    %588 = vector.load %arg9[%c0_402, %c0_403, %c100] : memref<2x1x358xf32, #tpu.memory_space<vmem>>, vector<1x1x256xf32>
    %589 = vector.shape_cast %588 : vector<1x1x256xf32> to vector<1x256xf32>
    %c46 = arith.constant 46 : index
    %590 = memref.load %arg6[%c46] : memref<98xf32, #tpu.memory_space<smem>>
    %c0_404 = arith.constant 0 : index
    %c0_405 = arith.constant 0 : index
    %591 = vector.load %arg10[%c0_404, %c0_405] : memref<1x256xf32, #tpu.memory_space<vmem>>, vector<1x256xf32>
    %cst_406 = arith.constant 0.000000e+00 : f32
    %592 = vector.broadcast %cst_406 : f32 to vector<1x256xf32>
    %593 = arith.select %104, %589, %592 : vector<1x256xi1>, vector<1x256xf32>
    %594 = vector.broadcast %590 : f32 to vector<1x256xf32>
    %595 = arith.mulf %594, %593 : vector<1x256xf32>
    %596 = arith.addf %591, %595 : vector<1x256xf32>
    %c0_407 = arith.constant 0 : index
    %c0_408 = arith.constant 0 : index
    %597 = vector.load %arg10[%c0_407, %c0_408] : memref<1x256xf32, #tpu.memory_space<vmem>>, vector<1x256xf32>
    tpu.vector_store %arg10[%c0_407, %c0_408], %596 {strides = array<i32>} : memref<1x256xf32, #tpu.memory_space<vmem>>, vector<1x256xf32>,
    %c0_409 = arith.constant 0 : index
    %c0_410 = arith.constant 0 : index
    %c101 = arith.constant 101 : index
    %598 = vector.load %arg9[%c0_409, %c0_410, %c101] : memref<2x1x358xf32, #tpu.memory_space<vmem>>, vector<1x1x256xf32>
    %599 = vector.shape_cast %598 : vector<1x1x256xf32> to vector<1x256xf32>
    %c47 = arith.constant 47 : index
    %600 = memref.load %arg6[%c47] : memref<98xf32, #tpu.memory_space<smem>>
    %c0_411 = arith.constant 0 : index
    %c0_412 = arith.constant 0 : index
    %601 = vector.load %arg10[%c0_411, %c0_412] : memref<1x256xf32, #tpu.memory_space<vmem>>, vector<1x256xf32>
    %cst_413 = arith.constant 0.000000e+00 : f32
    %602 = vector.broadcast %cst_413 : f32 to vector<1x256xf32>
    %603 = arith.select %113, %599, %602 : vector<1x256xi1>, vector<1x256xf32>
    %604 = vector.broadcast %600 : f32 to vector<1x256xf32>
    %605 = arith.mulf %604, %603 : vector<1x256xf32>
    %606 = arith.addf %601, %605 : vector<1x256xf32>
    %c0_414 = arith.constant 0 : index
    %c0_415 = arith.constant 0 : index
    %607 = vector.load %arg10[%c0_414, %c0_415] : memref<1x256xf32, #tpu.memory_space<vmem>>, vector<1x256xf32>
    tpu.vector_store %arg10[%c0_414, %c0_415], %606 {strides = array<i32>} : memref<1x256xf32, #tpu.memory_space<vmem>>, vector<1x256xf32>,
    %c0_416 = arith.constant 0 : index
    %c0_417 = arith.constant 0 : index
    %c102 = arith.constant 102 : index
    %608 = vector.load %arg9[%c0_416, %c0_417, %c102] : memref<2x1x358xf32, #tpu.memory_space<vmem>>, vector<1x1x256xf32>
    %609 = vector.shape_cast %608 : vector<1x1x256xf32> to vector<1x256xf32>
    %c48_418 = arith.constant 48 : index
    %610 = memref.load %arg6[%c48_418] : memref<98xf32, #tpu.memory_space<smem>>
    %c0_419 = arith.constant 0 : index
    %c0_420 = arith.constant 0 : index
    %611 = vector.load %arg10[%c0_419, %c0_420] : memref<1x256xf32, #tpu.memory_space<vmem>>, vector<1x256xf32>
    %cst_421 = arith.constant 0.000000e+00 : f32
    %612 = vector.broadcast %cst_421 : f32 to vector<1x256xf32>
    %613 = arith.select %122, %609, %612 : vector<1x256xi1>, vector<1x256xf32>
    %614 = vector.broadcast %610 : f32 to vector<1x256xf32>
    %615 = arith.mulf %614, %613 : vector<1x256xf32>
    %616 = arith.addf %611, %615 : vector<1x256xf32>
    %c0_422 = arith.constant 0 : index
    %c0_423 = arith.constant 0 : index
    %617 = vector.load %arg10[%c0_422, %c0_423] : memref<1x256xf32, #tpu.memory_space<vmem>>, vector<1x256xf32>
    tpu.vector_store %arg10[%c0_422, %c0_423], %616 {strides = array<i32>} : memref<1x256xf32, #tpu.memory_space<vmem>>, vector<1x256xf32>,
    %c1_424 = arith.constant 1 : index
    %c0_425 = arith.constant 0 : index
    %c0_426 = arith.constant 0 : index
    %618 = vector.load %arg9[%c1_424, %c0_425, %c0_426] : memref<2x1x358xf32, #tpu.memory_space<vmem>>, vector<1x1x256xf32>
    %619 = vector.shape_cast %618 : vector<1x1x256xf32> to vector<1x256xf32>
    %c49_427 = arith.constant 49 : index
    %620 = memref.load %arg6[%c49_427] : memref<98xf32, #tpu.memory_space<smem>>
    %c0_428 = arith.constant 0 : index
    %c0_429 = arith.constant 0 : index
    %621 = vector.load %arg10[%c0_428, %c0_429] : memref<1x256xf32, #tpu.memory_space<vmem>>, vector<1x256xf32>
    %cst_430 = arith.constant 0.000000e+00 : f32
    %622 = vector.broadcast %cst_430 : f32 to vector<1x256xf32>
    %623 = arith.select %68, %619, %622 : vector<1x256xi1>, vector<1x256xf32>
    %624 = vector.broadcast %620 : f32 to vector<1x256xf32>
    %625 = arith.mulf %624, %623 : vector<1x256xf32>
    %626 = arith.addf %621, %625 : vector<1x256xf32>
    %c0_431 = arith.constant 0 : index
    %c0_432 = arith.constant 0 : index
    %627 = vector.load %arg10[%c0_431, %c0_432] : memref<1x256xf32, #tpu.memory_space<vmem>>, vector<1x256xf32>
    tpu.vector_store %arg10[%c0_431, %c0_432], %626 {strides = array<i32>} : memref<1x256xf32, #tpu.memory_space<vmem>>, vector<1x256xf32>,
    %c1_433 = arith.constant 1 : index
    %c0_434 = arith.constant 0 : index
    %c1_435 = arith.constant 1 : index
    %628 = vector.load %arg9[%c1_433, %c0_434, %c1_435] : memref<2x1x358xf32, #tpu.memory_space<vmem>>, vector<1x1x256xf32>
    %629 = vector.shape_cast %628 : vector<1x1x256xf32> to vector<1x256xf32>
    %c50_436 = arith.constant 50 : index
    %630 = memref.load %arg6[%c50_436] : memref<98xf32, #tpu.memory_space<smem>>
    %c0_437 = arith.constant 0 : index
    %c0_438 = arith.constant 0 : index
    %631 = vector.load %arg10[%c0_437, %c0_438] : memref<1x256xf32, #tpu.memory_space<vmem>>, vector<1x256xf32>
    %cst_439 = arith.constant 0.000000e+00 : f32
    %632 = vector.broadcast %cst_439 : f32 to vector<1x256xf32>
    %633 = arith.select %77, %629, %632 : vector<1x256xi1>, vector<1x256xf32>
    %634 = vector.broadcast %630 : f32 to vector<1x256xf32>
    %635 = arith.mulf %634, %633 : vector<1x256xf32>
    %636 = arith.addf %631, %635 : vector<1x256xf32>
    %c0_440 = arith.constant 0 : index
    %c0_441 = arith.constant 0 : index
    %637 = vector.load %arg10[%c0_440, %c0_441] : memref<1x256xf32, #tpu.memory_space<vmem>>, vector<1x256xf32>
    tpu.vector_store %arg10[%c0_440, %c0_441], %636 {strides = array<i32>} : memref<1x256xf32, #tpu.memory_space<vmem>>, vector<1x256xf32>,
    %c1_442 = arith.constant 1 : index
    %c0_443 = arith.constant 0 : index
    %c2_444 = arith.constant 2 : index
    %638 = vector.load %arg9[%c1_442, %c0_443, %c2_444] : memref<2x1x358xf32, #tpu.memory_space<vmem>>, vector<1x1x256xf32>
    %639 = vector.shape_cast %638 : vector<1x1x256xf32> to vector<1x256xf32>
    %c51_445 = arith.constant 51 : index
    %640 = memref.load %arg6[%c51_445] : memref<98xf32, #tpu.memory_space<smem>>
    %c0_446 = arith.constant 0 : index
    %c0_447 = arith.constant 0 : index
    %641 = vector.load %arg10[%c0_446, %c0_447] : memref<1x256xf32, #tpu.memory_space<vmem>>, vector<1x256xf32>
    %cst_448 = arith.constant 0.000000e+00 : f32
    %642 = vector.broadcast %cst_448 : f32 to vector<1x256xf32>
    %643 = arith.select %86, %639, %642 : vector<1x256xi1>, vector<1x256xf32>
    %644 = vector.broadcast %640 : f32 to vector<1x256xf32>
    %645 = arith.mulf %644, %643 : vector<1x256xf32>
    %646 = arith.addf %641, %645 : vector<1x256xf32>
    %c0_449 = arith.constant 0 : index
    %c0_450 = arith.constant 0 : index
    %647 = vector.load %arg10[%c0_449, %c0_450] : memref<1x256xf32, #tpu.memory_space<vmem>>, vector<1x256xf32>
    tpu.vector_store %arg10[%c0_449, %c0_450], %646 {strides = array<i32>} : memref<1x256xf32, #tpu.memory_space<vmem>>, vector<1x256xf32>,
    %c1_451 = arith.constant 1 : index
    %c0_452 = arith.constant 0 : index
    %c3_453 = arith.constant 3 : index
    %648 = vector.load %arg9[%c1_451, %c0_452, %c3_453] : memref<2x1x358xf32, #tpu.memory_space<vmem>>, vector<1x1x256xf32>
    %649 = vector.shape_cast %648 : vector<1x1x256xf32> to vector<1x256xf32>
    %c52_454 = arith.constant 52 : index
    %650 = memref.load %arg6[%c52_454] : memref<98xf32, #tpu.memory_space<smem>>
    %c0_455 = arith.constant 0 : index
    %c0_456 = arith.constant 0 : index
    %651 = vector.load %arg10[%c0_455, %c0_456] : memref<1x256xf32, #tpu.memory_space<vmem>>, vector<1x256xf32>
    %cst_457 = arith.constant 0.000000e+00 : f32
    %652 = vector.broadcast %cst_457 : f32 to vector<1x256xf32>
    %653 = arith.select %95, %649, %652 : vector<1x256xi1>, vector<1x256xf32>
    %654 = vector.broadcast %650 : f32 to vector<1x256xf32>
    %655 = arith.mulf %654, %653 : vector<1x256xf32>
    %656 = arith.addf %651, %655 : vector<1x256xf32>
    %c0_458 = arith.constant 0 : index
    %c0_459 = arith.constant 0 : index
    %657 = vector.load %arg10[%c0_458, %c0_459] : memref<1x256xf32, #tpu.memory_space<vmem>>, vector<1x256xf32>
    tpu.vector_store %arg10[%c0_458, %c0_459], %656 {strides = array<i32>} : memref<1x256xf32, #tpu.memory_space<vmem>>, vector<1x256xf32>,
    %c1_460 = arith.constant 1 : index
    %c0_461 = arith.constant 0 : index
    %c4_462 = arith.constant 4 : index
    %658 = vector.load %arg9[%c1_460, %c0_461, %c4_462] : memref<2x1x358xf32, #tpu.memory_space<vmem>>, vector<1x1x256xf32>
    %659 = vector.shape_cast %658 : vector<1x1x256xf32> to vector<1x256xf32>
    %c53_463 = arith.constant 53 : index
    %660 = memref.load %arg6[%c53_463] : memref<98xf32, #tpu.memory_space<smem>>
    %c0_464 = arith.constant 0 : index
    %c0_465 = arith.constant 0 : index
    %661 = vector.load %arg10[%c0_464, %c0_465] : memref<1x256xf32, #tpu.memory_space<vmem>>, vector<1x256xf32>
    %cst_466 = arith.constant 0.000000e+00 : f32
    %662 = vector.broadcast %cst_466 : f32 to vector<1x256xf32>
    %663 = arith.select %104, %659, %662 : vector<1x256xi1>, vector<1x256xf32>
    %664 = vector.broadcast %660 : f32 to vector<1x256xf32>
    %665 = arith.mulf %664, %663 : vector<1x256xf32>
    %666 = arith.addf %661, %665 : vector<1x256xf32>
    %c0_467 = arith.constant 0 : index
    %c0_468 = arith.constant 0 : index
    %667 = vector.load %arg10[%c0_467, %c0_468] : memref<1x256xf32, #tpu.memory_space<vmem>>, vector<1x256xf32>
    tpu.vector_store %arg10[%c0_467, %c0_468], %666 {strides = array<i32>} : memref<1x256xf32, #tpu.memory_space<vmem>>, vector<1x256xf32>,
    %c1_469 = arith.constant 1 : index
    %c0_470 = arith.constant 0 : index
    %c5_471 = arith.constant 5 : index
    %668 = vector.load %arg9[%c1_469, %c0_470, %c5_471] : memref<2x1x358xf32, #tpu.memory_space<vmem>>, vector<1x1x256xf32>
    %669 = vector.shape_cast %668 : vector<1x1x256xf32> to vector<1x256xf32>
    %c54_472 = arith.constant 54 : index
    %670 = memref.load %arg6[%c54_472] : memref<98xf32, #tpu.memory_space<smem>>
    %c0_473 = arith.constant 0 : index
    %c0_474 = arith.constant 0 : index
    %671 = vector.load %arg10[%c0_473, %c0_474] : memref<1x256xf32, #tpu.memory_space<vmem>>, vector<1x256xf32>
    %cst_475 = arith.constant 0.000000e+00 : f32
    %672 = vector.broadcast %cst_475 : f32 to vector<1x256xf32>
    %673 = arith.select %113, %669, %672 : vector<1x256xi1>, vector<1x256xf32>
    %674 = vector.broadcast %670 : f32 to vector<1x256xf32>
    %675 = arith.mulf %674, %673 : vector<1x256xf32>
    %676 = arith.addf %671, %675 : vector<1x256xf32>
    %c0_476 = arith.constant 0 : index
    %c0_477 = arith.constant 0 : index
    %677 = vector.load %arg10[%c0_476, %c0_477] : memref<1x256xf32, #tpu.memory_space<vmem>>, vector<1x256xf32>
    tpu.vector_store %arg10[%c0_476, %c0_477], %676 {strides = array<i32>} : memref<1x256xf32, #tpu.memory_space<vmem>>, vector<1x256xf32>,
    %c1_478 = arith.constant 1 : index
    %c0_479 = arith.constant 0 : index
    %c6_480 = arith.constant 6 : index
    %678 = vector.load %arg9[%c1_478, %c0_479, %c6_480] : memref<2x1x358xf32, #tpu.memory_space<vmem>>, vector<1x1x256xf32>
    %679 = vector.shape_cast %678 : vector<1x1x256xf32> to vector<1x256xf32>
    %c55 = arith.constant 55 : index
    %680 = memref.load %arg6[%c55] : memref<98xf32, #tpu.memory_space<smem>>
    %c0_481 = arith.constant 0 : index
    %c0_482 = arith.constant 0 : index
    %681 = vector.load %arg10[%c0_481, %c0_482] : memref<1x256xf32, #tpu.memory_space<vmem>>, vector<1x256xf32>
    %cst_483 = arith.constant 0.000000e+00 : f32
    %682 = vector.broadcast %cst_483 : f32 to vector<1x256xf32>
    %683 = arith.select %122, %679, %682 : vector<1x256xi1>, vector<1x256xf32>
    %684 = vector.broadcast %680 : f32 to vector<1x256xf32>
    %685 = arith.mulf %684, %683 : vector<1x256xf32>
    %686 = arith.addf %681, %685 : vector<1x256xf32>
    %c0_484 = arith.constant 0 : index
    %c0_485 = arith.constant 0 : index
    %687 = vector.load %arg10[%c0_484, %c0_485] : memref<1x256xf32, #tpu.memory_space<vmem>>, vector<1x256xf32>
    tpu.vector_store %arg10[%c0_484, %c0_485], %686 {strides = array<i32>} : memref<1x256xf32, #tpu.memory_space<vmem>>, vector<1x256xf32>,
    %c1_486 = arith.constant 1 : index
    %c0_487 = arith.constant 0 : index
    %c16_488 = arith.constant 16 : index
    %688 = vector.load %arg9[%c1_486, %c0_487, %c16_488] : memref<2x1x358xf32, #tpu.memory_space<vmem>>, vector<1x1x256xf32>
    %689 = vector.shape_cast %688 : vector<1x1x256xf32> to vector<1x256xf32>
    %c56 = arith.constant 56 : index
    %690 = memref.load %arg6[%c56] : memref<98xf32, #tpu.memory_space<smem>>
    %c0_489 = arith.constant 0 : index
    %c0_490 = arith.constant 0 : index
    %691 = vector.load %arg10[%c0_489, %c0_490] : memref<1x256xf32, #tpu.memory_space<vmem>>, vector<1x256xf32>
    %cst_491 = arith.constant 0.000000e+00 : f32
    %692 = vector.broadcast %cst_491 : f32 to vector<1x256xf32>
    %693 = arith.select %68, %689, %692 : vector<1x256xi1>, vector<1x256xf32>
    %694 = vector.broadcast %690 : f32 to vector<1x256xf32>
    %695 = arith.mulf %694, %693 : vector<1x256xf32>
    %696 = arith.addf %691, %695 : vector<1x256xf32>
    %c0_492 = arith.constant 0 : index
    %c0_493 = arith.constant 0 : index
    %697 = vector.load %arg10[%c0_492, %c0_493] : memref<1x256xf32, #tpu.memory_space<vmem>>, vector<1x256xf32>
    tpu.vector_store %arg10[%c0_492, %c0_493], %696 {strides = array<i32>} : memref<1x256xf32, #tpu.memory_space<vmem>>, vector<1x256xf32>,
    %c1_494 = arith.constant 1 : index
    %c0_495 = arith.constant 0 : index
    %c17_496 = arith.constant 17 : index
    %698 = vector.load %arg9[%c1_494, %c0_495, %c17_496] : memref<2x1x358xf32, #tpu.memory_space<vmem>>, vector<1x1x256xf32>
    %699 = vector.shape_cast %698 : vector<1x1x256xf32> to vector<1x256xf32>
    %c57 = arith.constant 57 : index
    %700 = memref.load %arg6[%c57] : memref<98xf32, #tpu.memory_space<smem>>
    %c0_497 = arith.constant 0 : index
    %c0_498 = arith.constant 0 : index
    %701 = vector.load %arg10[%c0_497, %c0_498] : memref<1x256xf32, #tpu.memory_space<vmem>>, vector<1x256xf32>
    %cst_499 = arith.constant 0.000000e+00 : f32
    %702 = vector.broadcast %cst_499 : f32 to vector<1x256xf32>
    %703 = arith.select %77, %699, %702 : vector<1x256xi1>, vector<1x256xf32>
    %704 = vector.broadcast %700 : f32 to vector<1x256xf32>
    %705 = arith.mulf %704, %703 : vector<1x256xf32>
    %706 = arith.addf %701, %705 : vector<1x256xf32>
    %c0_500 = arith.constant 0 : index
    %c0_501 = arith.constant 0 : index
    %707 = vector.load %arg10[%c0_500, %c0_501] : memref<1x256xf32, #tpu.memory_space<vmem>>, vector<1x256xf32>
    tpu.vector_store %arg10[%c0_500, %c0_501], %706 {strides = array<i32>} : memref<1x256xf32, #tpu.memory_space<vmem>>, vector<1x256xf32>,
    %c1_502 = arith.constant 1 : index
    %c0_503 = arith.constant 0 : index
    %c18_504 = arith.constant 18 : index
    %708 = vector.load %arg9[%c1_502, %c0_503, %c18_504] : memref<2x1x358xf32, #tpu.memory_space<vmem>>, vector<1x1x256xf32>
    %709 = vector.shape_cast %708 : vector<1x1x256xf32> to vector<1x256xf32>
    %c58 = arith.constant 58 : index
    %710 = memref.load %arg6[%c58] : memref<98xf32, #tpu.memory_space<smem>>
    %c0_505 = arith.constant 0 : index
    %c0_506 = arith.constant 0 : index
    %711 = vector.load %arg10[%c0_505, %c0_506] : memref<1x256xf32, #tpu.memory_space<vmem>>, vector<1x256xf32>
    %cst_507 = arith.constant 0.000000e+00 : f32
    %712 = vector.broadcast %cst_507 : f32 to vector<1x256xf32>
    %713 = arith.select %86, %709, %712 : vector<1x256xi1>, vector<1x256xf32>
    %714 = vector.broadcast %710 : f32 to vector<1x256xf32>
    %715 = arith.mulf %714, %713 : vector<1x256xf32>
    %716 = arith.addf %711, %715 : vector<1x256xf32>
    %c0_508 = arith.constant 0 : index
    %c0_509 = arith.constant 0 : index
    %717 = vector.load %arg10[%c0_508, %c0_509] : memref<1x256xf32, #tpu.memory_space<vmem>>, vector<1x256xf32>
    tpu.vector_store %arg10[%c0_508, %c0_509], %716 {strides = array<i32>} : memref<1x256xf32, #tpu.memory_space<vmem>>, vector<1x256xf32>,
    %c1_510 = arith.constant 1 : index
    %c0_511 = arith.constant 0 : index
    %c19_512 = arith.constant 19 : index
    %718 = vector.load %arg9[%c1_510, %c0_511, %c19_512] : memref<2x1x358xf32, #tpu.memory_space<vmem>>, vector<1x1x256xf32>
    %719 = vector.shape_cast %718 : vector<1x1x256xf32> to vector<1x256xf32>
    %c59 = arith.constant 59 : index
    %720 = memref.load %arg6[%c59] : memref<98xf32, #tpu.memory_space<smem>>
    %c0_513 = arith.constant 0 : index
    %c0_514 = arith.constant 0 : index
    %721 = vector.load %arg10[%c0_513, %c0_514] : memref<1x256xf32, #tpu.memory_space<vmem>>, vector<1x256xf32>
    %cst_515 = arith.constant 0.000000e+00 : f32
    %722 = vector.broadcast %cst_515 : f32 to vector<1x256xf32>
    %723 = arith.select %95, %719, %722 : vector<1x256xi1>, vector<1x256xf32>
    %724 = vector.broadcast %720 : f32 to vector<1x256xf32>
    %725 = arith.mulf %724, %723 : vector<1x256xf32>
    %726 = arith.addf %721, %725 : vector<1x256xf32>
    %c0_516 = arith.constant 0 : index
    %c0_517 = arith.constant 0 : index
    %727 = vector.load %arg10[%c0_516, %c0_517] : memref<1x256xf32, #tpu.memory_space<vmem>>, vector<1x256xf32>
    tpu.vector_store %arg10[%c0_516, %c0_517], %726 {strides = array<i32>} : memref<1x256xf32, #tpu.memory_space<vmem>>, vector<1x256xf32>,
    %c1_518 = arith.constant 1 : index
    %c0_519 = arith.constant 0 : index
    %c20_520 = arith.constant 20 : index
    %728 = vector.load %arg9[%c1_518, %c0_519, %c20_520] : memref<2x1x358xf32, #tpu.memory_space<vmem>>, vector<1x1x256xf32>
    %729 = vector.shape_cast %728 : vector<1x1x256xf32> to vector<1x256xf32>
    %c60 = arith.constant 60 : index
    %730 = memref.load %arg6[%c60] : memref<98xf32, #tpu.memory_space<smem>>
    %c0_521 = arith.constant 0 : index
    %c0_522 = arith.constant 0 : index
    %731 = vector.load %arg10[%c0_521, %c0_522] : memref<1x256xf32, #tpu.memory_space<vmem>>, vector<1x256xf32>
    %cst_523 = arith.constant 0.000000e+00 : f32
    %732 = vector.broadcast %cst_523 : f32 to vector<1x256xf32>
    %733 = arith.select %104, %729, %732 : vector<1x256xi1>, vector<1x256xf32>
    %734 = vector.broadcast %730 : f32 to vector<1x256xf32>
    %735 = arith.mulf %734, %733 : vector<1x256xf32>
    %736 = arith.addf %731, %735 : vector<1x256xf32>
    %c0_524 = arith.constant 0 : index
    %c0_525 = arith.constant 0 : index
    %737 = vector.load %arg10[%c0_524, %c0_525] : memref<1x256xf32, #tpu.memory_space<vmem>>, vector<1x256xf32>
    tpu.vector_store %arg10[%c0_524, %c0_525], %736 {strides = array<i32>} : memref<1x256xf32, #tpu.memory_space<vmem>>, vector<1x256xf32>,
    %c1_526 = arith.constant 1 : index
    %c0_527 = arith.constant 0 : index
    %c21_528 = arith.constant 21 : index
    %738 = vector.load %arg9[%c1_526, %c0_527, %c21_528] : memref<2x1x358xf32, #tpu.memory_space<vmem>>, vector<1x1x256xf32>
    %739 = vector.shape_cast %738 : vector<1x1x256xf32> to vector<1x256xf32>
    %c61 = arith.constant 61 : index
    %740 = memref.load %arg6[%c61] : memref<98xf32, #tpu.memory_space<smem>>
    %c0_529 = arith.constant 0 : index
    %c0_530 = arith.constant 0 : index
    %741 = vector.load %arg10[%c0_529, %c0_530] : memref<1x256xf32, #tpu.memory_space<vmem>>, vector<1x256xf32>
    %cst_531 = arith.constant 0.000000e+00 : f32
    %742 = vector.broadcast %cst_531 : f32 to vector<1x256xf32>
    %743 = arith.select %113, %739, %742 : vector<1x256xi1>, vector<1x256xf32>
    %744 = vector.broadcast %740 : f32 to vector<1x256xf32>
    %745 = arith.mulf %744, %743 : vector<1x256xf32>
    %746 = arith.addf %741, %745 : vector<1x256xf32>
    %c0_532 = arith.constant 0 : index
    %c0_533 = arith.constant 0 : index
    %747 = vector.load %arg10[%c0_532, %c0_533] : memref<1x256xf32, #tpu.memory_space<vmem>>, vector<1x256xf32>
    tpu.vector_store %arg10[%c0_532, %c0_533], %746 {strides = array<i32>} : memref<1x256xf32, #tpu.memory_space<vmem>>, vector<1x256xf32>,
    %c1_534 = arith.constant 1 : index
    %c0_535 = arith.constant 0 : index
    %c22_536 = arith.constant 22 : index
    %748 = vector.load %arg9[%c1_534, %c0_535, %c22_536] : memref<2x1x358xf32, #tpu.memory_space<vmem>>, vector<1x1x256xf32>
    %749 = vector.shape_cast %748 : vector<1x1x256xf32> to vector<1x256xf32>
    %c62 = arith.constant 62 : index
    %750 = memref.load %arg6[%c62] : memref<98xf32, #tpu.memory_space<smem>>
    %c0_537 = arith.constant 0 : index
    %c0_538 = arith.constant 0 : index
    %751 = vector.load %arg10[%c0_537, %c0_538] : memref<1x256xf32, #tpu.memory_space<vmem>>, vector<1x256xf32>
    %cst_539 = arith.constant 0.000000e+00 : f32
    %752 = vector.broadcast %cst_539 : f32 to vector<1x256xf32>
    %753 = arith.select %122, %749, %752 : vector<1x256xi1>, vector<1x256xf32>
    %754 = vector.broadcast %750 : f32 to vector<1x256xf32>
    %755 = arith.mulf %754, %753 : vector<1x256xf32>
    %756 = arith.addf %751, %755 : vector<1x256xf32>
    %c0_540 = arith.constant 0 : index
    %c0_541 = arith.constant 0 : index
    %757 = vector.load %arg10[%c0_540, %c0_541] : memref<1x256xf32, #tpu.memory_space<vmem>>, vector<1x256xf32>
    tpu.vector_store %arg10[%c0_540, %c0_541], %756 {strides = array<i32>} : memref<1x256xf32, #tpu.memory_space<vmem>>, vector<1x256xf32>,
    %c1_542 = arith.constant 1 : index
    %c0_543 = arith.constant 0 : index
    %c32_544 = arith.constant 32 : index
    %758 = vector.load %arg9[%c1_542, %c0_543, %c32_544] : memref<2x1x358xf32, #tpu.memory_space<vmem>>, vector<1x1x256xf32>
    %759 = vector.shape_cast %758 : vector<1x1x256xf32> to vector<1x256xf32>
    %c63 = arith.constant 63 : index
    %760 = memref.load %arg6[%c63] : memref<98xf32, #tpu.memory_space<smem>>
    %c0_545 = arith.constant 0 : index
    %c0_546 = arith.constant 0 : index
    %761 = vector.load %arg10[%c0_545, %c0_546] : memref<1x256xf32, #tpu.memory_space<vmem>>, vector<1x256xf32>
    %cst_547 = arith.constant 0.000000e+00 : f32
    %762 = vector.broadcast %cst_547 : f32 to vector<1x256xf32>
    %763 = arith.select %68, %759, %762 : vector<1x256xi1>, vector<1x256xf32>
    %764 = vector.broadcast %760 : f32 to vector<1x256xf32>
    %765 = arith.mulf %764, %763 : vector<1x256xf32>
    %766 = arith.addf %761, %765 : vector<1x256xf32>
    %c0_548 = arith.constant 0 : index
    %c0_549 = arith.constant 0 : index
    %767 = vector.load %arg10[%c0_548, %c0_549] : memref<1x256xf32, #tpu.memory_space<vmem>>, vector<1x256xf32>
    tpu.vector_store %arg10[%c0_548, %c0_549], %766 {strides = array<i32>} : memref<1x256xf32, #tpu.memory_space<vmem>>, vector<1x256xf32>,
    %c1_550 = arith.constant 1 : index
    %c0_551 = arith.constant 0 : index
    %c33_552 = arith.constant 33 : index
    %768 = vector.load %arg9[%c1_550, %c0_551, %c33_552] : memref<2x1x358xf32, #tpu.memory_space<vmem>>, vector<1x1x256xf32>
    %769 = vector.shape_cast %768 : vector<1x1x256xf32> to vector<1x256xf32>
    %c64_553 = arith.constant 64 : index
    %770 = memref.load %arg6[%c64_553] : memref<98xf32, #tpu.memory_space<smem>>
    %c0_554 = arith.constant 0 : index
    %c0_555 = arith.constant 0 : index
    %771 = vector.load %arg10[%c0_554, %c0_555] : memref<1x256xf32, #tpu.memory_space<vmem>>, vector<1x256xf32>
    %cst_556 = arith.constant 0.000000e+00 : f32
    %772 = vector.broadcast %cst_556 : f32 to vector<1x256xf32>
    %773 = arith.select %77, %769, %772 : vector<1x256xi1>, vector<1x256xf32>
    %774 = vector.broadcast %770 : f32 to vector<1x256xf32>
    %775 = arith.mulf %774, %773 : vector<1x256xf32>
    %776 = arith.addf %771, %775 : vector<1x256xf32>
    %c0_557 = arith.constant 0 : index
    %c0_558 = arith.constant 0 : index
    %777 = vector.load %arg10[%c0_557, %c0_558] : memref<1x256xf32, #tpu.memory_space<vmem>>, vector<1x256xf32>
    tpu.vector_store %arg10[%c0_557, %c0_558], %776 {strides = array<i32>} : memref<1x256xf32, #tpu.memory_space<vmem>>, vector<1x256xf32>,
    %c1_559 = arith.constant 1 : index
    %c0_560 = arith.constant 0 : index
    %c34_561 = arith.constant 34 : index
    %778 = vector.load %arg9[%c1_559, %c0_560, %c34_561] : memref<2x1x358xf32, #tpu.memory_space<vmem>>, vector<1x1x256xf32>
    %779 = vector.shape_cast %778 : vector<1x1x256xf32> to vector<1x256xf32>
    %c65_562 = arith.constant 65 : index
    %780 = memref.load %arg6[%c65_562] : memref<98xf32, #tpu.memory_space<smem>>
    %c0_563 = arith.constant 0 : index
    %c0_564 = arith.constant 0 : index
    %781 = vector.load %arg10[%c0_563, %c0_564] : memref<1x256xf32, #tpu.memory_space<vmem>>, vector<1x256xf32>
    %cst_565 = arith.constant 0.000000e+00 : f32
    %782 = vector.broadcast %cst_565 : f32 to vector<1x256xf32>
    %783 = arith.select %86, %779, %782 : vector<1x256xi1>, vector<1x256xf32>
    %784 = vector.broadcast %780 : f32 to vector<1x256xf32>
    %785 = arith.mulf %784, %783 : vector<1x256xf32>
    %786 = arith.addf %781, %785 : vector<1x256xf32>
    %c0_566 = arith.constant 0 : index
    %c0_567 = arith.constant 0 : index
    %787 = vector.load %arg10[%c0_566, %c0_567] : memref<1x256xf32, #tpu.memory_space<vmem>>, vector<1x256xf32>
    tpu.vector_store %arg10[%c0_566, %c0_567], %786 {strides = array<i32>} : memref<1x256xf32, #tpu.memory_space<vmem>>, vector<1x256xf32>,
    %c1_568 = arith.constant 1 : index
    %c0_569 = arith.constant 0 : index
    %c35_570 = arith.constant 35 : index
    %788 = vector.load %arg9[%c1_568, %c0_569, %c35_570] : memref<2x1x358xf32, #tpu.memory_space<vmem>>, vector<1x1x256xf32>
    %789 = vector.shape_cast %788 : vector<1x1x256xf32> to vector<1x256xf32>
    %c66_571 = arith.constant 66 : index
    %790 = memref.load %arg6[%c66_571] : memref<98xf32, #tpu.memory_space<smem>>
    %c0_572 = arith.constant 0 : index
    %c0_573 = arith.constant 0 : index
    %791 = vector.load %arg10[%c0_572, %c0_573] : memref<1x256xf32, #tpu.memory_space<vmem>>, vector<1x256xf32>
    %cst_574 = arith.constant 0.000000e+00 : f32
    %792 = vector.broadcast %cst_574 : f32 to vector<1x256xf32>
    %793 = arith.select %95, %789, %792 : vector<1x256xi1>, vector<1x256xf32>
    %794 = vector.broadcast %790 : f32 to vector<1x256xf32>
    %795 = arith.mulf %794, %793 : vector<1x256xf32>
    %796 = arith.addf %791, %795 : vector<1x256xf32>
    %c0_575 = arith.constant 0 : index
    %c0_576 = arith.constant 0 : index
    %797 = vector.load %arg10[%c0_575, %c0_576] : memref<1x256xf32, #tpu.memory_space<vmem>>, vector<1x256xf32>
    tpu.vector_store %arg10[%c0_575, %c0_576], %796 {strides = array<i32>} : memref<1x256xf32, #tpu.memory_space<vmem>>, vector<1x256xf32>,
    %c1_577 = arith.constant 1 : index
    %c0_578 = arith.constant 0 : index
    %c36_579 = arith.constant 36 : index
    %798 = vector.load %arg9[%c1_577, %c0_578, %c36_579] : memref<2x1x358xf32, #tpu.memory_space<vmem>>, vector<1x1x256xf32>
    %799 = vector.shape_cast %798 : vector<1x1x256xf32> to vector<1x256xf32>
    %c67_580 = arith.constant 67 : index
    %800 = memref.load %arg6[%c67_580] : memref<98xf32, #tpu.memory_space<smem>>
    %c0_581 = arith.constant 0 : index
    %c0_582 = arith.constant 0 : index
    %801 = vector.load %arg10[%c0_581, %c0_582] : memref<1x256xf32, #tpu.memory_space<vmem>>, vector<1x256xf32>
    %cst_583 = arith.constant 0.000000e+00 : f32
    %802 = vector.broadcast %cst_583 : f32 to vector<1x256xf32>
    %803 = arith.select %104, %799, %802 : vector<1x256xi1>, vector<1x256xf32>
    %804 = vector.broadcast %800 : f32 to vector<1x256xf32>
    %805 = arith.mulf %804, %803 : vector<1x256xf32>
    %806 = arith.addf %801, %805 : vector<1x256xf32>
    %c0_584 = arith.constant 0 : index
    %c0_585 = arith.constant 0 : index
    %807 = vector.load %arg10[%c0_584, %c0_585] : memref<1x256xf32, #tpu.memory_space<vmem>>, vector<1x256xf32>
    tpu.vector_store %arg10[%c0_584, %c0_585], %806 {strides = array<i32>} : memref<1x256xf32, #tpu.memory_space<vmem>>, vector<1x256xf32>,
    %c1_586 = arith.constant 1 : index
    %c0_587 = arith.constant 0 : index
    %c37_588 = arith.constant 37 : index
    %808 = vector.load %arg9[%c1_586, %c0_587, %c37_588] : memref<2x1x358xf32, #tpu.memory_space<vmem>>, vector<1x1x256xf32>
    %809 = vector.shape_cast %808 : vector<1x1x256xf32> to vector<1x256xf32>
    %c68_589 = arith.constant 68 : index
    %810 = memref.load %arg6[%c68_589] : memref<98xf32, #tpu.memory_space<smem>>
    %c0_590 = arith.constant 0 : index
    %c0_591 = arith.constant 0 : index
    %811 = vector.load %arg10[%c0_590, %c0_591] : memref<1x256xf32, #tpu.memory_space<vmem>>, vector<1x256xf32>
    %cst_592 = arith.constant 0.000000e+00 : f32
    %812 = vector.broadcast %cst_592 : f32 to vector<1x256xf32>
    %813 = arith.select %113, %809, %812 : vector<1x256xi1>, vector<1x256xf32>
    %814 = vector.broadcast %810 : f32 to vector<1x256xf32>
    %815 = arith.mulf %814, %813 : vector<1x256xf32>
    %816 = arith.addf %811, %815 : vector<1x256xf32>
    %c0_593 = arith.constant 0 : index
    %c0_594 = arith.constant 0 : index
    %817 = vector.load %arg10[%c0_593, %c0_594] : memref<1x256xf32, #tpu.memory_space<vmem>>, vector<1x256xf32>
    tpu.vector_store %arg10[%c0_593, %c0_594], %816 {strides = array<i32>} : memref<1x256xf32, #tpu.memory_space<vmem>>, vector<1x256xf32>,
    %c1_595 = arith.constant 1 : index
    %c0_596 = arith.constant 0 : index
    %c38_597 = arith.constant 38 : index
    %818 = vector.load %arg9[%c1_595, %c0_596, %c38_597] : memref<2x1x358xf32, #tpu.memory_space<vmem>>, vector<1x1x256xf32>
    %819 = vector.shape_cast %818 : vector<1x1x256xf32> to vector<1x256xf32>
    %c69_598 = arith.constant 69 : index
    %820 = memref.load %arg6[%c69_598] : memref<98xf32, #tpu.memory_space<smem>>
    %c0_599 = arith.constant 0 : index
    %c0_600 = arith.constant 0 : index
    %821 = vector.load %arg10[%c0_599, %c0_600] : memref<1x256xf32, #tpu.memory_space<vmem>>, vector<1x256xf32>
    %cst_601 = arith.constant 0.000000e+00 : f32
    %822 = vector.broadcast %cst_601 : f32 to vector<1x256xf32>
    %823 = arith.select %122, %819, %822 : vector<1x256xi1>, vector<1x256xf32>
    %824 = vector.broadcast %820 : f32 to vector<1x256xf32>
    %825 = arith.mulf %824, %823 : vector<1x256xf32>
    %826 = arith.addf %821, %825 : vector<1x256xf32>
    %c0_602 = arith.constant 0 : index
    %c0_603 = arith.constant 0 : index
    %827 = vector.load %arg10[%c0_602, %c0_603] : memref<1x256xf32, #tpu.memory_space<vmem>>, vector<1x256xf32>
    tpu.vector_store %arg10[%c0_602, %c0_603], %826 {strides = array<i32>} : memref<1x256xf32, #tpu.memory_space<vmem>>, vector<1x256xf32>,
    %c1_604 = arith.constant 1 : index
    %c0_605 = arith.constant 0 : index
    %c48_606 = arith.constant 48 : index
    %828 = vector.load %arg9[%c1_604, %c0_605, %c48_606] : memref<2x1x358xf32, #tpu.memory_space<vmem>>, vector<1x1x256xf32>
    %829 = vector.shape_cast %828 : vector<1x1x256xf32> to vector<1x256xf32>
    %c70_607 = arith.constant 70 : index
    %830 = memref.load %arg6[%c70_607] : memref<98xf32, #tpu.memory_space<smem>>
    %c0_608 = arith.constant 0 : index
    %c0_609 = arith.constant 0 : index
    %831 = vector.load %arg10[%c0_608, %c0_609] : memref<1x256xf32, #tpu.memory_space<vmem>>, vector<1x256xf32>
    %cst_610 = arith.constant 0.000000e+00 : f32
    %832 = vector.broadcast %cst_610 : f32 to vector<1x256xf32>
    %833 = arith.select %68, %829, %832 : vector<1x256xi1>, vector<1x256xf32>
    %834 = vector.broadcast %830 : f32 to vector<1x256xf32>
    %835 = arith.mulf %834, %833 : vector<1x256xf32>
    %836 = arith.addf %831, %835 : vector<1x256xf32>
    %c0_611 = arith.constant 0 : index
    %c0_612 = arith.constant 0 : index
    %837 = vector.load %arg10[%c0_611, %c0_612] : memref<1x256xf32, #tpu.memory_space<vmem>>, vector<1x256xf32>
    tpu.vector_store %arg10[%c0_611, %c0_612], %836 {strides = array<i32>} : memref<1x256xf32, #tpu.memory_space<vmem>>, vector<1x256xf32>,
    %c1_613 = arith.constant 1 : index
    %c0_614 = arith.constant 0 : index
    %c49_615 = arith.constant 49 : index
    %838 = vector.load %arg9[%c1_613, %c0_614, %c49_615] : memref<2x1x358xf32, #tpu.memory_space<vmem>>, vector<1x1x256xf32>
    %839 = vector.shape_cast %838 : vector<1x1x256xf32> to vector<1x256xf32>
    %c71 = arith.constant 71 : index
    %840 = memref.load %arg6[%c71] : memref<98xf32, #tpu.memory_space<smem>>
    %c0_616 = arith.constant 0 : index
    %c0_617 = arith.constant 0 : index
    %841 = vector.load %arg10[%c0_616, %c0_617] : memref<1x256xf32, #tpu.memory_space<vmem>>, vector<1x256xf32>
    %cst_618 = arith.constant 0.000000e+00 : f32
    %842 = vector.broadcast %cst_618 : f32 to vector<1x256xf32>
    %843 = arith.select %77, %839, %842 : vector<1x256xi1>, vector<1x256xf32>
    %844 = vector.broadcast %840 : f32 to vector<1x256xf32>
    %845 = arith.mulf %844, %843 : vector<1x256xf32>
    %846 = arith.addf %841, %845 : vector<1x256xf32>
    %c0_619 = arith.constant 0 : index
    %c0_620 = arith.constant 0 : index
    %847 = vector.load %arg10[%c0_619, %c0_620] : memref<1x256xf32, #tpu.memory_space<vmem>>, vector<1x256xf32>
    tpu.vector_store %arg10[%c0_619, %c0_620], %846 {strides = array<i32>} : memref<1x256xf32, #tpu.memory_space<vmem>>, vector<1x256xf32>,
    %c1_621 = arith.constant 1 : index
    %c0_622 = arith.constant 0 : index
    %c50_623 = arith.constant 50 : index
    %848 = vector.load %arg9[%c1_621, %c0_622, %c50_623] : memref<2x1x358xf32, #tpu.memory_space<vmem>>, vector<1x1x256xf32>
    %849 = vector.shape_cast %848 : vector<1x1x256xf32> to vector<1x256xf32>
    %c72 = arith.constant 72 : index
    %850 = memref.load %arg6[%c72] : memref<98xf32, #tpu.memory_space<smem>>
    %c0_624 = arith.constant 0 : index
    %c0_625 = arith.constant 0 : index
    %851 = vector.load %arg10[%c0_624, %c0_625] : memref<1x256xf32, #tpu.memory_space<vmem>>, vector<1x256xf32>
    %cst_626 = arith.constant 0.000000e+00 : f32
    %852 = vector.broadcast %cst_626 : f32 to vector<1x256xf32>
    %853 = arith.select %86, %849, %852 : vector<1x256xi1>, vector<1x256xf32>
    %854 = vector.broadcast %850 : f32 to vector<1x256xf32>
    %855 = arith.mulf %854, %853 : vector<1x256xf32>
    %856 = arith.addf %851, %855 : vector<1x256xf32>
    %c0_627 = arith.constant 0 : index
    %c0_628 = arith.constant 0 : index
    %857 = vector.load %arg10[%c0_627, %c0_628] : memref<1x256xf32, #tpu.memory_space<vmem>>, vector<1x256xf32>
    tpu.vector_store %arg10[%c0_627, %c0_628], %856 {strides = array<i32>} : memref<1x256xf32, #tpu.memory_space<vmem>>, vector<1x256xf32>,
    %c1_629 = arith.constant 1 : index
    %c0_630 = arith.constant 0 : index
    %c51_631 = arith.constant 51 : index
    %858 = vector.load %arg9[%c1_629, %c0_630, %c51_631] : memref<2x1x358xf32, #tpu.memory_space<vmem>>, vector<1x1x256xf32>
    %859 = vector.shape_cast %858 : vector<1x1x256xf32> to vector<1x256xf32>
    %c73 = arith.constant 73 : index
    %860 = memref.load %arg6[%c73] : memref<98xf32, #tpu.memory_space<smem>>
    %c0_632 = arith.constant 0 : index
    %c0_633 = arith.constant 0 : index
    %861 = vector.load %arg10[%c0_632, %c0_633] : memref<1x256xf32, #tpu.memory_space<vmem>>, vector<1x256xf32>
    %cst_634 = arith.constant 0.000000e+00 : f32
    %862 = vector.broadcast %cst_634 : f32 to vector<1x256xf32>
    %863 = arith.select %95, %859, %862 : vector<1x256xi1>, vector<1x256xf32>
    %864 = vector.broadcast %860 : f32 to vector<1x256xf32>
    %865 = arith.mulf %864, %863 : vector<1x256xf32>
    %866 = arith.addf %861, %865 : vector<1x256xf32>
    %c0_635 = arith.constant 0 : index
    %c0_636 = arith.constant 0 : index
    %867 = vector.load %arg10[%c0_635, %c0_636] : memref<1x256xf32, #tpu.memory_space<vmem>>, vector<1x256xf32>
    tpu.vector_store %arg10[%c0_635, %c0_636], %866 {strides = array<i32>} : memref<1x256xf32, #tpu.memory_space<vmem>>, vector<1x256xf32>,
    %c1_637 = arith.constant 1 : index
    %c0_638 = arith.constant 0 : index
    %c52_639 = arith.constant 52 : index
    %868 = vector.load %arg9[%c1_637, %c0_638, %c52_639] : memref<2x1x358xf32, #tpu.memory_space<vmem>>, vector<1x1x256xf32>
    %869 = vector.shape_cast %868 : vector<1x1x256xf32> to vector<1x256xf32>
    %c74 = arith.constant 74 : index
    %870 = memref.load %arg6[%c74] : memref<98xf32, #tpu.memory_space<smem>>
    %c0_640 = arith.constant 0 : index
    %c0_641 = arith.constant 0 : index
    %871 = vector.load %arg10[%c0_640, %c0_641] : memref<1x256xf32, #tpu.memory_space<vmem>>, vector<1x256xf32>
    %cst_642 = arith.constant 0.000000e+00 : f32
    %872 = vector.broadcast %cst_642 : f32 to vector<1x256xf32>
    %873 = arith.select %104, %869, %872 : vector<1x256xi1>, vector<1x256xf32>
    %874 = vector.broadcast %870 : f32 to vector<1x256xf32>
    %875 = arith.mulf %874, %873 : vector<1x256xf32>
    %876 = arith.addf %871, %875 : vector<1x256xf32>
    %c0_643 = arith.constant 0 : index
    %c0_644 = arith.constant 0 : index
    %877 = vector.load %arg10[%c0_643, %c0_644] : memref<1x256xf32, #tpu.memory_space<vmem>>, vector<1x256xf32>
    tpu.vector_store %arg10[%c0_643, %c0_644], %876 {strides = array<i32>} : memref<1x256xf32, #tpu.memory_space<vmem>>, vector<1x256xf32>,
    %c1_645 = arith.constant 1 : index
    %c0_646 = arith.constant 0 : index
    %c53_647 = arith.constant 53 : index
    %878 = vector.load %arg9[%c1_645, %c0_646, %c53_647] : memref<2x1x358xf32, #tpu.memory_space<vmem>>, vector<1x1x256xf32>
    %879 = vector.shape_cast %878 : vector<1x1x256xf32> to vector<1x256xf32>
    %c75 = arith.constant 75 : index
    %880 = memref.load %arg6[%c75] : memref<98xf32, #tpu.memory_space<smem>>
    %c0_648 = arith.constant 0 : index
    %c0_649 = arith.constant 0 : index
    %881 = vector.load %arg10[%c0_648, %c0_649] : memref<1x256xf32, #tpu.memory_space<vmem>>, vector<1x256xf32>
    %cst_650 = arith.constant 0.000000e+00 : f32
    %882 = vector.broadcast %cst_650 : f32 to vector<1x256xf32>
    %883 = arith.select %113, %879, %882 : vector<1x256xi1>, vector<1x256xf32>
    %884 = vector.broadcast %880 : f32 to vector<1x256xf32>
    %885 = arith.mulf %884, %883 : vector<1x256xf32>
    %886 = arith.addf %881, %885 : vector<1x256xf32>
    %c0_651 = arith.constant 0 : index
    %c0_652 = arith.constant 0 : index
    %887 = vector.load %arg10[%c0_651, %c0_652] : memref<1x256xf32, #tpu.memory_space<vmem>>, vector<1x256xf32>
    tpu.vector_store %arg10[%c0_651, %c0_652], %886 {strides = array<i32>} : memref<1x256xf32, #tpu.memory_space<vmem>>, vector<1x256xf32>,
    %c1_653 = arith.constant 1 : index
    %c0_654 = arith.constant 0 : index
    %c54_655 = arith.constant 54 : index
    %888 = vector.load %arg9[%c1_653, %c0_654, %c54_655] : memref<2x1x358xf32, #tpu.memory_space<vmem>>, vector<1x1x256xf32>
    %889 = vector.shape_cast %888 : vector<1x1x256xf32> to vector<1x256xf32>
    %c76 = arith.constant 76 : index
    %890 = memref.load %arg6[%c76] : memref<98xf32, #tpu.memory_space<smem>>
    %c0_656 = arith.constant 0 : index
    %c0_657 = arith.constant 0 : index
    %891 = vector.load %arg10[%c0_656, %c0_657] : memref<1x256xf32, #tpu.memory_space<vmem>>, vector<1x256xf32>
    %cst_658 = arith.constant 0.000000e+00 : f32
    %892 = vector.broadcast %cst_658 : f32 to vector<1x256xf32>
    %893 = arith.select %122, %889, %892 : vector<1x256xi1>, vector<1x256xf32>
    %894 = vector.broadcast %890 : f32 to vector<1x256xf32>
    %895 = arith.mulf %894, %893 : vector<1x256xf32>
    %896 = arith.addf %891, %895 : vector<1x256xf32>
    %c0_659 = arith.constant 0 : index
    %c0_660 = arith.constant 0 : index
    %897 = vector.load %arg10[%c0_659, %c0_660] : memref<1x256xf32, #tpu.memory_space<vmem>>, vector<1x256xf32>
    tpu.vector_store %arg10[%c0_659, %c0_660], %896 {strides = array<i32>} : memref<1x256xf32, #tpu.memory_space<vmem>>, vector<1x256xf32>,
    %c1_661 = arith.constant 1 : index
    %c0_662 = arith.constant 0 : index
    %c64_663 = arith.constant 64 : index
    %898 = vector.load %arg9[%c1_661, %c0_662, %c64_663] : memref<2x1x358xf32, #tpu.memory_space<vmem>>, vector<1x1x256xf32>
    %899 = vector.shape_cast %898 : vector<1x1x256xf32> to vector<1x256xf32>
    %c77 = arith.constant 77 : index
    %900 = memref.load %arg6[%c77] : memref<98xf32, #tpu.memory_space<smem>>
    %c0_664 = arith.constant 0 : index
    %c0_665 = arith.constant 0 : index
    %901 = vector.load %arg10[%c0_664, %c0_665] : memref<1x256xf32, #tpu.memory_space<vmem>>, vector<1x256xf32>
    %cst_666 = arith.constant 0.000000e+00 : f32
    %902 = vector.broadcast %cst_666 : f32 to vector<1x256xf32>
    %903 = arith.select %68, %899, %902 : vector<1x256xi1>, vector<1x256xf32>
    %904 = vector.broadcast %900 : f32 to vector<1x256xf32>
    %905 = arith.mulf %904, %903 : vector<1x256xf32>
    %906 = arith.addf %901, %905 : vector<1x256xf32>
    %c0_667 = arith.constant 0 : index
    %c0_668 = arith.constant 0 : index
    %907 = vector.load %arg10[%c0_667, %c0_668] : memref<1x256xf32, #tpu.memory_space<vmem>>, vector<1x256xf32>
    tpu.vector_store %arg10[%c0_667, %c0_668], %906 {strides = array<i32>} : memref<1x256xf32, #tpu.memory_space<vmem>>, vector<1x256xf32>,
    %c1_669 = arith.constant 1 : index
    %c0_670 = arith.constant 0 : index
    %c65_671 = arith.constant 65 : index
    %908 = vector.load %arg9[%c1_669, %c0_670, %c65_671] : memref<2x1x358xf32, #tpu.memory_space<vmem>>, vector<1x1x256xf32>
    %909 = vector.shape_cast %908 : vector<1x1x256xf32> to vector<1x256xf32>
    %c78 = arith.constant 78 : index
    %910 = memref.load %arg6[%c78] : memref<98xf32, #tpu.memory_space<smem>>
    %c0_672 = arith.constant 0 : index
    %c0_673 = arith.constant 0 : index
    %911 = vector.load %arg10[%c0_672, %c0_673] : memref<1x256xf32, #tpu.memory_space<vmem>>, vector<1x256xf32>
    %cst_674 = arith.constant 0.000000e+00 : f32
    %912 = vector.broadcast %cst_674 : f32 to vector<1x256xf32>
    %913 = arith.select %77, %909, %912 : vector<1x256xi1>, vector<1x256xf32>
    %914 = vector.broadcast %910 : f32 to vector<1x256xf32>
    %915 = arith.mulf %914, %913 : vector<1x256xf32>
    %916 = arith.addf %911, %915 : vector<1x256xf32>
    %c0_675 = arith.constant 0 : index
    %c0_676 = arith.constant 0 : index
    %917 = vector.load %arg10[%c0_675, %c0_676] : memref<1x256xf32, #tpu.memory_space<vmem>>, vector<1x256xf32>
    tpu.vector_store %arg10[%c0_675, %c0_676], %916 {strides = array<i32>} : memref<1x256xf32, #tpu.memory_space<vmem>>, vector<1x256xf32>,
    %c1_677 = arith.constant 1 : index
    %c0_678 = arith.constant 0 : index
    %c66_679 = arith.constant 66 : index
    %918 = vector.load %arg9[%c1_677, %c0_678, %c66_679] : memref<2x1x358xf32, #tpu.memory_space<vmem>>, vector<1x1x256xf32>
    %919 = vector.shape_cast %918 : vector<1x1x256xf32> to vector<1x256xf32>
    %c79 = arith.constant 79 : index
    %920 = memref.load %arg6[%c79] : memref<98xf32, #tpu.memory_space<smem>>
    %c0_680 = arith.constant 0 : index
    %c0_681 = arith.constant 0 : index
    %921 = vector.load %arg10[%c0_680, %c0_681] : memref<1x256xf32, #tpu.memory_space<vmem>>, vector<1x256xf32>
    %cst_682 = arith.constant 0.000000e+00 : f32
    %922 = vector.broadcast %cst_682 : f32 to vector<1x256xf32>
    %923 = arith.select %86, %919, %922 : vector<1x256xi1>, vector<1x256xf32>
    %924 = vector.broadcast %920 : f32 to vector<1x256xf32>
    %925 = arith.mulf %924, %923 : vector<1x256xf32>
    %926 = arith.addf %921, %925 : vector<1x256xf32>
    %c0_683 = arith.constant 0 : index
    %c0_684 = arith.constant 0 : index
    %927 = vector.load %arg10[%c0_683, %c0_684] : memref<1x256xf32, #tpu.memory_space<vmem>>, vector<1x256xf32>
    tpu.vector_store %arg10[%c0_683, %c0_684], %926 {strides = array<i32>} : memref<1x256xf32, #tpu.memory_space<vmem>>, vector<1x256xf32>,
    %c1_685 = arith.constant 1 : index
    %c0_686 = arith.constant 0 : index
    %c67_687 = arith.constant 67 : index
    %928 = vector.load %arg9[%c1_685, %c0_686, %c67_687] : memref<2x1x358xf32, #tpu.memory_space<vmem>>, vector<1x1x256xf32>
    %929 = vector.shape_cast %928 : vector<1x1x256xf32> to vector<1x256xf32>
    %c80_688 = arith.constant 80 : index
    %930 = memref.load %arg6[%c80_688] : memref<98xf32, #tpu.memory_space<smem>>
    %c0_689 = arith.constant 0 : index
    %c0_690 = arith.constant 0 : index
    %931 = vector.load %arg10[%c0_689, %c0_690] : memref<1x256xf32, #tpu.memory_space<vmem>>, vector<1x256xf32>
    %cst_691 = arith.constant 0.000000e+00 : f32
    %932 = vector.broadcast %cst_691 : f32 to vector<1x256xf32>
    %933 = arith.select %95, %929, %932 : vector<1x256xi1>, vector<1x256xf32>
    %934 = vector.broadcast %930 : f32 to vector<1x256xf32>
    %935 = arith.mulf %934, %933 : vector<1x256xf32>
    %936 = arith.addf %931, %935 : vector<1x256xf32>
    %c0_692 = arith.constant 0 : index
    %c0_693 = arith.constant 0 : index
    %937 = vector.load %arg10[%c0_692, %c0_693] : memref<1x256xf32, #tpu.memory_space<vmem>>, vector<1x256xf32>
    tpu.vector_store %arg10[%c0_692, %c0_693], %936 {strides = array<i32>} : memref<1x256xf32, #tpu.memory_space<vmem>>, vector<1x256xf32>,
    %c1_694 = arith.constant 1 : index
    %c0_695 = arith.constant 0 : index
    %c68_696 = arith.constant 68 : index
    %938 = vector.load %arg9[%c1_694, %c0_695, %c68_696] : memref<2x1x358xf32, #tpu.memory_space<vmem>>, vector<1x1x256xf32>
    %939 = vector.shape_cast %938 : vector<1x1x256xf32> to vector<1x256xf32>
    %c81_697 = arith.constant 81 : index
    %940 = memref.load %arg6[%c81_697] : memref<98xf32, #tpu.memory_space<smem>>
    %c0_698 = arith.constant 0 : index
    %c0_699 = arith.constant 0 : index
    %941 = vector.load %arg10[%c0_698, %c0_699] : memref<1x256xf32, #tpu.memory_space<vmem>>, vector<1x256xf32>
    %cst_700 = arith.constant 0.000000e+00 : f32
    %942 = vector.broadcast %cst_700 : f32 to vector<1x256xf32>
    %943 = arith.select %104, %939, %942 : vector<1x256xi1>, vector<1x256xf32>
    %944 = vector.broadcast %940 : f32 to vector<1x256xf32>
    %945 = arith.mulf %944, %943 : vector<1x256xf32>
    %946 = arith.addf %941, %945 : vector<1x256xf32>
    %c0_701 = arith.constant 0 : index
    %c0_702 = arith.constant 0 : index
    %947 = vector.load %arg10[%c0_701, %c0_702] : memref<1x256xf32, #tpu.memory_space<vmem>>, vector<1x256xf32>
    tpu.vector_store %arg10[%c0_701, %c0_702], %946 {strides = array<i32>} : memref<1x256xf32, #tpu.memory_space<vmem>>, vector<1x256xf32>,
    %c1_703 = arith.constant 1 : index
    %c0_704 = arith.constant 0 : index
    %c69_705 = arith.constant 69 : index
    %948 = vector.load %arg9[%c1_703, %c0_704, %c69_705] : memref<2x1x358xf32, #tpu.memory_space<vmem>>, vector<1x1x256xf32>
    %949 = vector.shape_cast %948 : vector<1x1x256xf32> to vector<1x256xf32>
    %c82_706 = arith.constant 82 : index
    %950 = memref.load %arg6[%c82_706] : memref<98xf32, #tpu.memory_space<smem>>
    %c0_707 = arith.constant 0 : index
    %c0_708 = arith.constant 0 : index
    %951 = vector.load %arg10[%c0_707, %c0_708] : memref<1x256xf32, #tpu.memory_space<vmem>>, vector<1x256xf32>
    %cst_709 = arith.constant 0.000000e+00 : f32
    %952 = vector.broadcast %cst_709 : f32 to vector<1x256xf32>
    %953 = arith.select %113, %949, %952 : vector<1x256xi1>, vector<1x256xf32>
    %954 = vector.broadcast %950 : f32 to vector<1x256xf32>
    %955 = arith.mulf %954, %953 : vector<1x256xf32>
    %956 = arith.addf %951, %955 : vector<1x256xf32>
    %c0_710 = arith.constant 0 : index
    %c0_711 = arith.constant 0 : index
    %957 = vector.load %arg10[%c0_710, %c0_711] : memref<1x256xf32, #tpu.memory_space<vmem>>, vector<1x256xf32>
    tpu.vector_store %arg10[%c0_710, %c0_711], %956 {strides = array<i32>} : memref<1x256xf32, #tpu.memory_space<vmem>>, vector<1x256xf32>,
    %c1_712 = arith.constant 1 : index
    %c0_713 = arith.constant 0 : index
    %c70_714 = arith.constant 70 : index
    %958 = vector.load %arg9[%c1_712, %c0_713, %c70_714] : memref<2x1x358xf32, #tpu.memory_space<vmem>>, vector<1x1x256xf32>
    %959 = vector.shape_cast %958 : vector<1x1x256xf32> to vector<1x256xf32>
    %c83_715 = arith.constant 83 : index
    %960 = memref.load %arg6[%c83_715] : memref<98xf32, #tpu.memory_space<smem>>
    %c0_716 = arith.constant 0 : index
    %c0_717 = arith.constant 0 : index
    %961 = vector.load %arg10[%c0_716, %c0_717] : memref<1x256xf32, #tpu.memory_space<vmem>>, vector<1x256xf32>
    %cst_718 = arith.constant 0.000000e+00 : f32
    %962 = vector.broadcast %cst_718 : f32 to vector<1x256xf32>
    %963 = arith.select %122, %959, %962 : vector<1x256xi1>, vector<1x256xf32>
    %964 = vector.broadcast %960 : f32 to vector<1x256xf32>
    %965 = arith.mulf %964, %963 : vector<1x256xf32>
    %966 = arith.addf %961, %965 : vector<1x256xf32>
    %c0_719 = arith.constant 0 : index
    %c0_720 = arith.constant 0 : index
    %967 = vector.load %arg10[%c0_719, %c0_720] : memref<1x256xf32, #tpu.memory_space<vmem>>, vector<1x256xf32>
    tpu.vector_store %arg10[%c0_719, %c0_720], %966 {strides = array<i32>} : memref<1x256xf32, #tpu.memory_space<vmem>>, vector<1x256xf32>,
    %c1_721 = arith.constant 1 : index
    %c0_722 = arith.constant 0 : index
    %c80_723 = arith.constant 80 : index
    %968 = vector.load %arg9[%c1_721, %c0_722, %c80_723] : memref<2x1x358xf32, #tpu.memory_space<vmem>>, vector<1x1x256xf32>
    %969 = vector.shape_cast %968 : vector<1x1x256xf32> to vector<1x256xf32>
    %c84_724 = arith.constant 84 : index
    %970 = memref.load %arg6[%c84_724] : memref<98xf32, #tpu.memory_space<smem>>
    %c0_725 = arith.constant 0 : index
    %c0_726 = arith.constant 0 : index
    %971 = vector.load %arg10[%c0_725, %c0_726] : memref<1x256xf32, #tpu.memory_space<vmem>>, vector<1x256xf32>
    %cst_727 = arith.constant 0.000000e+00 : f32
    %972 = vector.broadcast %cst_727 : f32 to vector<1x256xf32>
    %973 = arith.select %68, %969, %972 : vector<1x256xi1>, vector<1x256xf32>
    %974 = vector.broadcast %970 : f32 to vector<1x256xf32>
    %975 = arith.mulf %974, %973 : vector<1x256xf32>
    %976 = arith.addf %971, %975 : vector<1x256xf32>
    %c0_728 = arith.constant 0 : index
    %c0_729 = arith.constant 0 : index
    %977 = vector.load %arg10[%c0_728, %c0_729] : memref<1x256xf32, #tpu.memory_space<vmem>>, vector<1x256xf32>
    tpu.vector_store %arg10[%c0_728, %c0_729], %976 {strides = array<i32>} : memref<1x256xf32, #tpu.memory_space<vmem>>, vector<1x256xf32>,
    %c1_730 = arith.constant 1 : index
    %c0_731 = arith.constant 0 : index
    %c81_732 = arith.constant 81 : index
    %978 = vector.load %arg9[%c1_730, %c0_731, %c81_732] : memref<2x1x358xf32, #tpu.memory_space<vmem>>, vector<1x1x256xf32>
    %979 = vector.shape_cast %978 : vector<1x1x256xf32> to vector<1x256xf32>
    %c85_733 = arith.constant 85 : index
    %980 = memref.load %arg6[%c85_733] : memref<98xf32, #tpu.memory_space<smem>>
    %c0_734 = arith.constant 0 : index
    %c0_735 = arith.constant 0 : index
    %981 = vector.load %arg10[%c0_734, %c0_735] : memref<1x256xf32, #tpu.memory_space<vmem>>, vector<1x256xf32>
    %cst_736 = arith.constant 0.000000e+00 : f32
    %982 = vector.broadcast %cst_736 : f32 to vector<1x256xf32>
    %983 = arith.select %77, %979, %982 : vector<1x256xi1>, vector<1x256xf32>
    %984 = vector.broadcast %980 : f32 to vector<1x256xf32>
    %985 = arith.mulf %984, %983 : vector<1x256xf32>
    %986 = arith.addf %981, %985 : vector<1x256xf32>
    %c0_737 = arith.constant 0 : index
    %c0_738 = arith.constant 0 : index
    %987 = vector.load %arg10[%c0_737, %c0_738] : memref<1x256xf32, #tpu.memory_space<vmem>>, vector<1x256xf32>
    tpu.vector_store %arg10[%c0_737, %c0_738], %986 {strides = array<i32>} : memref<1x256xf32, #tpu.memory_space<vmem>>, vector<1x256xf32>,
    %c1_739 = arith.constant 1 : index
    %c0_740 = arith.constant 0 : index
    %c82_741 = arith.constant 82 : index
    %988 = vector.load %arg9[%c1_739, %c0_740, %c82_741] : memref<2x1x358xf32, #tpu.memory_space<vmem>>, vector<1x1x256xf32>
    %989 = vector.shape_cast %988 : vector<1x1x256xf32> to vector<1x256xf32>
    %c86_742 = arith.constant 86 : index
    %990 = memref.load %arg6[%c86_742] : memref<98xf32, #tpu.memory_space<smem>>
    %c0_743 = arith.constant 0 : index
    %c0_744 = arith.constant 0 : index
    %991 = vector.load %arg10[%c0_743, %c0_744] : memref<1x256xf32, #tpu.memory_space<vmem>>, vector<1x256xf32>
    %cst_745 = arith.constant 0.000000e+00 : f32
    %992 = vector.broadcast %cst_745 : f32 to vector<1x256xf32>
    %993 = arith.select %86, %989, %992 : vector<1x256xi1>, vector<1x256xf32>
    %994 = vector.broadcast %990 : f32 to vector<1x256xf32>
    %995 = arith.mulf %994, %993 : vector<1x256xf32>
    %996 = arith.addf %991, %995 : vector<1x256xf32>
    %c0_746 = arith.constant 0 : index
    %c0_747 = arith.constant 0 : index
    %997 = vector.load %arg10[%c0_746, %c0_747] : memref<1x256xf32, #tpu.memory_space<vmem>>, vector<1x256xf32>
    tpu.vector_store %arg10[%c0_746, %c0_747], %996 {strides = array<i32>} : memref<1x256xf32, #tpu.memory_space<vmem>>, vector<1x256xf32>,
    %c1_748 = arith.constant 1 : index
    %c0_749 = arith.constant 0 : index
    %c83_750 = arith.constant 83 : index
    %998 = vector.load %arg9[%c1_748, %c0_749, %c83_750] : memref<2x1x358xf32, #tpu.memory_space<vmem>>, vector<1x1x256xf32>
    %999 = vector.shape_cast %998 : vector<1x1x256xf32> to vector<1x256xf32>
    %c87 = arith.constant 87 : index
    %1000 = memref.load %arg6[%c87] : memref<98xf32, #tpu.memory_space<smem>>
    %c0_751 = arith.constant 0 : index
    %c0_752 = arith.constant 0 : index
    %1001 = vector.load %arg10[%c0_751, %c0_752] : memref<1x256xf32, #tpu.memory_space<vmem>>, vector<1x256xf32>
    %cst_753 = arith.constant 0.000000e+00 : f32
    %1002 = vector.broadcast %cst_753 : f32 to vector<1x256xf32>
    %1003 = arith.select %95, %999, %1002 : vector<1x256xi1>, vector<1x256xf32>
    %1004 = vector.broadcast %1000 : f32 to vector<1x256xf32>
    %1005 = arith.mulf %1004, %1003 : vector<1x256xf32>
    %1006 = arith.addf %1001, %1005 : vector<1x256xf32>
    %c0_754 = arith.constant 0 : index
    %c0_755 = arith.constant 0 : index
    %1007 = vector.load %arg10[%c0_754, %c0_755] : memref<1x256xf32, #tpu.memory_space<vmem>>, vector<1x256xf32>
    tpu.vector_store %arg10[%c0_754, %c0_755], %1006 {strides = array<i32>} : memref<1x256xf32, #tpu.memory_space<vmem>>, vector<1x256xf32>,
    %c1_756 = arith.constant 1 : index
    %c0_757 = arith.constant 0 : index
    %c84_758 = arith.constant 84 : index
    %1008 = vector.load %arg9[%c1_756, %c0_757, %c84_758] : memref<2x1x358xf32, #tpu.memory_space<vmem>>, vector<1x1x256xf32>
    %1009 = vector.shape_cast %1008 : vector<1x1x256xf32> to vector<1x256xf32>
    %c88 = arith.constant 88 : index
    %1010 = memref.load %arg6[%c88] : memref<98xf32, #tpu.memory_space<smem>>
    %c0_759 = arith.constant 0 : index
    %c0_760 = arith.constant 0 : index
    %1011 = vector.load %arg10[%c0_759, %c0_760] : memref<1x256xf32, #tpu.memory_space<vmem>>, vector<1x256xf32>
    %cst_761 = arith.constant 0.000000e+00 : f32
    %1012 = vector.broadcast %cst_761 : f32 to vector<1x256xf32>
    %1013 = arith.select %104, %1009, %1012 : vector<1x256xi1>, vector<1x256xf32>
    %1014 = vector.broadcast %1010 : f32 to vector<1x256xf32>
    %1015 = arith.mulf %1014, %1013 : vector<1x256xf32>
    %1016 = arith.addf %1011, %1015 : vector<1x256xf32>
    %c0_762 = arith.constant 0 : index
    %c0_763 = arith.constant 0 : index
    %1017 = vector.load %arg10[%c0_762, %c0_763] : memref<1x256xf32, #tpu.memory_space<vmem>>, vector<1x256xf32>
    tpu.vector_store %arg10[%c0_762, %c0_763], %1016 {strides = array<i32>} : memref<1x256xf32, #tpu.memory_space<vmem>>, vector<1x256xf32>,
    %c1_764 = arith.constant 1 : index
    %c0_765 = arith.constant 0 : index
    %c85_766 = arith.constant 85 : index
    %1018 = vector.load %arg9[%c1_764, %c0_765, %c85_766] : memref<2x1x358xf32, #tpu.memory_space<vmem>>, vector<1x1x256xf32>
    %1019 = vector.shape_cast %1018 : vector<1x1x256xf32> to vector<1x256xf32>
    %c89 = arith.constant 89 : index
    %1020 = memref.load %arg6[%c89] : memref<98xf32, #tpu.memory_space<smem>>
    %c0_767 = arith.constant 0 : index
    %c0_768 = arith.constant 0 : index
    %1021 = vector.load %arg10[%c0_767, %c0_768] : memref<1x256xf32, #tpu.memory_space<vmem>>, vector<1x256xf32>
    %cst_769 = arith.constant 0.000000e+00 : f32
    %1022 = vector.broadcast %cst_769 : f32 to vector<1x256xf32>
    %1023 = arith.select %113, %1019, %1022 : vector<1x256xi1>, vector<1x256xf32>
    %1024 = vector.broadcast %1020 : f32 to vector<1x256xf32>
    %1025 = arith.mulf %1024, %1023 : vector<1x256xf32>
    %1026 = arith.addf %1021, %1025 : vector<1x256xf32>
    %c0_770 = arith.constant 0 : index
    %c0_771 = arith.constant 0 : index
    %1027 = vector.load %arg10[%c0_770, %c0_771] : memref<1x256xf32, #tpu.memory_space<vmem>>, vector<1x256xf32>
    tpu.vector_store %arg10[%c0_770, %c0_771], %1026 {strides = array<i32>} : memref<1x256xf32, #tpu.memory_space<vmem>>, vector<1x256xf32>,
    %c1_772 = arith.constant 1 : index
    %c0_773 = arith.constant 0 : index
    %c86_774 = arith.constant 86 : index
    %1028 = vector.load %arg9[%c1_772, %c0_773, %c86_774] : memref<2x1x358xf32, #tpu.memory_space<vmem>>, vector<1x1x256xf32>
    %1029 = vector.shape_cast %1028 : vector<1x1x256xf32> to vector<1x256xf32>
    %c90 = arith.constant 90 : index
    %1030 = memref.load %arg6[%c90] : memref<98xf32, #tpu.memory_space<smem>>
    %c0_775 = arith.constant 0 : index
    %c0_776 = arith.constant 0 : index
    %1031 = vector.load %arg10[%c0_775, %c0_776] : memref<1x256xf32, #tpu.memory_space<vmem>>, vector<1x256xf32>
    %cst_777 = arith.constant 0.000000e+00 : f32
    %1032 = vector.broadcast %cst_777 : f32 to vector<1x256xf32>
    %1033 = arith.select %122, %1029, %1032 : vector<1x256xi1>, vector<1x256xf32>
    %1034 = vector.broadcast %1030 : f32 to vector<1x256xf32>
    %1035 = arith.mulf %1034, %1033 : vector<1x256xf32>
    %1036 = arith.addf %1031, %1035 : vector<1x256xf32>
    %c0_778 = arith.constant 0 : index
    %c0_779 = arith.constant 0 : index
    %1037 = vector.load %arg10[%c0_778, %c0_779] : memref<1x256xf32, #tpu.memory_space<vmem>>, vector<1x256xf32>
    tpu.vector_store %arg10[%c0_778, %c0_779], %1036 {strides = array<i32>} : memref<1x256xf32, #tpu.memory_space<vmem>>, vector<1x256xf32>,
    %c1_780 = arith.constant 1 : index
    %c0_781 = arith.constant 0 : index
    %c96_782 = arith.constant 96 : index
    %1038 = vector.load %arg9[%c1_780, %c0_781, %c96_782] : memref<2x1x358xf32, #tpu.memory_space<vmem>>, vector<1x1x256xf32>
    %1039 = vector.shape_cast %1038 : vector<1x1x256xf32> to vector<1x256xf32>
    %c91 = arith.constant 91 : index
    %1040 = memref.load %arg6[%c91] : memref<98xf32, #tpu.memory_space<smem>>
    %c0_783 = arith.constant 0 : index
    %c0_784 = arith.constant 0 : index
    %1041 = vector.load %arg10[%c0_783, %c0_784] : memref<1x256xf32, #tpu.memory_space<vmem>>, vector<1x256xf32>
    %cst_785 = arith.constant 0.000000e+00 : f32
    %1042 = vector.broadcast %cst_785 : f32 to vector<1x256xf32>
    %1043 = arith.select %68, %1039, %1042 : vector<1x256xi1>, vector<1x256xf32>
    %1044 = vector.broadcast %1040 : f32 to vector<1x256xf32>
    %1045 = arith.mulf %1044, %1043 : vector<1x256xf32>
    %1046 = arith.addf %1041, %1045 : vector<1x256xf32>
    %c0_786 = arith.constant 0 : index
    %c0_787 = arith.constant 0 : index
    %1047 = vector.load %arg10[%c0_786, %c0_787] : memref<1x256xf32, #tpu.memory_space<vmem>>, vector<1x256xf32>
    tpu.vector_store %arg10[%c0_786, %c0_787], %1046 {strides = array<i32>} : memref<1x256xf32, #tpu.memory_space<vmem>>, vector<1x256xf32>,
    %c1_788 = arith.constant 1 : index
    %c0_789 = arith.constant 0 : index
    %c97_790 = arith.constant 97 : index
    %1048 = vector.load %arg9[%c1_788, %c0_789, %c97_790] : memref<2x1x358xf32, #tpu.memory_space<vmem>>, vector<1x1x256xf32>
    %1049 = vector.shape_cast %1048 : vector<1x1x256xf32> to vector<1x256xf32>
    %c92 = arith.constant 92 : index
    %1050 = memref.load %arg6[%c92] : memref<98xf32, #tpu.memory_space<smem>>
    %c0_791 = arith.constant 0 : index
    %c0_792 = arith.constant 0 : index
    %1051 = vector.load %arg10[%c0_791, %c0_792] : memref<1x256xf32, #tpu.memory_space<vmem>>, vector<1x256xf32>
    %cst_793 = arith.constant 0.000000e+00 : f32
    %1052 = vector.broadcast %cst_793 : f32 to vector<1x256xf32>
    %1053 = arith.select %77, %1049, %1052 : vector<1x256xi1>, vector<1x256xf32>
    %1054 = vector.broadcast %1050 : f32 to vector<1x256xf32>
    %1055 = arith.mulf %1054, %1053 : vector<1x256xf32>
    %1056 = arith.addf %1051, %1055 : vector<1x256xf32>
    %c0_794 = arith.constant 0 : index
    %c0_795 = arith.constant 0 : index
    %1057 = vector.load %arg10[%c0_794, %c0_795] : memref<1x256xf32, #tpu.memory_space<vmem>>, vector<1x256xf32>
    tpu.vector_store %arg10[%c0_794, %c0_795], %1056 {strides = array<i32>} : memref<1x256xf32, #tpu.memory_space<vmem>>, vector<1x256xf32>,
    %c1_796 = arith.constant 1 : index
    %c0_797 = arith.constant 0 : index
    %c98_798 = arith.constant 98 : index
    %1058 = vector.load %arg9[%c1_796, %c0_797, %c98_798] : memref<2x1x358xf32, #tpu.memory_space<vmem>>, vector<1x1x256xf32>
    %1059 = vector.shape_cast %1058 : vector<1x1x256xf32> to vector<1x256xf32>
    %c93 = arith.constant 93 : index
    %1060 = memref.load %arg6[%c93] : memref<98xf32, #tpu.memory_space<smem>>
    %c0_799 = arith.constant 0 : index
    %c0_800 = arith.constant 0 : index
    %1061 = vector.load %arg10[%c0_799, %c0_800] : memref<1x256xf32, #tpu.memory_space<vmem>>, vector<1x256xf32>
    %cst_801 = arith.constant 0.000000e+00 : f32
    %1062 = vector.broadcast %cst_801 : f32 to vector<1x256xf32>
    %1063 = arith.select %86, %1059, %1062 : vector<1x256xi1>, vector<1x256xf32>
    %1064 = vector.broadcast %1060 : f32 to vector<1x256xf32>
    %1065 = arith.mulf %1064, %1063 : vector<1x256xf32>
    %1066 = arith.addf %1061, %1065 : vector<1x256xf32>
    %c0_802 = arith.constant 0 : index
    %c0_803 = arith.constant 0 : index
    %1067 = vector.load %arg10[%c0_802, %c0_803] : memref<1x256xf32, #tpu.memory_space<vmem>>, vector<1x256xf32>
    tpu.vector_store %arg10[%c0_802, %c0_803], %1066 {strides = array<i32>} : memref<1x256xf32, #tpu.memory_space<vmem>>, vector<1x256xf32>,
    %c1_804 = arith.constant 1 : index
    %c0_805 = arith.constant 0 : index
    %c99_806 = arith.constant 99 : index
    %1068 = vector.load %arg9[%c1_804, %c0_805, %c99_806] : memref<2x1x358xf32, #tpu.memory_space<vmem>>, vector<1x1x256xf32>
    %1069 = vector.shape_cast %1068 : vector<1x1x256xf32> to vector<1x256xf32>
    %c94 = arith.constant 94 : index
    %1070 = memref.load %arg6[%c94] : memref<98xf32, #tpu.memory_space<smem>>
    %c0_807 = arith.constant 0 : index
    %c0_808 = arith.constant 0 : index
    %1071 = vector.load %arg10[%c0_807, %c0_808] : memref<1x256xf32, #tpu.memory_space<vmem>>, vector<1x256xf32>
    %cst_809 = arith.constant 0.000000e+00 : f32
    %1072 = vector.broadcast %cst_809 : f32 to vector<1x256xf32>
    %1073 = arith.select %95, %1069, %1072 : vector<1x256xi1>, vector<1x256xf32>
    %1074 = vector.broadcast %1070 : f32 to vector<1x256xf32>
    %1075 = arith.mulf %1074, %1073 : vector<1x256xf32>
    %1076 = arith.addf %1071, %1075 : vector<1x256xf32>
    %c0_810 = arith.constant 0 : index
    %c0_811 = arith.constant 0 : index
    %1077 = vector.load %arg10[%c0_810, %c0_811] : memref<1x256xf32, #tpu.memory_space<vmem>>, vector<1x256xf32>
    tpu.vector_store %arg10[%c0_810, %c0_811], %1076 {strides = array<i32>} : memref<1x256xf32, #tpu.memory_space<vmem>>, vector<1x256xf32>,
    %c1_812 = arith.constant 1 : index
    %c0_813 = arith.constant 0 : index
    %c100_814 = arith.constant 100 : index
    %1078 = vector.load %arg9[%c1_812, %c0_813, %c100_814] : memref<2x1x358xf32, #tpu.memory_space<vmem>>, vector<1x1x256xf32>
    %1079 = vector.shape_cast %1078 : vector<1x1x256xf32> to vector<1x256xf32>
    %c95 = arith.constant 95 : index
    %1080 = memref.load %arg6[%c95] : memref<98xf32, #tpu.memory_space<smem>>
    %c0_815 = arith.constant 0 : index
    %c0_816 = arith.constant 0 : index
    %1081 = vector.load %arg10[%c0_815, %c0_816] : memref<1x256xf32, #tpu.memory_space<vmem>>, vector<1x256xf32>
    %cst_817 = arith.constant 0.000000e+00 : f32
    %1082 = vector.broadcast %cst_817 : f32 to vector<1x256xf32>
    %1083 = arith.select %104, %1079, %1082 : vector<1x256xi1>, vector<1x256xf32>
    %1084 = vector.broadcast %1080 : f32 to vector<1x256xf32>
    %1085 = arith.mulf %1084, %1083 : vector<1x256xf32>
    %1086 = arith.addf %1081, %1085 : vector<1x256xf32>
    %c0_818 = arith.constant 0 : index
    %c0_819 = arith.constant 0 : index
    %1087 = vector.load %arg10[%c0_818, %c0_819] : memref<1x256xf32, #tpu.memory_space<vmem>>, vector<1x256xf32>
    tpu.vector_store %arg10[%c0_818, %c0_819], %1086 {strides = array<i32>} : memref<1x256xf32, #tpu.memory_space<vmem>>, vector<1x256xf32>,
    %c1_820 = arith.constant 1 : index
    %c0_821 = arith.constant 0 : index
    %c101_822 = arith.constant 101 : index
    %1088 = vector.load %arg9[%c1_820, %c0_821, %c101_822] : memref<2x1x358xf32, #tpu.memory_space<vmem>>, vector<1x1x256xf32>
    %1089 = vector.shape_cast %1088 : vector<1x1x256xf32> to vector<1x256xf32>
    %c96_823 = arith.constant 96 : index
    %1090 = memref.load %arg6[%c96_823] : memref<98xf32, #tpu.memory_space<smem>>
    %c0_824 = arith.constant 0 : index
    %c0_825 = arith.constant 0 : index
    %1091 = vector.load %arg10[%c0_824, %c0_825] : memref<1x256xf32, #tpu.memory_space<vmem>>, vector<1x256xf32>
    %cst_826 = arith.constant 0.000000e+00 : f32
    %1092 = vector.broadcast %cst_826 : f32 to vector<1x256xf32>
    %1093 = arith.select %113, %1089, %1092 : vector<1x256xi1>, vector<1x256xf32>
    %1094 = vector.broadcast %1090 : f32 to vector<1x256xf32>
    %1095 = arith.mulf %1094, %1093 : vector<1x256xf32>
    %1096 = arith.addf %1091, %1095 : vector<1x256xf32>
    %c0_827 = arith.constant 0 : index
    %c0_828 = arith.constant 0 : index
    %1097 = vector.load %arg10[%c0_827, %c0_828] : memref<1x256xf32, #tpu.memory_space<vmem>>, vector<1x256xf32>
    tpu.vector_store %arg10[%c0_827, %c0_828], %1096 {strides = array<i32>} : memref<1x256xf32, #tpu.memory_space<vmem>>, vector<1x256xf32>,
    %c1_829 = arith.constant 1 : index
    %c0_830 = arith.constant 0 : index
    %c102_831 = arith.constant 102 : index
    %1098 = vector.load %arg9[%c1_829, %c0_830, %c102_831] : memref<2x1x358xf32, #tpu.memory_space<vmem>>, vector<1x1x256xf32>
    %1099 = vector.shape_cast %1098 : vector<1x1x256xf32> to vector<1x256xf32>
    %c97_832 = arith.constant 97 : index
    %1100 = memref.load %arg6[%c97_832] : memref<98xf32, #tpu.memory_space<smem>>
    %c0_833 = arith.constant 0 : index
    %c0_834 = arith.constant 0 : index
    %1101 = vector.load %arg10[%c0_833, %c0_834] : memref<1x256xf32, #tpu.memory_space<vmem>>, vector<1x256xf32>
    %cst_835 = arith.constant 0.000000e+00 : f32
    %1102 = vector.broadcast %cst_835 : f32 to vector<1x256xf32>
    %1103 = arith.select %122, %1099, %1102 : vector<1x256xi1>, vector<1x256xf32>
    %1104 = vector.broadcast %1100 : f32 to vector<1x256xf32>
    %1105 = arith.mulf %1104, %1103 : vector<1x256xf32>
    %1106 = arith.addf %1101, %1105 : vector<1x256xf32>
    %c0_836 = arith.constant 0 : index
    %c0_837 = arith.constant 0 : index
    %1107 = vector.load %arg10[%c0_836, %c0_837] : memref<1x256xf32, #tpu.memory_space<vmem>>, vector<1x256xf32>
    tpu.vector_store %arg10[%c0_836, %c0_837], %1106 {strides = array<i32>} : memref<1x256xf32, #tpu.memory_space<vmem>>, vector<1x256xf32>,
    %c0_838 = arith.constant 0 : index
    %c0_839 = arith.constant 0 : index
    %1108 = vector.load %arg10[%c0_838, %c0_839] : memref<1x256xf32, #tpu.memory_space<vmem>>, vector<1x256xf32>
    %1109 = arith.negf %1108 : vector<1x256xf32>
    %1110 = math.exp %1109 : vector<1x256xf32>
    %cst_840 = arith.constant 1.000000e+00 : f32
    %1111 = vector.broadcast %cst_840 : f32 to vector<1x256xf32>
    %1112 = arith.addf %1111, %1110 : vector<1x256xf32>
    %1113 = arith.divf %1111, %1112 : vector<1x256xf32>
    %1114 = vector.broadcast %1113 : vector<1x256xf32> to vector<32x256xf32>
    %1115 = arith.mulf %28, %1114 : vector<32x256xf32>
    %c0_841 = arith.constant 0 : index
    %c0_842 = arith.constant 0 : index
    %c0_843 = arith.constant 0 : index
    %1116 = vector.load %arg8[%c0_841, %c0_842, %c0_843] : memref<1x32x256xf32, #tpu.memory_space<vmem>>, vector<1x32x256xf32>
    %1117 = vector.shape_cast %1116 : vector<1x32x256xf32> to vector<32x256xf32>
    %1118 = vector.shape_cast %1115 : vector<32x256xf32> to vector<1x32x256xf32>
    tpu.vector_store %arg8[%c0_841, %c0_842, %c0_843], %1118 {strides = array<i32>} : memref<1x32x256xf32, #tpu.memory_space<vmem>>, vector<1x32x256xf32>,
    return
  }
  func.func @transform_0(%arg0: i32) -> (i32, i32, i32) {
    %c0_i32 = arith.constant 0 : i32
    %c0_i32_0 = arith.constant 0 : i32
    %c0_i32_1 = arith.constant 0 : i32
    return %arg0, %c0_i32, %c0_i32_0 : i32, i32, i32
  }
  func.func @transform_1(%arg0: i32) -> (i32, i32) {
    %c0_i32 = arith.constant 0 : i32
    %c0_i32_0 = arith.constant 0 : i32
    %c0_i32_1 = arith.constant 0 : i32
    return %c0_i32, %c0_i32_0 : i32, i32
  }
  func.func @transform_2(%arg0: i32) -> (i32, i32) {
    %c0_i32 = arith.constant 0 : i32
    %c0_i32_0 = arith.constant 0 : i32
    %c0_i32_1 = arith.constant 0 : i32
    return %c0_i32, %c0_i32_0 : i32, i32
  }
  func.func @transform_3(%arg0: i32) -> (i32, i32) {
    %c0_i32 = arith.constant 0 : i32
    %c0_i32_0 = arith.constant 0 : i32
    %c0_i32_1 = arith.constant 0 : i32
    return %c0_i32, %c0_i32_0 : i32, i32
  }
  func.func @transform_4(%arg0: i32) -> (i32, i32) {
    %c0_i32 = arith.constant 0 : i32
    %c0_i32_0 = arith.constant 0 : i32
    %c0_i32_1 = arith.constant 0 : i32
    return %c0_i32, %c0_i32_0 : i32, i32
  }
  func.func @transform_5(%arg0: i32) -> i32 {
    %c0_i32 = arith.constant 0 : i32
    %c0_i32_0 = arith.constant 0 : i32
    return %c0_i32 : i32
  }
  func.func @transform_6(%arg0: i32) -> i32 {
    %c0_i32 = arith.constant 0 : i32
    %c0_i32_0 = arith.constant 0 : i32
    return %c0_i32 : i32
  }
  func.func @transform_7(%arg0: i32) -> (i32, i32, i32) {
    %c0_i32 = arith.constant 0 : i32
    %c0_i32_0 = arith.constant 0 : i32
    %c0_i32_1 = arith.constant 0 : i32
    return %arg0, %c0_i32, %c0_i32_0 : i32, i32, i32
  }
}

</mosaic_0001>

<llo_original>
// kernel: cbam_pallas.1
$region0: #{cbam_pallas.1}
  #allocation0 [shape = 'u32[]', space=smem, size = 0x4, offset = 0x4, fixed_abs, tag = 'smem constant byte address 0x4 - core index']
  #allocation1 [shape = 'u32[144,128]{1,0:T(1,128)}', space=vmem, size = 0x12000, scoped, tag = 'internal scratch']
  #allocation2 [shape = 'f32[2,1,358]{2,1,0:T(1,128)}', space=vmem, size = 0xc00, scoped, tag = 'scratch operand']
  #allocation3 [shape = 'f32[1,256]{1,0:T(1,128)}', space=vmem, size = 0x400, scoped, tag = 'scratch operand']
  #allocation4 [shape = 'f32[1]{0:T(128)S(6)}', space=smem, size = 0x200, scoped, tag = 'scoped memory for cbam_pallas.1']
  %s0 = inlined_call_operand.vmem [shape: f32[2,32,256], index: 0, kind: input, shape index: {}]
  %s1 = inlined_call_operand.vmem [shape: f32[32,2], index: 1, kind: input, shape index: {}]
  %s2 = inlined_call_operand.vmem [shape: f32[1,2], index: 2, kind: input, shape index: {}]
  %s3 = inlined_call_operand.vmem [shape: f32[32,2], index: 3, kind: input, shape index: {}]
  %s4 = inlined_call_operand.vmem [shape: f32[32,1], index: 4, kind: input, shape index: {}]
  %s5 = inlined_call_operand.vmem [shape: f32[98], index: 5, kind: input, shape index: {}]
  %s6 = inlined_call_operand.<no memory space> [shape: f32[1], index: 6, kind: input, shape index: {}]
  %s7 = inlined_call_operand.vmem [shape: f32[2,32,256], index: 7, kind: output, shape index: {}]
  %s8 = sld [smem:[#allocation0]]
  $region65: #{cbam_pallas.1} parent=0
    _
  %s10 = ssub.s32 1, %s8
  %s11 = scalar_select 0, %s10, %s8
  %12 = sst [smem:[#allocation4]] %s6
  $region1: #{cbam_pallas.1} parent=0
    #allocation5 [shape = 'u8[512]{0}', space=smem, size = 0x200, scoped, tag = 'input window, operand 5, single buffered']
    #allocation6 [shape = 's32[2]{0}', space=sflag, size = 0x8, scoped, tag = 'scoped memory for cbam_pallas.1']
    %13 = vsyncpa [#allocation6], 0
    loop: start=0, step=1, limit=4
    $region2: #{cbam_pallas.1} parent=1 // loop_pre_header
      _
    $region3: #{cbam_pallas.1} parent=1 // loop_header
      %s15 = sphi 0, %s19
      %p16 = scmp.ge.s32.totalorder %s15, 4
      %s25 = sphi 0, %s27
      %s28 = sphi 0, %s25
      %s29 = sphi 0, %s28
      %s45 = sphi 0, %s29
      %s49 = sphi 0, %s49
      %s51 = sphi 0, %s49
      %s52 = sphi 0, %s51
      %s66 = sphi 0, %s52
      %s70 = sphi 0, %s70
      %s72 = sphi 0, %s70
      %s73 = sphi 0, %s72
      %s87 = sphi 0, %s73
      %s91 = sphi 0, %s91
      %s93 = sphi 0, %s91
      %s94 = sphi 0, %s93
      %s108 = sphi 0, %s94
      %s112 = sphi 0, %s112
      %s114 = sphi 0, %s112
      %s115 = sphi 0, %s114
      %s129 = sphi 0, %s115
      %s133 = sphi 0, %s133
      %s135 = sphi 0, %s133
      %s136 = sphi 0, %s135
      %s150 = sphi 0, %s136
      %s154 = sphi 0, %s154
      %s156 = sphi 0, %s154
      %s157 = sphi 0, %s156
      %s171 = sphi 0, %s157
      %s177 = sphi 0, %s179
      %s180 = sphi 0, %s177
      %s181 = sphi 0, %s180
      %s197 = sphi 0, %s181
    $region4: #{cbam_pallas.1} parent=1 // loop_header_branch
      %18 = sbr.rel (%p16) target = $region8
    $region5: #{cbam_pallas.1} parent=1 // loop_body
      %s20 = ssub.s32 %s15, 1
      %s21 = ssub.s32 %s15, 2
      %s22 = sadd.s32 %s15, 1
      %s23 = ssub.s32 %s15, %s22
      %p24 = scmp.eq.s32.totalorder %s23, 0
      %s26 = sadd.s32 %s25, 1
      %s27 = scalar_select %p24, %s25, %s26
      %p30 = pneg %p24
      %p31 = scmp.eq.s32.totalorder %s15, 1
      %p32 = por %p30, %p31
      %p33 = scmp.ne.s32.totalorder %s25, %s28
      %p34 = scmp.eq.s32.totalorder %s15, 0
      %p35 = por %p33, %p34
      %p36 = scmp.ne.s32.totalorder %s25, %s28
      %p37 = scmp.eq.s32.totalorder %s20, 1
      %p38 = por %p36, %p37
      %p39 = scmp.ne.s32.totalorder %s28, %s29
      %p40 = scmp.eq.s32.totalorder %s20, 0
      %p41 = por %p39, %p40
      %p42 = scmp.ne.s32.totalorder %s28, %s29
      %p43 = scmp.eq.s32.totalorder %s21, 1
      %p44 = por %p42, %p43
      %p46 = scmp.ne.s32.totalorder %s29, %s45
      %p47 = scmp.eq.s32.totalorder %s21, 0
      %p48 = por %p46, %p47
      %s50 = sadd.s32 %s49, 1
      %p53 = scmp.eq.s32.totalorder %s15, 1
      %p54 = scmp.ne.s32.totalorder %s49, %s51
      %p55 = scmp.eq.s32.totalorder %s15, 0
      %p56 = por %p54, %p55
      %p57 = scmp.ne.s32.totalorder %s49, %s51
      %p58 = scmp.eq.s32.totalorder %s20, 1
      %p59 = por %p57, %p58
      %p60 = scmp.ne.s32.totalorder %s51, %s52
      %p61 = scmp.eq.s32.totalorder %s20, 0
      %p62 = por %p60, %p61
      %p63 = scmp.ne.s32.totalorder %s51, %s52
      %p64 = scmp.eq.s32.totalorder %s21, 1
      %p65 = por %p63, %p64
      %p67 = scmp.ne.s32.totalorder %s52, %s66
      %p68 = scmp.eq.s32.totalorder %s21, 0
      %p69 = por %p67, %p68
      %s71 = sadd.s32 %s70, 1
      %p74 = scmp.eq.s32.totalorder %s15, 1
      %p75 = scmp.ne.s32.totalorder %s70, %s72
      %p76 = scmp.eq.s32.totalorder %s15, 0
      %p77 = por %p75, %p76
      %p78 = scmp.ne.s32.totalorder %s70, %s72
      %p79 = scmp.eq.s32.totalorder %s20, 1
      %p80 = por %p78, %p79
      %p81 = scmp.ne.s32.totalorder %s72, %s73
      %p82 = scmp.eq.s32.totalorder %s20, 0
      %p83 = por %p81, %p82
      %p84 = scmp.ne.s32.totalorder %s72, %s73
      %p85 = scmp.eq.s32.totalorder %s21, 1
      %p86 = por %p84, %p85
      %p88 = scmp.ne.s32.totalorder %s73, %s87
      %p89 = scmp.eq.s32.totalorder %s21, 0
      %p90 = por %p88, %p89
      %s92 = sadd.s32 %s91, 1
      %p95 = scmp.eq.s32.totalorder %s15, 1
      %p96 = scmp.ne.s32.totalorder %s91, %s93
      %p97 = scmp.eq.s32.totalorder %s15, 0
      %p98 = por %p96, %p97
      %p99 = scmp.ne.s32.totalorder %s91, %s93
      %p100 = scmp.eq.s32.totalorder %s20, 1
      %p101 = por %p99, %p100
      %p102 = scmp.ne.s32.totalorder %s93, %s94
      %p103 = scmp.eq.s32.totalorder %s20, 0
      %p104 = por %p102, %p103
      %p105 = scmp.ne.s32.totalorder %s93, %s94
      %p106 = scmp.eq.s32.totalorder %s21, 1
      %p107 = por %p105, %p106
      %p109 = scmp.ne.s32.totalorder %s94, %s108
      %p110 = scmp.eq.s32.totalorder %s21, 0
      %p111 = por %p109, %p110
      %s113 = sadd.s32 %s112, 1
      %p116 = scmp.eq.s32.totalorder %s15, 1
      %p117 = scmp.ne.s32.totalorder %s112, %s114
      %p118 = scmp.eq.s32.totalorder %s15, 0
      %p119 = por %p117, %p118
      %p120 = scmp.ne.s32.totalorder %s112, %s114
      %p121 = scmp.eq.s32.totalorder %s20, 1
      %p122 = por %p120, %p121
      %p123 = scmp.ne.s32.totalorder %s114, %s115
      %p124 = scmp.eq.s32.totalorder %s20, 0
      %p125 = por %p123, %p124
      %p126 = scmp.ne.s32.totalorder %s114, %s115
      %p127 = scmp.eq.s32.totalorder %s21, 1
      %p128 = por %p126, %p127
      %p130 = scmp.ne.s32.totalorder %s115, %s129
      %p131 = scmp.eq.s32.totalorder %s21, 0
      %p132 = por %p130, %p131
      %s134 = sadd.s32 %s133, 1
      %p137 = scmp.eq.s32.totalorder %s15, 1
      %p138 = scmp.ne.s32.totalorder %s133, %s135
      %p139 = scmp.eq.s32.totalorder %s15, 0
      %p140 = por %p138, %p139
      %p141 = scmp.ne.s32.totalorder %s133, %s135
      %p142 = scmp.eq.s32.totalorder %s20, 1
      %p143 = por %p141, %p142
      %p144 = scmp.ne.s32.totalorder %s135, %s136
      %p145 = scmp.eq.s32.totalorder %s20, 0
      %p146 = por %p144, %p145
      %p147 = scmp.ne.s32.totalorder %s135, %s136
      %p148 = scmp.eq.s32.totalorder %s21, 1
      %p149 = por %p147, %p148
      %p151 = scmp.ne.s32.totalorder %s136, %s150
      %p152 = scmp.eq.s32.totalorder %s21, 0
      %p153 = por %p151, %p152
      %s155 = sadd.s32 %s154, 1
      %p158 = scmp.eq.s32.totalorder %s15, 1
      %p159 = scmp.ne.s32.totalorder %s154, %s156
      %p160 = scmp.eq.s32.totalorder %s15, 0
      %p161 = por %p159, %p160
      %p162 = scmp.ne.s32.totalorder %s154, %s156
      %p163 = scmp.eq.s32.totalorder %s20, 1
      %p164 = por %p162, %p163
      %p165 = scmp.ne.s32.totalorder %s156, %s157
      %p166 = scmp.eq.s32.totalorder %s20, 0
      %p167 = por %p165, %p166
      %p168 = scmp.ne.s32.totalorder %s156, %s157
      %p169 = scmp.eq.s32.totalorder %s21, 1
      %p170 = por %p168, %p169
      %p172 = scmp.ne.s32.totalorder %s157, %s171
      %p173 = scmp.eq.s32.totalorder %s21, 0
      %p174 = por %p172, %p173
      %s175 = ssub.s32 %s15, %s22
      %p176 = scmp.eq.s32.totalorder %s175, 0
      %s178 = sadd.s32 %s177, 1
      %s179 = scalar_select %p176, %s177, %s178
      %p182 = pneg %p176
      %p183 = scmp.eq.s32.totalorder %s15, 1
      %p184 = por %p182, %p183
      %p185 = scmp.ne.s32.totalorder %s177, %s180
      %p186 = scmp.eq.s32.totalorder %s15, 0
      %p187 = por %p185, %p186
      %p188 = scmp.ne.s32.totalorder %s177, %s180
      %p189 = scmp.eq.s32.totalorder %s20, 1
      %p190 = por %p188, %p189
      %p191 = scmp.ne.s32.totalorder %s180, %s181
      %p192 = scmp.eq.s32.totalorder %s20, 0
      %p193 = por %p191, %p192
      %p194 = scmp.ne.s32.totalorder %s180, %s181
      %p195 = scmp.eq.s32.totalorder %s21, 1
      %p196 = por %p194, %p195
      %p198 = scmp.ne.s32.totalorder %s181, %s197
      %p199 = scmp.eq.s32.totalorder %s21, 0
      %p200 = por %p198, %p199
      %p201 = scmp.le.s32.totalorder 1, %s15
      %p202 = scmp.lt.s32.totalorder %s15, 3
      %p203 = pnand %p201, %p202
      %p204 = pneg %p203
      // Predicated region
      $region9: #{cbam_pallas.1} parent=5 // pred_check
        _
      $region10: #{cbam_pallas.1} parent=5 // pred_check_branch
        %206 = sbr.rel (%p203) target = $region12
      $region11: #{cbam_pallas.1} parent=5 // pred_region
        %s207 = ssub.s32 %s15, 1
        // Predicated region
        $region13: #{cbam_pallas.1} parent=11 // pred_check
          %p208 = pneg %p62
        $region14: #{cbam_pallas.1} parent=11 // pred_check_branch
          %210 = sbr.rel (%p208) target = $region16
        $region15: #{cbam_pallas.1} parent=11 // pred_region
          _
        $region16: #{cbam_pallas.1} parent=11 // pred_fallthru
          _
        // Predicated region
        $region17: #{cbam_pallas.1} parent=11 // pred_check
          %p211 = pneg %p83
        $region18: #{cbam_pallas.1} parent=11 // pred_check_branch
          %213 = sbr.rel (%p211) target = $region20
        $region19: #{cbam_pallas.1} parent=11 // pred_region
          _
        $region20: #{cbam_pallas.1} parent=11 // pred_fallthru
          _
        // Predicated region
        $region21: #{cbam_pallas.1} parent=11 // pred_check
          %p214 = pneg %p104
        $region22: #{cbam_pallas.1} parent=11 // pred_check_branch
          %216 = sbr.rel (%p214) target = $region24
        $region23: #{cbam_pallas.1} parent=11 // pred_region
          _
        $region24: #{cbam_pallas.1} parent=11 // pred_fallthru
          _
        // Predicated region
        $region25: #{cbam_pallas.1} parent=11 // pred_check
          %p217 = pneg %p125
        $region26: #{cbam_pallas.1} parent=11 // pred_check_branch
          %219 = sbr.rel (%p217) target = $region28
        $region27: #{cbam_pallas.1} parent=11 // pred_region
          _
        $region28: #{cbam_pallas.1} parent=11 // pred_fallthru
          _
        // Predicated region
        $region29: #{cbam_pallas.1} parent=11 // pred_check
          %p220 = pneg %p146
        $region30: #{cbam_pallas.1} parent=11 // pred_check_branch
          %222 = sbr.rel (%p220) target = $region32
        $region31: #{cbam_pallas.1} parent=11 // pred_region
          %s224 = ssub.s32 16, 16
          %225 = vsyncadd [#allocation6], %s224
          %s227 = sshll.u32 %s5, 4
          %s228 = int_to_ptr.vmem [resolvable:$true] %s227
          %230 = dma.vmem_to_smem %s228, 16, [#allocation5], [#allocation6]
        $region32: #{cbam_pallas.1} parent=11 // pred_fallthru
          _
        // Predicated region
        $region33: #{cbam_pallas.1} parent=11 // pred_check
          %p231 = pneg %p167
        $region34: #{cbam_pallas.1} parent=11 // pred_check_branch
          %233 = sbr.rel (%p231) target = $region36
        $region35: #{cbam_pallas.1} parent=11 // pred_region
          _
        $region36: #{cbam_pallas.1} parent=11 // pred_fallthru
          _
      $region12: #{cbam_pallas.1} parent=5 // pred_fallthru
        _
      %p234 = scmp.lt.s32.totalorder %s15, 2
      // Predicated region
      $region37: #{cbam_pallas.1} parent=5 // pred_check
        %p235 = pneg %p234
      $region38: #{cbam_pallas.1} parent=5 // pred_check_branch
        %237 = sbr.rel (%p235) target = $region40
      $region39: #{cbam_pallas.1} parent=5 // pred_region
        // Predicated region
        $region41: #{cbam_pallas.1} parent=39 // pred_check
          %p238 = pneg %p35
        $region42: #{cbam_pallas.1} parent=39 // pred_check_branch
          %240 = sbr.rel (%p238) target = $region44
        $region43: #{cbam_pallas.1} parent=39 // pred_region
          %p241 = scmp.lt.s32.totalorder %s15, 1
          %s242 = scalar_select %p241, %s15, 1
          %s243 = smul.addr %s242, 8
          %s244 = smul.addr %s243, 8
          %s245 = scalar_lea.vmem %s0, %s244
        $region44: #{cbam_pallas.1} parent=39 // pred_fallthru
          _
      $region40: #{cbam_pallas.1} parent=5 // pred_fallthru
        _
      %p246 = scmp.le.s32.totalorder 1, %s15
      %p247 = scmp.lt.s32.totalorder %s15, 3
      %p248 = pnand %p246, %p247
      %p249 = pneg %p248
      // Predicated region
      $region45: #{cbam_pallas.1} parent=5 // pred_check
        _
      $region46: #{cbam_pallas.1} parent=5 // pred_check_branch
        %251 = sbr.rel (%p248) target = $region48
      $region47: #{cbam_pallas.1} parent=5 // pred_region
        %s252 = ssub.s32 %s15, 1
        // Predicated region
        $region49: #{cbam_pallas.1} parent=47 // pred_check
          %p253 = pneg %p146
        $region50: #{cbam_pallas.1} parent=47 // pred_check_branch
          %255 = sbr.rel (%p253) target = $region52
        $region51: #{cbam_pallas.1} parent=47 // pred_region
          %256 = dma.done [#allocation6], 16
        $region52: #{cbam_pallas.1} parent=47 // pred_fallthru
          _
        %257 = sfence
        %p258 = scmp.lt.s32.totalorder %s20, 1
        %s259 = scalar_select %p258, %s20, 1
        %s260 = smul.addr %s259, 8
        %s261 = smul.addr %s260, 8
        %s262 = scalar_lea.vmem %s0, %s261
        %p263 = pneg %p41
        %p264 = pneg %p38
        %p265 = pneg %p62
        %p266 = pneg %p59
        %p267 = pneg %p83
        %p268 = pneg %p80
        %p269 = pneg %p104
        %p270 = pneg %p101
        %p271 = pneg %p125
        %p272 = pneg %p122
        %p273 = pneg %p146
        %p274 = pneg %p143
        %p275 = pneg %p167
        %p276 = pneg %p164
        %p277 = pneg %p193
        %p278 = pneg %p190
        %p279 = scmp.lt.s32.totalorder %s20, 1
        %s280 = scalar_select %p279, %s20, 1
        %s281 = smul.addr %s280, 8
        %s282 = smul.addr %s281, 8
        %s283 = scalar_lea.vmem %s7, %s282
        %p284 = scmp.lt.s32.totalorder %s20, 1
        %s285 = scalar_select %p284, %s20, 1
        %s286 = smul.addr %s285, 8
        %s287 = smul.addr %s286, 8
        %s288 = scalar_lea.vmem %s0, %s287
        %p289 = scmp.lt.s32.totalorder %s20, 1
        %s290 = scalar_select %p289, %s20, 1
        %s291 = smul.addr %s290, 8
        %s292 = smul.addr %s291, 8
        %s293 = scalar_lea.vmem %s7, %s292
        %v294 = vld [vmem:[%s288] sm:$0xff]
        %v295 = vld [vmem:[%s288 + $0x8] sm:$0xff]
        %v296 = vld [vmem:[%s288 + $0x10] sm:$0xff]
        %v297 = vld [vmem:[%s288 + $0x18] sm:$0xff]
        %v298 = vld [vmem:[%s288 + $0x20] sm:$0xff]
        %v299 = vld [vmem:[%s288 + $0x28] sm:$0xff]
        %v300 = vld [vmem:[%s288 + $0x30] sm:$0xff]
        %v301 = vld [vmem:[%s288 + $0x38] sm:$0xff]
        %v302 = vadd.f32 %v294, %v295
        %303 = vadd.xlane.f32.xlu0 %v302
        %v304 = vpop.xlane.xlu0 %303
        %v305 = vadd.f32 %v296, %v297
        %306 = vadd.xlane.f32.xlu0 %v305
        %v307 = vpop.xlane.xlu0 %306
        %v308 = vadd.f32 %v298, %v299
        %309 = vadd.xlane.f32.xlu0 %v308
        %v310 = vpop.xlane.xlu0 %309
        %v311 = vadd.f32 %v300, %v301
        %312 = vadd.xlane.f32.xlu0 %v311
        %v313 = vpop.xlane.xlu0 %312
        %v314 = vrcp.pop 256.0
        %v315 = vmul.f32 %v304, %v314
        %v316 = vmul.f32 %v307, %v314
        %v317 = vmul.f32 %v310, %v314
        %v318 = vmul.f32 %v313, %v314
        %v319 = vld [vmem:[%s1] sm:$0xff]
        %v320 = vld [vmem:[%s1 + $0x8] sm:$0xff]
        %v321 = vld [vmem:[%s1 + $0x10] sm:$0xff]
        %v322 = vld [vmem:[%s1 + $0x18] sm:$0xff]
        %v323 = vmul.f32 %v319, %v315
        %v324 = vmul.f32 %v320, %v316
        %v325 = vmul.f32 %v321, %v317
        %v326 = vmul.f32 %v322, %v318
        %vm327 = vcmask 15360
        %v328 = vsel %vm327, %v323, 0.0
        %v329 = vsel %vm327, %v324, 0.0
        %v330 = vadd.f32 %v328, %v329
        %v331 = vsel %vm327, %v325, 0.0
        %v332 = vadd.f32 %v330, %v331
        %v333 = vsel %vm327, %v326, 0.0
        %v334 = vadd.f32 %v332, %v333
        %v335 = vrot.slane %v334, 4
        %v336 = vadd.f32 %v334, %v335
        %v337 = vrot.slane %v336, 2
        %v338 = vadd.f32 %v336, %v337
        %v339 = vrot.slane %v338, 1
        %v340 = vadd.f32 %v338, %v339
        %v341 = vld [vmem:[%s2] sm:$0x1]
        %v342 = vadd.f32 %v340, %v341
        %v343 = vmax.f32 %v342, 0.0
        %v344 = vld [vmem:[%s3] sm:$0xff]
        %v345 = vld [vmem:[%s3 + $0x8] sm:$0xff]
        %v346 = vld [vmem:[%s3 + $0x10] sm:$0xff]
        %v347 = vld [vmem:[%s3 + $0x18] sm:$0xff]
        %v348 = vlaneseq
        %v349 = vshrl.u32 %v348, 7
        %v350 = vsub.s32 0, %v349
        %v351 = vrot.slane %v343, %v350
        %v352 = vmul.f32 %v344, %v351
        %v353 = vmul.f32 %v345, %v351
        %v354 = vmul.f32 %v346, %v351
        %v355 = vmul.f32 %v347, %v351
        %v356 = vsel %vm327, %v352, 0.0
        %357 = vadd.xlane.f32.xlu0 %v356
        %v358 = vpop.xlane.xlu0 %357
        %v359 = vsel %vm327, %v353, 0.0
        %360 = vadd.xlane.f32.xlu0 %v359
        %v361 = vpop.xlane.xlu0 %360
        %v362 = vsel %vm327, %v354, 0.0
        %363 = vadd.xlane.f32.xlu0 %v362
        %v364 = vpop.xlane.xlu0 %363
        %v365 = vsel %vm327, %v355, 0.0
        %366 = vadd.xlane.f32.xlu0 %v365
        %v367 = vpop.xlane.xlu0 %366
        %v368 = vld [vmem:[%s4] sm:$0xff]
        %v369 = vld [vmem:[%s4 + $0x8] sm:$0xff]
        %v370 = vld [vmem:[%s4 + $0x10] sm:$0xff]
        %v371 = vld [vmem:[%s4 + $0x18] sm:$0xff]
        %v372 = vadd.f32 %v358, %v368
        %v373 = vadd.f32 %v361, %v369
        %v374 = vadd.f32 %v364, %v370
        %v375 = vadd.f32 %v367, %v371
        %v376 = vxor.u32 %v372, 2147483648
        %v377 = vxor.u32 %v373, 2147483648
        %v378 = vxor.u32 %v374, 2147483648
        %v379 = vxor.u32 %v375, 2147483648
        %v380 = vmul.f32 %v376, 1.442695
        %v381 = vpow.pop %v380
        %v382 = vmul.f32 %v377, 1.442695
        %v383 = vpow.pop %v382
        %v384 = vmul.f32 %v378, 1.442695
        %v385 = vpow.pop %v384
        %v386 = vmul.f32 %v379, 1.442695
        %v387 = vpow.pop %v386
        %v388 = vadd.f32 %v381, 1.0
        %v389 = vadd.f32 %v383, 1.0
        %v390 = vadd.f32 %v385, 1.0
        %v391 = vadd.f32 %v387, 1.0
        %v392 = vrcp.pop %v388
        %v393 = vmul.f32 1.0, %v392
        %v394 = vrcp.pop %v389
        %v395 = vmul.f32 1.0, %v394
        %v396 = vrcp.pop %v390
        %v397 = vmul.f32 1.0, %v396
        %v398 = vrcp.pop %v391
        %v399 = vmul.f32 1.0, %v398
        %401 = vset.pattern.permute.xlu0 0
        %402 = vperm.xlu0 %401, %v393
        %v403 = vpop.permute.xlu0 %402
        %406 = vset.pattern.permute.xlu0 0
        %407 = vperm.xlu0 %406, %v395
        %v408 = vpop.permute.xlu0 %407
        %411 = vset.pattern.permute.xlu0 0
        %412 = vperm.xlu0 %411, %v397
        %v413 = vpop.permute.xlu0 %412
        %416 = vset.pattern.permute.xlu0 0
        %417 = vperm.xlu0 %416, %v399
        %v418 = vpop.permute.xlu0 %417
        %v420 = vmul.f32 %v294, %v403
        %v421 = vmul.f32 %v295, %v403
        %v422 = vmul.f32 %v296, %v408
        %v423 = vmul.f32 %v297, %v408
        %v424 = vmul.f32 %v298, %v413
        %v425 = vmul.f32 %v299, %v413
        %v426 = vmul.f32 %v300, %v418
        %v427 = vmul.f32 %v301, %v418
        %v428 = vadd.f32 %v420, %v422
        %v429 = vadd.f32 %v428, %v424
        %v430 = vadd.f32 %v429, %v426
        %v431 = vrot.slane %v430, 4
        %v432 = vadd.f32 %v430, %v431
        %v433 = vrot.slane %v432, 2
        %v434 = vadd.f32 %v432, %v433
        %v435 = vrot.slane %v434, 1
        %v436 = vadd.f32 %v434, %v435
        %v437 = vadd.f32 %v421, %v423
        %v438 = vadd.f32 %v437, %v425
        %v439 = vadd.f32 %v438, %v427
        %v440 = vrot.slane %v439, 4
        %v441 = vadd.f32 %v439, %v440
        %v442 = vrot.slane %v441, 2
        %v443 = vadd.f32 %v441, %v442
        %v444 = vrot.slane %v443, 1
        %v445 = vadd.f32 %v443, %v444
        %v446 = vrcp.pop 32.0
        %v447 = vmul.f32 %v436, %v446
        %v448 = vmul.f32 %v445, %v446
        %v449 = vmax.f32 %v420, %v424
        %v450 = vmax.f32 %v422, %v426
        %v451 = vmax.f32 %v449, %v450
        %v452 = vrot.slane %v451, 4
        %v453 = vmax.f32 %v451, %v452
        %v454 = vrot.slane %v453, 2
        %v455 = vmax.f32 %v453, %v454
        %v456 = vrot.slane %v455, 1
        %v457 = vmax.f32 %v455, %v456
        %v458 = vmax.f32 %v421, %v425
        %v459 = vmax.f32 %v423, %v427
        %v460 = vmax.f32 %v458, %v459
        %v461 = vrot.slane %v460, 4
        %v462 = vmax.f32 %v460, %v461
        %v463 = vrot.slane %v462, 2
        %v464 = vmax.f32 %v462, %v463
        %v465 = vrot.slane %v464, 1
        %v466 = vmax.f32 %v464, %v465
        %v467 = vlaneseq
        %vm468 = vcmp.ge.s32.totalorder %v467, 0
        %vm469 = vcmp.lt.s32.totalorder %v467, 358
        %vm470 = vmand %vm468, %vm469
        %471 = vst.msk [vmem:[#allocation2] sm:$0x7] %vm470, 0.0
        %472 = vst.msk [vmem:[#allocation2 + $0x3] sm:$0x7] %vm470, 0.0
        %v475 = vcombine.low %v447, %v448
        %v477 = vunpack.c.l.s4 1966171168
        %v478 = vunpack.c.0.s8 %v477
        %v479 = vlaneseq
        %v480 = vshrl.u32 %v479, 7
        %v481 = vsub.s32 %v478, %v480
        %v482 = vrot.slane %v475, %v481
        %v484 = vunpack.c.l.s4 1966171168
        %v485 = vunpack.c.0.s8 %v484
        %v486 = vlaneseq
        %v487 = vshrl.u32 %v486, 7
        %v488 = vsub.s32 %v485, %v487
        %v489 = vrot.slane %v482, %v488
        %490 = vrot.lane.b32.xlu0 %v489, 51
        %v491 = vpop.permute.xlu0 %490
        %v492 = vrot.slane %v491, 7
        %vm493 = vcmask 416768
        %v494 = vsel %vm493, %v492, %v491
        %vm496 = vcmp.ge.s32.totalorder %v467, 51
        %vm497 = vcmp.lt.s32.totalorder %v467, 307
        %vm498 = vmand %vm496, %vm497
        %499 = vst.msk [vmem:[#allocation2] sm:$0x7] %vm498, %v494
        %v502 = vcombine.low %v457, %v466
        %v504 = vunpack.c.l.s4 1966171168
        %v505 = vunpack.c.0.s8 %v504
        %v506 = vlaneseq
        %v507 = vshrl.u32 %v506, 7
        %v508 = vsub.s32 %v505, %v507
        %v509 = vrot.slane %v502, %v508
        %v511 = vunpack.c.l.s4 1966171168
        %v512 = vunpack.c.0.s8 %v511
        %v513 = vlaneseq
        %v514 = vshrl.u32 %v513, 7
        %v515 = vsub.s32 %v512, %v514
        %v516 = vrot.slane %v509, %v515
        %517 = vrot.lane.b32.xlu0 %v516, 51
        %v518 = vpop.permute.xlu0 %517
        %v519 = vrot.slane %v518, 7
        %v520 = vsel %vm493, %v519, %v518
        %s522 = scalar_lea.vmem [#allocation2], 3
        %523 = vst.msk [vmem:[%s522] sm:$0x7] %vm498, %v520
        %v524 = vlaneseq
        %v525 = vand.u32 %v524, 127
        %v526 = vadd.s32 %v525, 128
        %vm527 = vcmp.lt.s32.totalorder %v525, 0
        %v528 = vsub.s32 0, %v525
        %v529 = vsel %vm527, %v528, %v525
        %v530 = vshrl.u32 %v529, 4
        %v531 = vand.u32 %v529, 15
        %v532 = vsub.s32 0, %v531
        %v533 = vsel %vm527, %v532, %v531
        %vm534 = vcmp.lt.s32.totalorder %v526, 0
        %v535 = vsub.s32 0, %v526
        %v536 = vsel %vm534, %v535, %v526
        %v537 = vshrl.u32 %v536, 4
        %v538 = vand.u32 %v536, 15
        %v539 = vsub.s32 0, %v538
        %v540 = vsel %vm534, %v539, %v538
        %vm541 = vcmp.ne.s32.totalorder %v533, 0
        %vm542 = vcmp.ne.s32.totalorder %v540, 0
        %vm543 = vcmp.lt.s32.totalorder %v533, 0
        %vm544 = vcmp.lt.s32.totalorder %v540, 0
        %vm545 = vmand %vm543, %vm541
        %vm546 = vmand %vm544, %vm542
        %v547 = vadd.s32 %v533, 16
        %v548 = vadd.s32 %v540, 16
        %v549 = vsel %vm545, %v547, %v533
        %v550 = vsel %vm546, %v548, %v540
        %v551 = vadd.s32 %v549, 4294967293
        %v552 = vadd.s32 %v550, 4294967293
        %vm553 = vcmp.ge.s32.totalorder %v551, 0
        %vm554 = vcmp.ge.s32.totalorder %v552, 0
        %vm555 = vcmp.lt.s32.totalorder %v551, 16
        %vm556 = vcmp.lt.s32.totalorder %v552, 16
        %vm557 = vmand %vm553, %vm555
        %vm558 = vmand %vm554, %vm556
        %v559 = vadd.s32 %v549, 4294967294
        %v560 = vadd.s32 %v550, 4294967294
        %vm561 = vcmp.ge.s32.totalorder %v559, 0
        %vm562 = vcmp.ge.s32.totalorder %v560, 0
        %vm563 = vcmp.lt.s32.totalorder %v559, 16
        %vm564 = vcmp.lt.s32.totalorder %v560, 16
        %vm565 = vmand %vm561, %vm563
        %vm566 = vmand %vm562, %vm564
        %v567 = vadd.s32 %v549, 4294967295
        %v568 = vadd.s32 %v550, 4294967295
        %vm569 = vcmp.ge.s32.totalorder %v567, 0
        %vm570 = vcmp.ge.s32.totalorder %v568, 0
        %vm571 = vcmp.lt.s32.totalorder %v567, 16
        %vm572 = vcmp.lt.s32.totalorder %v568, 16
        %vm573 = vmand %vm569, %vm571
        %vm574 = vmand %vm570, %vm572
        %vm575 = vcmp.ge.s32.totalorder %v549, 0
        %vm576 = vcmp.ge.s32.totalorder %v550, 0
        %vm577 = vcmp.lt.s32.totalorder %v549, 16
        %vm578 = vcmp.lt.s32.totalorder %v550, 16
        %vm579 = vmand %vm575, %vm577
        %vm580 = vmand %vm576, %vm578
        %v581 = vadd.s32 %v549, 1
        %v582 = vadd.s32 %v550, 1
        %vm583 = vcmp.ge.s32.totalorder %v581, 0
        %vm584 = vcmp.ge.s32.totalorder %v582, 0
        %vm585 = vcmp.lt.s32.totalorder %v581, 16
        %vm586 = vcmp.lt.s32.totalorder %v582, 16
        %vm587 = vmand %vm583, %vm585
        %vm588 = vmand %vm584, %vm586
        %v589 = vadd.s32 %v549, 2
        %v590 = vadd.s32 %v550, 2
        %vm591 = vcmp.ge.s32.totalorder %v589, 0
        %vm592 = vcmp.ge.s32.totalorder %v590, 0
        %vm593 = vcmp.lt.s32.totalorder %v589, 16
        %vm594 = vcmp.lt.s32.totalorder %v590, 16
        %vm595 = vmand %vm591, %vm593
        %vm596 = vmand %vm592, %vm594
        %v597 = vadd.s32 %v549, 3
        %v598 = vadd.s32 %v550, 3
        %vm599 = vcmp.ge.s32.totalorder %v597, 0
        %vm600 = vcmp.ge.s32.totalorder %v598, 0
        %vm601 = vcmp.lt.s32.totalorder %v597, 16
        %vm602 = vcmp.lt.s32.totalorder %v598, 16
        %vm603 = vmand %vm599, %vm601
        %vm604 = vmand %vm600, %vm602
        %s605 = sld [smem:[#allocation4]]
        %v606 = vstv %s605
        %v607 = vadd.f32 %v606, 0.0
        %vm608 = vcmp.lt.s32.totalorder %v467, 256
        %vm609 = vmand %vm468, %vm608
        %610 = vst.msk [vmem:[#allocation3] sm:$0x3] %vm609, %v607
        %v611 = vld [vmem:[#allocation2] sm:$0x3]
        %s612 = sld [smem:[#allocation5]]
        %v613 = vld [vmem:[#allocation3] sm:$0x3]
        %v615 = vlaneseq
        %v616 = vshrl.u32 %v615, 7
        %v617 = vsub.s32 0, %v616
        %v618 = vrot.slane %v611, %v617
        %v619 = vlaneseq
        %v620 = vshrl.u32 %v619, 7
        %v621 = vsub.s32 1, %v620
        %v622 = vrot.slane %v611, %v621
        %v625 = vsel %vm557, %v618, 0.0
        %v626 = vsel %vm558, %v622, 0.0
        %v627 = vstv %s612
        %v628 = vmul.f32 %v627, %v625
        %v629 = vmul.f32 %v627, %v626
        %v632 = vcombine.low %v628, %v629
        %v634 = vunpack.c.l.s4 1966171168
        %v635 = vunpack.c.0.s8 %v634
        %v636 = vlaneseq
        %v637 = vshrl.u32 %v636, 7
        %v638 = vsub.s32 %v635, %v637
        %v639 = vrot.slane %v632, %v638
        %v641 = vunpack.c.l.s4 1966171168
        %v642 = vunpack.c.0.s8 %v641
        %v643 = vlaneseq
        %v644 = vshrl.u32 %v643, 7
        %v645 = vsub.s32 %v642, %v644
        %v646 = vrot.slane %v639, %v645
        %v648 = vadd.f32 %v613, %v646
        %649 = vst.msk [vmem:[#allocation3] sm:$0x3] %vm609, %v648
        %v650 = vld [vmem:[#allocation2] sm:$0x7]
        %s651 = sld [smem:[#allocation5 + $0x1]]
        %v652 = vld [vmem:[#allocation3] sm:$0x3]
        %v654 = vlaneseq
        %v655 = vshrl.u32 %v654, 7
        %v656 = vsub.s32 0, %v655
        %v657 = vrot.slane %v650, %v656
        %v658 = vlaneseq
        %v659 = vshrl.u32 %v658, 7
        %v660 = vsub.s32 1, %v659
        %v661 = vrot.slane %v650, %v660
        %v662 = vlaneseq
        %v663 = vshrl.u32 %v662, 7
        %v664 = vsub.s32 2, %v663
        %v665 = vrot.slane %v650, %v664
        %666 = vrot.lane.b32.xlu0 %v657, 127
        %v667 = vpop.permute.xlu0 %666
        %668 = vrot.lane.b32.xlu0 %v661, 127
        %v669 = vpop.permute.xlu0 %668
        %670 = vrot.lane.b32.xlu0 %v665, 127
        %v671 = vpop.permute.xlu0 %670
        %vm672 = vcmask 1039360
        %v673 = vsel %vm672, %v667, %v669
        %v674 = vsel %vm672, %v669, %v671
        %v677 = vsel %vm565, %v673, 0.0
        %v678 = vsel %vm566, %v674, 0.0
        %v679 = vstv %s651
        %v680 = vmul.f32 %v679, %v677
        %v681 = vmul.f32 %v679, %v678
        %v684 = vcombine.low %v680, %v681
        %v686 = vunpack.c.l.s4 1966171168
        %v687 = vunpack.c.0.s8 %v686
        %v688 = vlaneseq
        %v689 = vshrl.u32 %v688, 7
        %v690 = vsub.s32 %v687, %v689
        %v691 = vrot.slane %v684, %v690
        %v693 = vunpack.c.l.s4 1966171168
        %v694 = vunpack.c.0.s8 %v693
        %v695 = vlaneseq
        %v696 = vshrl.u32 %v695, 7
        %v697 = vsub.s32 %v694, %v696
        %v698 = vrot.slane %v691, %v697
        %v700 = vadd.f32 %v652, %v698
        %701 = vst.msk [vmem:[#allocation3] sm:$0x3] %vm609, %v700
        %v702 = vld [vmem:[#allocation2] sm:$0x7]
        %s703 = sld [smem:[#allocation5 + $0x2]]
        %v704 = vld [vmem:[#allocation3] sm:$0x3]
        %v706 = vlaneseq
        %v707 = vshrl.u32 %v706, 7
        %v708 = vsub.s32 0, %v707
        %v709 = vrot.slane %v702, %v708
        %v710 = vlaneseq
        %v711 = vshrl.u32 %v710, 7
        %v712 = vsub.s32 1, %v711
        %v713 = vrot.slane %v702, %v712
        %v714 = vlaneseq
        %v715 = vshrl.u32 %v714, 7
        %v716 = vsub.s32 2, %v715
        %v717 = vrot.slane %v702, %v716
        %718 = vrot.lane.b32.xlu0 %v709, 126
        %v719 = vpop.permute.xlu0 %718
        %720 = vrot.lane.b32.xlu0 %v713, 126
        %v721 = vpop.permute.xlu0 %720
        %722 = vrot.lane.b32.xlu0 %v717, 126
        %v723 = vpop.permute.xlu0 %722
        %vm724 = vcmask 1031168
        %v725 = vsel %vm724, %v719, %v721
        %v726 = vsel %vm724, %v721, %v723
        %v729 = vsel %vm573, %v725, 0.0
        %v730 = vsel %vm574, %v726, 0.0
        %v731 = vstv %s703
        %v732 = vmul.f32 %v731, %v729
        %v733 = vmul.f32 %v731, %v730
        %v736 = vcombine.low %v732, %v733
        %v738 = vunpack.c.l.s4 1966171168
        %v739 = vunpack.c.0.s8 %v738
        %v740 = vlaneseq
        %v741 = vshrl.u32 %v740, 7
        %v742 = vsub.s32 %v739, %v741
        %v743 = vrot.slane %v736, %v742
        %v745 = vunpack.c.l.s4 1966171168
        %v746 = vunpack.c.0.s8 %v745
        %v747 = vlaneseq
        %v748 = vshrl.u32 %v747, 7
        %v749 = vsub.s32 %v746, %v748
        %v750 = vrot.slane %v743, %v749
        %v752 = vadd.f32 %v704, %v750
        %753 = vst.msk [vmem:[#allocation3] sm:$0x3] %vm609, %v752
        %v754 = vld [vmem:[#allocation2] sm:$0x7]
        %s755 = sld [smem:[#allocation5 + $0x3]]
        %v756 = vld [vmem:[#allocation3] sm:$0x3]
        %v758 = vlaneseq
        %v759 = vshrl.u32 %v758, 7
        %v760 = vsub.s32 0, %v759
        %v761 = vrot.slane %v754, %v760
        %v762 = vlaneseq
        %v763 = vshrl.u32 %v762, 7
        %v764 = vsub.s32 1, %v763
        %v765 = vrot.slane %v754, %v764
        %v766 = vlaneseq
        %v767 = vshrl.u32 %v766, 7
        %v768 = vsub.s32 2, %v767
        %v769 = vrot.slane %v754, %v768
        %770 = vrot.lane.b32.xlu0 %v761, 125
        %v771 = vpop.permute.xlu0 %770
        %772 = vrot.lane.b32.xlu0 %v765, 125
        %v773 = vpop.permute.xlu0 %772
        %774 = vrot.lane.b32.xlu0 %v769, 125
        %v775 = vpop.permute.xlu0 %774
        %vm776 = vcmask 1022976
        %v777 = vsel %vm776, %v771, %v773
        %v778 = vsel %vm776, %v773, %v775
        %v781 = vsel %vm579, %v777, 0.0
        %v782 = vsel %vm580, %v778, 0.0
        %v783 = vstv %s755
        %v784 = vmul.f32 %v783, %v781
        %v785 = vmul.f32 %v783, %v782
        %v788 = vcombine.low %v784, %v785
        %v790 = vunpack.c.l.s4 1966171168
        %v791 = vunpack.c.0.s8 %v790
        %v792 = vlaneseq
        %v793 = vshrl.u32 %v792, 7
        %v794 = vsub.s32 %v791, %v793
        %v795 = vrot.slane %v788, %v794
        %v797 = vunpack.c.l.s4 1966171168
        %v798 = vunpack.c.0.s8 %v797
        %v799 = vlaneseq
        %v800 = vshrl.u32 %v799, 7
        %v801 = vsub.s32 %v798, %v800
        %v802 = vrot.slane %v795, %v801
        %v804 = vadd.f32 %v756, %v802
        %805 = vst.msk [vmem:[#allocation3] sm:$0x3] %vm609, %v804
        %v806 = vld [vmem:[#allocation2] sm:$0x7]
        %s807 = sld [smem:[#allocation5 + $0x4]]
        %v808 = vld [vmem:[#allocation3] sm:$0x3]
        %v810 = vlaneseq
        %v811 = vshrl.u32 %v810, 7
        %v812 = vsub.s32 0, %v811
        %v813 = vrot.slane %v806, %v812
        %v814 = vlaneseq
        %v815 = vshrl.u32 %v814, 7
        %v816 = vsub.s32 1, %v815
        %v817 = vrot.slane %v806, %v816
        %v818 = vlaneseq
        %v819 = vshrl.u32 %v818, 7
        %v820 = vsub.s32 2, %v819
        %v821 = vrot.slane %v806, %v820
        %822 = vrot.lane.b32.xlu0 %v813, 124
        %v823 = vpop.permute.xlu0 %822
        %824 = vrot.lane.b32.xlu0 %v817, 124
        %v825 = vpop.permute.xlu0 %824
        %826 = vrot.lane.b32.xlu0 %v821, 124
        %v827 = vpop.permute.xlu0 %826
        %vm828 = vcmask 1014784
        %v829 = vsel %vm828, %v823, %v825
        %v830 = vsel %vm828, %v825, %v827
        %v833 = vsel %vm587, %v829, 0.0
        %v834 = vsel %vm588, %v830, 0.0
        %v835 = vstv %s807
        %v836 = vmul.f32 %v835, %v833
        %v837 = vmul.f32 %v835, %v834
        %v840 = vcombine.low %v836, %v837
        %v842 = vunpack.c.l.s4 1966171168
        %v843 = vunpack.c.0.s8 %v842
        %v844 = vlaneseq
        %v845 = vshrl.u32 %v844, 7
        %v846 = vsub.s32 %v843, %v845
        %v847 = vrot.slane %v840, %v846
        %v849 = vunpack.c.l.s4 1966171168
        %v850 = vunpack.c.0.s8 %v849
        %v851 = vlaneseq
        %v852 = vshrl.u32 %v851, 7
        %v853 = vsub.s32 %v850, %v852
        %v854 = vrot.slane %v847, %v853
        %v856 = vadd.f32 %v808, %v854
        %857 = vst.msk [vmem:[#allocation3] sm:$0x3] %vm609, %v856
        %v858 = vld [vmem:[#allocation2] sm:$0x7]
        %s859 = sld [smem:[#allocation5 + $0x5]]
        %v860 = vld [vmem:[#allocation3] sm:$0x3]
        %v862 = vlaneseq
        %v863 = vshrl.u32 %v862, 7
        %v864 = vsub.s32 0, %v863
        %v865 = vrot.slane %v858, %v864
        %v866 = vlaneseq
        %v867 = vshrl.u32 %v866, 7
        %v868 = vsub.s32 1, %v867
        %v869 = vrot.slane %v858, %v868
        %v870 = vlaneseq
        %v871 = vshrl.u32 %v870, 7
        %v872 = vsub.s32 2, %v871
        %v873 = vrot.slane %v858, %v872
        %874 = vrot.lane.b32.xlu0 %v865, 123
        %v875 = vpop.permute.xlu0 %874
        %876 = vrot.lane.b32.xlu0 %v869, 123
        %v877 = vpop.permute.xlu0 %876
        %878 = vrot.lane.b32.xlu0 %v873, 123
        %v879 = vpop.permute.xlu0 %878
        %vm880 = vcmask 1006592
        %v881 = vsel %vm880, %v875, %v877
        %v882 = vsel %vm880, %v877, %v879
        %v885 = vsel %vm595, %v881, 0.0
        %v886 = vsel %vm596, %v882, 0.0
        %v887 = vstv %s859
        %v888 = vmul.f32 %v887, %v885
        %v889 = vmul.f32 %v887, %v886
        %v892 = vcombine.low %v888, %v889
        %v894 = vunpack.c.l.s4 1966171168
        %v895 = vunpack.c.0.s8 %v894
        %v896 = vlaneseq
        %v897 = vshrl.u32 %v896, 7
        %v898 = vsub.s32 %v895, %v897
        %v899 = vrot.slane %v892, %v898
        %v901 = vunpack.c.l.s4 1966171168
        %v902 = vunpack.c.0.s8 %v901
        %v903 = vlaneseq
        %v904 = vshrl.u32 %v903, 7
        %v905 = vsub.s32 %v902, %v904
        %v906 = vrot.slane %v899, %v905
        %v908 = vadd.f32 %v860, %v906
        %909 = vst.msk [vmem:[#allocation3] sm:$0x3] %vm609, %v908
        %v910 = vld [vmem:[#allocation2] sm:$0x7]
        %s911 = sld [smem:[#allocation5 + $0x6]]
        %v912 = vld [vmem:[#allocation3] sm:$0x3]
        %v914 = vlaneseq
        %v915 = vshrl.u32 %v914, 7
        %v916 = vsub.s32 0, %v915
        %v917 = vrot.slane %v910, %v916
        %v918 = vlaneseq
        %v919 = vshrl.u32 %v918, 7
        %v920 = vsub.s32 1, %v919
        %v921 = vrot.slane %v910, %v920
        %v922 = vlaneseq
        %v923 = vshrl.u32 %v922, 7
        %v924 = vsub.s32 2, %v923
        %v925 = vrot.slane %v910, %v924
        %926 = vrot.lane.b32.xlu0 %v917, 122
        %v927 = vpop.permute.xlu0 %926
        %928 = vrot.lane.b32.xlu0 %v921, 122
        %v929 = vpop.permute.xlu0 %928
        %930 = vrot.lane.b32.xlu0 %v925, 122
        %v931 = vpop.permute.xlu0 %930
        %vm932 = vcmask 998400
        %v933 = vsel %vm932, %v927, %v929
        %v934 = vsel %vm932, %v929, %v931
        %v937 = vsel %vm603, %v933, 0.0
        %v938 = vsel %vm604, %v934, 0.0
        %v939 = vstv %s911
        %v940 = vmul.f32 %v939, %v937
        %v941 = vmul.f32 %v939, %v938
        %v944 = vcombine.low %v940, %v941
        %v946 = vunpack.c.l.s4 1966171168
        %v947 = vunpack.c.0.s8 %v946
        %v948 = vlaneseq
        %v949 = vshrl.u32 %v948, 7
        %v950 = vsub.s32 %v947, %v949
        %v951 = vrot.slane %v944, %v950
        %v953 = vunpack.c.l.s4 1966171168
        %v954 = vunpack.c.0.s8 %v953
        %v955 = vlaneseq
        %v956 = vshrl.u32 %v955, 7
        %v957 = vsub.s32 %v954, %v956
        %v958 = vrot.slane %v951, %v957
        %v960 = vadd.f32 %v912, %v958
        %961 = vst.msk [vmem:[#allocation3] sm:$0x3] %vm609, %v960
        %v962 = vld [vmem:[#allocation2] sm:$0x7]
        %s963 = sld [smem:[#allocation5 + $0x7]]
        %v964 = vld [vmem:[#allocation3] sm:$0x3]
        %v966 = vlaneseq
        %v967 = vshrl.u32 %v966, 7
        %v968 = vsub.s32 0, %v967
        %v969 = vrot.slane %v962, %v968
        %v970 = vlaneseq
        %v971 = vshrl.u32 %v970, 7
        %v972 = vsub.s32 1, %v971
        %v973 = vrot.slane %v962, %v972
        %v974 = vlaneseq
        %v975 = vshrl.u32 %v974, 7
        %v976 = vsub.s32 2, %v975
        %v977 = vrot.slane %v962, %v976
        %978 = vrot.lane.b32.xlu0 %v969, 112
        %v979 = vpop.permute.xlu0 %978
        %980 = vrot.lane.b32.xlu0 %v973, 112
        %v981 = vpop.permute.xlu0 %980
        %982 = vrot.lane.b32.xlu0 %v977, 112
        %v983 = vpop.permute.xlu0 %982
        %vm984 = vcmask 916480
        %v985 = vsel %vm984, %v979, %v981
        %v986 = vsel %vm984, %v981, %v983
        %v989 = vsel %vm557, %v985, 0.0
        %v990 = vsel %vm558, %v986, 0.0
        %v991 = vstv %s963
        %v992 = vmul.f32 %v991, %v989
        %v993 = vmul.f32 %v991, %v990
        %v996 = vcombine.low %v992, %v993
        %v998 = vunpack.c.l.s4 1966171168
        %v999 = vunpack.c.0.s8 %v998
        %v1000 = vlaneseq
        %v1001 = vshrl.u32 %v1000, 7
        %v1002 = vsub.s32 %v999, %v1001
        %v1003 = vrot.slane %v996, %v1002
        %v1005 = vunpack.c.l.s4 1966171168
        %v1006 = vunpack.c.0.s8 %v1005
        %v1007 = vlaneseq
        %v1008 = vshrl.u32 %v1007, 7
        %v1009 = vsub.s32 %v1006, %v1008
        %v1010 = vrot.slane %v1003, %v1009
        %v1012 = vadd.f32 %v964, %v1010
        %1013 = vst.msk [vmem:[#allocation3] sm:$0x3] %vm609, %v1012
        %v1014 = vld [vmem:[#allocation2] sm:$0x7]
        %s1015 = sld [smem:[#allocation5 + $0x8]]
        %v1016 = vld [vmem:[#allocation3] sm:$0x3]
        %v1018 = vlaneseq
        %v1019 = vshrl.u32 %v1018, 7
        %v1020 = vsub.s32 0, %v1019
        %v1021 = vrot.slane %v1014, %v1020
        %v1022 = vlaneseq
        %v1023 = vshrl.u32 %v1022, 7
        %v1024 = vsub.s32 1, %v1023
        %v1025 = vrot.slane %v1014, %v1024
        %v1026 = vlaneseq
        %v1027 = vshrl.u32 %v1026, 7
        %v1028 = vsub.s32 2, %v1027
        %v1029 = vrot.slane %v1014, %v1028
        %1030 = vrot.lane.b32.xlu0 %v1021, 111
        %v1031 = vpop.permute.xlu0 %1030
        %1032 = vrot.lane.b32.xlu0 %v1025, 111
        %v1033 = vpop.permute.xlu0 %1032
        %1034 = vrot.lane.b32.xlu0 %v1029, 111
        %v1035 = vpop.permute.xlu0 %1034
        %vm1036 = vcmask 908288
        %v1037 = vsel %vm1036, %v1031, %v1033
        %v1038 = vsel %vm1036, %v1033, %v1035
        %v1041 = vsel %vm565, %v1037, 0.0
        %v1042 = vsel %vm566, %v1038, 0.0
        %v1043 = vstv %s1015
        %v1044 = vmul.f32 %v1043, %v1041
        %v1045 = vmul.f32 %v1043, %v1042
        %v1048 = vcombine.low %v1044, %v1045
        %v1050 = vunpack.c.l.s4 1966171168
        %v1051 = vunpack.c.0.s8 %v1050
        %v1052 = vlaneseq
        %v1053 = vshrl.u32 %v1052, 7
        %v1054 = vsub.s32 %v1051, %v1053
        %v1055 = vrot.slane %v1048, %v1054
        %v1057 = vunpack.c.l.s4 1966171168
        %v1058 = vunpack.c.0.s8 %v1057
        %v1059 = vlaneseq
        %v1060 = vshrl.u32 %v1059, 7
        %v1061 = vsub.s32 %v1058, %v1060
        %v1062 = vrot.slane %v1055, %v1061
        %v1064 = vadd.f32 %v1016, %v1062
        %1065 = vst.msk [vmem:[#allocation3] sm:$0x3] %vm609, %v1064
        %v1066 = vld [vmem:[#allocation2] sm:$0x7]
        %s1067 = sld [smem:[#allocation5 + $0x9]]
        %v1068 = vld [vmem:[#allocation3] sm:$0x3]
        %v1070 = vlaneseq
        %v1071 = vshrl.u32 %v1070, 7
        %v1072 = vsub.s32 0, %v1071
        %v1073 = vrot.slane %v1066, %v1072
        %v1074 = vlaneseq
        %v1075 = vshrl.u32 %v1074, 7
        %v1076 = vsub.s32 1, %v1075
        %v1077 = vrot.slane %v1066, %v1076
        %v1078 = vlaneseq
        %v1079 = vshrl.u32 %v1078, 7
        %v1080 = vsub.s32 2, %v1079
        %v1081 = vrot.slane %v1066, %v1080
        %1082 = vrot.lane.b32.xlu0 %v1073, 110
        %v1083 = vpop.permute.xlu0 %1082
        %1084 = vrot.lane.b32.xlu0 %v1077, 110
        %v1085 = vpop.permute.xlu0 %1084
        %1086 = vrot.lane.b32.xlu0 %v1081, 110
        %v1087 = vpop.permute.xlu0 %1086
        %vm1088 = vcmask 900096
        %v1089 = vsel %vm1088, %v1083, %v1085
        %v1090 = vsel %vm1088, %v1085, %v1087
        %v1093 = vsel %vm573, %v1089, 0.0
        %v1094 = vsel %vm574, %v1090, 0.0
        %v1095 = vstv %s1067
        %v1096 = vmul.f32 %v1095, %v1093
        %v1097 = vmul.f32 %v1095, %v1094
        %v1100 = vcombine.low %v1096, %v1097
        %v1102 = vunpack.c.l.s4 1966171168
        %v1103 = vunpack.c.0.s8 %v1102
        %v1104 = vlaneseq
        %v1105 = vshrl.u32 %v1104, 7
        %v1106 = vsub.s32 %v1103, %v1105
        %v1107 = vrot.slane %v1100, %v1106
        %v1109 = vunpack.c.l.s4 1966171168
        %v1110 = vunpack.c.0.s8 %v1109
        %v1111 = vlaneseq
        %v1112 = vshrl.u32 %v1111, 7
        %v1113 = vsub.s32 %v1110, %v1112
        %v1114 = vrot.slane %v1107, %v1113
        %v1116 = vadd.f32 %v1068, %v1114
        %1117 = vst.msk [vmem:[#allocation3] sm:$0x3] %vm609, %v1116
        %v1118 = vld [vmem:[#allocation2] sm:$0x7]
        %s1119 = sld [smem:[#allocation5 + $0xa]]
        %v1120 = vld [vmem:[#allocation3] sm:$0x3]
        %v1122 = vlaneseq
        %v1123 = vshrl.u32 %v1122, 7
        %v1124 = vsub.s32 0, %v1123
        %v1125 = vrot.slane %v1118, %v1124
        %v1126 = vlaneseq
        %v1127 = vshrl.u32 %v1126, 7
        %v1128 = vsub.s32 1, %v1127
        %v1129 = vrot.slane %v1118, %v1128
        %v1130 = vlaneseq
        %v1131 = vshrl.u32 %v1130, 7
        %v1132 = vsub.s32 2, %v1131
        %v1133 = vrot.slane %v1118, %v1132
        %1134 = vrot.lane.b32.xlu0 %v1125, 109
        %v1135 = vpop.permute.xlu0 %1134
        %1136 = vrot.lane.b32.xlu0 %v1129, 109
        %v1137 = vpop.permute.xlu0 %1136
        %1138 = vrot.lane.b32.xlu0 %v1133, 109
        %v1139 = vpop.permute.xlu0 %1138
        %vm1140 = vcmask 891904
        %v1141 = vsel %vm1140, %v1135, %v1137
        %v1142 = vsel %vm1140, %v1137, %v1139
        %v1145 = vsel %vm579, %v1141, 0.0
        %v1146 = vsel %vm580, %v1142, 0.0
        %v1147 = vstv %s1119
        %v1148 = vmul.f32 %v1147, %v1145
        %v1149 = vmul.f32 %v1147, %v1146
        %v1152 = vcombine.low %v1148, %v1149
        %v1154 = vunpack.c.l.s4 1966171168
        %v1155 = vunpack.c.0.s8 %v1154
        %v1156 = vlaneseq
        %v1157 = vshrl.u32 %v1156, 7
        %v1158 = vsub.s32 %v1155, %v1157
        %v1159 = vrot.slane %v1152, %v1158
        %v1161 = vunpack.c.l.s4 1966171168
        %v1162 = vunpack.c.0.s8 %v1161
        %v1163 = vlaneseq
        %v1164 = vshrl.u32 %v1163, 7
        %v1165 = vsub.s32 %v1162, %v1164
        %v1166 = vrot.slane %v1159, %v1165
        %v1168 = vadd.f32 %v1120, %v1166
        %1169 = vst.msk [vmem:[#allocation3] sm:$0x3] %vm609, %v1168
        %v1170 = vld [vmem:[#allocation2] sm:$0x7]
        %s1171 = sld [smem:[#allocation5 + $0xb]]
        %v1172 = vld [vmem:[#allocation3] sm:$0x3]
        %v1174 = vlaneseq
        %v1175 = vshrl.u32 %v1174, 7
        %v1176 = vsub.s32 0, %v1175
        %v1177 = vrot.slane %v1170, %v1176
        %v1178 = vlaneseq
        %v1179 = vshrl.u32 %v1178, 7
        %v1180 = vsub.s32 1, %v1179
        %v1181 = vrot.slane %v1170, %v1180
        %v1182 = vlaneseq
        %v1183 = vshrl.u32 %v1182, 7
        %v1184 = vsub.s32 2, %v1183
        %v1185 = vrot.slane %v1170, %v1184
        %1186 = vrot.lane.b32.xlu0 %v1177, 108
        %v1187 = vpop.permute.xlu0 %1186
        %1188 = vrot.lane.b32.xlu0 %v1181, 108
        %v1189 = vpop.permute.xlu0 %1188
        %1190 = vrot.lane.b32.xlu0 %v1185, 108
        %v1191 = vpop.permute.xlu0 %1190
        %vm1192 = vcmask 883712
        %v1193 = vsel %vm1192, %v1187, %v1189
        %v1194 = vsel %vm1192, %v1189, %v1191
        %v1197 = vsel %vm587, %v1193, 0.0
        %v1198 = vsel %vm588, %v1194, 0.0
        %v1199 = vstv %s1171
        %v1200 = vmul.f32 %v1199, %v1197
        %v1201 = vmul.f32 %v1199, %v1198
        %v1204 = vcombine.low %v1200, %v1201
        %v1206 = vunpack.c.l.s4 1966171168
        %v1207 = vunpack.c.0.s8 %v1206
        %v1208 = vlaneseq
        %v1209 = vshrl.u32 %v1208, 7
        %v1210 = vsub.s32 %v1207, %v1209
        %v1211 = vrot.slane %v1204, %v1210
        %v1213 = vunpack.c.l.s4 1966171168
        %v1214 = vunpack.c.0.s8 %v1213
        %v1215 = vlaneseq
        %v1216 = vshrl.u32 %v1215, 7
        %v1217 = vsub.s32 %v1214, %v1216
        %v1218 = vrot.slane %v1211, %v1217
        %v1220 = vadd.f32 %v1172, %v1218
        %1221 = vst.msk [vmem:[#allocation3] sm:$0x3] %vm609, %v1220
        %v1222 = vld [vmem:[#allocation2] sm:$0x7]
        %s1223 = sld [smem:[#allocation5 + $0xc]]
        %v1224 = vld [vmem:[#allocation3] sm:$0x3]
        %v1226 = vlaneseq
        %v1227 = vshrl.u32 %v1226, 7
        %v1228 = vsub.s32 0, %v1227
        %v1229 = vrot.slane %v1222, %v1228
        %v1230 = vlaneseq
        %v1231 = vshrl.u32 %v1230, 7
        %v1232 = vsub.s32 1, %v1231
        %v1233 = vrot.slane %v1222, %v1232
        %v1234 = vlaneseq
        %v1235 = vshrl.u32 %v1234, 7
        %v1236 = vsub.s32 2, %v1235
        %v1237 = vrot.slane %v1222, %v1236
        %1238 = vrot.lane.b32.xlu0 %v1229, 107
        %v1239 = vpop.permute.xlu0 %1238
        %1240 = vrot.lane.b32.xlu0 %v1233, 107
        %v1241 = vpop.permute.xlu0 %1240
        %1242 = vrot.lane.b32.xlu0 %v1237, 107
        %v1243 = vpop.permute.xlu0 %1242
        %vm1244 = vcmask 875520
        %v1245 = vsel %vm1244, %v1239, %v1241
        %v1246 = vsel %vm1244, %v1241, %v1243
        %v1249 = vsel %vm595, %v1245, 0.0
        %v1250 = vsel %vm596, %v1246, 0.0
        %v1251 = vstv %s1223
        %v1252 = vmul.f32 %v1251, %v1249
        %v1253 = vmul.f32 %v1251, %v1250
        %v1256 = vcombine.low %v1252, %v1253
        %v1258 = vunpack.c.l.s4 1966171168
        %v1259 = vunpack.c.0.s8 %v1258
        %v1260 = vlaneseq
        %v1261 = vshrl.u32 %v1260, 7
        %v1262 = vsub.s32 %v1259, %v1261
        %v1263 = vrot.slane %v1256, %v1262
        %v1265 = vunpack.c.l.s4 1966171168
        %v1266 = vunpack.c.0.s8 %v1265
        %v1267 = vlaneseq
        %v1268 = vshrl.u32 %v1267, 7
        %v1269 = vsub.s32 %v1266, %v1268
        %v1270 = vrot.slane %v1263, %v1269
        %v1272 = vadd.f32 %v1224, %v1270
        %1273 = vst.msk [vmem:[#allocation3] sm:$0x3] %vm609, %v1272
        %v1274 = vld [vmem:[#allocation2] sm:$0x7]
        %s1275 = sld [smem:[#allocation5 + $0xd]]
        %v1276 = vld [vmem:[#allocation3] sm:$0x3]
        %v1278 = vlaneseq
        %v1279 = vshrl.u32 %v1278, 7
        %v1280 = vsub.s32 0, %v1279
        %v1281 = vrot.slane %v1274, %v1280
        %v1282 = vlaneseq
        %v1283 = vshrl.u32 %v1282, 7
        %v1284 = vsub.s32 1, %v1283
        %v1285 = vrot.slane %v1274, %v1284
        %v1286 = vlaneseq
        %v1287 = vshrl.u32 %v1286, 7
        %v1288 = vsub.s32 2, %v1287
        %v1289 = vrot.slane %v1274, %v1288
        %1290 = vrot.lane.b32.xlu0 %v1281, 106
        %v1291 = vpop.permute.xlu0 %1290
        %1292 = vrot.lane.b32.xlu0 %v1285, 106
        %v1293 = vpop.permute.xlu0 %1292
        %1294 = vrot.lane.b32.xlu0 %v1289, 106
        %v1295 = vpop.permute.xlu0 %1294
        %vm1296 = vcmask 867328
        %v1297 = vsel %vm1296, %v1291, %v1293
        %v1298 = vsel %vm1296, %v1293, %v1295
        %v1301 = vsel %vm603, %v1297, 0.0
        %v1302 = vsel %vm604, %v1298, 0.0
        %v1303 = vstv %s1275
        %v1304 = vmul.f32 %v1303, %v1301
        %v1305 = vmul.f32 %v1303, %v1302
        %v1308 = vcombine.low %v1304, %v1305
        %v1310 = vunpack.c.l.s4 1966171168
        %v1311 = vunpack.c.0.s8 %v1310
        %v1312 = vlaneseq
        %v1313 = vshrl.u32 %v1312, 7
        %v1314 = vsub.s32 %v1311, %v1313
        %v1315 = vrot.slane %v1308, %v1314
        %v1317 = vunpack.c.l.s4 1966171168
        %v1318 = vunpack.c.0.s8 %v1317
        %v1319 = vlaneseq
        %v1320 = vshrl.u32 %v1319, 7
        %v1321 = vsub.s32 %v1318, %v1320
        %v1322 = vrot.slane %v1315, %v1321
        %v1324 = vadd.f32 %v1276, %v1322
        %1325 = vst.msk [vmem:[#allocation3] sm:$0x3] %vm609, %v1324
        %v1326 = vld [vmem:[#allocation2] sm:$0x7]
        %s1327 = sld [smem:[#allocation5 + $0xe]]
        %v1328 = vld [vmem:[#allocation3] sm:$0x3]
        %v1330 = vlaneseq
        %v1331 = vshrl.u32 %v1330, 7
        %v1332 = vsub.s32 0, %v1331
        %v1333 = vrot.slane %v1326, %v1332
        %v1334 = vlaneseq
        %v1335 = vshrl.u32 %v1334, 7
        %v1336 = vsub.s32 1, %v1335
        %v1337 = vrot.slane %v1326, %v1336
        %v1338 = vlaneseq
        %v1339 = vshrl.u32 %v1338, 7
        %v1340 = vsub.s32 2, %v1339
        %v1341 = vrot.slane %v1326, %v1340
        %1342 = vrot.lane.b32.xlu0 %v1333, 96
        %v1343 = vpop.permute.xlu0 %1342
        %1344 = vrot.lane.b32.xlu0 %v1337, 96
        %v1345 = vpop.permute.xlu0 %1344
        %1346 = vrot.lane.b32.xlu0 %v1341, 96
        %v1347 = vpop.permute.xlu0 %1346
        %vm1348 = vcmask 785408
        %v1349 = vsel %vm1348, %v1343, %v1345
        %v1350 = vsel %vm1348, %v1345, %v1347
        %v1353 = vsel %vm557, %v1349, 0.0
        %v1354 = vsel %vm558, %v1350, 0.0
        %v1355 = vstv %s1327
        %v1356 = vmul.f32 %v1355, %v1353
        %v1357 = vmul.f32 %v1355, %v1354
        %v1360 = vcombine.low %v1356, %v1357
        %v1362 = vunpack.c.l.s4 1966171168
        %v1363 = vunpack.c.0.s8 %v1362
        %v1364 = vlaneseq
        %v1365 = vshrl.u32 %v1364, 7
        %v1366 = vsub.s32 %v1363, %v1365
        %v1367 = vrot.slane %v1360, %v1366
        %v1369 = vunpack.c.l.s4 1966171168
        %v1370 = vunpack.c.0.s8 %v1369
        %v1371 = vlaneseq
        %v1372 = vshrl.u32 %v1371, 7
        %v1373 = vsub.s32 %v1370, %v1372
        %v1374 = vrot.slane %v1367, %v1373
        %v1376 = vadd.f32 %v1328, %v1374
        %1377 = vst.msk [vmem:[#allocation3] sm:$0x3] %vm609, %v1376
        %v1378 = vld [vmem:[#allocation2] sm:$0x7]
        %s1379 = sld [smem:[#allocation5 + $0xf]]
        %v1380 = vld [vmem:[#allocation3] sm:$0x3]
        %v1382 = vlaneseq
        %v1383 = vshrl.u32 %v1382, 7
        %v1384 = vsub.s32 0, %v1383
        %v1385 = vrot.slane %v1378, %v1384
        %v1386 = vlaneseq
        %v1387 = vshrl.u32 %v1386, 7
        %v1388 = vsub.s32 1, %v1387
        %v1389 = vrot.slane %v1378, %v1388
        %v1390 = vlaneseq
        %v1391 = vshrl.u32 %v1390, 7
        %v1392 = vsub.s32 2, %v1391
        %v1393 = vrot.slane %v1378, %v1392
        %1394 = vrot.lane.b32.xlu0 %v1385, 95
        %v1395 = vpop.permute.xlu0 %1394
        %1396 = vrot.lane.b32.xlu0 %v1389, 95
        %v1397 = vpop.permute.xlu0 %1396
        %1398 = vrot.lane.b32.xlu0 %v1393, 95
        %v1399 = vpop.permute.xlu0 %1398
        %vm1400 = vcmask 777216
        %v1401 = vsel %vm1400, %v1395, %v1397
        %v1402 = vsel %vm1400, %v1397, %v1399
        %v1405 = vsel %vm565, %v1401, 0.0
        %v1406 = vsel %vm566, %v1402, 0.0
        %v1407 = vstv %s1379
        %v1408 = vmul.f32 %v1407, %v1405
        %v1409 = vmul.f32 %v1407, %v1406
        %v1412 = vcombine.low %v1408, %v1409
        %v1414 = vunpack.c.l.s4 1966171168
        %v1415 = vunpack.c.0.s8 %v1414
        %v1416 = vlaneseq
        %v1417 = vshrl.u32 %v1416, 7
        %v1418 = vsub.s32 %v1415, %v1417
        %v1419 = vrot.slane %v1412, %v1418
        %v1421 = vunpack.c.l.s4 1966171168
        %v1422 = vunpack.c.0.s8 %v1421
        %v1423 = vlaneseq
        %v1424 = vshrl.u32 %v1423, 7
        %v1425 = vsub.s32 %v1422, %v1424
        %v1426 = vrot.slane %v1419, %v1425
        %v1428 = vadd.f32 %v1380, %v1426
        %1429 = vst.msk [vmem:[#allocation3] sm:$0x3] %vm609, %v1428
        %v1430 = vld [vmem:[#allocation2] sm:$0x7]
        %s1431 = sld [smem:[#allocation5 + $0x10]]
        %v1432 = vld [vmem:[#allocation3] sm:$0x3]
        %v1434 = vlaneseq
        %v1435 = vshrl.u32 %v1434, 7
        %v1436 = vsub.s32 0, %v1435
        %v1437 = vrot.slane %v1430, %v1436
        %v1438 = vlaneseq
        %v1439 = vshrl.u32 %v1438, 7
        %v1440 = vsub.s32 1, %v1439
        %v1441 = vrot.slane %v1430, %v1440
        %v1442 = vlaneseq
        %v1443 = vshrl.u32 %v1442, 7
        %v1444 = vsub.s32 2, %v1443
        %v1445 = vrot.slane %v1430, %v1444
        %1446 = vrot.lane.b32.xlu0 %v1437, 94
        %v1447 = vpop.permute.xlu0 %1446
        %1448 = vrot.lane.b32.xlu0 %v1441, 94
        %v1449 = vpop.permute.xlu0 %1448
        %1450 = vrot.lane.b32.xlu0 %v1445, 94
        %v1451 = vpop.permute.xlu0 %1450
        %vm1452 = vcmask 769024
        %v1453 = vsel %vm1452, %v1447, %v1449
        %v1454 = vsel %vm1452, %v1449, %v1451
        %v1457 = vsel %vm573, %v1453, 0.0
        %v1458 = vsel %vm574, %v1454, 0.0
        %v1459 = vstv %s1431
        %v1460 = vmul.f32 %v1459, %v1457
        %v1461 = vmul.f32 %v1459, %v1458
        %v1464 = vcombine.low %v1460, %v1461
        %v1466 = vunpack.c.l.s4 1966171168
        %v1467 = vunpack.c.0.s8 %v1466
        %v1468 = vlaneseq
        %v1469 = vshrl.u32 %v1468, 7
        %v1470 = vsub.s32 %v1467, %v1469
        %v1471 = vrot.slane %v1464, %v1470
        %v1473 = vunpack.c.l.s4 1966171168
        %v1474 = vunpack.c.0.s8 %v1473
        %v1475 = vlaneseq
        %v1476 = vshrl.u32 %v1475, 7
        %v1477 = vsub.s32 %v1474, %v1476
        %v1478 = vrot.slane %v1471, %v1477
        %v1480 = vadd.f32 %v1432, %v1478
        %1481 = vst.msk [vmem:[#allocation3] sm:$0x3] %vm609, %v1480
        %v1482 = vld [vmem:[#allocation2] sm:$0x7]
        %s1483 = sld [smem:[#allocation5 + $0x11]]
        %v1484 = vld [vmem:[#allocation3] sm:$0x3]
        %v1486 = vlaneseq
        %v1487 = vshrl.u32 %v1486, 7
        %v1488 = vsub.s32 0, %v1487
        %v1489 = vrot.slane %v1482, %v1488
        %v1490 = vlaneseq
        %v1491 = vshrl.u32 %v1490, 7
        %v1492 = vsub.s32 1, %v1491
        %v1493 = vrot.slane %v1482, %v1492
        %v1494 = vlaneseq
        %v1495 = vshrl.u32 %v1494, 7
        %v1496 = vsub.s32 2, %v1495
        %v1497 = vrot.slane %v1482, %v1496
        %1498 = vrot.lane.b32.xlu0 %v1489, 93
        %v1499 = vpop.permute.xlu0 %1498
        %1500 = vrot.lane.b32.xlu0 %v1493, 93
        %v1501 = vpop.permute.xlu0 %1500
        %1502 = vrot.lane.b32.xlu0 %v1497, 93
        %v1503 = vpop.permute.xlu0 %1502
        %vm1504 = vcmask 760832
        %v1505 = vsel %vm1504, %v1499, %v1501
        %v1506 = vsel %vm1504, %v1501, %v1503
        %v1509 = vsel %vm579, %v1505, 0.0
        %v1510 = vsel %vm580, %v1506, 0.0
        %v1511 = vstv %s1483
        %v1512 = vmul.f32 %v1511, %v1509
        %v1513 = vmul.f32 %v1511, %v1510
        %v1516 = vcombine.low %v1512, %v1513
        %v1518 = vunpack.c.l.s4 1966171168
        %v1519 = vunpack.c.0.s8 %v1518
        %v1520 = vlaneseq
        %v1521 = vshrl.u32 %v1520, 7
        %v1522 = vsub.s32 %v1519, %v1521
        %v1523 = vrot.slane %v1516, %v1522
        %v1525 = vunpack.c.l.s4 1966171168
        %v1526 = vunpack.c.0.s8 %v1525
        %v1527 = vlaneseq
        %v1528 = vshrl.u32 %v1527, 7
        %v1529 = vsub.s32 %v1526, %v1528
        %v1530 = vrot.slane %v1523, %v1529
        %v1532 = vadd.f32 %v1484, %v1530
        %1533 = vst.msk [vmem:[#allocation3] sm:$0x3] %vm609, %v1532
        %v1534 = vld [vmem:[#allocation2] sm:$0x7]
        %s1535 = sld [smem:[#allocation5 + $0x12]]
        %v1536 = vld [vmem:[#allocation3] sm:$0x3]
        %v1538 = vlaneseq
        %v1539 = vshrl.u32 %v1538, 7
        %v1540 = vsub.s32 0, %v1539
        %v1541 = vrot.slane %v1534, %v1540
        %v1542 = vlaneseq
        %v1543 = vshrl.u32 %v1542, 7
        %v1544 = vsub.s32 1, %v1543
        %v1545 = vrot.slane %v1534, %v1544
        %v1546 = vlaneseq
        %v1547 = vshrl.u32 %v1546, 7
        %v1548 = vsub.s32 2, %v1547
        %v1549 = vrot.slane %v1534, %v1548
        %1550 = vrot.lane.b32.xlu0 %v1541, 92
        %v1551 = vpop.permute.xlu0 %1550
        %1552 = vrot.lane.b32.xlu0 %v1545, 92
        %v1553 = vpop.permute.xlu0 %1552
        %1554 = vrot.lane.b32.xlu0 %v1549, 92
        %v1555 = vpop.permute.xlu0 %1554
        %vm1556 = vcmask 752640
        %v1557 = vsel %vm1556, %v1551, %v1553
        %v1558 = vsel %vm1556, %v1553, %v1555
        %v1561 = vsel %vm587, %v1557, 0.0
        %v1562 = vsel %vm588, %v1558, 0.0
        %v1563 = vstv %s1535
        %v1564 = vmul.f32 %v1563, %v1561
        %v1565 = vmul.f32 %v1563, %v1562
        %v1568 = vcombine.low %v1564, %v1565
        %v1570 = vunpack.c.l.s4 1966171168
        %v1571 = vunpack.c.0.s8 %v1570
        %v1572 = vlaneseq
        %v1573 = vshrl.u32 %v1572, 7
        %v1574 = vsub.s32 %v1571, %v1573
        %v1575 = vrot.slane %v1568, %v1574
        %v1577 = vunpack.c.l.s4 1966171168
        %v1578 = vunpack.c.0.s8 %v1577
        %v1579 = vlaneseq
        %v1580 = vshrl.u32 %v1579, 7
        %v1581 = vsub.s32 %v1578, %v1580
        %v1582 = vrot.slane %v1575, %v1581
        %v1584 = vadd.f32 %v1536, %v1582
        %1585 = vst.msk [vmem:[#allocation3] sm:$0x3] %vm609, %v1584
        %v1586 = vld [vmem:[#allocation2] sm:$0x7]
        %s1587 = sld [smem:[#allocation5 + $0x13]]
        %v1588 = vld [vmem:[#allocation3] sm:$0x3]
        %v1590 = vlaneseq
        %v1591 = vshrl.u32 %v1590, 7
        %v1592 = vsub.s32 0, %v1591
        %v1593 = vrot.slane %v1586, %v1592
        %v1594 = vlaneseq
        %v1595 = vshrl.u32 %v1594, 7
        %v1596 = vsub.s32 1, %v1595
        %v1597 = vrot.slane %v1586, %v1596
        %v1598 = vlaneseq
        %v1599 = vshrl.u32 %v1598, 7
        %v1600 = vsub.s32 2, %v1599
        %v1601 = vrot.slane %v1586, %v1600
        %1602 = vrot.lane.b32.xlu0 %v1593, 91
        %v1603 = vpop.permute.xlu0 %1602
        %1604 = vrot.lane.b32.xlu0 %v1597, 91
        %v1605 = vpop.permute.xlu0 %1604
        %1606 = vrot.lane.b32.xlu0 %v1601, 91
        %v1607 = vpop.permute.xlu0 %1606
        %vm1608 = vcmask 744448
        %v1609 = vsel %vm1608, %v1603, %v1605
        %v1610 = vsel %vm1608, %v1605, %v1607
        %v1613 = vsel %vm595, %v1609, 0.0
        %v1614 = vsel %vm596, %v1610, 0.0
        %v1615 = vstv %s1587
        %v1616 = vmul.f32 %v1615, %v1613
        %v1617 = vmul.f32 %v1615, %v1614
        %v1620 = vcombine.low %v1616, %v1617
        %v1622 = vunpack.c.l.s4 1966171168
        %v1623 = vunpack.c.0.s8 %v1622
        %v1624 = vlaneseq
        %v1625 = vshrl.u32 %v1624, 7
        %v1626 = vsub.s32 %v1623, %v1625
        %v1627 = vrot.slane %v1620, %v1626
        %v1629 = vunpack.c.l.s4 1966171168
        %v1630 = vunpack.c.0.s8 %v1629
        %v1631 = vlaneseq
        %v1632 = vshrl.u32 %v1631, 7
        %v1633 = vsub.s32 %v1630, %v1632
        %v1634 = vrot.slane %v1627, %v1633
        %v1636 = vadd.f32 %v1588, %v1634
        %1637 = vst.msk [vmem:[#allocation3] sm:$0x3] %vm609, %v1636
        %v1638 = vld [vmem:[#allocation2] sm:$0x7]
        %s1639 = sld [smem:[#allocation5 + $0x14]]
        %v1640 = vld [vmem:[#allocation3] sm:$0x3]
        %v1642 = vlaneseq
        %v1643 = vshrl.u32 %v1642, 7
        %v1644 = vsub.s32 0, %v1643
        %v1645 = vrot.slane %v1638, %v1644
        %v1646 = vlaneseq
        %v1647 = vshrl.u32 %v1646, 7
        %v1648 = vsub.s32 1, %v1647
        %v1649 = vrot.slane %v1638, %v1648
        %v1650 = vlaneseq
        %v1651 = vshrl.u32 %v1650, 7
        %v1652 = vsub.s32 2, %v1651
        %v1653 = vrot.slane %v1638, %v1652
        %1654 = vrot.lane.b32.xlu0 %v1645, 90
        %v1655 = vpop.permute.xlu0 %1654
        %1656 = vrot.lane.b32.xlu0 %v1649, 90
        %v1657 = vpop.permute.xlu0 %1656
        %1658 = vrot.lane.b32.xlu0 %v1653, 90
        %v1659 = vpop.permute.xlu0 %1658
        %vm1660 = vcmask 736256
        %v1661 = vsel %vm1660, %v1655, %v1657
        %v1662 = vsel %vm1660, %v1657, %v1659
        %v1665 = vsel %vm603, %v1661, 0.0
        %v1666 = vsel %vm604, %v1662, 0.0
        %v1667 = vstv %s1639
        %v1668 = vmul.f32 %v1667, %v1665
        %v1669 = vmul.f32 %v1667, %v1666
        %v1672 = vcombine.low %v1668, %v1669
        %v1674 = vunpack.c.l.s4 1966171168
        %v1675 = vunpack.c.0.s8 %v1674
        %v1676 = vlaneseq
        %v1677 = vshrl.u32 %v1676, 7
        %v1678 = vsub.s32 %v1675, %v1677
        %v1679 = vrot.slane %v1672, %v1678
        %v1681 = vunpack.c.l.s4 1966171168
        %v1682 = vunpack.c.0.s8 %v1681
        %v1683 = vlaneseq
        %v1684 = vshrl.u32 %v1683, 7
        %v1685 = vsub.s32 %v1682, %v1684
        %v1686 = vrot.slane %v1679, %v1685
        %v1688 = vadd.f32 %v1640, %v1686
        %1689 = vst.msk [vmem:[#allocation3] sm:$0x3] %vm609, %v1688
        %v1690 = vld [vmem:[#allocation2] sm:$0x7]
        %s1691 = sld [smem:[#allocation5 + $0x15]]
        %v1692 = vld [vmem:[#allocation3] sm:$0x3]
        %v1694 = vlaneseq
        %v1695 = vshrl.u32 %v1694, 7
        %v1696 = vsub.s32 0, %v1695
        %v1697 = vrot.slane %v1690, %v1696
        %v1698 = vlaneseq
        %v1699 = vshrl.u32 %v1698, 7
        %v1700 = vsub.s32 1, %v1699
        %v1701 = vrot.slane %v1690, %v1700
        %v1702 = vlaneseq
        %v1703 = vshrl.u32 %v1702, 7
        %v1704 = vsub.s32 2, %v1703
        %v1705 = vrot.slane %v1690, %v1704
        %1706 = vrot.lane.b32.xlu0 %v1697, 80
        %v1707 = vpop.permute.xlu0 %1706
        %1708 = vrot.lane.b32.xlu0 %v1701, 80
        %v1709 = vpop.permute.xlu0 %1708
        %1710 = vrot.lane.b32.xlu0 %v1705, 80
        %v1711 = vpop.permute.xlu0 %1710
        %vm1712 = vcmask 654336
        %v1713 = vsel %vm1712, %v1707, %v1709
        %v1714 = vsel %vm1712, %v1709, %v1711
        %v1717 = vsel %vm557, %v1713, 0.0
        %v1718 = vsel %vm558, %v1714, 0.0
        %v1719 = vstv %s1691
        %v1720 = vmul.f32 %v1719, %v1717
        %v1721 = vmul.f32 %v1719, %v1718
        %v1724 = vcombine.low %v1720, %v1721
        %v1726 = vunpack.c.l.s4 1966171168
        %v1727 = vunpack.c.0.s8 %v1726
        %v1728 = vlaneseq
        %v1729 = vshrl.u32 %v1728, 7
        %v1730 = vsub.s32 %v1727, %v1729
        %v1731 = vrot.slane %v1724, %v1730
        %v1733 = vunpack.c.l.s4 1966171168
        %v1734 = vunpack.c.0.s8 %v1733
        %v1735 = vlaneseq
        %v1736 = vshrl.u32 %v1735, 7
        %v1737 = vsub.s32 %v1734, %v1736
        %v1738 = vrot.slane %v1731, %v1737
        %v1740 = vadd.f32 %v1692, %v1738
        %1741 = vst.msk [vmem:[#allocation3] sm:$0x3] %vm609, %v1740
        %v1742 = vld [vmem:[#allocation2] sm:$0x7]
        %s1743 = sld [smem:[#allocation5 + $0x16]]
        %v1744 = vld [vmem:[#allocation3] sm:$0x3]
        %v1746 = vlaneseq
        %v1747 = vshrl.u32 %v1746, 7
        %v1748 = vsub.s32 0, %v1747
        %v1749 = vrot.slane %v1742, %v1748
        %v1750 = vlaneseq
        %v1751 = vshrl.u32 %v1750, 7
        %v1752 = vsub.s32 1, %v1751
        %v1753 = vrot.slane %v1742, %v1752
        %v1754 = vlaneseq
        %v1755 = vshrl.u32 %v1754, 7
        %v1756 = vsub.s32 2, %v1755
        %v1757 = vrot.slane %v1742, %v1756
        %1758 = vrot.lane.b32.xlu0 %v1749, 79
        %v1759 = vpop.permute.xlu0 %1758
        %1760 = vrot.lane.b32.xlu0 %v1753, 79
        %v1761 = vpop.permute.xlu0 %1760
        %1762 = vrot.lane.b32.xlu0 %v1757, 79
        %v1763 = vpop.permute.xlu0 %1762
        %vm1764 = vcmask 646144
        %v1765 = vsel %vm1764, %v1759, %v1761
        %v1766 = vsel %vm1764, %v1761, %v1763
        %v1769 = vsel %vm565, %v1765, 0.0
        %v1770 = vsel %vm566, %v1766, 0.0
        %v1771 = vstv %s1743
        %v1772 = vmul.f32 %v1771, %v1769
        %v1773 = vmul.f32 %v1771, %v1770
        %v1776 = vcombine.low %v1772, %v1773
        %v1778 = vunpack.c.l.s4 1966171168
        %v1779 = vunpack.c.0.s8 %v1778
        %v1780 = vlaneseq
        %v1781 = vshrl.u32 %v1780, 7
        %v1782 = vsub.s32 %v1779, %v1781
        %v1783 = vrot.slane %v1776, %v1782
        %v1785 = vunpack.c.l.s4 1966171168
        %v1786 = vunpack.c.0.s8 %v1785
        %v1787 = vlaneseq
        %v1788 = vshrl.u32 %v1787, 7
        %v1789 = vsub.s32 %v1786, %v1788
        %v1790 = vrot.slane %v1783, %v1789
        %v1792 = vadd.f32 %v1744, %v1790
        %1793 = vst.msk [vmem:[#allocation3] sm:$0x3] %vm609, %v1792
        %v1794 = vld [vmem:[#allocation2] sm:$0x7]
        %s1795 = sld [smem:[#allocation5 + $0x17]]
        %v1796 = vld [vmem:[#allocation3] sm:$0x3]
        %v1798 = vlaneseq
        %v1799 = vshrl.u32 %v1798, 7
        %v1800 = vsub.s32 0, %v1799
        %v1801 = vrot.slane %v1794, %v1800
        %v1802 = vlaneseq
        %v1803 = vshrl.u32 %v1802, 7
        %v1804 = vsub.s32 1, %v1803
        %v1805 = vrot.slane %v1794, %v1804
        %v1806 = vlaneseq
        %v1807 = vshrl.u32 %v1806, 7
        %v1808 = vsub.s32 2, %v1807
        %v1809 = vrot.slane %v1794, %v1808
        %1810 = vrot.lane.b32.xlu0 %v1801, 78
        %v1811 = vpop.permute.xlu0 %1810
        %1812 = vrot.lane.b32.xlu0 %v1805, 78
        %v1813 = vpop.permute.xlu0 %1812
        %1814 = vrot.lane.b32.xlu0 %v1809, 78
        %v1815 = vpop.permute.xlu0 %1814
        %vm1816 = vcmask 637952
        %v1817 = vsel %vm1816, %v1811, %v1813
        %v1818 = vsel %vm1816, %v1813, %v1815
        %v1821 = vsel %vm573, %v1817, 0.0
        %v1822 = vsel %vm574, %v1818, 0.0
        %v1823 = vstv %s1795
        %v1824 = vmul.f32 %v1823, %v1821
        %v1825 = vmul.f32 %v1823, %v1822
        %v1828 = vcombine.low %v1824, %v1825
        %v1830 = vunpack.c.l.s4 1966171168
        %v1831 = vunpack.c.0.s8 %v1830
        %v1832 = vlaneseq
        %v1833 = vshrl.u32 %v1832, 7
        %v1834 = vsub.s32 %v1831, %v1833
        %v1835 = vrot.slane %v1828, %v1834
        %v1837 = vunpack.c.l.s4 1966171168
        %v1838 = vunpack.c.0.s8 %v1837
        %v1839 = vlaneseq
        %v1840 = vshrl.u32 %v1839, 7
        %v1841 = vsub.s32 %v1838, %v1840
        %v1842 = vrot.slane %v1835, %v1841
        %v1844 = vadd.f32 %v1796, %v1842
        %1845 = vst.msk [vmem:[#allocation3] sm:$0x3] %vm609, %v1844
        %v1846 = vld [vmem:[#allocation2] sm:$0x7]
        %s1847 = sld [smem:[#allocation5 + $0x18]]
        %v1848 = vld [vmem:[#allocation3] sm:$0x3]
        %v1850 = vlaneseq
        %v1851 = vshrl.u32 %v1850, 7
        %v1852 = vsub.s32 0, %v1851
        %v1853 = vrot.slane %v1846, %v1852
        %v1854 = vlaneseq
        %v1855 = vshrl.u32 %v1854, 7
        %v1856 = vsub.s32 1, %v1855
        %v1857 = vrot.slane %v1846, %v1856
        %v1858 = vlaneseq
        %v1859 = vshrl.u32 %v1858, 7
        %v1860 = vsub.s32 2, %v1859
        %v1861 = vrot.slane %v1846, %v1860
        %1862 = vrot.lane.b32.xlu0 %v1853, 77
        %v1863 = vpop.permute.xlu0 %1862
        %1864 = vrot.lane.b32.xlu0 %v1857, 77
        %v1865 = vpop.permute.xlu0 %1864
        %1866 = vrot.lane.b32.xlu0 %v1861, 77
        %v1867 = vpop.permute.xlu0 %1866
        %vm1868 = vcmask 629760
        %v1869 = vsel %vm1868, %v1863, %v1865
        %v1870 = vsel %vm1868, %v1865, %v1867
        %v1873 = vsel %vm579, %v1869, 0.0
        %v1874 = vsel %vm580, %v1870, 0.0
        %v1875 = vstv %s1847
        %v1876 = vmul.f32 %v1875, %v1873
        %v1877 = vmul.f32 %v1875, %v1874
        %v1880 = vcombine.low %v1876, %v1877
        %v1882 = vunpack.c.l.s4 1966171168
        %v1883 = vunpack.c.0.s8 %v1882
        %v1884 = vlaneseq
        %v1885 = vshrl.u32 %v1884, 7
        %v1886 = vsub.s32 %v1883, %v1885
        %v1887 = vrot.slane %v1880, %v1886
        %v1889 = vunpack.c.l.s4 1966171168
        %v1890 = vunpack.c.0.s8 %v1889
        %v1891 = vlaneseq
        %v1892 = vshrl.u32 %v1891, 7
        %v1893 = vsub.s32 %v1890, %v1892
        %v1894 = vrot.slane %v1887, %v1893
        %v1896 = vadd.f32 %v1848, %v1894
        %1897 = vst.msk [vmem:[#allocation3] sm:$0x3] %vm609, %v1896
        %v1898 = vld [vmem:[#allocation2] sm:$0x7]
        %s1899 = sld [smem:[#allocation5 + $0x19]]
        %v1900 = vld [vmem:[#allocation3] sm:$0x3]
        %v1902 = vlaneseq
        %v1903 = vshrl.u32 %v1902, 7
        %v1904 = vsub.s32 0, %v1903
        %v1905 = vrot.slane %v1898, %v1904
        %v1906 = vlaneseq
        %v1907 = vshrl.u32 %v1906, 7
        %v1908 = vsub.s32 1, %v1907
        %v1909 = vrot.slane %v1898, %v1908
        %v1910 = vlaneseq
        %v1911 = vshrl.u32 %v1910, 7
        %v1912 = vsub.s32 2, %v1911
        %v1913 = vrot.slane %v1898, %v1912
        %1914 = vrot.lane.b32.xlu0 %v1905, 76
        %v1915 = vpop.permute.xlu0 %1914
        %1916 = vrot.lane.b32.xlu0 %v1909, 76
        %v1917 = vpop.permute.xlu0 %1916
        %1918 = vrot.lane.b32.xlu0 %v1913, 76
        %v1919 = vpop.permute.xlu0 %1918
        %vm1920 = vcmask 621568
        %v1921 = vsel %vm1920, %v1915, %v1917
        %v1922 = vsel %vm1920, %v1917, %v1919
        %v1925 = vsel %vm587, %v1921, 0.0
        %v1926 = vsel %vm588, %v1922, 0.0
        %v1927 = vstv %s1899
        %v1928 = vmul.f32 %v1927, %v1925
        %v1929 = vmul.f32 %v1927, %v1926
        %v1932 = vcombine.low %v1928, %v1929
        %v1934 = vunpack.c.l.s4 1966171168
        %v1935 = vunpack.c.0.s8 %v1934
        %v1936 = vlaneseq
        %v1937 = vshrl.u32 %v1936, 7
        %v1938 = vsub.s32 %v1935, %v1937
        %v1939 = vrot.slane %v1932, %v1938
        %v1941 = vunpack.c.l.s4 1966171168
        %v1942 = vunpack.c.0.s8 %v1941
        %v1943 = vlaneseq
        %v1944 = vshrl.u32 %v1943, 7
        %v1945 = vsub.s32 %v1942, %v1944
        %v1946 = vrot.slane %v1939, %v1945
        %v1948 = vadd.f32 %v1900, %v1946
        %1949 = vst.msk [vmem:[#allocation3] sm:$0x3] %vm609, %v1948
        %v1950 = vld [vmem:[#allocation2] sm:$0x7]
        %s1951 = sld [smem:[#allocation5 + $0x1a]]
        %v1952 = vld [vmem:[#allocation3] sm:$0x3]
        %v1954 = vlaneseq
        %v1955 = vshrl.u32 %v1954, 7
        %v1956 = vsub.s32 0, %v1955
        %v1957 = vrot.slane %v1950, %v1956
        %v1958 = vlaneseq
        %v1959 = vshrl.u32 %v1958, 7
        %v1960 = vsub.s32 1, %v1959
        %v1961 = vrot.slane %v1950, %v1960
        %v1962 = vlaneseq
        %v1963 = vshrl.u32 %v1962, 7
        %v1964 = vsub.s32 2, %v1963
        %v1965 = vrot.slane %v1950, %v1964
        %1966 = vrot.lane.b32.xlu0 %v1957, 75
        %v1967 = vpop.permute.xlu0 %1966
        %1968 = vrot.lane.b32.xlu0 %v1961, 75
        %v1969 = vpop.permute.xlu0 %1968
        %1970 = vrot.lane.b32.xlu0 %v1965, 75
        %v1971 = vpop.permute.xlu0 %1970
        %vm1972 = vcmask 613376
        %v1973 = vsel %vm1972, %v1967, %v1969
        %v1974 = vsel %vm1972, %v1969, %v1971
        %v1977 = vsel %vm595, %v1973, 0.0
        %v1978 = vsel %vm596, %v1974, 0.0
        %v1979 = vstv %s1951
        %v1980 = vmul.f32 %v1979, %v1977
        %v1981 = vmul.f32 %v1979, %v1978
        %v1984 = vcombine.low %v1980, %v1981
        %v1986 = vunpack.c.l.s4 1966171168
        %v1987 = vunpack.c.0.s8 %v1986
        %v1988 = vlaneseq
        %v1989 = vshrl.u32 %v1988, 7
        %v1990 = vsub.s32 %v1987, %v1989
        %v1991 = vrot.slane %v1984, %v1990
        %v1993 = vunpack.c.l.s4 1966171168
        %v1994 = vunpack.c.0.s8 %v1993
        %v1995 = vlaneseq
        %v1996 = vshrl.u32 %v1995, 7
        %v1997 = vsub.s32 %v1994, %v1996
        %v1998 = vrot.slane %v1991, %v1997
        %v2000 = vadd.f32 %v1952, %v1998
        %2001 = vst.msk [vmem:[#allocation3] sm:$0x3] %vm609, %v2000
        %v2002 = vld [vmem:[#allocation2] sm:$0x7]
        %s2003 = sld [smem:[#allocation5 + $0x1b]]
        %v2004 = vld [vmem:[#allocation3] sm:$0x3]
        %v2006 = vlaneseq
        %v2007 = vshrl.u32 %v2006, 7
        %v2008 = vsub.s32 0, %v2007
        %v2009 = vrot.slane %v2002, %v2008
        %v2010 = vlaneseq
        %v2011 = vshrl.u32 %v2010, 7
        %v2012 = vsub.s32 1, %v2011
        %v2013 = vrot.slane %v2002, %v2012
        %v2014 = vlaneseq
        %v2015 = vshrl.u32 %v2014, 7
        %v2016 = vsub.s32 2, %v2015
        %v2017 = vrot.slane %v2002, %v2016
        %2018 = vrot.lane.b32.xlu0 %v2009, 74
        %v2019 = vpop.permute.xlu0 %2018
        %2020 = vrot.lane.b32.xlu0 %v2013, 74
        %v2021 = vpop.permute.xlu0 %2020
        %2022 = vrot.lane.b32.xlu0 %v2017, 74
        %v2023 = vpop.permute.xlu0 %2022
        %vm2024 = vcmask 605184
        %v2025 = vsel %vm2024, %v2019, %v2021
        %v2026 = vsel %vm2024, %v2021, %v2023
        %v2029 = vsel %vm603, %v2025, 0.0
        %v2030 = vsel %vm604, %v2026, 0.0
        %v2031 = vstv %s2003
        %v2032 = vmul.f32 %v2031, %v2029
        %v2033 = vmul.f32 %v2031, %v2030
        %v2036 = vcombine.low %v2032, %v2033
        %v2038 = vunpack.c.l.s4 1966171168
        %v2039 = vunpack.c.0.s8 %v2038
        %v2040 = vlaneseq
        %v2041 = vshrl.u32 %v2040, 7
        %v2042 = vsub.s32 %v2039, %v2041
        %v2043 = vrot.slane %v2036, %v2042
        %v2045 = vunpack.c.l.s4 1966171168
        %v2046 = vunpack.c.0.s8 %v2045
        %v2047 = vlaneseq
        %v2048 = vshrl.u32 %v2047, 7
        %v2049 = vsub.s32 %v2046, %v2048
        %v2050 = vrot.slane %v2043, %v2049
        %v2052 = vadd.f32 %v2004, %v2050
        %2053 = vst.msk [vmem:[#allocation3] sm:$0x3] %vm609, %v2052
        %v2054 = vld [vmem:[#allocation2] sm:$0x7]
        %s2055 = sld [smem:[#allocation5 + $0x1c]]
        %v2056 = vld [vmem:[#allocation3] sm:$0x3]
        %v2058 = vlaneseq
        %v2059 = vshrl.u32 %v2058, 7
        %v2060 = vsub.s32 0, %v2059
        %v2061 = vrot.slane %v2054, %v2060
        %v2062 = vlaneseq
        %v2063 = vshrl.u32 %v2062, 7
        %v2064 = vsub.s32 1, %v2063
        %v2065 = vrot.slane %v2054, %v2064
        %v2066 = vlaneseq
        %v2067 = vshrl.u32 %v2066, 7
        %v2068 = vsub.s32 2, %v2067
        %v2069 = vrot.slane %v2054, %v2068
        %2070 = vrot.lane.b32.xlu0 %v2061, 64
        %v2071 = vpop.permute.xlu0 %2070
        %2072 = vrot.lane.b32.xlu0 %v2065, 64
        %v2073 = vpop.permute.xlu0 %2072
        %2074 = vrot.lane.b32.xlu0 %v2069, 64
        %v2075 = vpop.permute.xlu0 %2074
        %vm2076 = vcmask 523264
        %v2077 = vsel %vm2076, %v2071, %v2073
        %v2078 = vsel %vm2076, %v2073, %v2075
        %v2081 = vsel %vm557, %v2077, 0.0
        %v2082 = vsel %vm558, %v2078, 0.0
        %v2083 = vstv %s2055
        %v2084 = vmul.f32 %v2083, %v2081
        %v2085 = vmul.f32 %v2083, %v2082
        %v2088 = vcombine.low %v2084, %v2085
        %v2090 = vunpack.c.l.s4 1966171168
        %v2091 = vunpack.c.0.s8 %v2090
        %v2092 = vlaneseq
        %v2093 = vshrl.u32 %v2092, 7
        %v2094 = vsub.s32 %v2091, %v2093
        %v2095 = vrot.slane %v2088, %v2094
        %v2097 = vunpack.c.l.s4 1966171168
        %v2098 = vunpack.c.0.s8 %v2097
        %v2099 = vlaneseq
        %v2100 = vshrl.u32 %v2099, 7
        %v2101 = vsub.s32 %v2098, %v2100
        %v2102 = vrot.slane %v2095, %v2101
        %v2104 = vadd.f32 %v2056, %v2102
        %2105 = vst.msk [vmem:[#allocation3] sm:$0x3] %vm609, %v2104
        %v2106 = vld [vmem:[#allocation2] sm:$0x7]
        %s2107 = sld [smem:[#allocation5 + $0x1d]]
        %v2108 = vld [vmem:[#allocation3] sm:$0x3]
        %v2110 = vlaneseq
        %v2111 = vshrl.u32 %v2110, 7
        %v2112 = vsub.s32 0, %v2111
        %v2113 = vrot.slane %v2106, %v2112
        %v2114 = vlaneseq
        %v2115 = vshrl.u32 %v2114, 7
        %v2116 = vsub.s32 1, %v2115
        %v2117 = vrot.slane %v2106, %v2116
        %v2118 = vlaneseq
        %v2119 = vshrl.u32 %v2118, 7
        %v2120 = vsub.s32 2, %v2119
        %v2121 = vrot.slane %v2106, %v2120
        %2122 = vrot.lane.b32.xlu0 %v2113, 63
        %v2123 = vpop.permute.xlu0 %2122
        %2124 = vrot.lane.b32.xlu0 %v2117, 63
        %v2125 = vpop.permute.xlu0 %2124
        %2126 = vrot.lane.b32.xlu0 %v2121, 63
        %v2127 = vpop.permute.xlu0 %2126
        %vm2128 = vcmask 515072
        %v2129 = vsel %vm2128, %v2123, %v2125
        %v2130 = vsel %vm2128, %v2125, %v2127
        %v2133 = vsel %vm565, %v2129, 0.0
        %v2134 = vsel %vm566, %v2130, 0.0
        %v2135 = vstv %s2107
        %v2136 = vmul.f32 %v2135, %v2133
        %v2137 = vmul.f32 %v2135, %v2134
        %v2140 = vcombine.low %v2136, %v2137
        %v2142 = vunpack.c.l.s4 1966171168
        %v2143 = vunpack.c.0.s8 %v2142
        %v2144 = vlaneseq
        %v2145 = vshrl.u32 %v2144, 7
        %v2146 = vsub.s32 %v2143, %v2145
        %v2147 = vrot.slane %v2140, %v2146
        %v2149 = vunpack.c.l.s4 1966171168
        %v2150 = vunpack.c.0.s8 %v2149
        %v2151 = vlaneseq
        %v2152 = vshrl.u32 %v2151, 7
        %v2153 = vsub.s32 %v2150, %v2152
        %v2154 = vrot.slane %v2147, %v2153
        %v2156 = vadd.f32 %v2108, %v2154
        %2157 = vst.msk [vmem:[#allocation3] sm:$0x3] %vm609, %v2156
        %v2158 = vld [vmem:[#allocation2] sm:$0x7]
        %s2159 = sld [smem:[#allocation5 + $0x1e]]
        %v2160 = vld [vmem:[#allocation3] sm:$0x3]
        %v2162 = vlaneseq
        %v2163 = vshrl.u32 %v2162, 7
        %v2164 = vsub.s32 0, %v2163
        %v2165 = vrot.slane %v2158, %v2164
        %v2166 = vlaneseq
        %v2167 = vshrl.u32 %v2166, 7
        %v2168 = vsub.s32 1, %v2167
        %v2169 = vrot.slane %v2158, %v2168
        %v2170 = vlaneseq
        %v2171 = vshrl.u32 %v2170, 7
        %v2172 = vsub.s32 2, %v2171
        %v2173 = vrot.slane %v2158, %v2172
        %2174 = vrot.lane.b32.xlu0 %v2165, 62
        %v2175 = vpop.permute.xlu0 %2174
        %2176 = vrot.lane.b32.xlu0 %v2169, 62
        %v2177 = vpop.permute.xlu0 %2176
        %2178 = vrot.lane.b32.xlu0 %v2173, 62
        %v2179 = vpop.permute.xlu0 %2178
        %vm2180 = vcmask 506880
        %v2181 = vsel %vm2180, %v2175, %v2177
        %v2182 = vsel %vm2180, %v2177, %v2179
        %v2185 = vsel %vm573, %v2181, 0.0
        %v2186 = vsel %vm574, %v2182, 0.0
        %v2187 = vstv %s2159
        %v2188 = vmul.f32 %v2187, %v2185
        %v2189 = vmul.f32 %v2187, %v2186
        %v2192 = vcombine.low %v2188, %v2189
        %v2194 = vunpack.c.l.s4 1966171168
        %v2195 = vunpack.c.0.s8 %v2194
        %v2196 = vlaneseq
        %v2197 = vshrl.u32 %v2196, 7
        %v2198 = vsub.s32 %v2195, %v2197
        %v2199 = vrot.slane %v2192, %v2198
        %v2201 = vunpack.c.l.s4 1966171168
        %v2202 = vunpack.c.0.s8 %v2201
        %v2203 = vlaneseq
        %v2204 = vshrl.u32 %v2203, 7
        %v2205 = vsub.s32 %v2202, %v2204
        %v2206 = vrot.slane %v2199, %v2205
        %v2208 = vadd.f32 %v2160, %v2206
        %2209 = vst.msk [vmem:[#allocation3] sm:$0x3] %vm609, %v2208
        %v2210 = vld [vmem:[#allocation2] sm:$0x7]
        %s2211 = sld [smem:[#allocation5 + $0x1f]]
        %v2212 = vld [vmem:[#allocation3] sm:$0x3]
        %v2214 = vlaneseq
        %v2215 = vshrl.u32 %v2214, 7
        %v2216 = vsub.s32 0, %v2215
        %v2217 = vrot.slane %v2210, %v2216
        %v2218 = vlaneseq
        %v2219 = vshrl.u32 %v2218, 7
        %v2220 = vsub.s32 1, %v2219
        %v2221 = vrot.slane %v2210, %v2220
        %v2222 = vlaneseq
        %v2223 = vshrl.u32 %v2222, 7
        %v2224 = vsub.s32 2, %v2223
        %v2225 = vrot.slane %v2210, %v2224
        %2226 = vrot.lane.b32.xlu0 %v2217, 61
        %v2227 = vpop.permute.xlu0 %2226
        %2228 = vrot.lane.b32.xlu0 %v2221, 61
        %v2229 = vpop.permute.xlu0 %2228
        %2230 = vrot.lane.b32.xlu0 %v2225, 61
        %v2231 = vpop.permute.xlu0 %2230
        %vm2232 = vcmask 498688
        %v2233 = vsel %vm2232, %v2227, %v2229
        %v2234 = vsel %vm2232, %v2229, %v2231
        %v2237 = vsel %vm579, %v2233, 0.0
        %v2238 = vsel %vm580, %v2234, 0.0
        %v2239 = vstv %s2211
        %v2240 = vmul.f32 %v2239, %v2237
        %v2241 = vmul.f32 %v2239, %v2238
        %v2244 = vcombine.low %v2240, %v2241
        %v2246 = vunpack.c.l.s4 1966171168
        %v2247 = vunpack.c.0.s8 %v2246
        %v2248 = vlaneseq
        %v2249 = vshrl.u32 %v2248, 7
        %v2250 = vsub.s32 %v2247, %v2249
        %v2251 = vrot.slane %v2244, %v2250
        %v2253 = vunpack.c.l.s4 1966171168
        %v2254 = vunpack.c.0.s8 %v2253
        %v2255 = vlaneseq
        %v2256 = vshrl.u32 %v2255, 7
        %v2257 = vsub.s32 %v2254, %v2256
        %v2258 = vrot.slane %v2251, %v2257
        %v2260 = vadd.f32 %v2212, %v2258
        %2261 = vst.msk [vmem:[#allocation3] sm:$0x3] %vm609, %v2260
        %v2262 = vld [vmem:[#allocation2] sm:$0x7]
        %s2263 = sld [smem:[#allocation5 + $0x20]]
        %v2264 = vld [vmem:[#allocation3] sm:$0x3]
        %v2266 = vlaneseq
        %v2267 = vshrl.u32 %v2266, 7
        %v2268 = vsub.s32 0, %v2267
        %v2269 = vrot.slane %v2262, %v2268
        %v2270 = vlaneseq
        %v2271 = vshrl.u32 %v2270, 7
        %v2272 = vsub.s32 1, %v2271
        %v2273 = vrot.slane %v2262, %v2272
        %v2274 = vlaneseq
        %v2275 = vshrl.u32 %v2274, 7
        %v2276 = vsub.s32 2, %v2275
        %v2277 = vrot.slane %v2262, %v2276
        %2278 = vrot.lane.b32.xlu0 %v2269, 60
        %v2279 = vpop.permute.xlu0 %2278
        %2280 = vrot.lane.b32.xlu0 %v2273, 60
        %v2281 = vpop.permute.xlu0 %2280
        %2282 = vrot.lane.b32.xlu0 %v2277, 60
        %v2283 = vpop.permute.xlu0 %2282
        %vm2284 = vcmask 490496
        %v2285 = vsel %vm2284, %v2279, %v2281
        %v2286 = vsel %vm2284, %v2281, %v2283
        %v2289 = vsel %vm587, %v2285, 0.0
        %v2290 = vsel %vm588, %v2286, 0.0
        %v2291 = vstv %s2263
        %v2292 = vmul.f32 %v2291, %v2289
        %v2293 = vmul.f32 %v2291, %v2290
        %v2296 = vcombine.low %v2292, %v2293
        %v2298 = vunpack.c.l.s4 1966171168
        %v2299 = vunpack.c.0.s8 %v2298
        %v2300 = vlaneseq
        %v2301 = vshrl.u32 %v2300, 7
        %v2302 = vsub.s32 %v2299, %v2301
        %v2303 = vrot.slane %v2296, %v2302
        %v2305 = vunpack.c.l.s4 1966171168
        %v2306 = vunpack.c.0.s8 %v2305
        %v2307 = vlaneseq
        %v2308 = vshrl.u32 %v2307, 7
        %v2309 = vsub.s32 %v2306, %v2308
        %v2310 = vrot.slane %v2303, %v2309
        %v2312 = vadd.f32 %v2264, %v2310
        %2313 = vst.msk [vmem:[#allocation3] sm:$0x3] %vm609, %v2312
        %v2314 = vld [vmem:[#allocation2] sm:$0x7]
        %s2315 = sld [smem:[#allocation5 + $0x21]]
        %v2316 = vld [vmem:[#allocation3] sm:$0x3]
        %v2318 = vlaneseq
        %v2319 = vshrl.u32 %v2318, 7
        %v2320 = vsub.s32 0, %v2319
        %v2321 = vrot.slane %v2314, %v2320
        %v2322 = vlaneseq
        %v2323 = vshrl.u32 %v2322, 7
        %v2324 = vsub.s32 1, %v2323
        %v2325 = vrot.slane %v2314, %v2324
        %v2326 = vlaneseq
        %v2327 = vshrl.u32 %v2326, 7
        %v2328 = vsub.s32 2, %v2327
        %v2329 = vrot.slane %v2314, %v2328
        %2330 = vrot.lane.b32.xlu0 %v2321, 59
        %v2331 = vpop.permute.xlu0 %2330
        %2332 = vrot.lane.b32.xlu0 %v2325, 59
        %v2333 = vpop.permute.xlu0 %2332
        %2334 = vrot.lane.b32.xlu0 %v2329, 59
        %v2335 = vpop.permute.xlu0 %2334
        %vm2336 = vcmask 482304
        %v2337 = vsel %vm2336, %v2331, %v2333
        %v2338 = vsel %vm2336, %v2333, %v2335
        %v2341 = vsel %vm595, %v2337, 0.0
        %v2342 = vsel %vm596, %v2338, 0.0
        %v2343 = vstv %s2315
        %v2344 = vmul.f32 %v2343, %v2341
        %v2345 = vmul.f32 %v2343, %v2342
        %v2348 = vcombine.low %v2344, %v2345
        %v2350 = vunpack.c.l.s4 1966171168
        %v2351 = vunpack.c.0.s8 %v2350
        %v2352 = vlaneseq
        %v2353 = vshrl.u32 %v2352, 7
        %v2354 = vsub.s32 %v2351, %v2353
        %v2355 = vrot.slane %v2348, %v2354
        %v2357 = vunpack.c.l.s4 1966171168
        %v2358 = vunpack.c.0.s8 %v2357
        %v2359 = vlaneseq
        %v2360 = vshrl.u32 %v2359, 7
        %v2361 = vsub.s32 %v2358, %v2360
        %v2362 = vrot.slane %v2355, %v2361
        %v2364 = vadd.f32 %v2316, %v2362
        %2365 = vst.msk [vmem:[#allocation3] sm:$0x3] %vm609, %v2364
        %v2366 = vld [vmem:[#allocation2] sm:$0x7]
        %s2367 = sld [smem:[#allocation5 + $0x22]]
        %v2368 = vld [vmem:[#allocation3] sm:$0x3]
        %v2370 = vlaneseq
        %v2371 = vshrl.u32 %v2370, 7
        %v2372 = vsub.s32 0, %v2371
        %v2373 = vrot.slane %v2366, %v2372
        %v2374 = vlaneseq
        %v2375 = vshrl.u32 %v2374, 7
        %v2376 = vsub.s32 1, %v2375
        %v2377 = vrot.slane %v2366, %v2376
        %v2378 = vlaneseq
        %v2379 = vshrl.u32 %v2378, 7
        %v2380 = vsub.s32 2, %v2379
        %v2381 = vrot.slane %v2366, %v2380
        %2382 = vrot.lane.b32.xlu0 %v2373, 58
        %v2383 = vpop.permute.xlu0 %2382
        %2384 = vrot.lane.b32.xlu0 %v2377, 58
        %v2385 = vpop.permute.xlu0 %2384
        %2386 = vrot.lane.b32.xlu0 %v2381, 58
        %v2387 = vpop.permute.xlu0 %2386
        %vm2388 = vcmask 474112
        %v2389 = vsel %vm2388, %v2383, %v2385
        %v2390 = vsel %vm2388, %v2385, %v2387
        %v2393 = vsel %vm603, %v2389, 0.0
        %v2394 = vsel %vm604, %v2390, 0.0
        %v2395 = vstv %s2367
        %v2396 = vmul.f32 %v2395, %v2393
        %v2397 = vmul.f32 %v2395, %v2394
        %v2400 = vcombine.low %v2396, %v2397
        %v2402 = vunpack.c.l.s4 1966171168
        %v2403 = vunpack.c.0.s8 %v2402
        %v2404 = vlaneseq
        %v2405 = vshrl.u32 %v2404, 7
        %v2406 = vsub.s32 %v2403, %v2405
        %v2407 = vrot.slane %v2400, %v2406
        %v2409 = vunpack.c.l.s4 1966171168
        %v2410 = vunpack.c.0.s8 %v2409
        %v2411 = vlaneseq
        %v2412 = vshrl.u32 %v2411, 7
        %v2413 = vsub.s32 %v2410, %v2412
        %v2414 = vrot.slane %v2407, %v2413
        %v2416 = vadd.f32 %v2368, %v2414
        %2417 = vst.msk [vmem:[#allocation3] sm:$0x3] %vm609, %v2416
        %v2418 = vld [vmem:[#allocation2] sm:$0x7]
        %s2419 = sld [smem:[#allocation5 + $0x23]]
        %v2420 = vld [vmem:[#allocation3] sm:$0x3]
        %v2422 = vlaneseq
        %v2423 = vshrl.u32 %v2422, 7
        %v2424 = vsub.s32 0, %v2423
        %v2425 = vrot.slane %v2418, %v2424
        %v2426 = vlaneseq
        %v2427 = vshrl.u32 %v2426, 7
        %v2428 = vsub.s32 1, %v2427
        %v2429 = vrot.slane %v2418, %v2428
        %v2430 = vlaneseq
        %v2431 = vshrl.u32 %v2430, 7
        %v2432 = vsub.s32 2, %v2431
        %v2433 = vrot.slane %v2418, %v2432
        %2434 = vrot.lane.b32.xlu0 %v2425, 48
        %v2435 = vpop.permute.xlu0 %2434
        %2436 = vrot.lane.b32.xlu0 %v2429, 48
        %v2437 = vpop.permute.xlu0 %2436
        %2438 = vrot.lane.b32.xlu0 %v2433, 48
        %v2439 = vpop.permute.xlu0 %2438
        %vm2440 = vcmask 392192
        %v2441 = vsel %vm2440, %v2435, %v2437
        %v2442 = vsel %vm2440, %v2437, %v2439
        %v2445 = vsel %vm557, %v2441, 0.0
        %v2446 = vsel %vm558, %v2442, 0.0
        %v2447 = vstv %s2419
        %v2448 = vmul.f32 %v2447, %v2445
        %v2449 = vmul.f32 %v2447, %v2446
        %v2452 = vcombine.low %v2448, %v2449
        %v2454 = vunpack.c.l.s4 1966171168
        %v2455 = vunpack.c.0.s8 %v2454
        %v2456 = vlaneseq
        %v2457 = vshrl.u32 %v2456, 7
        %v2458 = vsub.s32 %v2455, %v2457
        %v2459 = vrot.slane %v2452, %v2458
        %v2461 = vunpack.c.l.s4 1966171168
        %v2462 = vunpack.c.0.s8 %v2461
        %v2463 = vlaneseq
        %v2464 = vshrl.u32 %v2463, 7
        %v2465 = vsub.s32 %v2462, %v2464
        %v2466 = vrot.slane %v2459, %v2465
        %v2468 = vadd.f32 %v2420, %v2466
        %2469 = vst.msk [vmem:[#allocation3] sm:$0x3] %vm609, %v2468
        %v2470 = vld [vmem:[#allocation2] sm:$0x7]
        %s2471 = sld [smem:[#allocation5 + $0x24]]
        %v2472 = vld [vmem:[#allocation3] sm:$0x3]
        %v2474 = vlaneseq
        %v2475 = vshrl.u32 %v2474, 7
        %v2476 = vsub.s32 0, %v2475
        %v2477 = vrot.slane %v2470, %v2476
        %v2478 = vlaneseq
        %v2479 = vshrl.u32 %v2478, 7
        %v2480 = vsub.s32 1, %v2479
        %v2481 = vrot.slane %v2470, %v2480
        %v2482 = vlaneseq
        %v2483 = vshrl.u32 %v2482, 7
        %v2484 = vsub.s32 2, %v2483
        %v2485 = vrot.slane %v2470, %v2484
        %2486 = vrot.lane.b32.xlu0 %v2477, 47
        %v2487 = vpop.permute.xlu0 %2486
        %2488 = vrot.lane.b32.xlu0 %v2481, 47
        %v2489 = vpop.permute.xlu0 %2488
        %2490 = vrot.lane.b32.xlu0 %v2485, 47
        %v2491 = vpop.permute.xlu0 %2490
        %vm2492 = vcmask 384000
        %v2493 = vsel %vm2492, %v2487, %v2489
        %v2494 = vsel %vm2492, %v2489, %v2491
        %v2497 = vsel %vm565, %v2493, 0.0
        %v2498 = vsel %vm566, %v2494, 0.0
        %v2499 = vstv %s2471
        %v2500 = vmul.f32 %v2499, %v2497
        %v2501 = vmul.f32 %v2499, %v2498
        %v2504 = vcombine.low %v2500, %v2501
        %v2506 = vunpack.c.l.s4 1966171168
        %v2507 = vunpack.c.0.s8 %v2506
        %v2508 = vlaneseq
        %v2509 = vshrl.u32 %v2508, 7
        %v2510 = vsub.s32 %v2507, %v2509
        %v2511 = vrot.slane %v2504, %v2510
        %v2513 = vunpack.c.l.s4 1966171168
        %v2514 = vunpack.c.0.s8 %v2513
        %v2515 = vlaneseq
        %v2516 = vshrl.u32 %v2515, 7
        %v2517 = vsub.s32 %v2514, %v2516
        %v2518 = vrot.slane %v2511, %v2517
        %v2520 = vadd.f32 %v2472, %v2518
        %2521 = vst.msk [vmem:[#allocation3] sm:$0x3] %vm609, %v2520
        %v2522 = vld [vmem:[#allocation2] sm:$0x7]
        %s2523 = sld [smem:[#allocation5 + $0x25]]
        %v2524 = vld [vmem:[#allocation3] sm:$0x3]
        %v2526 = vlaneseq
        %v2527 = vshrl.u32 %v2526, 7
        %v2528 = vsub.s32 0, %v2527
        %v2529 = vrot.slane %v2522, %v2528
        %v2530 = vlaneseq
        %v2531 = vshrl.u32 %v2530, 7
        %v2532 = vsub.s32 1, %v2531
        %v2533 = vrot.slane %v2522, %v2532
        %v2534 = vlaneseq
        %v2535 = vshrl.u32 %v2534, 7
        %v2536 = vsub.s32 2, %v2535
        %v2537 = vrot.slane %v2522, %v2536
        %2538 = vrot.lane.b32.xlu0 %v2529, 46
        %v2539 = vpop.permute.xlu0 %2538
        %2540 = vrot.lane.b32.xlu0 %v2533, 46
        %v2541 = vpop.permute.xlu0 %2540
        %2542 = vrot.lane.b32.xlu0 %v2537, 46
        %v2543 = vpop.permute.xlu0 %2542
        %vm2544 = vcmask 375808
        %v2545 = vsel %vm2544, %v2539, %v2541
        %v2546 = vsel %vm2544, %v2541, %v2543
        %v2549 = vsel %vm573, %v2545, 0.0
        %v2550 = vsel %vm574, %v2546, 0.0
        %v2551 = vstv %s2523
        %v2552 = vmul.f32 %v2551, %v2549
        %v2553 = vmul.f32 %v2551, %v2550
        %v2556 = vcombine.low %v2552, %v2553
        %v2558 = vunpack.c.l.s4 1966171168
        %v2559 = vunpack.c.0.s8 %v2558
        %v2560 = vlaneseq
        %v2561 = vshrl.u32 %v2560, 7
        %v2562 = vsub.s32 %v2559, %v2561
        %v2563 = vrot.slane %v2556, %v2562
        %v2565 = vunpack.c.l.s4 1966171168
        %v2566 = vunpack.c.0.s8 %v2565
        %v2567 = vlaneseq
        %v2568 = vshrl.u32 %v2567, 7
        %v2569 = vsub.s32 %v2566, %v2568
        %v2570 = vrot.slane %v2563, %v2569
        %v2572 = vadd.f32 %v2524, %v2570
        %2573 = vst.msk [vmem:[#allocation3] sm:$0x3] %vm609, %v2572
        %v2574 = vld [vmem:[#allocation2] sm:$0x7]
        %s2575 = sld [smem:[#allocation5 + $0x26]]
        %v2576 = vld [vmem:[#allocation3] sm:$0x3]
        %v2578 = vlaneseq
        %v2579 = vshrl.u32 %v2578, 7
        %v2580 = vsub.s32 0, %v2579
        %v2581 = vrot.slane %v2574, %v2580
        %v2582 = vlaneseq
        %v2583 = vshrl.u32 %v2582, 7
        %v2584 = vsub.s32 1, %v2583
        %v2585 = vrot.slane %v2574, %v2584
        %v2586 = vlaneseq
        %v2587 = vshrl.u32 %v2586, 7
        %v2588 = vsub.s32 2, %v2587
        %v2589 = vrot.slane %v2574, %v2588
        %2590 = vrot.lane.b32.xlu0 %v2581, 45
        %v2591 = vpop.permute.xlu0 %2590
        %2592 = vrot.lane.b32.xlu0 %v2585, 45
        %v2593 = vpop.permute.xlu0 %2592
        %2594 = vrot.lane.b32.xlu0 %v2589, 45
        %v2595 = vpop.permute.xlu0 %2594
        %vm2596 = vcmask 367616
        %v2597 = vsel %vm2596, %v2591, %v2593
        %v2598 = vsel %vm2596, %v2593, %v2595
        %v2601 = vsel %vm579, %v2597, 0.0
        %v2602 = vsel %vm580, %v2598, 0.0
        %v2603 = vstv %s2575
        %v2604 = vmul.f32 %v2603, %v2601
        %v2605 = vmul.f32 %v2603, %v2602
        %v2608 = vcombine.low %v2604, %v2605
        %v2610 = vunpack.c.l.s4 1966171168
        %v2611 = vunpack.c.0.s8 %v2610
        %v2612 = vlaneseq
        %v2613 = vshrl.u32 %v2612, 7
        %v2614 = vsub.s32 %v2611, %v2613
        %v2615 = vrot.slane %v2608, %v2614
        %v2617 = vunpack.c.l.s4 1966171168
        %v2618 = vunpack.c.0.s8 %v2617
        %v2619 = vlaneseq
        %v2620 = vshrl.u32 %v2619, 7
        %v2621 = vsub.s32 %v2618, %v2620
        %v2622 = vrot.slane %v2615, %v2621
        %v2624 = vadd.f32 %v2576, %v2622
        %2625 = vst.msk [vmem:[#allocation3] sm:$0x3] %vm609, %v2624
        %v2626 = vld [vmem:[#allocation2] sm:$0x7]
        %s2627 = sld [smem:[#allocation5 + $0x27]]
        %v2628 = vld [vmem:[#allocation3] sm:$0x3]
        %v2630 = vlaneseq
        %v2631 = vshrl.u32 %v2630, 7
        %v2632 = vsub.s32 0, %v2631
        %v2633 = vrot.slane %v2626, %v2632
        %v2634 = vlaneseq
        %v2635 = vshrl.u32 %v2634, 7
        %v2636 = vsub.s32 1, %v2635
        %v2637 = vrot.slane %v2626, %v2636
        %v2638 = vlaneseq
        %v2639 = vshrl.u32 %v2638, 7
        %v2640 = vsub.s32 2, %v2639
        %v2641 = vrot.slane %v2626, %v2640
        %2642 = vrot.lane.b32.xlu0 %v2633, 44
        %v2643 = vpop.permute.xlu0 %2642
        %2644 = vrot.lane.b32.xlu0 %v2637, 44
        %v2645 = vpop.permute.xlu0 %2644
        %2646 = vrot.lane.b32.xlu0 %v2641, 44
        %v2647 = vpop.permute.xlu0 %2646
        %vm2648 = vcmask 359424
        %v2649 = vsel %vm2648, %v2643, %v2645
        %v2650 = vsel %vm2648, %v2645, %v2647
        %v2653 = vsel %vm587, %v2649, 0.0
        %v2654 = vsel %vm588, %v2650, 0.0
        %v2655 = vstv %s2627
        %v2656 = vmul.f32 %v2655, %v2653
        %v2657 = vmul.f32 %v2655, %v2654
        %v2660 = vcombine.low %v2656, %v2657
        %v2662 = vunpack.c.l.s4 1966171168
        %v2663 = vunpack.c.0.s8 %v2662
        %v2664 = vlaneseq
        %v2665 = vshrl.u32 %v2664, 7
        %v2666 = vsub.s32 %v2663, %v2665
        %v2667 = vrot.slane %v2660, %v2666
        %v2669 = vunpack.c.l.s4 1966171168
        %v2670 = vunpack.c.0.s8 %v2669
        %v2671 = vlaneseq
        %v2672 = vshrl.u32 %v2671, 7
        %v2673 = vsub.s32 %v2670, %v2672
        %v2674 = vrot.slane %v2667, %v2673
        %v2676 = vadd.f32 %v2628, %v2674
        %2677 = vst.msk [vmem:[#allocation3] sm:$0x3] %vm609, %v2676
        %v2678 = vld [vmem:[#allocation2] sm:$0x7]
        %s2679 = sld [smem:[#allocation5 + $0x28]]
        %v2680 = vld [vmem:[#allocation3] sm:$0x3]
        %v2682 = vlaneseq
        %v2683 = vshrl.u32 %v2682, 7
        %v2684 = vsub.s32 0, %v2683
        %v2685 = vrot.slane %v2678, %v2684
        %v2686 = vlaneseq
        %v2687 = vshrl.u32 %v2686, 7
        %v2688 = vsub.s32 1, %v2687
        %v2689 = vrot.slane %v2678, %v2688
        %v2690 = vlaneseq
        %v2691 = vshrl.u32 %v2690, 7
        %v2692 = vsub.s32 2, %v2691
        %v2693 = vrot.slane %v2678, %v2692
        %2694 = vrot.lane.b32.xlu0 %v2685, 43
        %v2695 = vpop.permute.xlu0 %2694
        %2696 = vrot.lane.b32.xlu0 %v2689, 43
        %v2697 = vpop.permute.xlu0 %2696
        %2698 = vrot.lane.b32.xlu0 %v2693, 43
        %v2699 = vpop.permute.xlu0 %2698
        %vm2700 = vcmask 351232
        %v2701 = vsel %vm2700, %v2695, %v2697
        %v2702 = vsel %vm2700, %v2697, %v2699
        %v2705 = vsel %vm595, %v2701, 0.0
        %v2706 = vsel %vm596, %v2702, 0.0
        %v2707 = vstv %s2679
        %v2708 = vmul.f32 %v2707, %v2705
        %v2709 = vmul.f32 %v2707, %v2706
        %v2712 = vcombine.low %v2708, %v2709
        %v2714 = vunpack.c.l.s4 1966171168
        %v2715 = vunpack.c.0.s8 %v2714
        %v2716 = vlaneseq
        %v2717 = vshrl.u32 %v2716, 7
        %v2718 = vsub.s32 %v2715, %v2717
        %v2719 = vrot.slane %v2712, %v2718
        %v2721 = vunpack.c.l.s4 1966171168
        %v2722 = vunpack.c.0.s8 %v2721
        %v2723 = vlaneseq
        %v2724 = vshrl.u32 %v2723, 7
        %v2725 = vsub.s32 %v2722, %v2724
        %v2726 = vrot.slane %v2719, %v2725
        %v2728 = vadd.f32 %v2680, %v2726
        %2729 = vst.msk [vmem:[#allocation3] sm:$0x3] %vm609, %v2728
        %v2730 = vld [vmem:[#allocation2] sm:$0x7]
        %s2731 = sld [smem:[#allocation5 + $0x29]]
        %v2732 = vld [vmem:[#allocation3] sm:$0x3]
        %v2734 = vlaneseq
        %v2735 = vshrl.u32 %v2734, 7
        %v2736 = vsub.s32 0, %v2735
        %v2737 = vrot.slane %v2730, %v2736
        %v2738 = vlaneseq
        %v2739 = vshrl.u32 %v2738, 7
        %v2740 = vsub.s32 1, %v2739
        %v2741 = vrot.slane %v2730, %v2740
        %v2742 = vlaneseq
        %v2743 = vshrl.u32 %v2742, 7
        %v2744 = vsub.s32 2, %v2743
        %v2745 = vrot.slane %v2730, %v2744
        %2746 = vrot.lane.b32.xlu0 %v2737, 42
        %v2747 = vpop.permute.xlu0 %2746
        %2748 = vrot.lane.b32.xlu0 %v2741, 42
        %v2749 = vpop.permute.xlu0 %2748
        %2750 = vrot.lane.b32.xlu0 %v2745, 42
        %v2751 = vpop.permute.xlu0 %2750
        %vm2752 = vcmask 343040
        %v2753 = vsel %vm2752, %v2747, %v2749
        %v2754 = vsel %vm2752, %v2749, %v2751
        %v2757 = vsel %vm603, %v2753, 0.0
        %v2758 = vsel %vm604, %v2754, 0.0
        %v2759 = vstv %s2731
        %v2760 = vmul.f32 %v2759, %v2757
        %v2761 = vmul.f32 %v2759, %v2758
        %v2764 = vcombine.low %v2760, %v2761
        %v2766 = vunpack.c.l.s4 1966171168
        %v2767 = vunpack.c.0.s8 %v2766
        %v2768 = vlaneseq
        %v2769 = vshrl.u32 %v2768, 7
        %v2770 = vsub.s32 %v2767, %v2769
        %v2771 = vrot.slane %v2764, %v2770
        %v2773 = vunpack.c.l.s4 1966171168
        %v2774 = vunpack.c.0.s8 %v2773
        %v2775 = vlaneseq
        %v2776 = vshrl.u32 %v2775, 7
        %v2777 = vsub.s32 %v2774, %v2776
        %v2778 = vrot.slane %v2771, %v2777
        %v2780 = vadd.f32 %v2732, %v2778
        %2781 = vst.msk [vmem:[#allocation3] sm:$0x3] %vm609, %v2780
        %v2782 = vld [vmem:[#allocation2] sm:$0x7]
        %s2783 = sld [smem:[#allocation5 + $0x2a]]
        %v2784 = vld [vmem:[#allocation3] sm:$0x3]
        %v2786 = vlaneseq
        %v2787 = vshrl.u32 %v2786, 7
        %v2788 = vsub.s32 0, %v2787
        %v2789 = vrot.slane %v2782, %v2788
        %v2790 = vlaneseq
        %v2791 = vshrl.u32 %v2790, 7
        %v2792 = vsub.s32 1, %v2791
        %v2793 = vrot.slane %v2782, %v2792
        %v2794 = vlaneseq
        %v2795 = vshrl.u32 %v2794, 7
        %v2796 = vsub.s32 2, %v2795
        %v2797 = vrot.slane %v2782, %v2796
        %2798 = vrot.lane.b32.xlu0 %v2789, 32
        %v2799 = vpop.permute.xlu0 %2798
        %2800 = vrot.lane.b32.xlu0 %v2793, 32
        %v2801 = vpop.permute.xlu0 %2800
        %2802 = vrot.lane.b32.xlu0 %v2797, 32
        %v2803 = vpop.permute.xlu0 %2802
        %vm2804 = vcmask 261120
        %v2805 = vsel %vm2804, %v2799, %v2801
        %v2806 = vsel %vm2804, %v2801, %v2803
        %v2809 = vsel %vm557, %v2805, 0.0
        %v2810 = vsel %vm558, %v2806, 0.0
        %v2811 = vstv %s2783
        %v2812 = vmul.f32 %v2811, %v2809
        %v2813 = vmul.f32 %v2811, %v2810
        %v2816 = vcombine.low %v2812, %v2813
        %v2818 = vunpack.c.l.s4 1966171168
        %v2819 = vunpack.c.0.s8 %v2818
        %v2820 = vlaneseq
        %v2821 = vshrl.u32 %v2820, 7
        %v2822 = vsub.s32 %v2819, %v2821
        %v2823 = vrot.slane %v2816, %v2822
        %v2825 = vunpack.c.l.s4 1966171168
        %v2826 = vunpack.c.0.s8 %v2825
        %v2827 = vlaneseq
        %v2828 = vshrl.u32 %v2827, 7
        %v2829 = vsub.s32 %v2826, %v2828
        %v2830 = vrot.slane %v2823, %v2829
        %v2832 = vadd.f32 %v2784, %v2830
        %2833 = vst.msk [vmem:[#allocation3] sm:$0x3] %vm609, %v2832
        %v2834 = vld [vmem:[#allocation2] sm:$0x7]
        %s2835 = sld [smem:[#allocation5 + $0x2b]]
        %v2836 = vld [vmem:[#allocation3] sm:$0x3]
        %v2838 = vlaneseq
        %v2839 = vshrl.u32 %v2838, 7
        %v2840 = vsub.s32 0, %v2839
        %v2841 = vrot.slane %v2834, %v2840
        %v2842 = vlaneseq
        %v2843 = vshrl.u32 %v2842, 7
        %v2844 = vsub.s32 1, %v2843
        %v2845 = vrot.slane %v2834, %v2844
        %v2846 = vlaneseq
        %v2847 = vshrl.u32 %v2846, 7
        %v2848 = vsub.s32 2, %v2847
        %v2849 = vrot.slane %v2834, %v2848
        %2850 = vrot.lane.b32.xlu0 %v2841, 31
        %v2851 = vpop.permute.xlu0 %2850
        %2852 = vrot.lane.b32.xlu0 %v2845, 31
        %v2853 = vpop.permute.xlu0 %2852
        %2854 = vrot.lane.b32.xlu0 %v2849, 31
        %v2855 = vpop.permute.xlu0 %2854
        %vm2856 = vcmask 252928
        %v2857 = vsel %vm2856, %v2851, %v2853
        %v2858 = vsel %vm2856, %v2853, %v2855
        %v2861 = vsel %vm565, %v2857, 0.0
        %v2862 = vsel %vm566, %v2858, 0.0
        %v2863 = vstv %s2835
        %v2864 = vmul.f32 %v2863, %v2861
        %v2865 = vmul.f32 %v2863, %v2862
        %v2868 = vcombine.low %v2864, %v2865
        %v2870 = vunpack.c.l.s4 1966171168
        %v2871 = vunpack.c.0.s8 %v2870
        %v2872 = vlaneseq
        %v2873 = vshrl.u32 %v2872, 7
        %v2874 = vsub.s32 %v2871, %v2873
        %v2875 = vrot.slane %v2868, %v2874
        %v2877 = vunpack.c.l.s4 1966171168
        %v2878 = vunpack.c.0.s8 %v2877
        %v2879 = vlaneseq
        %v2880 = vshrl.u32 %v2879, 7
        %v2881 = vsub.s32 %v2878, %v2880
        %v2882 = vrot.slane %v2875, %v2881
        %v2884 = vadd.f32 %v2836, %v2882
        %2885 = vst.msk [vmem:[#allocation3] sm:$0x3] %vm609, %v2884
        %v2886 = vld [vmem:[#allocation2] sm:$0x7]
        %s2887 = sld [smem:[#allocation5 + $0x2c]]
        %v2888 = vld [vmem:[#allocation3] sm:$0x3]
        %v2890 = vlaneseq
        %v2891 = vshrl.u32 %v2890, 7
        %v2892 = vsub.s32 0, %v2891
        %v2893 = vrot.slane %v2886, %v2892
        %v2894 = vlaneseq
        %v2895 = vshrl.u32 %v2894, 7
        %v2896 = vsub.s32 1, %v2895
        %v2897 = vrot.slane %v2886, %v2896
        %v2898 = vlaneseq
        %v2899 = vshrl.u32 %v2898, 7
        %v2900 = vsub.s32 2, %v2899
        %v2901 = vrot.slane %v2886, %v2900
        %2902 = vrot.lane.b32.xlu0 %v2893, 30
        %v2903 = vpop.permute.xlu0 %2902
        %2904 = vrot.lane.b32.xlu0 %v2897, 30
        %v2905 = vpop.permute.xlu0 %2904
        %2906 = vrot.lane.b32.xlu0 %v2901, 30
        %v2907 = vpop.permute.xlu0 %2906
        %vm2908 = vcmask 244736
        %v2909 = vsel %vm2908, %v2903, %v2905
        %v2910 = vsel %vm2908, %v2905, %v2907
        %v2913 = vsel %vm573, %v2909, 0.0
        %v2914 = vsel %vm574, %v2910, 0.0
        %v2915 = vstv %s2887
        %v2916 = vmul.f32 %v2915, %v2913
        %v2917 = vmul.f32 %v2915, %v2914
        %v2920 = vcombine.low %v2916, %v2917
        %v2922 = vunpack.c.l.s4 1966171168
        %v2923 = vunpack.c.0.s8 %v2922
        %v2924 = vlaneseq
        %v2925 = vshrl.u32 %v2924, 7
        %v2926 = vsub.s32 %v2923, %v2925
        %v2927 = vrot.slane %v2920, %v2926
        %v2929 = vunpack.c.l.s4 1966171168
        %v2930 = vunpack.c.0.s8 %v2929
        %v2931 = vlaneseq
        %v2932 = vshrl.u32 %v2931, 7
        %v2933 = vsub.s32 %v2930, %v2932
        %v2934 = vrot.slane %v2927, %v2933
        %v2936 = vadd.f32 %v2888, %v2934
        %2937 = vst.msk [vmem:[#allocation3] sm:$0x3] %vm609, %v2936
        %v2938 = vld [vmem:[#allocation2] sm:$0x7]
        %s2939 = sld [smem:[#allocation5 + $0x2d]]
        %v2940 = vld [vmem:[#allocation3] sm:$0x3]
        %v2942 = vlaneseq
        %v2943 = vshrl.u32 %v2942, 7
        %v2944 = vsub.s32 0, %v2943
        %v2945 = vrot.slane %v2938, %v2944
        %v2946 = vlaneseq
        %v2947 = vshrl.u32 %v2946, 7
        %v2948 = vsub.s32 1, %v2947
        %v2949 = vrot.slane %v2938, %v2948
        %v2950 = vlaneseq
        %v2951 = vshrl.u32 %v2950, 7
        %v2952 = vsub.s32 2, %v2951
        %v2953 = vrot.slane %v2938, %v2952
        %2954 = vrot.lane.b32.xlu0 %v2945, 29
        %v2955 = vpop.permute.xlu0 %2954
        %2956 = vrot.lane.b32.xlu0 %v2949, 29
        %v2957 = vpop.permute.xlu0 %2956
        %2958 = vrot.lane.b32.xlu0 %v2953, 29
        %v2959 = vpop.permute.xlu0 %2958
        %vm2960 = vcmask 236544
        %v2961 = vsel %vm2960, %v2955, %v2957
        %v2962 = vsel %vm2960, %v2957, %v2959
        %v2965 = vsel %vm579, %v2961, 0.0
        %v2966 = vsel %vm580, %v2962, 0.0
        %v2967 = vstv %s2939
        %v2968 = vmul.f32 %v2967, %v2965
        %v2969 = vmul.f32 %v2967, %v2966
        %v2972 = vcombine.low %v2968, %v2969
        %v2974 = vunpack.c.l.s4 1966171168
        %v2975 = vunpack.c.0.s8 %v2974
        %v2976 = vlaneseq
        %v2977 = vshrl.u32 %v2976, 7
        %v2978 = vsub.s32 %v2975, %v2977
        %v2979 = vrot.slane %v2972, %v2978
        %v2981 = vunpack.c.l.s4 1966171168
        %v2982 = vunpack.c.0.s8 %v2981
        %v2983 = vlaneseq
        %v2984 = vshrl.u32 %v2983, 7
        %v2985 = vsub.s32 %v2982, %v2984
        %v2986 = vrot.slane %v2979, %v2985
        %v2988 = vadd.f32 %v2940, %v2986
        %2989 = vst.msk [vmem:[#allocation3] sm:$0x3] %vm609, %v2988
        %v2990 = vld [vmem:[#allocation2] sm:$0x7]
        %s2991 = sld [smem:[#allocation5 + $0x2e]]
        %v2992 = vld [vmem:[#allocation3] sm:$0x3]
        %v2994 = vlaneseq
        %v2995 = vshrl.u32 %v2994, 7
        %v2996 = vsub.s32 0, %v2995
        %v2997 = vrot.slane %v2990, %v2996
        %v2998 = vlaneseq
        %v2999 = vshrl.u32 %v2998, 7
        %v3000 = vsub.s32 1, %v2999
        %v3001 = vrot.slane %v2990, %v3000
        %v3002 = vlaneseq
        %v3003 = vshrl.u32 %v3002, 7
        %v3004 = vsub.s32 2, %v3003
        %v3005 = vrot.slane %v2990, %v3004
        %3006 = vrot.lane.b32.xlu0 %v2997, 28
        %v3007 = vpop.permute.xlu0 %3006
        %3008 = vrot.lane.b32.xlu0 %v3001, 28
        %v3009 = vpop.permute.xlu0 %3008
        %3010 = vrot.lane.b32.xlu0 %v3005, 28
        %v3011 = vpop.permute.xlu0 %3010
        %vm3012 = vcmask 228352
        %v3013 = vsel %vm3012, %v3007, %v3009
        %v3014 = vsel %vm3012, %v3009, %v3011
        %v3017 = vsel %vm587, %v3013, 0.0
        %v3018 = vsel %vm588, %v3014, 0.0
        %v3019 = vstv %s2991
        %v3020 = vmul.f32 %v3019, %v3017
        %v3021 = vmul.f32 %v3019, %v3018
        %v3024 = vcombine.low %v3020, %v3021
        %v3026 = vunpack.c.l.s4 1966171168
        %v3027 = vunpack.c.0.s8 %v3026
        %v3028 = vlaneseq
        %v3029 = vshrl.u32 %v3028, 7
        %v3030 = vsub.s32 %v3027, %v3029
        %v3031 = vrot.slane %v3024, %v3030
        %v3033 = vunpack.c.l.s4 1966171168
        %v3034 = vunpack.c.0.s8 %v3033
        %v3035 = vlaneseq
        %v3036 = vshrl.u32 %v3035, 7
        %v3037 = vsub.s32 %v3034, %v3036
        %v3038 = vrot.slane %v3031, %v3037
        %v3040 = vadd.f32 %v2992, %v3038
        %3041 = vst.msk [vmem:[#allocation3] sm:$0x3] %vm609, %v3040
        %v3042 = vld [vmem:[#allocation2] sm:$0x7]
        %s3043 = sld [smem:[#allocation5 + $0x2f]]
        %v3044 = vld [vmem:[#allocation3] sm:$0x3]
        %v3046 = vlaneseq
        %v3047 = vshrl.u32 %v3046, 7
        %v3048 = vsub.s32 0, %v3047
        %v3049 = vrot.slane %v3042, %v3048
        %v3050 = vlaneseq
        %v3051 = vshrl.u32 %v3050, 7
        %v3052 = vsub.s32 1, %v3051
        %v3053 = vrot.slane %v3042, %v3052
        %v3054 = vlaneseq
        %v3055 = vshrl.u32 %v3054, 7
        %v3056 = vsub.s32 2, %v3055
        %v3057 = vrot.slane %v3042, %v3056
        %3058 = vrot.lane.b32.xlu0 %v3049, 27
        %v3059 = vpop.permute.xlu0 %3058
        %3060 = vrot.lane.b32.xlu0 %v3053, 27
        %v3061 = vpop.permute.xlu0 %3060
        %3062 = vrot.lane.b32.xlu0 %v3057, 27
        %v3063 = vpop.permute.xlu0 %3062
        %vm3064 = vcmask 220160
        %v3065 = vsel %vm3064, %v3059, %v3061
        %v3066 = vsel %vm3064, %v3061, %v3063
        %v3069 = vsel %vm595, %v3065, 0.0
        %v3070 = vsel %vm596, %v3066, 0.0
        %v3071 = vstv %s3043
        %v3072 = vmul.f32 %v3071, %v3069
        %v3073 = vmul.f32 %v3071, %v3070
        %v3076 = vcombine.low %v3072, %v3073
        %v3078 = vunpack.c.l.s4 1966171168
        %v3079 = vunpack.c.0.s8 %v3078
        %v3080 = vlaneseq
        %v3081 = vshrl.u32 %v3080, 7
        %v3082 = vsub.s32 %v3079, %v3081
        %v3083 = vrot.slane %v3076, %v3082
        %v3085 = vunpack.c.l.s4 1966171168
        %v3086 = vunpack.c.0.s8 %v3085
        %v3087 = vlaneseq
        %v3088 = vshrl.u32 %v3087, 7
        %v3089 = vsub.s32 %v3086, %v3088
        %v3090 = vrot.slane %v3083, %v3089
        %v3092 = vadd.f32 %v3044, %v3090
        %3093 = vst.msk [vmem:[#allocation3] sm:$0x3] %vm609, %v3092
        %v3094 = vld [vmem:[#allocation2] sm:$0x7]
        %s3095 = sld [smem:[#allocation5 + $0x30]]
        %v3096 = vld [vmem:[#allocation3] sm:$0x3]
        %v3098 = vlaneseq
        %v3099 = vshrl.u32 %v3098, 7
        %v3100 = vsub.s32 0, %v3099
        %v3101 = vrot.slane %v3094, %v3100
        %v3102 = vlaneseq
        %v3103 = vshrl.u32 %v3102, 7
        %v3104 = vsub.s32 1, %v3103
        %v3105 = vrot.slane %v3094, %v3104
        %v3106 = vlaneseq
        %v3107 = vshrl.u32 %v3106, 7
        %v3108 = vsub.s32 2, %v3107
        %v3109 = vrot.slane %v3094, %v3108
        %3110 = vrot.lane.b32.xlu0 %v3101, 26
        %v3111 = vpop.permute.xlu0 %3110
        %3112 = vrot.lane.b32.xlu0 %v3105, 26
        %v3113 = vpop.permute.xlu0 %3112
        %3114 = vrot.lane.b32.xlu0 %v3109, 26
        %v3115 = vpop.permute.xlu0 %3114
        %vm3116 = vcmask 211968
        %v3117 = vsel %vm3116, %v3111, %v3113
        %v3118 = vsel %vm3116, %v3113, %v3115
        %v3121 = vsel %vm603, %v3117, 0.0
        %v3122 = vsel %vm604, %v3118, 0.0
        %v3123 = vstv %s3095
        %v3124 = vmul.f32 %v3123, %v3121
        %v3125 = vmul.f32 %v3123, %v3122
        %v3128 = vcombine.low %v3124, %v3125
        %v3130 = vunpack.c.l.s4 1966171168
        %v3131 = vunpack.c.0.s8 %v3130
        %v3132 = vlaneseq
        %v3133 = vshrl.u32 %v3132, 7
        %v3134 = vsub.s32 %v3131, %v3133
        %v3135 = vrot.slane %v3128, %v3134
        %v3137 = vunpack.c.l.s4 1966171168
        %v3138 = vunpack.c.0.s8 %v3137
        %v3139 = vlaneseq
        %v3140 = vshrl.u32 %v3139, 7
        %v3141 = vsub.s32 %v3138, %v3140
        %v3142 = vrot.slane %v3135, %v3141
        %v3144 = vadd.f32 %v3096, %v3142
        %3145 = vst.msk [vmem:[#allocation3] sm:$0x3] %vm609, %v3144
        %v3146 = vld [vmem:[%s522] sm:$0x3]
        %s3147 = sld [smem:[#allocation5 + $0x31]]
        %v3148 = vld [vmem:[#allocation3] sm:$0x3]
        %v3150 = vlaneseq
        %v3151 = vshrl.u32 %v3150, 7
        %v3152 = vsub.s32 0, %v3151
        %v3153 = vrot.slane %v3146, %v3152
        %v3154 = vlaneseq
        %v3155 = vshrl.u32 %v3154, 7
        %v3156 = vsub.s32 1, %v3155
        %v3157 = vrot.slane %v3146, %v3156
        %v3160 = vsel %vm557, %v3153, 0.0
        %v3161 = vsel %vm558, %v3157, 0.0
        %v3162 = vstv %s3147
        %v3163 = vmul.f32 %v3162, %v3160
        %v3164 = vmul.f32 %v3162, %v3161
        %v3167 = vcombine.low %v3163, %v3164
        %v3169 = vunpack.c.l.s4 1966171168
        %v3170 = vunpack.c.0.s8 %v3169
        %v3171 = vlaneseq
        %v3172 = vshrl.u32 %v3171, 7
        %v3173 = vsub.s32 %v3170, %v3172
        %v3174 = vrot.slane %v3167, %v3173
        %v3176 = vunpack.c.l.s4 1966171168
        %v3177 = vunpack.c.0.s8 %v3176
        %v3178 = vlaneseq
        %v3179 = vshrl.u32 %v3178, 7
        %v3180 = vsub.s32 %v3177, %v3179
        %v3181 = vrot.slane %v3174, %v3180
        %v3183 = vadd.f32 %v3148, %v3181
        %3184 = vst.msk [vmem:[#allocation3] sm:$0x3] %vm609, %v3183
        %v3185 = vld [vmem:[%s522] sm:$0x7]
        %s3186 = sld [smem:[#allocation5 + $0x32]]
        %v3187 = vld [vmem:[#allocation3] sm:$0x3]
        %v3189 = vlaneseq
        %v3190 = vshrl.u32 %v3189, 7
        %v3191 = vsub.s32 0, %v3190
        %v3192 = vrot.slane %v3185, %v3191
        %v3193 = vlaneseq
        %v3194 = vshrl.u32 %v3193, 7
        %v3195 = vsub.s32 1, %v3194
        %v3196 = vrot.slane %v3185, %v3195
        %v3197 = vlaneseq
        %v3198 = vshrl.u32 %v3197, 7
        %v3199 = vsub.s32 2, %v3198
        %v3200 = vrot.slane %v3185, %v3199
        %3201 = vrot.lane.b32.xlu0 %v3192, 127
        %v3202 = vpop.permute.xlu0 %3201
        %3203 = vrot.lane.b32.xlu0 %v3196, 127
        %v3204 = vpop.permute.xlu0 %3203
        %3205 = vrot.lane.b32.xlu0 %v3200, 127
        %v3206 = vpop.permute.xlu0 %3205
        %v3207 = vsel %vm672, %v3202, %v3204
        %v3208 = vsel %vm672, %v3204, %v3206
        %v3211 = vsel %vm565, %v3207, 0.0
        %v3212 = vsel %vm566, %v3208, 0.0
        %v3213 = vstv %s3186
        %v3214 = vmul.f32 %v3213, %v3211
        %v3215 = vmul.f32 %v3213, %v3212
        %v3218 = vcombine.low %v3214, %v3215
        %v3220 = vunpack.c.l.s4 1966171168
        %v3221 = vunpack.c.0.s8 %v3220
        %v3222 = vlaneseq
        %v3223 = vshrl.u32 %v3222, 7
        %v3224 = vsub.s32 %v3221, %v3223
        %v3225 = vrot.slane %v3218, %v3224
        %v3227 = vunpack.c.l.s4 1966171168
        %v3228 = vunpack.c.0.s8 %v3227
        %v3229 = vlaneseq
        %v3230 = vshrl.u32 %v3229, 7
        %v3231 = vsub.s32 %v3228, %v3230
        %v3232 = vrot.slane %v3225, %v3231
        %v3234 = vadd.f32 %v3187, %v3232
        %3235 = vst.msk [vmem:[#allocation3] sm:$0x3] %vm609, %v3234
        %v3236 = vld [vmem:[%s522] sm:$0x7]
        %s3237 = sld [smem:[#allocation5 + $0x33]]
        %v3238 = vld [vmem:[#allocation3] sm:$0x3]
        %v3240 = vlaneseq
        %v3241 = vshrl.u32 %v3240, 7
        %v3242 = vsub.s32 0, %v3241
        %v3243 = vrot.slane %v3236, %v3242
        %v3244 = vlaneseq
        %v3245 = vshrl.u32 %v3244, 7
        %v3246 = vsub.s32 1, %v3245
        %v3247 = vrot.slane %v3236, %v3246
        %v3248 = vlaneseq
        %v3249 = vshrl.u32 %v3248, 7
        %v3250 = vsub.s32 2, %v3249
        %v3251 = vrot.slane %v3236, %v3250
        %3252 = vrot.lane.b32.xlu0 %v3243, 126
        %v3253 = vpop.permute.xlu0 %3252
        %3254 = vrot.lane.b32.xlu0 %v3247, 126
        %v3255 = vpop.permute.xlu0 %3254
        %3256 = vrot.lane.b32.xlu0 %v3251, 126
        %v3257 = vpop.permute.xlu0 %3256
        %v3258 = vsel %vm724, %v3253, %v3255
        %v3259 = vsel %vm724, %v3255, %v3257
        %v3262 = vsel %vm573, %v3258, 0.0
        %v3263 = vsel %vm574, %v3259, 0.0
        %v3264 = vstv %s3237
        %v3265 = vmul.f32 %v3264, %v3262
        %v3266 = vmul.f32 %v3264, %v3263
        %v3269 = vcombine.low %v3265, %v3266
        %v3271 = vunpack.c.l.s4 1966171168
        %v3272 = vunpack.c.0.s8 %v3271
        %v3273 = vlaneseq
        %v3274 = vshrl.u32 %v3273, 7
        %v3275 = vsub.s32 %v3272, %v3274
        %v3276 = vrot.slane %v3269, %v3275
        %v3278 = vunpack.c.l.s4 1966171168
        %v3279 = vunpack.c.0.s8 %v3278
        %v3280 = vlaneseq
        %v3281 = vshrl.u32 %v3280, 7
        %v3282 = vsub.s32 %v3279, %v3281
        %v3283 = vrot.slane %v3276, %v3282
        %v3285 = vadd.f32 %v3238, %v3283
        %3286 = vst.msk [vmem:[#allocation3] sm:$0x3] %vm609, %v3285
        %v3287 = vld [vmem:[%s522] sm:$0x7]
        %s3288 = sld [smem:[#allocation5 + $0x34]]
        %v3289 = vld [vmem:[#allocation3] sm:$0x3]
        %v3291 = vlaneseq
        %v3292 = vshrl.u32 %v3291, 7
        %v3293 = vsub.s32 0, %v3292
        %v3294 = vrot.slane %v3287, %v3293
        %v3295 = vlaneseq
        %v3296 = vshrl.u32 %v3295, 7
        %v3297 = vsub.s32 1, %v3296
        %v3298 = vrot.slane %v3287, %v3297
        %v3299 = vlaneseq
        %v3300 = vshrl.u32 %v3299, 7
        %v3301 = vsub.s32 2, %v3300
        %v3302 = vrot.slane %v3287, %v3301
        %3303 = vrot.lane.b32.xlu0 %v3294, 125
        %v3304 = vpop.permute.xlu0 %3303
        %3305 = vrot.lane.b32.xlu0 %v3298, 125
        %v3306 = vpop.permute.xlu0 %3305
        %3307 = vrot.lane.b32.xlu0 %v3302, 125
        %v3308 = vpop.permute.xlu0 %3307
        %v3309 = vsel %vm776, %v3304, %v3306
        %v3310 = vsel %vm776, %v3306, %v3308
        %v3313 = vsel %vm579, %v3309, 0.0
        %v3314 = vsel %vm580, %v3310, 0.0
        %v3315 = vstv %s3288
        %v3316 = vmul.f32 %v3315, %v3313
        %v3317 = vmul.f32 %v3315, %v3314
        %v3320 = vcombine.low %v3316, %v3317
        %v3322 = vunpack.c.l.s4 1966171168
        %v3323 = vunpack.c.0.s8 %v3322
        %v3324 = vlaneseq
        %v3325 = vshrl.u32 %v3324, 7
        %v3326 = vsub.s32 %v3323, %v3325
        %v3327 = vrot.slane %v3320, %v3326
        %v3329 = vunpack.c.l.s4 1966171168
        %v3330 = vunpack.c.0.s8 %v3329
        %v3331 = vlaneseq
        %v3332 = vshrl.u32 %v3331, 7
        %v3333 = vsub.s32 %v3330, %v3332
        %v3334 = vrot.slane %v3327, %v3333
        %v3336 = vadd.f32 %v3289, %v3334
        %3337 = vst.msk [vmem:[#allocation3] sm:$0x3] %vm609, %v3336
        %v3338 = vld [vmem:[%s522] sm:$0x7]
        %s3339 = sld [smem:[#allocation5 + $0x35]]
        %v3340 = vld [vmem:[#allocation3] sm:$0x3]
        %v3342 = vlaneseq
        %v3343 = vshrl.u32 %v3342, 7
        %v3344 = vsub.s32 0, %v3343
        %v3345 = vrot.slane %v3338, %v3344
        %v3346 = vlaneseq
        %v3347 = vshrl.u32 %v3346, 7
        %v3348 = vsub.s32 1, %v3347
        %v3349 = vrot.slane %v3338, %v3348
        %v3350 = vlaneseq
        %v3351 = vshrl.u32 %v3350, 7
        %v3352 = vsub.s32 2, %v3351
        %v3353 = vrot.slane %v3338, %v3352
        %3354 = vrot.lane.b32.xlu0 %v3345, 124
        %v3355 = vpop.permute.xlu0 %3354
        %3356 = vrot.lane.b32.xlu0 %v3349, 124
        %v3357 = vpop.permute.xlu0 %3356
        %3358 = vrot.lane.b32.xlu0 %v3353, 124
        %v3359 = vpop.permute.xlu0 %3358
        %v3360 = vsel %vm828, %v3355, %v3357
        %v3361 = vsel %vm828, %v3357, %v3359
        %v3364 = vsel %vm587, %v3360, 0.0
        %v3365 = vsel %vm588, %v3361, 0.0
        %v3366 = vstv %s3339
        %v3367 = vmul.f32 %v3366, %v3364
        %v3368 = vmul.f32 %v3366, %v3365
        %v3371 = vcombine.low %v3367, %v3368
        %v3373 = vunpack.c.l.s4 1966171168
        %v3374 = vunpack.c.0.s8 %v3373
        %v3375 = vlaneseq
        %v3376 = vshrl.u32 %v3375, 7
        %v3377 = vsub.s32 %v3374, %v3376
        %v3378 = vrot.slane %v3371, %v3377
        %v3380 = vunpack.c.l.s4 1966171168
        %v3381 = vunpack.c.0.s8 %v3380
        %v3382 = vlaneseq
        %v3383 = vshrl.u32 %v3382, 7
        %v3384 = vsub.s32 %v3381, %v3383
        %v3385 = vrot.slane %v3378, %v3384
        %v3387 = vadd.f32 %v3340, %v3385
        %3388 = vst.msk [vmem:[#allocation3] sm:$0x3] %vm609, %v3387
        %v3389 = vld [vmem:[%s522] sm:$0x7]
        %s3390 = sld [smem:[#allocation5 + $0x36]]
        %v3391 = vld [vmem:[#allocation3] sm:$0x3]
        %v3393 = vlaneseq
        %v3394 = vshrl.u32 %v3393, 7
        %v3395 = vsub.s32 0, %v3394
        %v3396 = vrot.slane %v3389, %v3395
        %v3397 = vlaneseq
        %v3398 = vshrl.u32 %v3397, 7
        %v3399 = vsub.s32 1, %v3398
        %v3400 = vrot.slane %v3389, %v3399
        %v3401 = vlaneseq
        %v3402 = vshrl.u32 %v3401, 7
        %v3403 = vsub.s32 2, %v3402
        %v3404 = vrot.slane %v3389, %v3403
        %3405 = vrot.lane.b32.xlu0 %v3396, 123
        %v3406 = vpop.permute.xlu0 %3405
        %3407 = vrot.lane.b32.xlu0 %v3400, 123
        %v3408 = vpop.permute.xlu0 %3407
        %3409 = vrot.lane.b32.xlu0 %v3404, 123
        %v3410 = vpop.permute.xlu0 %3409
        %v3411 = vsel %vm880, %v3406, %v3408
        %v3412 = vsel %vm880, %v3408, %v3410
        %v3415 = vsel %vm595, %v3411, 0.0
        %v3416 = vsel %vm596, %v3412, 0.0
        %v3417 = vstv %s3390
        %v3418 = vmul.f32 %v3417, %v3415
        %v3419 = vmul.f32 %v3417, %v3416
        %v3422 = vcombine.low %v3418, %v3419
        %v3424 = vunpack.c.l.s4 1966171168
        %v3425 = vunpack.c.0.s8 %v3424
        %v3426 = vlaneseq
        %v3427 = vshrl.u32 %v3426, 7
        %v3428 = vsub.s32 %v3425, %v3427
        %v3429 = vrot.slane %v3422, %v3428
        %v3431 = vunpack.c.l.s4 1966171168
        %v3432 = vunpack.c.0.s8 %v3431
        %v3433 = vlaneseq
        %v3434 = vshrl.u32 %v3433, 7
        %v3435 = vsub.s32 %v3432, %v3434
        %v3436 = vrot.slane %v3429, %v3435
        %v3438 = vadd.f32 %v3391, %v3436
        %3439 = vst.msk [vmem:[#allocation3] sm:$0x3] %vm609, %v3438
        %v3440 = vld [vmem:[%s522] sm:$0x7]
        %s3441 = sld [smem:[#allocation5 + $0x37]]
        %v3442 = vld [vmem:[#allocation3] sm:$0x3]
        %v3444 = vlaneseq
        %v3445 = vshrl.u32 %v3444, 7
        %v3446 = vsub.s32 0, %v3445
        %v3447 = vrot.slane %v3440, %v3446
        %v3448 = vlaneseq
        %v3449 = vshrl.u32 %v3448, 7
        %v3450 = vsub.s32 1, %v3449
        %v3451 = vrot.slane %v3440, %v3450
        %v3452 = vlaneseq
        %v3453 = vshrl.u32 %v3452, 7
        %v3454 = vsub.s32 2, %v3453
        %v3455 = vrot.slane %v3440, %v3454
        %3456 = vrot.lane.b32.xlu0 %v3447, 122
        %v3457 = vpop.permute.xlu0 %3456
        %3458 = vrot.lane.b32.xlu0 %v3451, 122
        %v3459 = vpop.permute.xlu0 %3458
        %3460 = vrot.lane.b32.xlu0 %v3455, 122
        %v3461 = vpop.permute.xlu0 %3460
        %v3462 = vsel %vm932, %v3457, %v3459
        %v3463 = vsel %vm932, %v3459, %v3461
        %v3466 = vsel %vm603, %v3462, 0.0
        %v3467 = vsel %vm604, %v3463, 0.0
        %v3468 = vstv %s3441
        %v3469 = vmul.f32 %v3468, %v3466
        %v3470 = vmul.f32 %v3468, %v3467
        %v3473 = vcombine.low %v3469, %v3470
        %v3475 = vunpack.c.l.s4 1966171168
        %v3476 = vunpack.c.0.s8 %v3475
        %v3477 = vlaneseq
        %v3478 = vshrl.u32 %v3477, 7
        %v3479 = vsub.s32 %v3476, %v3478
        %v3480 = vrot.slane %v3473, %v3479
        %v3482 = vunpack.c.l.s4 1966171168
        %v3483 = vunpack.c.0.s8 %v3482
        %v3484 = vlaneseq
        %v3485 = vshrl.u32 %v3484, 7
        %v3486 = vsub.s32 %v3483, %v3485
        %v3487 = vrot.slane %v3480, %v3486
        %v3489 = vadd.f32 %v3442, %v3487
        %3490 = vst.msk [vmem:[#allocation3] sm:$0x3] %vm609, %v3489
        %v3491 = vld [vmem:[%s522] sm:$0x7]
        %s3492 = sld [smem:[#allocation5 + $0x38]]
        %v3493 = vld [vmem:[#allocation3] sm:$0x3]
        %v3495 = vlaneseq
        %v3496 = vshrl.u32 %v3495, 7
        %v3497 = vsub.s32 0, %v3496
        %v3498 = vrot.slane %v3491, %v3497
        %v3499 = vlaneseq
        %v3500 = vshrl.u32 %v3499, 7
        %v3501 = vsub.s32 1, %v3500
        %v3502 = vrot.slane %v3491, %v3501
        %v3503 = vlaneseq
        %v3504 = vshrl.u32 %v3503, 7
        %v3505 = vsub.s32 2, %v3504
        %v3506 = vrot.slane %v3491, %v3505
        %3507 = vrot.lane.b32.xlu0 %v3498, 112
        %v3508 = vpop.permute.xlu0 %3507
        %3509 = vrot.lane.b32.xlu0 %v3502, 112
        %v3510 = vpop.permute.xlu0 %3509
        %3511 = vrot.lane.b32.xlu0 %v3506, 112
        %v3512 = vpop.permute.xlu0 %3511
        %v3513 = vsel %vm984, %v3508, %v3510
        %v3514 = vsel %vm984, %v3510, %v3512
        %v3517 = vsel %vm557, %v3513, 0.0
        %v3518 = vsel %vm558, %v3514, 0.0
        %v3519 = vstv %s3492
        %v3520 = vmul.f32 %v3519, %v3517
        %v3521 = vmul.f32 %v3519, %v3518
        %v3524 = vcombine.low %v3520, %v3521
        %v3526 = vunpack.c.l.s4 1966171168
        %v3527 = vunpack.c.0.s8 %v3526
        %v3528 = vlaneseq
        %v3529 = vshrl.u32 %v3528, 7
        %v3530 = vsub.s32 %v3527, %v3529
        %v3531 = vrot.slane %v3524, %v3530
        %v3533 = vunpack.c.l.s4 1966171168
        %v3534 = vunpack.c.0.s8 %v3533
        %v3535 = vlaneseq
        %v3536 = vshrl.u32 %v3535, 7
        %v3537 = vsub.s32 %v3534, %v3536
        %v3538 = vrot.slane %v3531, %v3537
        %v3540 = vadd.f32 %v3493, %v3538
        %3541 = vst.msk [vmem:[#allocation3] sm:$0x3] %vm609, %v3540
        %v3542 = vld [vmem:[%s522] sm:$0x7]
        %s3543 = sld [smem:[#allocation5 + $0x39]]
        %v3544 = vld [vmem:[#allocation3] sm:$0x3]
        %v3546 = vlaneseq
        %v3547 = vshrl.u32 %v3546, 7
        %v3548 = vsub.s32 0, %v3547
        %v3549 = vrot.slane %v3542, %v3548
        %v3550 = vlaneseq
        %v3551 = vshrl.u32 %v3550, 7
        %v3552 = vsub.s32 1, %v3551
        %v3553 = vrot.slane %v3542, %v3552
        %v3554 = vlaneseq
        %v3555 = vshrl.u32 %v3554, 7
        %v3556 = vsub.s32 2, %v3555
        %v3557 = vrot.slane %v3542, %v3556
        %3558 = vrot.lane.b32.xlu0 %v3549, 111
        %v3559 = vpop.permute.xlu0 %3558
        %3560 = vrot.lane.b32.xlu0 %v3553, 111
        %v3561 = vpop.permute.xlu0 %3560
        %3562 = vrot.lane.b32.xlu0 %v3557, 111
        %v3563 = vpop.permute.xlu0 %3562
        %v3564 = vsel %vm1036, %v3559, %v3561
        %v3565 = vsel %vm1036, %v3561, %v3563
        %v3568 = vsel %vm565, %v3564, 0.0
        %v3569 = vsel %vm566, %v3565, 0.0
        %v3570 = vstv %s3543
        %v3571 = vmul.f32 %v3570, %v3568
        %v3572 = vmul.f32 %v3570, %v3569
        %v3575 = vcombine.low %v3571, %v3572
        %v3577 = vunpack.c.l.s4 1966171168
        %v3578 = vunpack.c.0.s8 %v3577
        %v3579 = vlaneseq
        %v3580 = vshrl.u32 %v3579, 7
        %v3581 = vsub.s32 %v3578, %v3580
        %v3582 = vrot.slane %v3575, %v3581
        %v3584 = vunpack.c.l.s4 1966171168
        %v3585 = vunpack.c.0.s8 %v3584
        %v3586 = vlaneseq
        %v3587 = vshrl.u32 %v3586, 7
        %v3588 = vsub.s32 %v3585, %v3587
        %v3589 = vrot.slane %v3582, %v3588
        %v3591 = vadd.f32 %v3544, %v3589
        %3592 = vst.msk [vmem:[#allocation3] sm:$0x3] %vm609, %v3591
        %v3593 = vld [vmem:[%s522] sm:$0x7]
        %s3594 = sld [smem:[#allocation5 + $0x3a]]
        %v3595 = vld [vmem:[#allocation3] sm:$0x3]
        %v3597 = vlaneseq
        %v3598 = vshrl.u32 %v3597, 7
        %v3599 = vsub.s32 0, %v3598
        %v3600 = vrot.slane %v3593, %v3599
        %v3601 = vlaneseq
        %v3602 = vshrl.u32 %v3601, 7
        %v3603 = vsub.s32 1, %v3602
        %v3604 = vrot.slane %v3593, %v3603
        %v3605 = vlaneseq
        %v3606 = vshrl.u32 %v3605, 7
        %v3607 = vsub.s32 2, %v3606
        %v3608 = vrot.slane %v3593, %v3607
        %3609 = vrot.lane.b32.xlu0 %v3600, 110
        %v3610 = vpop.permute.xlu0 %3609
        %3611 = vrot.lane.b32.xlu0 %v3604, 110
        %v3612 = vpop.permute.xlu0 %3611
        %3613 = vrot.lane.b32.xlu0 %v3608, 110
        %v3614 = vpop.permute.xlu0 %3613
        %v3615 = vsel %vm1088, %v3610, %v3612
        %v3616 = vsel %vm1088, %v3612, %v3614
        %v3619 = vsel %vm573, %v3615, 0.0
        %v3620 = vsel %vm574, %v3616, 0.0
        %v3621 = vstv %s3594
        %v3622 = vmul.f32 %v3621, %v3619
        %v3623 = vmul.f32 %v3621, %v3620
        %v3626 = vcombine.low %v3622, %v3623
        %v3628 = vunpack.c.l.s4 1966171168
        %v3629 = vunpack.c.0.s8 %v3628
        %v3630 = vlaneseq
        %v3631 = vshrl.u32 %v3630, 7
        %v3632 = vsub.s32 %v3629, %v3631
        %v3633 = vrot.slane %v3626, %v3632
        %v3635 = vunpack.c.l.s4 1966171168
        %v3636 = vunpack.c.0.s8 %v3635
        %v3637 = vlaneseq
        %v3638 = vshrl.u32 %v3637, 7
        %v3639 = vsub.s32 %v3636, %v3638
        %v3640 = vrot.slane %v3633, %v3639
        %v3642 = vadd.f32 %v3595, %v3640
        %3643 = vst.msk [vmem:[#allocation3] sm:$0x3] %vm609, %v3642
        %v3644 = vld [vmem:[%s522] sm:$0x7]
        %s3645 = sld [smem:[#allocation5 + $0x3b]]
        %v3646 = vld [vmem:[#allocation3] sm:$0x3]
        %v3648 = vlaneseq
        %v3649 = vshrl.u32 %v3648, 7
        %v3650 = vsub.s32 0, %v3649
        %v3651 = vrot.slane %v3644, %v3650
        %v3652 = vlaneseq
        %v3653 = vshrl.u32 %v3652, 7
        %v3654 = vsub.s32 1, %v3653
        %v3655 = vrot.slane %v3644, %v3654
        %v3656 = vlaneseq
        %v3657 = vshrl.u32 %v3656, 7
        %v3658 = vsub.s32 2, %v3657
        %v3659 = vrot.slane %v3644, %v3658
        %3660 = vrot.lane.b32.xlu0 %v3651, 109
        %v3661 = vpop.permute.xlu0 %3660
        %3662 = vrot.lane.b32.xlu0 %v3655, 109
        %v3663 = vpop.permute.xlu0 %3662
        %3664 = vrot.lane.b32.xlu0 %v3659, 109
        %v3665 = vpop.permute.xlu0 %3664
        %v3666 = vsel %vm1140, %v3661, %v3663
        %v3667 = vsel %vm1140, %v3663, %v3665
        %v3670 = vsel %vm579, %v3666, 0.0
        %v3671 = vsel %vm580, %v3667, 0.0
        %v3672 = vstv %s3645
        %v3673 = vmul.f32 %v3672, %v3670
        %v3674 = vmul.f32 %v3672, %v3671
        %v3677 = vcombine.low %v3673, %v3674
        %v3679 = vunpack.c.l.s4 1966171168
        %v3680 = vunpack.c.0.s8 %v3679
        %v3681 = vlaneseq
        %v3682 = vshrl.u32 %v3681, 7
        %v3683 = vsub.s32 %v3680, %v3682
        %v3684 = vrot.slane %v3677, %v3683
        %v3686 = vunpack.c.l.s4 1966171168
        %v3687 = vunpack.c.0.s8 %v3686
        %v3688 = vlaneseq
        %v3689 = vshrl.u32 %v3688, 7
        %v3690 = vsub.s32 %v3687, %v3689
        %v3691 = vrot.slane %v3684, %v3690
        %v3693 = vadd.f32 %v3646, %v3691
        %3694 = vst.msk [vmem:[#allocation3] sm:$0x3] %vm609, %v3693
        %v3695 = vld [vmem:[%s522] sm:$0x7]
        %s3696 = sld [smem:[#allocation5 + $0x3c]]
        %v3697 = vld [vmem:[#allocation3] sm:$0x3]
        %v3699 = vlaneseq
        %v3700 = vshrl.u32 %v3699, 7
        %v3701 = vsub.s32 0, %v3700
        %v3702 = vrot.slane %v3695, %v3701
        %v3703 = vlaneseq
        %v3704 = vshrl.u32 %v3703, 7
        %v3705 = vsub.s32 1, %v3704
        %v3706 = vrot.slane %v3695, %v3705
        %v3707 = vlaneseq
        %v3708 = vshrl.u32 %v3707, 7
        %v3709 = vsub.s32 2, %v3708
        %v3710 = vrot.slane %v3695, %v3709
        %3711 = vrot.lane.b32.xlu0 %v3702, 108
        %v3712 = vpop.permute.xlu0 %3711
        %3713 = vrot.lane.b32.xlu0 %v3706, 108
        %v3714 = vpop.permute.xlu0 %3713
        %3715 = vrot.lane.b32.xlu0 %v3710, 108
        %v3716 = vpop.permute.xlu0 %3715
        %v3717 = vsel %vm1192, %v3712, %v3714
        %v3718 = vsel %vm1192, %v3714, %v3716
        %v3721 = vsel %vm587, %v3717, 0.0
        %v3722 = vsel %vm588, %v3718, 0.0
        %v3723 = vstv %s3696
        %v3724 = vmul.f32 %v3723, %v3721
        %v3725 = vmul.f32 %v3723, %v3722
        %v3728 = vcombine.low %v3724, %v3725
        %v3730 = vunpack.c.l.s4 1966171168
        %v3731 = vunpack.c.0.s8 %v3730
        %v3732 = vlaneseq
        %v3733 = vshrl.u32 %v3732, 7
        %v3734 = vsub.s32 %v3731, %v3733
        %v3735 = vrot.slane %v3728, %v3734
        %v3737 = vunpack.c.l.s4 1966171168
        %v3738 = vunpack.c.0.s8 %v3737
        %v3739 = vlaneseq
        %v3740 = vshrl.u32 %v3739, 7
        %v3741 = vsub.s32 %v3738, %v3740
        %v3742 = vrot.slane %v3735, %v3741
        %v3744 = vadd.f32 %v3697, %v3742
        %3745 = vst.msk [vmem:[#allocation3] sm:$0x3] %vm609, %v3744
        %v3746 = vld [vmem:[%s522] sm:$0x7]
        %s3747 = sld [smem:[#allocation5 + $0x3d]]
        %v3748 = vld [vmem:[#allocation3] sm:$0x3]
        %v3750 = vlaneseq
        %v3751 = vshrl.u32 %v3750, 7
        %v3752 = vsub.s32 0, %v3751
        %v3753 = vrot.slane %v3746, %v3752
        %v3754 = vlaneseq
        %v3755 = vshrl.u32 %v3754, 7
        %v3756 = vsub.s32 1, %v3755
        %v3757 = vrot.slane %v3746, %v3756
        %v3758 = vlaneseq
        %v3759 = vshrl.u32 %v3758, 7
        %v3760 = vsub.s32 2, %v3759
        %v3761 = vrot.slane %v3746, %v3760
        %3762 = vrot.lane.b32.xlu0 %v3753, 107
        %v3763 = vpop.permute.xlu0 %3762
        %3764 = vrot.lane.b32.xlu0 %v3757, 107
        %v3765 = vpop.permute.xlu0 %3764
        %3766 = vrot.lane.b32.xlu0 %v3761, 107
        %v3767 = vpop.permute.xlu0 %3766
        %v3768 = vsel %vm1244, %v3763, %v3765
        %v3769 = vsel %vm1244, %v3765, %v3767
        %v3772 = vsel %vm595, %v3768, 0.0
        %v3773 = vsel %vm596, %v3769, 0.0
        %v3774 = vstv %s3747
        %v3775 = vmul.f32 %v3774, %v3772
        %v3776 = vmul.f32 %v3774, %v3773
        %v3779 = vcombine.low %v3775, %v3776
        %v3781 = vunpack.c.l.s4 1966171168
        %v3782 = vunpack.c.0.s8 %v3781
        %v3783 = vlaneseq
        %v3784 = vshrl.u32 %v3783, 7
        %v3785 = vsub.s32 %v3782, %v3784
        %v3786 = vrot.slane %v3779, %v3785
        %v3788 = vunpack.c.l.s4 1966171168
        %v3789 = vunpack.c.0.s8 %v3788
        %v3790 = vlaneseq
        %v3791 = vshrl.u32 %v3790, 7
        %v3792 = vsub.s32 %v3789, %v3791
        %v3793 = vrot.slane %v3786, %v3792
        %v3795 = vadd.f32 %v3748, %v3793
        %3796 = vst.msk [vmem:[#allocation3] sm:$0x3] %vm609, %v3795
        %v3797 = vld [vmem:[%s522] sm:$0x7]
        %s3798 = sld [smem:[#allocation5 + $0x3e]]
        %v3799 = vld [vmem:[#allocation3] sm:$0x3]
        %v3801 = vlaneseq
        %v3802 = vshrl.u32 %v3801, 7
        %v3803 = vsub.s32 0, %v3802
        %v3804 = vrot.slane %v3797, %v3803
        %v3805 = vlaneseq
        %v3806 = vshrl.u32 %v3805, 7
        %v3807 = vsub.s32 1, %v3806
        %v3808 = vrot.slane %v3797, %v3807
        %v3809 = vlaneseq
        %v3810 = vshrl.u32 %v3809, 7
        %v3811 = vsub.s32 2, %v3810
        %v3812 = vrot.slane %v3797, %v3811
        %3813 = vrot.lane.b32.xlu0 %v3804, 106
        %v3814 = vpop.permute.xlu0 %3813
        %3815 = vrot.lane.b32.xlu0 %v3808, 106
        %v3816 = vpop.permute.xlu0 %3815
        %3817 = vrot.lane.b32.xlu0 %v3812, 106
        %v3818 = vpop.permute.xlu0 %3817
        %v3819 = vsel %vm1296, %v3814, %v3816
        %v3820 = vsel %vm1296, %v3816, %v3818
        %v3823 = vsel %vm603, %v3819, 0.0
        %v3824 = vsel %vm604, %v3820, 0.0
        %v3825 = vstv %s3798
        %v3826 = vmul.f32 %v3825, %v3823
        %v3827 = vmul.f32 %v3825, %v3824
        %v3830 = vcombine.low %v3826, %v3827
        %v3832 = vunpack.c.l.s4 1966171168
        %v3833 = vunpack.c.0.s8 %v3832
        %v3834 = vlaneseq
        %v3835 = vshrl.u32 %v3834, 7
        %v3836 = vsub.s32 %v3833, %v3835
        %v3837 = vrot.slane %v3830, %v3836
        %v3839 = vunpack.c.l.s4 1966171168
        %v3840 = vunpack.c.0.s8 %v3839
        %v3841 = vlaneseq
        %v3842 = vshrl.u32 %v3841, 7
        %v3843 = vsub.s32 %v3840, %v3842
        %v3844 = vrot.slane %v3837, %v3843
        %v3846 = vadd.f32 %v3799, %v3844
        %3847 = vst.msk [vmem:[#allocation3] sm:$0x3] %vm609, %v3846
        %v3848 = vld [vmem:[%s522] sm:$0x7]
        %s3849 = sld [smem:[#allocation5 + $0x3f]]
        %v3850 = vld [vmem:[#allocation3] sm:$0x3]
        %v3852 = vlaneseq
        %v3853 = vshrl.u32 %v3852, 7
        %v3854 = vsub.s32 0, %v3853
        %v3855 = vrot.slane %v3848, %v3854
        %v3856 = vlaneseq
        %v3857 = vshrl.u32 %v3856, 7
        %v3858 = vsub.s32 1, %v3857
        %v3859 = vrot.slane %v3848, %v3858
        %v3860 = vlaneseq
        %v3861 = vshrl.u32 %v3860, 7
        %v3862 = vsub.s32 2, %v3861
        %v3863 = vrot.slane %v3848, %v3862
        %3864 = vrot.lane.b32.xlu0 %v3855, 96
        %v3865 = vpop.permute.xlu0 %3864
        %3866 = vrot.lane.b32.xlu0 %v3859, 96
        %v3867 = vpop.permute.xlu0 %3866
        %3868 = vrot.lane.b32.xlu0 %v3863, 96
        %v3869 = vpop.permute.xlu0 %3868
        %v3870 = vsel %vm1348, %v3865, %v3867
        %v3871 = vsel %vm1348, %v3867, %v3869
        %v3874 = vsel %vm557, %v3870, 0.0
        %v3875 = vsel %vm558, %v3871, 0.0
        %v3876 = vstv %s3849
        %v3877 = vmul.f32 %v3876, %v3874
        %v3878 = vmul.f32 %v3876, %v3875
        %v3881 = vcombine.low %v3877, %v3878
        %v3883 = vunpack.c.l.s4 1966171168
        %v3884 = vunpack.c.0.s8 %v3883
        %v3885 = vlaneseq
        %v3886 = vshrl.u32 %v3885, 7
        %v3887 = vsub.s32 %v3884, %v3886
        %v3888 = vrot.slane %v3881, %v3887
        %v3890 = vunpack.c.l.s4 1966171168
        %v3891 = vunpack.c.0.s8 %v3890
        %v3892 = vlaneseq
        %v3893 = vshrl.u32 %v3892, 7
        %v3894 = vsub.s32 %v3891, %v3893
        %v3895 = vrot.slane %v3888, %v3894
        %v3897 = vadd.f32 %v3850, %v3895
        %3898 = vst.msk [vmem:[#allocation3] sm:$0x3] %vm609, %v3897
        %v3899 = vld [vmem:[%s522] sm:$0x7]
        %s3900 = sld [smem:[#allocation5 + $0x40]]
        %v3901 = vld [vmem:[#allocation3] sm:$0x3]
        %v3903 = vlaneseq
        %v3904 = vshrl.u32 %v3903, 7
        %v3905 = vsub.s32 0, %v3904
        %v3906 = vrot.slane %v3899, %v3905
        %v3907 = vlaneseq
        %v3908 = vshrl.u32 %v3907, 7
        %v3909 = vsub.s32 1, %v3908
        %v3910 = vrot.slane %v3899, %v3909
        %v3911 = vlaneseq
        %v3912 = vshrl.u32 %v3911, 7
        %v3913 = vsub.s32 2, %v3912
        %v3914 = vrot.slane %v3899, %v3913
        %3915 = vrot.lane.b32.xlu0 %v3906, 95
        %v3916 = vpop.permute.xlu0 %3915
        %3917 = vrot.lane.b32.xlu0 %v3910, 95
        %v3918 = vpop.permute.xlu0 %3917
        %3919 = vrot.lane.b32.xlu0 %v3914, 95
        %v3920 = vpop.permute.xlu0 %3919
        %v3921 = vsel %vm1400, %v3916, %v3918
        %v3922 = vsel %vm1400, %v3918, %v3920
        %v3925 = vsel %vm565, %v3921, 0.0
        %v3926 = vsel %vm566, %v3922, 0.0
        %v3927 = vstv %s3900
        %v3928 = vmul.f32 %v3927, %v3925
        %v3929 = vmul.f32 %v3927, %v3926
        %v3932 = vcombine.low %v3928, %v3929
        %v3934 = vunpack.c.l.s4 1966171168
        %v3935 = vunpack.c.0.s8 %v3934
        %v3936 = vlaneseq
        %v3937 = vshrl.u32 %v3936, 7
        %v3938 = vsub.s32 %v3935, %v3937
        %v3939 = vrot.slane %v3932, %v3938
        %v3941 = vunpack.c.l.s4 1966171168
        %v3942 = vunpack.c.0.s8 %v3941
        %v3943 = vlaneseq
        %v3944 = vshrl.u32 %v3943, 7
        %v3945 = vsub.s32 %v3942, %v3944
        %v3946 = vrot.slane %v3939, %v3945
        %v3948 = vadd.f32 %v3901, %v3946
        %3949 = vst.msk [vmem:[#allocation3] sm:$0x3] %vm609, %v3948
        %v3950 = vld [vmem:[%s522] sm:$0x7]
        %s3951 = sld [smem:[#allocation5 + $0x41]]
        %v3952 = vld [vmem:[#allocation3] sm:$0x3]
        %v3954 = vlaneseq
        %v3955 = vshrl.u32 %v3954, 7
        %v3956 = vsub.s32 0, %v3955
        %v3957 = vrot.slane %v3950, %v3956
        %v3958 = vlaneseq
        %v3959 = vshrl.u32 %v3958, 7
        %v3960 = vsub.s32 1, %v3959
        %v3961 = vrot.slane %v3950, %v3960
        %v3962 = vlaneseq
        %v3963 = vshrl.u32 %v3962, 7
        %v3964 = vsub.s32 2, %v3963
        %v3965 = vrot.slane %v3950, %v3964
        %3966 = vrot.lane.b32.xlu0 %v3957, 94
        %v3967 = vpop.permute.xlu0 %3966
        %3968 = vrot.lane.b32.xlu0 %v3961, 94
        %v3969 = vpop.permute.xlu0 %3968
        %3970 = vrot.lane.b32.xlu0 %v3965, 94
        %v3971 = vpop.permute.xlu0 %3970
        %v3972 = vsel %vm1452, %v3967, %v3969
        %v3973 = vsel %vm1452, %v3969, %v3971
        %v3976 = vsel %vm573, %v3972, 0.0
        %v3977 = vsel %vm574, %v3973, 0.0
        %v3978 = vstv %s3951
        %v3979 = vmul.f32 %v3978, %v3976
        %v3980 = vmul.f32 %v3978, %v3977
        %v3983 = vcombine.low %v3979, %v3980
        %v3985 = vunpack.c.l.s4 1966171168
        %v3986 = vunpack.c.0.s8 %v3985
        %v3987 = vlaneseq
        %v3988 = vshrl.u32 %v3987, 7
        %v3989 = vsub.s32 %v3986, %v3988
        %v3990 = vrot.slane %v3983, %v3989
        %v3992 = vunpack.c.l.s4 1966171168
        %v3993 = vunpack.c.0.s8 %v3992
        %v3994 = vlaneseq
        %v3995 = vshrl.u32 %v3994, 7
        %v3996 = vsub.s32 %v3993, %v3995
        %v3997 = vrot.slane %v3990, %v3996
        %v3999 = vadd.f32 %v3952, %v3997
        %4000 = vst.msk [vmem:[#allocation3] sm:$0x3] %vm609, %v3999
        %v4001 = vld [vmem:[%s522] sm:$0x7]
        %s4002 = sld [smem:[#allocation5 + $0x42]]
        %v4003 = vld [vmem:[#allocation3] sm:$0x3]
        %v4005 = vlaneseq
        %v4006 = vshrl.u32 %v4005, 7
        %v4007 = vsub.s32 0, %v4006
        %v4008 = vrot.slane %v4001, %v4007
        %v4009 = vlaneseq
        %v4010 = vshrl.u32 %v4009, 7
        %v4011 = vsub.s32 1, %v4010
        %v4012 = vrot.slane %v4001, %v4011
        %v4013 = vlaneseq
        %v4014 = vshrl.u32 %v4013, 7
        %v4015 = vsub.s32 2, %v4014
        %v4016 = vrot.slane %v4001, %v4015
        %4017 = vrot.lane.b32.xlu0 %v4008, 93
        %v4018 = vpop.permute.xlu0 %4017
        %4019 = vrot.lane.b32.xlu0 %v4012, 93
        %v4020 = vpop.permute.xlu0 %4019
        %4021 = vrot.lane.b32.xlu0 %v4016, 93
        %v4022 = vpop.permute.xlu0 %4021
        %v4023 = vsel %vm1504, %v4018, %v4020
        %v4024 = vsel %vm1504, %v4020, %v4022
        %v4027 = vsel %vm579, %v4023, 0.0
        %v4028 = vsel %vm580, %v4024, 0.0
        %v4029 = vstv %s4002
        %v4030 = vmul.f32 %v4029, %v4027
        %v4031 = vmul.f32 %v4029, %v4028
        %v4034 = vcombine.low %v4030, %v4031
        %v4036 = vunpack.c.l.s4 1966171168
        %v4037 = vunpack.c.0.s8 %v4036
        %v4038 = vlaneseq
        %v4039 = vshrl.u32 %v4038, 7
        %v4040 = vsub.s32 %v4037, %v4039
        %v4041 = vrot.slane %v4034, %v4040
        %v4043 = vunpack.c.l.s4 1966171168
        %v4044 = vunpack.c.0.s8 %v4043
        %v4045 = vlaneseq
        %v4046 = vshrl.u32 %v4045, 7
        %v4047 = vsub.s32 %v4044, %v4046
        %v4048 = vrot.slane %v4041, %v4047
        %v4050 = vadd.f32 %v4003, %v4048
        %4051 = vst.msk [vmem:[#allocation3] sm:$0x3] %vm609, %v4050
        %v4052 = vld [vmem:[%s522] sm:$0x7]
        %s4053 = sld [smem:[#allocation5 + $0x43]]
        %v4054 = vld [vmem:[#allocation3] sm:$0x3]
        %v4056 = vlaneseq
        %v4057 = vshrl.u32 %v4056, 7
        %v4058 = vsub.s32 0, %v4057
        %v4059 = vrot.slane %v4052, %v4058
        %v4060 = vlaneseq
        %v4061 = vshrl.u32 %v4060, 7
        %v4062 = vsub.s32 1, %v4061
        %v4063 = vrot.slane %v4052, %v4062
        %v4064 = vlaneseq
        %v4065 = vshrl.u32 %v4064, 7
        %v4066 = vsub.s32 2, %v4065
        %v4067 = vrot.slane %v4052, %v4066
        %4068 = vrot.lane.b32.xlu0 %v4059, 92
        %v4069 = vpop.permute.xlu0 %4068
        %4070 = vrot.lane.b32.xlu0 %v4063, 92
        %v4071 = vpop.permute.xlu0 %4070
        %4072 = vrot.lane.b32.xlu0 %v4067, 92
        %v4073 = vpop.permute.xlu0 %4072
        %v4074 = vsel %vm1556, %v4069, %v4071
        %v4075 = vsel %vm1556, %v4071, %v4073
        %v4078 = vsel %vm587, %v4074, 0.0
        %v4079 = vsel %vm588, %v4075, 0.0
        %v4080 = vstv %s4053
        %v4081 = vmul.f32 %v4080, %v4078
        %v4082 = vmul.f32 %v4080, %v4079
        %v4085 = vcombine.low %v4081, %v4082
        %v4087 = vunpack.c.l.s4 1966171168
        %v4088 = vunpack.c.0.s8 %v4087
        %v4089 = vlaneseq
        %v4090 = vshrl.u32 %v4089, 7
        %v4091 = vsub.s32 %v4088, %v4090
        %v4092 = vrot.slane %v4085, %v4091
        %v4094 = vunpack.c.l.s4 1966171168
        %v4095 = vunpack.c.0.s8 %v4094
        %v4096 = vlaneseq
        %v4097 = vshrl.u32 %v4096, 7
        %v4098 = vsub.s32 %v4095, %v4097
        %v4099 = vrot.slane %v4092, %v4098
        %v4101 = vadd.f32 %v4054, %v4099
        %4102 = vst.msk [vmem:[#allocation3] sm:$0x3] %vm609, %v4101
        %v4103 = vld [vmem:[%s522] sm:$0x7]
        %s4104 = sld [smem:[#allocation5 + $0x44]]
        %v4105 = vld [vmem:[#allocation3] sm:$0x3]
        %v4107 = vlaneseq
        %v4108 = vshrl.u32 %v4107, 7
        %v4109 = vsub.s32 0, %v4108
        %v4110 = vrot.slane %v4103, %v4109
        %v4111 = vlaneseq
        %v4112 = vshrl.u32 %v4111, 7
        %v4113 = vsub.s32 1, %v4112
        %v4114 = vrot.slane %v4103, %v4113
        %v4115 = vlaneseq
        %v4116 = vshrl.u32 %v4115, 7
        %v4117 = vsub.s32 2, %v4116
        %v4118 = vrot.slane %v4103, %v4117
        %4119 = vrot.lane.b32.xlu0 %v4110, 91
        %v4120 = vpop.permute.xlu0 %4119
        %4121 = vrot.lane.b32.xlu0 %v4114, 91
        %v4122 = vpop.permute.xlu0 %4121
        %4123 = vrot.lane.b32.xlu0 %v4118, 91
        %v4124 = vpop.permute.xlu0 %4123
        %v4125 = vsel %vm1608, %v4120, %v4122
        %v4126 = vsel %vm1608, %v4122, %v4124
        %v4129 = vsel %vm595, %v4125, 0.0
        %v4130 = vsel %vm596, %v4126, 0.0
        %v4131 = vstv %s4104
        %v4132 = vmul.f32 %v4131, %v4129
        %v4133 = vmul.f32 %v4131, %v4130
        %v4136 = vcombine.low %v4132, %v4133
        %v4138 = vunpack.c.l.s4 1966171168
        %v4139 = vunpack.c.0.s8 %v4138
        %v4140 = vlaneseq
        %v4141 = vshrl.u32 %v4140, 7
        %v4142 = vsub.s32 %v4139, %v4141
        %v4143 = vrot.slane %v4136, %v4142
        %v4145 = vunpack.c.l.s4 1966171168
        %v4146 = vunpack.c.0.s8 %v4145
        %v4147 = vlaneseq
        %v4148 = vshrl.u32 %v4147, 7
        %v4149 = vsub.s32 %v4146, %v4148
        %v4150 = vrot.slane %v4143, %v4149
        %v4152 = vadd.f32 %v4105, %v4150
        %4153 = vst.msk [vmem:[#allocation3] sm:$0x3] %vm609, %v4152
        %v4154 = vld [vmem:[%s522] sm:$0x7]
        %s4155 = sld [smem:[#allocation5 + $0x45]]
        %v4156 = vld [vmem:[#allocation3] sm:$0x3]
        %v4158 = vlaneseq
        %v4159 = vshrl.u32 %v4158, 7
        %v4160 = vsub.s32 0, %v4159
        %v4161 = vrot.slane %v4154, %v4160
        %v4162 = vlaneseq
        %v4163 = vshrl.u32 %v4162, 7
        %v4164 = vsub.s32 1, %v4163
        %v4165 = vrot.slane %v4154, %v4164
        %v4166 = vlaneseq
        %v4167 = vshrl.u32 %v4166, 7
        %v4168 = vsub.s32 2, %v4167
        %v4169 = vrot.slane %v4154, %v4168
        %4170 = vrot.lane.b32.xlu0 %v4161, 90
        %v4171 = vpop.permute.xlu0 %4170
        %4172 = vrot.lane.b32.xlu0 %v4165, 90
        %v4173 = vpop.permute.xlu0 %4172
        %4174 = vrot.lane.b32.xlu0 %v4169, 90
        %v4175 = vpop.permute.xlu0 %4174
        %v4176 = vsel %vm1660, %v4171, %v4173
        %v4177 = vsel %vm1660, %v4173, %v4175
        %v4180 = vsel %vm603, %v4176, 0.0
        %v4181 = vsel %vm604, %v4177, 0.0
        %v4182 = vstv %s4155
        %v4183 = vmul.f32 %v4182, %v4180
        %v4184 = vmul.f32 %v4182, %v4181
        %v4187 = vcombine.low %v4183, %v4184
        %v4189 = vunpack.c.l.s4 1966171168
        %v4190 = vunpack.c.0.s8 %v4189
        %v4191 = vlaneseq
        %v4192 = vshrl.u32 %v4191, 7
        %v4193 = vsub.s32 %v4190, %v4192
        %v4194 = vrot.slane %v4187, %v4193
        %v4196 = vunpack.c.l.s4 1966171168
        %v4197 = vunpack.c.0.s8 %v4196
        %v4198 = vlaneseq
        %v4199 = vshrl.u32 %v4198, 7
        %v4200 = vsub.s32 %v4197, %v4199
        %v4201 = vrot.slane %v4194, %v4200
        %v4203 = vadd.f32 %v4156, %v4201
        %4204 = vst.msk [vmem:[#allocation3] sm:$0x3] %vm609, %v4203
        %v4205 = vld [vmem:[%s522] sm:$0x7]
        %s4206 = sld [smem:[#allocation5 + $0x46]]
        %v4207 = vld [vmem:[#allocation3] sm:$0x3]
        %v4209 = vlaneseq
        %v4210 = vshrl.u32 %v4209, 7
        %v4211 = vsub.s32 0, %v4210
        %v4212 = vrot.slane %v4205, %v4211
        %v4213 = vlaneseq
        %v4214 = vshrl.u32 %v4213, 7
        %v4215 = vsub.s32 1, %v4214
        %v4216 = vrot.slane %v4205, %v4215
        %v4217 = vlaneseq
        %v4218 = vshrl.u32 %v4217, 7
        %v4219 = vsub.s32 2, %v4218
        %v4220 = vrot.slane %v4205, %v4219
        %4221 = vrot.lane.b32.xlu0 %v4212, 80
        %v4222 = vpop.permute.xlu0 %4221
        %4223 = vrot.lane.b32.xlu0 %v4216, 80
        %v4224 = vpop.permute.xlu0 %4223
        %4225 = vrot.lane.b32.xlu0 %v4220, 80
        %v4226 = vpop.permute.xlu0 %4225
        %v4227 = vsel %vm1712, %v4222, %v4224
        %v4228 = vsel %vm1712, %v4224, %v4226
        %v4231 = vsel %vm557, %v4227, 0.0
        %v4232 = vsel %vm558, %v4228, 0.0
        %v4233 = vstv %s4206
        %v4234 = vmul.f32 %v4233, %v4231
        %v4235 = vmul.f32 %v4233, %v4232
        %v4238 = vcombine.low %v4234, %v4235
        %v4240 = vunpack.c.l.s4 1966171168
        %v4241 = vunpack.c.0.s8 %v4240
        %v4242 = vlaneseq
        %v4243 = vshrl.u32 %v4242, 7
        %v4244 = vsub.s32 %v4241, %v4243
        %v4245 = vrot.slane %v4238, %v4244
        %v4247 = vunpack.c.l.s4 1966171168
        %v4248 = vunpack.c.0.s8 %v4247
        %v4249 = vlaneseq
        %v4250 = vshrl.u32 %v4249, 7
        %v4251 = vsub.s32 %v4248, %v4250
        %v4252 = vrot.slane %v4245, %v4251
        %v4254 = vadd.f32 %v4207, %v4252
        %4255 = vst.msk [vmem:[#allocation3] sm:$0x3] %vm609, %v4254
        %v4256 = vld [vmem:[%s522] sm:$0x7]
        %s4257 = sld [smem:[#allocation5 + $0x47]]
        %v4258 = vld [vmem:[#allocation3] sm:$0x3]
        %v4260 = vlaneseq
        %v4261 = vshrl.u32 %v4260, 7
        %v4262 = vsub.s32 0, %v4261
        %v4263 = vrot.slane %v4256, %v4262
        %v4264 = vlaneseq
        %v4265 = vshrl.u32 %v4264, 7
        %v4266 = vsub.s32 1, %v4265
        %v4267 = vrot.slane %v4256, %v4266
        %v4268 = vlaneseq
        %v4269 = vshrl.u32 %v4268, 7
        %v4270 = vsub.s32 2, %v4269
        %v4271 = vrot.slane %v4256, %v4270
        %4272 = vrot.lane.b32.xlu0 %v4263, 79
        %v4273 = vpop.permute.xlu0 %4272
        %4274 = vrot.lane.b32.xlu0 %v4267, 79
        %v4275 = vpop.permute.xlu0 %4274
        %4276 = vrot.lane.b32.xlu0 %v4271, 79
        %v4277 = vpop.permute.xlu0 %4276
        %v4278 = vsel %vm1764, %v4273, %v4275
        %v4279 = vsel %vm1764, %v4275, %v4277
        %v4282 = vsel %vm565, %v4278, 0.0
        %v4283 = vsel %vm566, %v4279, 0.0
        %v4284 = vstv %s4257
        %v4285 = vmul.f32 %v4284, %v4282
        %v4286 = vmul.f32 %v4284, %v4283
        %v4289 = vcombine.low %v4285, %v4286
        %v4291 = vunpack.c.l.s4 1966171168
        %v4292 = vunpack.c.0.s8 %v4291
        %v4293 = vlaneseq
        %v4294 = vshrl.u32 %v4293, 7
        %v4295 = vsub.s32 %v4292, %v4294
        %v4296 = vrot.slane %v4289, %v4295
        %v4298 = vunpack.c.l.s4 1966171168
        %v4299 = vunpack.c.0.s8 %v4298
        %v4300 = vlaneseq
        %v4301 = vshrl.u32 %v4300, 7
        %v4302 = vsub.s32 %v4299, %v4301
        %v4303 = vrot.slane %v4296, %v4302
        %v4305 = vadd.f32 %v4258, %v4303
        %4306 = vst.msk [vmem:[#allocation3] sm:$0x3] %vm609, %v4305
        %v4307 = vld [vmem:[%s522] sm:$0x7]
        %s4308 = sld [smem:[#allocation5 + $0x48]]
        %v4309 = vld [vmem:[#allocation3] sm:$0x3]
        %v4311 = vlaneseq
        %v4312 = vshrl.u32 %v4311, 7
        %v4313 = vsub.s32 0, %v4312
        %v4314 = vrot.slane %v4307, %v4313
        %v4315 = vlaneseq
        %v4316 = vshrl.u32 %v4315, 7
        %v4317 = vsub.s32 1, %v4316
        %v4318 = vrot.slane %v4307, %v4317
        %v4319 = vlaneseq
        %v4320 = vshrl.u32 %v4319, 7
        %v4321 = vsub.s32 2, %v4320
        %v4322 = vrot.slane %v4307, %v4321
        %4323 = vrot.lane.b32.xlu0 %v4314, 78
        %v4324 = vpop.permute.xlu0 %4323
        %4325 = vrot.lane.b32.xlu0 %v4318, 78
        %v4326 = vpop.permute.xlu0 %4325
        %4327 = vrot.lane.b32.xlu0 %v4322, 78
        %v4328 = vpop.permute.xlu0 %4327
        %v4329 = vsel %vm1816, %v4324, %v4326
        %v4330 = vsel %vm1816, %v4326, %v4328
        %v4333 = vsel %vm573, %v4329, 0.0
        %v4334 = vsel %vm574, %v4330, 0.0
        %v4335 = vstv %s4308
        %v4336 = vmul.f32 %v4335, %v4333
        %v4337 = vmul.f32 %v4335, %v4334
        %v4340 = vcombine.low %v4336, %v4337
        %v4342 = vunpack.c.l.s4 1966171168
        %v4343 = vunpack.c.0.s8 %v4342
        %v4344 = vlaneseq
        %v4345 = vshrl.u32 %v4344, 7
        %v4346 = vsub.s32 %v4343, %v4345
        %v4347 = vrot.slane %v4340, %v4346
        %v4349 = vunpack.c.l.s4 1966171168
        %v4350 = vunpack.c.0.s8 %v4349
        %v4351 = vlaneseq
        %v4352 = vshrl.u32 %v4351, 7
        %v4353 = vsub.s32 %v4350, %v4352
        %v4354 = vrot.slane %v4347, %v4353
        %v4356 = vadd.f32 %v4309, %v4354
        %4357 = vst.msk [vmem:[#allocation3] sm:$0x3] %vm609, %v4356
        %v4358 = vld [vmem:[%s522] sm:$0x7]
        %s4359 = sld [smem:[#allocation5 + $0x49]]
        %v4360 = vld [vmem:[#allocation3] sm:$0x3]
        %v4362 = vlaneseq
        %v4363 = vshrl.u32 %v4362, 7
        %v4364 = vsub.s32 0, %v4363
        %v4365 = vrot.slane %v4358, %v4364
        %v4366 = vlaneseq
        %v4367 = vshrl.u32 %v4366, 7
        %v4368 = vsub.s32 1, %v4367
        %v4369 = vrot.slane %v4358, %v4368
        %v4370 = vlaneseq
        %v4371 = vshrl.u32 %v4370, 7
        %v4372 = vsub.s32 2, %v4371
        %v4373 = vrot.slane %v4358, %v4372
        %4374 = vrot.lane.b32.xlu0 %v4365, 77
        %v4375 = vpop.permute.xlu0 %4374
        %4376 = vrot.lane.b32.xlu0 %v4369, 77
        %v4377 = vpop.permute.xlu0 %4376
        %4378 = vrot.lane.b32.xlu0 %v4373, 77
        %v4379 = vpop.permute.xlu0 %4378
        %v4380 = vsel %vm1868, %v4375, %v4377
        %v4381 = vsel %vm1868, %v4377, %v4379
        %v4384 = vsel %vm579, %v4380, 0.0
        %v4385 = vsel %vm580, %v4381, 0.0
        %v4386 = vstv %s4359
        %v4387 = vmul.f32 %v4386, %v4384
        %v4388 = vmul.f32 %v4386, %v4385
        %v4391 = vcombine.low %v4387, %v4388
        %v4393 = vunpack.c.l.s4 1966171168
        %v4394 = vunpack.c.0.s8 %v4393
        %v4395 = vlaneseq
        %v4396 = vshrl.u32 %v4395, 7
        %v4397 = vsub.s32 %v4394, %v4396
        %v4398 = vrot.slane %v4391, %v4397
        %v4400 = vunpack.c.l.s4 1966171168
        %v4401 = vunpack.c.0.s8 %v4400
        %v4402 = vlaneseq
        %v4403 = vshrl.u32 %v4402, 7
        %v4404 = vsub.s32 %v4401, %v4403
        %v4405 = vrot.slane %v4398, %v4404
        %v4407 = vadd.f32 %v4360, %v4405
        %4408 = vst.msk [vmem:[#allocation3] sm:$0x3] %vm609, %v4407
        %v4409 = vld [vmem:[%s522] sm:$0x7]
        %s4410 = sld [smem:[#allocation5 + $0x4a]]
        %v4411 = vld [vmem:[#allocation3] sm:$0x3]
        %v4413 = vlaneseq
        %v4414 = vshrl.u32 %v4413, 7
        %v4415 = vsub.s32 0, %v4414
        %v4416 = vrot.slane %v4409, %v4415
        %v4417 = vlaneseq
        %v4418 = vshrl.u32 %v4417, 7
        %v4419 = vsub.s32 1, %v4418
        %v4420 = vrot.slane %v4409, %v4419
        %v4421 = vlaneseq
        %v4422 = vshrl.u32 %v4421, 7
        %v4423 = vsub.s32 2, %v4422
        %v4424 = vrot.slane %v4409, %v4423
        %4425 = vrot.lane.b32.xlu0 %v4416, 76
        %v4426 = vpop.permute.xlu0 %4425
        %4427 = vrot.lane.b32.xlu0 %v4420, 76
        %v4428 = vpop.permute.xlu0 %4427
        %4429 = vrot.lane.b32.xlu0 %v4424, 76
        %v4430 = vpop.permute.xlu0 %4429
        %v4431 = vsel %vm1920, %v4426, %v4428
        %v4432 = vsel %vm1920, %v4428, %v4430
        %v4435 = vsel %vm587, %v4431, 0.0
        %v4436 = vsel %vm588, %v4432, 0.0
        %v4437 = vstv %s4410
        %v4438 = vmul.f32 %v4437, %v4435
        %v4439 = vmul.f32 %v4437, %v4436
        %v4442 = vcombine.low %v4438, %v4439
        %v4444 = vunpack.c.l.s4 1966171168
        %v4445 = vunpack.c.0.s8 %v4444
        %v4446 = vlaneseq
        %v4447 = vshrl.u32 %v4446, 7
        %v4448 = vsub.s32 %v4445, %v4447
        %v4449 = vrot.slane %v4442, %v4448
        %v4451 = vunpack.c.l.s4 1966171168
        %v4452 = vunpack.c.0.s8 %v4451
        %v4453 = vlaneseq
        %v4454 = vshrl.u32 %v4453, 7
        %v4455 = vsub.s32 %v4452, %v4454
        %v4456 = vrot.slane %v4449, %v4455
        %v4458 = vadd.f32 %v4411, %v4456
        %4459 = vst.msk [vmem:[#allocation3] sm:$0x3] %vm609, %v4458
        %v4460 = vld [vmem:[%s522] sm:$0x7]
        %s4461 = sld [smem:[#allocation5 + $0x4b]]
        %v4462 = vld [vmem:[#allocation3] sm:$0x3]
        %v4464 = vlaneseq
        %v4465 = vshrl.u32 %v4464, 7
        %v4466 = vsub.s32 0, %v4465
        %v4467 = vrot.slane %v4460, %v4466
        %v4468 = vlaneseq
        %v4469 = vshrl.u32 %v4468, 7
        %v4470 = vsub.s32 1, %v4469
        %v4471 = vrot.slane %v4460, %v4470
        %v4472 = vlaneseq
        %v4473 = vshrl.u32 %v4472, 7
        %v4474 = vsub.s32 2, %v4473
        %v4475 = vrot.slane %v4460, %v4474
        %4476 = vrot.lane.b32.xlu0 %v4467, 75
        %v4477 = vpop.permute.xlu0 %4476
        %4478 = vrot.lane.b32.xlu0 %v4471, 75
        %v4479 = vpop.permute.xlu0 %4478
        %4480 = vrot.lane.b32.xlu0 %v4475, 75
        %v4481 = vpop.permute.xlu0 %4480
        %v4482 = vsel %vm1972, %v4477, %v4479
        %v4483 = vsel %vm1972, %v4479, %v4481
        %v4486 = vsel %vm595, %v4482, 0.0
        %v4487 = vsel %vm596, %v4483, 0.0
        %v4488 = vstv %s4461
        %v4489 = vmul.f32 %v4488, %v4486
        %v4490 = vmul.f32 %v4488, %v4487
        %v4493 = vcombine.low %v4489, %v4490
        %v4495 = vunpack.c.l.s4 1966171168
        %v4496 = vunpack.c.0.s8 %v4495
        %v4497 = vlaneseq
        %v4498 = vshrl.u32 %v4497, 7
        %v4499 = vsub.s32 %v4496, %v4498
        %v4500 = vrot.slane %v4493, %v4499
        %v4502 = vunpack.c.l.s4 1966171168
        %v4503 = vunpack.c.0.s8 %v4502
        %v4504 = vlaneseq
        %v4505 = vshrl.u32 %v4504, 7
        %v4506 = vsub.s32 %v4503, %v4505
        %v4507 = vrot.slane %v4500, %v4506
        %v4509 = vadd.f32 %v4462, %v4507
        %4510 = vst.msk [vmem:[#allocation3] sm:$0x3] %vm609, %v4509
        %v4511 = vld [vmem:[%s522] sm:$0x7]
        %s4512 = sld [smem:[#allocation5 + $0x4c]]
        %v4513 = vld [vmem:[#allocation3] sm:$0x3]
        %v4515 = vlaneseq
        %v4516 = vshrl.u32 %v4515, 7
        %v4517 = vsub.s32 0, %v4516
        %v4518 = vrot.slane %v4511, %v4517
        %v4519 = vlaneseq
        %v4520 = vshrl.u32 %v4519, 7
        %v4521 = vsub.s32 1, %v4520
        %v4522 = vrot.slane %v4511, %v4521
        %v4523 = vlaneseq
        %v4524 = vshrl.u32 %v4523, 7
        %v4525 = vsub.s32 2, %v4524
        %v4526 = vrot.slane %v4511, %v4525
        %4527 = vrot.lane.b32.xlu0 %v4518, 74
        %v4528 = vpop.permute.xlu0 %4527
        %4529 = vrot.lane.b32.xlu0 %v4522, 74
        %v4530 = vpop.permute.xlu0 %4529
        %4531 = vrot.lane.b32.xlu0 %v4526, 74
        %v4532 = vpop.permute.xlu0 %4531
        %v4533 = vsel %vm2024, %v4528, %v4530
        %v4534 = vsel %vm2024, %v4530, %v4532
        %v4537 = vsel %vm603, %v4533, 0.0
        %v4538 = vsel %vm604, %v4534, 0.0
        %v4539 = vstv %s4512
        %v4540 = vmul.f32 %v4539, %v4537
        %v4541 = vmul.f32 %v4539, %v4538
        %v4544 = vcombine.low %v4540, %v4541
        %v4546 = vunpack.c.l.s4 1966171168
        %v4547 = vunpack.c.0.s8 %v4546
        %v4548 = vlaneseq
        %v4549 = vshrl.u32 %v4548, 7
        %v4550 = vsub.s32 %v4547, %v4549
        %v4551 = vrot.slane %v4544, %v4550
        %v4553 = vunpack.c.l.s4 1966171168
        %v4554 = vunpack.c.0.s8 %v4553
        %v4555 = vlaneseq
        %v4556 = vshrl.u32 %v4555, 7
        %v4557 = vsub.s32 %v4554, %v4556
        %v4558 = vrot.slane %v4551, %v4557
        %v4560 = vadd.f32 %v4513, %v4558
        %4561 = vst.msk [vmem:[#allocation3] sm:$0x3] %vm609, %v4560
        %v4562 = vld [vmem:[%s522] sm:$0x7]
        %s4563 = sld [smem:[#allocation5 + $0x4d]]
        %v4564 = vld [vmem:[#allocation3] sm:$0x3]
        %v4566 = vlaneseq
        %v4567 = vshrl.u32 %v4566, 7
        %v4568 = vsub.s32 0, %v4567
        %v4569 = vrot.slane %v4562, %v4568
        %v4570 = vlaneseq
        %v4571 = vshrl.u32 %v4570, 7
        %v4572 = vsub.s32 1, %v4571
        %v4573 = vrot.slane %v4562, %v4572
        %v4574 = vlaneseq
        %v4575 = vshrl.u32 %v4574, 7
        %v4576 = vsub.s32 2, %v4575
        %v4577 = vrot.slane %v4562, %v4576
        %4578 = vrot.lane.b32.xlu0 %v4569, 64
        %v4579 = vpop.permute.xlu0 %4578
        %4580 = vrot.lane.b32.xlu0 %v4573, 64
        %v4581 = vpop.permute.xlu0 %4580
        %4582 = vrot.lane.b32.xlu0 %v4577, 64
        %v4583 = vpop.permute.xlu0 %4582
        %v4584 = vsel %vm2076, %v4579, %v4581
        %v4585 = vsel %vm2076, %v4581, %v4583
        %v4588 = vsel %vm557, %v4584, 0.0
        %v4589 = vsel %vm558, %v4585, 0.0
        %v4590 = vstv %s4563
        %v4591 = vmul.f32 %v4590, %v4588
        %v4592 = vmul.f32 %v4590, %v4589
        %v4595 = vcombine.low %v4591, %v4592
        %v4597 = vunpack.c.l.s4 1966171168
        %v4598 = vunpack.c.0.s8 %v4597
        %v4599 = vlaneseq
        %v4600 = vshrl.u32 %v4599, 7
        %v4601 = vsub.s32 %v4598, %v4600
        %v4602 = vrot.slane %v4595, %v4601
        %v4604 = vunpack.c.l.s4 1966171168
        %v4605 = vunpack.c.0.s8 %v4604
        %v4606 = vlaneseq
        %v4607 = vshrl.u32 %v4606, 7
        %v4608 = vsub.s32 %v4605, %v4607
        %v4609 = vrot.slane %v4602, %v4608
        %v4611 = vadd.f32 %v4564, %v4609
        %4612 = vst.msk [vmem:[#allocation3] sm:$0x3] %vm609, %v4611
        %v4613 = vld [vmem:[%s522] sm:$0x7]
        %s4614 = sld [smem:[#allocation5 + $0x4e]]
        %v4615 = vld [vmem:[#allocation3] sm:$0x3]
        %v4617 = vlaneseq
        %v4618 = vshrl.u32 %v4617, 7
        %v4619 = vsub.s32 0, %v4618
        %v4620 = vrot.slane %v4613, %v4619
        %v4621 = vlaneseq
        %v4622 = vshrl.u32 %v4621, 7
        %v4623 = vsub.s32 1, %v4622
        %v4624 = vrot.slane %v4613, %v4623
        %v4625 = vlaneseq
        %v4626 = vshrl.u32 %v4625, 7
        %v4627 = vsub.s32 2, %v4626
        %v4628 = vrot.slane %v4613, %v4627
        %4629 = vrot.lane.b32.xlu0 %v4620, 63
        %v4630 = vpop.permute.xlu0 %4629
        %4631 = vrot.lane.b32.xlu0 %v4624, 63
        %v4632 = vpop.permute.xlu0 %4631
        %4633 = vrot.lane.b32.xlu0 %v4628, 63
        %v4634 = vpop.permute.xlu0 %4633
        %v4635 = vsel %vm2128, %v4630, %v4632
        %v4636 = vsel %vm2128, %v4632, %v4634
        %v4639 = vsel %vm565, %v4635, 0.0
        %v4640 = vsel %vm566, %v4636, 0.0
        %v4641 = vstv %s4614
        %v4642 = vmul.f32 %v4641, %v4639
        %v4643 = vmul.f32 %v4641, %v4640
        %v4646 = vcombine.low %v4642, %v4643
        %v4648 = vunpack.c.l.s4 1966171168
        %v4649 = vunpack.c.0.s8 %v4648
        %v4650 = vlaneseq
        %v4651 = vshrl.u32 %v4650, 7
        %v4652 = vsub.s32 %v4649, %v4651
        %v4653 = vrot.slane %v4646, %v4652
        %v4655 = vunpack.c.l.s4 1966171168
        %v4656 = vunpack.c.0.s8 %v4655
        %v4657 = vlaneseq
        %v4658 = vshrl.u32 %v4657, 7
        %v4659 = vsub.s32 %v4656, %v4658
        %v4660 = vrot.slane %v4653, %v4659
        %v4662 = vadd.f32 %v4615, %v4660
        %4663 = vst.msk [vmem:[#allocation3] sm:$0x3] %vm609, %v4662
        %v4664 = vld [vmem:[%s522] sm:$0x7]
        %s4665 = sld [smem:[#allocation5 + $0x4f]]
        %v4666 = vld [vmem:[#allocation3] sm:$0x3]
        %v4668 = vlaneseq
        %v4669 = vshrl.u32 %v4668, 7
        %v4670 = vsub.s32 0, %v4669
        %v4671 = vrot.slane %v4664, %v4670
        %v4672 = vlaneseq
        %v4673 = vshrl.u32 %v4672, 7
        %v4674 = vsub.s32 1, %v4673
        %v4675 = vrot.slane %v4664, %v4674
        %v4676 = vlaneseq
        %v4677 = vshrl.u32 %v4676, 7
        %v4678 = vsub.s32 2, %v4677
        %v4679 = vrot.slane %v4664, %v4678
        %4680 = vrot.lane.b32.xlu0 %v4671, 62
        %v4681 = vpop.permute.xlu0 %4680
        %4682 = vrot.lane.b32.xlu0 %v4675, 62
        %v4683 = vpop.permute.xlu0 %4682
        %4684 = vrot.lane.b32.xlu0 %v4679, 62
        %v4685 = vpop.permute.xlu0 %4684
        %v4686 = vsel %vm2180, %v4681, %v4683
        %v4687 = vsel %vm2180, %v4683, %v4685
        %v4690 = vsel %vm573, %v4686, 0.0
        %v4691 = vsel %vm574, %v4687, 0.0
        %v4692 = vstv %s4665
        %v4693 = vmul.f32 %v4692, %v4690
        %v4694 = vmul.f32 %v4692, %v4691
        %v4697 = vcombine.low %v4693, %v4694
        %v4699 = vunpack.c.l.s4 1966171168
        %v4700 = vunpack.c.0.s8 %v4699
        %v4701 = vlaneseq
        %v4702 = vshrl.u32 %v4701, 7
        %v4703 = vsub.s32 %v4700, %v4702
        %v4704 = vrot.slane %v4697, %v4703
        %v4706 = vunpack.c.l.s4 1966171168
        %v4707 = vunpack.c.0.s8 %v4706
        %v4708 = vlaneseq
        %v4709 = vshrl.u32 %v4708, 7
        %v4710 = vsub.s32 %v4707, %v4709
        %v4711 = vrot.slane %v4704, %v4710
        %v4713 = vadd.f32 %v4666, %v4711
        %4714 = vst.msk [vmem:[#allocation3] sm:$0x3] %vm609, %v4713
        %v4715 = vld [vmem:[%s522] sm:$0x7]
        %s4716 = sld [smem:[#allocation5 + $0x50]]
        %v4717 = vld [vmem:[#allocation3] sm:$0x3]
        %v4719 = vlaneseq
        %v4720 = vshrl.u32 %v4719, 7
        %v4721 = vsub.s32 0, %v4720
        %v4722 = vrot.slane %v4715, %v4721
        %v4723 = vlaneseq
        %v4724 = vshrl.u32 %v4723, 7
        %v4725 = vsub.s32 1, %v4724
        %v4726 = vrot.slane %v4715, %v4725
        %v4727 = vlaneseq
        %v4728 = vshrl.u32 %v4727, 7
        %v4729 = vsub.s32 2, %v4728
        %v4730 = vrot.slane %v4715, %v4729
        %4731 = vrot.lane.b32.xlu0 %v4722, 61
        %v4732 = vpop.permute.xlu0 %4731
        %4733 = vrot.lane.b32.xlu0 %v4726, 61
        %v4734 = vpop.permute.xlu0 %4733
        %4735 = vrot.lane.b32.xlu0 %v4730, 61
        %v4736 = vpop.permute.xlu0 %4735
        %v4737 = vsel %vm2232, %v4732, %v4734
        %v4738 = vsel %vm2232, %v4734, %v4736
        %v4741 = vsel %vm579, %v4737, 0.0
        %v4742 = vsel %vm580, %v4738, 0.0
        %v4743 = vstv %s4716
        %v4744 = vmul.f32 %v4743, %v4741
        %v4745 = vmul.f32 %v4743, %v4742
        %v4748 = vcombine.low %v4744, %v4745
        %v4750 = vunpack.c.l.s4 1966171168
        %v4751 = vunpack.c.0.s8 %v4750
        %v4752 = vlaneseq
        %v4753 = vshrl.u32 %v4752, 7
        %v4754 = vsub.s32 %v4751, %v4753
        %v4755 = vrot.slane %v4748, %v4754
        %v4757 = vunpack.c.l.s4 1966171168
        %v4758 = vunpack.c.0.s8 %v4757
        %v4759 = vlaneseq
        %v4760 = vshrl.u32 %v4759, 7
        %v4761 = vsub.s32 %v4758, %v4760
        %v4762 = vrot.slane %v4755, %v4761
        %v4764 = vadd.f32 %v4717, %v4762
        %4765 = vst.msk [vmem:[#allocation3] sm:$0x3] %vm609, %v4764
        %v4766 = vld [vmem:[%s522] sm:$0x7]
        %s4767 = sld [smem:[#allocation5 + $0x51]]
        %v4768 = vld [vmem:[#allocation3] sm:$0x3]
        %v4770 = vlaneseq
        %v4771 = vshrl.u32 %v4770, 7
        %v4772 = vsub.s32 0, %v4771
        %v4773 = vrot.slane %v4766, %v4772
        %v4774 = vlaneseq
        %v4775 = vshrl.u32 %v4774, 7
        %v4776 = vsub.s32 1, %v4775
        %v4777 = vrot.slane %v4766, %v4776
        %v4778 = vlaneseq
        %v4779 = vshrl.u32 %v4778, 7
        %v4780 = vsub.s32 2, %v4779
        %v4781 = vrot.slane %v4766, %v4780
        %4782 = vrot.lane.b32.xlu0 %v4773, 60
        %v4783 = vpop.permute.xlu0 %4782
        %4784 = vrot.lane.b32.xlu0 %v4777, 60
        %v4785 = vpop.permute.xlu0 %4784
        %4786 = vrot.lane.b32.xlu0 %v4781, 60
        %v4787 = vpop.permute.xlu0 %4786
        %v4788 = vsel %vm2284, %v4783, %v4785
        %v4789 = vsel %vm2284, %v4785, %v4787
        %v4792 = vsel %vm587, %v4788, 0.0
        %v4793 = vsel %vm588, %v4789, 0.0
        %v4794 = vstv %s4767
        %v4795 = vmul.f32 %v4794, %v4792
        %v4796 = vmul.f32 %v4794, %v4793
        %v4799 = vcombine.low %v4795, %v4796
        %v4801 = vunpack.c.l.s4 1966171168
        %v4802 = vunpack.c.0.s8 %v4801
        %v4803 = vlaneseq
        %v4804 = vshrl.u32 %v4803, 7
        %v4805 = vsub.s32 %v4802, %v4804
        %v4806 = vrot.slane %v4799, %v4805
        %v4808 = vunpack.c.l.s4 1966171168
        %v4809 = vunpack.c.0.s8 %v4808
        %v4810 = vlaneseq
        %v4811 = vshrl.u32 %v4810, 7
        %v4812 = vsub.s32 %v4809, %v4811
        %v4813 = vrot.slane %v4806, %v4812
        %v4815 = vadd.f32 %v4768, %v4813
        %4816 = vst.msk [vmem:[#allocation3] sm:$0x3] %vm609, %v4815
        %v4817 = vld [vmem:[%s522] sm:$0x7]
        %s4818 = sld [smem:[#allocation5 + $0x52]]
        %v4819 = vld [vmem:[#allocation3] sm:$0x3]
        %v4821 = vlaneseq
        %v4822 = vshrl.u32 %v4821, 7
        %v4823 = vsub.s32 0, %v4822
        %v4824 = vrot.slane %v4817, %v4823
        %v4825 = vlaneseq
        %v4826 = vshrl.u32 %v4825, 7
        %v4827 = vsub.s32 1, %v4826
        %v4828 = vrot.slane %v4817, %v4827
        %v4829 = vlaneseq
        %v4830 = vshrl.u32 %v4829, 7
        %v4831 = vsub.s32 2, %v4830
        %v4832 = vrot.slane %v4817, %v4831
        %4833 = vrot.lane.b32.xlu0 %v4824, 59
        %v4834 = vpop.permute.xlu0 %4833
        %4835 = vrot.lane.b32.xlu0 %v4828, 59
        %v4836 = vpop.permute.xlu0 %4835
        %4837 = vrot.lane.b32.xlu0 %v4832, 59
        %v4838 = vpop.permute.xlu0 %4837
        %v4839 = vsel %vm2336, %v4834, %v4836
        %v4840 = vsel %vm2336, %v4836, %v4838
        %v4843 = vsel %vm595, %v4839, 0.0
        %v4844 = vsel %vm596, %v4840, 0.0
        %v4845 = vstv %s4818
        %v4846 = vmul.f32 %v4845, %v4843
        %v4847 = vmul.f32 %v4845, %v4844
        %v4850 = vcombine.low %v4846, %v4847
        %v4852 = vunpack.c.l.s4 1966171168
        %v4853 = vunpack.c.0.s8 %v4852
        %v4854 = vlaneseq
        %v4855 = vshrl.u32 %v4854, 7
        %v4856 = vsub.s32 %v4853, %v4855
        %v4857 = vrot.slane %v4850, %v4856
        %v4859 = vunpack.c.l.s4 1966171168
        %v4860 = vunpack.c.0.s8 %v4859
        %v4861 = vlaneseq
        %v4862 = vshrl.u32 %v4861, 7
        %v4863 = vsub.s32 %v4860, %v4862
        %v4864 = vrot.slane %v4857, %v4863
        %v4866 = vadd.f32 %v4819, %v4864
        %4867 = vst.msk [vmem:[#allocation3] sm:$0x3] %vm609, %v4866
        %v4868 = vld [vmem:[%s522] sm:$0x7]
        %s4869 = sld [smem:[#allocation5 + $0x53]]
        %v4870 = vld [vmem:[#allocation3] sm:$0x3]
        %v4872 = vlaneseq
        %v4873 = vshrl.u32 %v4872, 7
        %v4874 = vsub.s32 0, %v4873
        %v4875 = vrot.slane %v4868, %v4874
        %v4876 = vlaneseq
        %v4877 = vshrl.u32 %v4876, 7
        %v4878 = vsub.s32 1, %v4877
        %v4879 = vrot.slane %v4868, %v4878
        %v4880 = vlaneseq
        %v4881 = vshrl.u32 %v4880, 7
        %v4882 = vsub.s32 2, %v4881
        %v4883 = vrot.slane %v4868, %v4882
        %4884 = vrot.lane.b32.xlu0 %v4875, 58
        %v4885 = vpop.permute.xlu0 %4884
        %4886 = vrot.lane.b32.xlu0 %v4879, 58
        %v4887 = vpop.permute.xlu0 %4886
        %4888 = vrot.lane.b32.xlu0 %v4883, 58
        %v4889 = vpop.permute.xlu0 %4888
        %v4890 = vsel %vm2388, %v4885, %v4887
        %v4891 = vsel %vm2388, %v4887, %v4889
        %v4894 = vsel %vm603, %v4890, 0.0
        %v4895 = vsel %vm604, %v4891, 0.0
        %v4896 = vstv %s4869
        %v4897 = vmul.f32 %v4896, %v4894
        %v4898 = vmul.f32 %v4896, %v4895
        %v4901 = vcombine.low %v4897, %v4898
        %v4903 = vunpack.c.l.s4 1966171168
        %v4904 = vunpack.c.0.s8 %v4903
        %v4905 = vlaneseq
        %v4906 = vshrl.u32 %v4905, 7
        %v4907 = vsub.s32 %v4904, %v4906
        %v4908 = vrot.slane %v4901, %v4907
        %v4910 = vunpack.c.l.s4 1966171168
        %v4911 = vunpack.c.0.s8 %v4910
        %v4912 = vlaneseq
        %v4913 = vshrl.u32 %v4912, 7
        %v4914 = vsub.s32 %v4911, %v4913
        %v4915 = vrot.slane %v4908, %v4914
        %v4917 = vadd.f32 %v4870, %v4915
        %4918 = vst.msk [vmem:[#allocation3] sm:$0x3] %vm609, %v4917
        %v4919 = vld [vmem:[%s522] sm:$0x7]
        %s4920 = sld [smem:[#allocation5 + $0x54]]
        %v4921 = vld [vmem:[#allocation3] sm:$0x3]
        %v4923 = vlaneseq
        %v4924 = vshrl.u32 %v4923, 7
        %v4925 = vsub.s32 0, %v4924
        %v4926 = vrot.slane %v4919, %v4925
        %v4927 = vlaneseq
        %v4928 = vshrl.u32 %v4927, 7
        %v4929 = vsub.s32 1, %v4928
        %v4930 = vrot.slane %v4919, %v4929
        %v4931 = vlaneseq
        %v4932 = vshrl.u32 %v4931, 7
        %v4933 = vsub.s32 2, %v4932
        %v4934 = vrot.slane %v4919, %v4933
        %4935 = vrot.lane.b32.xlu0 %v4926, 48
        %v4936 = vpop.permute.xlu0 %4935
        %4937 = vrot.lane.b32.xlu0 %v4930, 48
        %v4938 = vpop.permute.xlu0 %4937
        %4939 = vrot.lane.b32.xlu0 %v4934, 48
        %v4940 = vpop.permute.xlu0 %4939
        %v4941 = vsel %vm2440, %v4936, %v4938
        %v4942 = vsel %vm2440, %v4938, %v4940
        %v4945 = vsel %vm557, %v4941, 0.0
        %v4946 = vsel %vm558, %v4942, 0.0
        %v4947 = vstv %s4920
        %v4948 = vmul.f32 %v4947, %v4945
        %v4949 = vmul.f32 %v4947, %v4946
        %v4952 = vcombine.low %v4948, %v4949
        %v4954 = vunpack.c.l.s4 1966171168
        %v4955 = vunpack.c.0.s8 %v4954
        %v4956 = vlaneseq
        %v4957 = vshrl.u32 %v4956, 7
        %v4958 = vsub.s32 %v4955, %v4957
        %v4959 = vrot.slane %v4952, %v4958
        %v4961 = vunpack.c.l.s4 1966171168
        %v4962 = vunpack.c.0.s8 %v4961
        %v4963 = vlaneseq
        %v4964 = vshrl.u32 %v4963, 7
        %v4965 = vsub.s32 %v4962, %v4964
        %v4966 = vrot.slane %v4959, %v4965
        %v4968 = vadd.f32 %v4921, %v4966
        %4969 = vst.msk [vmem:[#allocation3] sm:$0x3] %vm609, %v4968
        %v4970 = vld [vmem:[%s522] sm:$0x7]
        %s4971 = sld [smem:[#allocation5 + $0x55]]
        %v4972 = vld [vmem:[#allocation3] sm:$0x3]
        %v4974 = vlaneseq
        %v4975 = vshrl.u32 %v4974, 7
        %v4976 = vsub.s32 0, %v4975
        %v4977 = vrot.slane %v4970, %v4976
        %v4978 = vlaneseq
        %v4979 = vshrl.u32 %v4978, 7
        %v4980 = vsub.s32 1, %v4979
        %v4981 = vrot.slane %v4970, %v4980
        %v4982 = vlaneseq
        %v4983 = vshrl.u32 %v4982, 7
        %v4984 = vsub.s32 2, %v4983
        %v4985 = vrot.slane %v4970, %v4984
        %4986 = vrot.lane.b32.xlu0 %v4977, 47
        %v4987 = vpop.permute.xlu0 %4986
        %4988 = vrot.lane.b32.xlu0 %v4981, 47
        %v4989 = vpop.permute.xlu0 %4988
        %4990 = vrot.lane.b32.xlu0 %v4985, 47
        %v4991 = vpop.permute.xlu0 %4990
        %v4992 = vsel %vm2492, %v4987, %v4989
        %v4993 = vsel %vm2492, %v4989, %v4991
        %v4996 = vsel %vm565, %v4992, 0.0
        %v4997 = vsel %vm566, %v4993, 0.0
        %v4998 = vstv %s4971
        %v4999 = vmul.f32 %v4998, %v4996
        %v5000 = vmul.f32 %v4998, %v4997
        %v5003 = vcombine.low %v4999, %v5000
        %v5005 = vunpack.c.l.s4 1966171168
        %v5006 = vunpack.c.0.s8 %v5005
        %v5007 = vlaneseq
        %v5008 = vshrl.u32 %v5007, 7
        %v5009 = vsub.s32 %v5006, %v5008
        %v5010 = vrot.slane %v5003, %v5009
        %v5012 = vunpack.c.l.s4 1966171168
        %v5013 = vunpack.c.0.s8 %v5012
        %v5014 = vlaneseq
        %v5015 = vshrl.u32 %v5014, 7
        %v5016 = vsub.s32 %v5013, %v5015
        %v5017 = vrot.slane %v5010, %v5016
        %v5019 = vadd.f32 %v4972, %v5017
        %5020 = vst.msk [vmem:[#allocation3] sm:$0x3] %vm609, %v5019
        %v5021 = vld [vmem:[%s522] sm:$0x7]
        %s5022 = sld [smem:[#allocation5 + $0x56]]
        %v5023 = vld [vmem:[#allocation3] sm:$0x3]
        %v5025 = vlaneseq
        %v5026 = vshrl.u32 %v5025, 7
        %v5027 = vsub.s32 0, %v5026
        %v5028 = vrot.slane %v5021, %v5027
        %v5029 = vlaneseq
        %v5030 = vshrl.u32 %v5029, 7
        %v5031 = vsub.s32 1, %v5030
        %v5032 = vrot.slane %v5021, %v5031
        %v5033 = vlaneseq
        %v5034 = vshrl.u32 %v5033, 7
        %v5035 = vsub.s32 2, %v5034
        %v5036 = vrot.slane %v5021, %v5035
        %5037 = vrot.lane.b32.xlu0 %v5028, 46
        %v5038 = vpop.permute.xlu0 %5037
        %5039 = vrot.lane.b32.xlu0 %v5032, 46
        %v5040 = vpop.permute.xlu0 %5039
        %5041 = vrot.lane.b32.xlu0 %v5036, 46
        %v5042 = vpop.permute.xlu0 %5041
        %v5043 = vsel %vm2544, %v5038, %v5040
        %v5044 = vsel %vm2544, %v5040, %v5042
        %v5047 = vsel %vm573, %v5043, 0.0
        %v5048 = vsel %vm574, %v5044, 0.0
        %v5049 = vstv %s5022
        %v5050 = vmul.f32 %v5049, %v5047
        %v5051 = vmul.f32 %v5049, %v5048
        %v5054 = vcombine.low %v5050, %v5051
        %v5056 = vunpack.c.l.s4 1966171168
        %v5057 = vunpack.c.0.s8 %v5056
        %v5058 = vlaneseq
        %v5059 = vshrl.u32 %v5058, 7
        %v5060 = vsub.s32 %v5057, %v5059
        %v5061 = vrot.slane %v5054, %v5060
        %v5063 = vunpack.c.l.s4 1966171168
        %v5064 = vunpack.c.0.s8 %v5063
        %v5065 = vlaneseq
        %v5066 = vshrl.u32 %v5065, 7
        %v5067 = vsub.s32 %v5064, %v5066
        %v5068 = vrot.slane %v5061, %v5067
        %v5070 = vadd.f32 %v5023, %v5068
        %5071 = vst.msk [vmem:[#allocation3] sm:$0x3] %vm609, %v5070
        %v5072 = vld [vmem:[%s522] sm:$0x7]
        %s5073 = sld [smem:[#allocation5 + $0x57]]
        %v5074 = vld [vmem:[#allocation3] sm:$0x3]
        %v5076 = vlaneseq
        %v5077 = vshrl.u32 %v5076, 7
        %v5078 = vsub.s32 0, %v5077
        %v5079 = vrot.slane %v5072, %v5078
        %v5080 = vlaneseq
        %v5081 = vshrl.u32 %v5080, 7
        %v5082 = vsub.s32 1, %v5081
        %v5083 = vrot.slane %v5072, %v5082
        %v5084 = vlaneseq
        %v5085 = vshrl.u32 %v5084, 7
        %v5086 = vsub.s32 2, %v5085
        %v5087 = vrot.slane %v5072, %v5086
        %5088 = vrot.lane.b32.xlu0 %v5079, 45
        %v5089 = vpop.permute.xlu0 %5088
        %5090 = vrot.lane.b32.xlu0 %v5083, 45
        %v5091 = vpop.permute.xlu0 %5090
        %5092 = vrot.lane.b32.xlu0 %v5087, 45
        %v5093 = vpop.permute.xlu0 %5092
        %v5094 = vsel %vm2596, %v5089, %v5091
        %v5095 = vsel %vm2596, %v5091, %v5093
        %v5098 = vsel %vm579, %v5094, 0.0
        %v5099 = vsel %vm580, %v5095, 0.0
        %v5100 = vstv %s5073
        %v5101 = vmul.f32 %v5100, %v5098
        %v5102 = vmul.f32 %v5100, %v5099
        %v5105 = vcombine.low %v5101, %v5102
        %v5107 = vunpack.c.l.s4 1966171168
        %v5108 = vunpack.c.0.s8 %v5107
        %v5109 = vlaneseq
        %v5110 = vshrl.u32 %v5109, 7
        %v5111 = vsub.s32 %v5108, %v5110
        %v5112 = vrot.slane %v5105, %v5111
        %v5114 = vunpack.c.l.s4 1966171168
        %v5115 = vunpack.c.0.s8 %v5114
        %v5116 = vlaneseq
        %v5117 = vshrl.u32 %v5116, 7
        %v5118 = vsub.s32 %v5115, %v5117
        %v5119 = vrot.slane %v5112, %v5118
        %v5121 = vadd.f32 %v5074, %v5119
        %5122 = vst.msk [vmem:[#allocation3] sm:$0x3] %vm609, %v5121
        %v5123 = vld [vmem:[%s522] sm:$0x7]
        %s5124 = sld [smem:[#allocation5 + $0x58]]
        %v5125 = vld [vmem:[#allocation3] sm:$0x3]
        %v5127 = vlaneseq
        %v5128 = vshrl.u32 %v5127, 7
        %v5129 = vsub.s32 0, %v5128
        %v5130 = vrot.slane %v5123, %v5129
        %v5131 = vlaneseq
        %v5132 = vshrl.u32 %v5131, 7
        %v5133 = vsub.s32 1, %v5132
        %v5134 = vrot.slane %v5123, %v5133
        %v5135 = vlaneseq
        %v5136 = vshrl.u32 %v5135, 7
        %v5137 = vsub.s32 2, %v5136
        %v5138 = vrot.slane %v5123, %v5137
        %5139 = vrot.lane.b32.xlu0 %v5130, 44
        %v5140 = vpop.permute.xlu0 %5139
        %5141 = vrot.lane.b32.xlu0 %v5134, 44
        %v5142 = vpop.permute.xlu0 %5141
        %5143 = vrot.lane.b32.xlu0 %v5138, 44
        %v5144 = vpop.permute.xlu0 %5143
        %v5145 = vsel %vm2648, %v5140, %v5142
        %v5146 = vsel %vm2648, %v5142, %v5144
        %v5149 = vsel %vm587, %v5145, 0.0
        %v5150 = vsel %vm588, %v5146, 0.0
        %v5151 = vstv %s5124
        %v5152 = vmul.f32 %v5151, %v5149
        %v5153 = vmul.f32 %v5151, %v5150
        %v5156 = vcombine.low %v5152, %v5153
        %v5158 = vunpack.c.l.s4 1966171168
        %v5159 = vunpack.c.0.s8 %v5158
        %v5160 = vlaneseq
        %v5161 = vshrl.u32 %v5160, 7
        %v5162 = vsub.s32 %v5159, %v5161
        %v5163 = vrot.slane %v5156, %v5162
        %v5165 = vunpack.c.l.s4 1966171168
        %v5166 = vunpack.c.0.s8 %v5165
        %v5167 = vlaneseq
        %v5168 = vshrl.u32 %v5167, 7
        %v5169 = vsub.s32 %v5166, %v5168
        %v5170 = vrot.slane %v5163, %v5169
        %v5172 = vadd.f32 %v5125, %v5170
        %5173 = vst.msk [vmem:[#allocation3] sm:$0x3] %vm609, %v5172
        %v5174 = vld [vmem:[%s522] sm:$0x7]
        %s5175 = sld [smem:[#allocation5 + $0x59]]
        %v5176 = vld [vmem:[#allocation3] sm:$0x3]
        %v5178 = vlaneseq
        %v5179 = vshrl.u32 %v5178, 7
        %v5180 = vsub.s32 0, %v5179
        %v5181 = vrot.slane %v5174, %v5180
        %v5182 = vlaneseq
        %v5183 = vshrl.u32 %v5182, 7
        %v5184 = vsub.s32 1, %v5183
        %v5185 = vrot.slane %v5174, %v5184
        %v5186 = vlaneseq
        %v5187 = vshrl.u32 %v5186, 7
        %v5188 = vsub.s32 2, %v5187
        %v5189 = vrot.slane %v5174, %v5188
        %5190 = vrot.lane.b32.xlu0 %v5181, 43
        %v5191 = vpop.permute.xlu0 %5190
        %5192 = vrot.lane.b32.xlu0 %v5185, 43
        %v5193 = vpop.permute.xlu0 %5192
        %5194 = vrot.lane.b32.xlu0 %v5189, 43
        %v5195 = vpop.permute.xlu0 %5194
        %v5196 = vsel %vm2700, %v5191, %v5193
        %v5197 = vsel %vm2700, %v5193, %v5195
        %v5200 = vsel %vm595, %v5196, 0.0
        %v5201 = vsel %vm596, %v5197, 0.0
        %v5202 = vstv %s5175
        %v5203 = vmul.f32 %v5202, %v5200
        %v5204 = vmul.f32 %v5202, %v5201
        %v5207 = vcombine.low %v5203, %v5204
        %v5209 = vunpack.c.l.s4 1966171168
        %v5210 = vunpack.c.0.s8 %v5209
        %v5211 = vlaneseq
        %v5212 = vshrl.u32 %v5211, 7
        %v5213 = vsub.s32 %v5210, %v5212
        %v5214 = vrot.slane %v5207, %v5213
        %v5216 = vunpack.c.l.s4 1966171168
        %v5217 = vunpack.c.0.s8 %v5216
        %v5218 = vlaneseq
        %v5219 = vshrl.u32 %v5218, 7
        %v5220 = vsub.s32 %v5217, %v5219
        %v5221 = vrot.slane %v5214, %v5220
        %v5223 = vadd.f32 %v5176, %v5221
        %5224 = vst.msk [vmem:[#allocation3] sm:$0x3] %vm609, %v5223
        %v5225 = vld [vmem:[%s522] sm:$0x7]
        %s5226 = sld [smem:[#allocation5 + $0x5a]]
        %v5227 = vld [vmem:[#allocation3] sm:$0x3]
        %v5229 = vlaneseq
        %v5230 = vshrl.u32 %v5229, 7
        %v5231 = vsub.s32 0, %v5230
        %v5232 = vrot.slane %v5225, %v5231
        %v5233 = vlaneseq
        %v5234 = vshrl.u32 %v5233, 7
        %v5235 = vsub.s32 1, %v5234
        %v5236 = vrot.slane %v5225, %v5235
        %v5237 = vlaneseq
        %v5238 = vshrl.u32 %v5237, 7
        %v5239 = vsub.s32 2, %v5238
        %v5240 = vrot.slane %v5225, %v5239
        %5241 = vrot.lane.b32.xlu0 %v5232, 42
        %v5242 = vpop.permute.xlu0 %5241
        %5243 = vrot.lane.b32.xlu0 %v5236, 42
        %v5244 = vpop.permute.xlu0 %5243
        %5245 = vrot.lane.b32.xlu0 %v5240, 42
        %v5246 = vpop.permute.xlu0 %5245
        %v5247 = vsel %vm2752, %v5242, %v5244
        %v5248 = vsel %vm2752, %v5244, %v5246
        %v5251 = vsel %vm603, %v5247, 0.0
        %v5252 = vsel %vm604, %v5248, 0.0
        %v5253 = vstv %s5226
        %v5254 = vmul.f32 %v5253, %v5251
        %v5255 = vmul.f32 %v5253, %v5252
        %v5258 = vcombine.low %v5254, %v5255
        %v5260 = vunpack.c.l.s4 1966171168
        %v5261 = vunpack.c.0.s8 %v5260
        %v5262 = vlaneseq
        %v5263 = vshrl.u32 %v5262, 7
        %v5264 = vsub.s32 %v5261, %v5263
        %v5265 = vrot.slane %v5258, %v5264
        %v5267 = vunpack.c.l.s4 1966171168
        %v5268 = vunpack.c.0.s8 %v5267
        %v5269 = vlaneseq
        %v5270 = vshrl.u32 %v5269, 7
        %v5271 = vsub.s32 %v5268, %v5270
        %v5272 = vrot.slane %v5265, %v5271
        %v5274 = vadd.f32 %v5227, %v5272
        %5275 = vst.msk [vmem:[#allocation3] sm:$0x3] %vm609, %v5274
        %v5276 = vld [vmem:[%s522] sm:$0x7]
        %s5277 = sld [smem:[#allocation5 + $0x5b]]
        %v5278 = vld [vmem:[#allocation3] sm:$0x3]
        %v5280 = vlaneseq
        %v5281 = vshrl.u32 %v5280, 7
        %v5282 = vsub.s32 0, %v5281
        %v5283 = vrot.slane %v5276, %v5282
        %v5284 = vlaneseq
        %v5285 = vshrl.u32 %v5284, 7
        %v5286 = vsub.s32 1, %v5285
        %v5287 = vrot.slane %v5276, %v5286
        %v5288 = vlaneseq
        %v5289 = vshrl.u32 %v5288, 7
        %v5290 = vsub.s32 2, %v5289
        %v5291 = vrot.slane %v5276, %v5290
        %5292 = vrot.lane.b32.xlu0 %v5283, 32
        %v5293 = vpop.permute.xlu0 %5292
        %5294 = vrot.lane.b32.xlu0 %v5287, 32
        %v5295 = vpop.permute.xlu0 %5294
        %5296 = vrot.lane.b32.xlu0 %v5291, 32
        %v5297 = vpop.permute.xlu0 %5296
        %v5298 = vsel %vm2804, %v5293, %v5295
        %v5299 = vsel %vm2804, %v5295, %v5297
        %v5302 = vsel %vm557, %v5298, 0.0
        %v5303 = vsel %vm558, %v5299, 0.0
        %v5304 = vstv %s5277
        %v5305 = vmul.f32 %v5304, %v5302
        %v5306 = vmul.f32 %v5304, %v5303
        %v5309 = vcombine.low %v5305, %v5306
        %v5311 = vunpack.c.l.s4 1966171168
        %v5312 = vunpack.c.0.s8 %v5311
        %v5313 = vlaneseq
        %v5314 = vshrl.u32 %v5313, 7
        %v5315 = vsub.s32 %v5312, %v5314
        %v5316 = vrot.slane %v5309, %v5315
        %v5318 = vunpack.c.l.s4 1966171168
        %v5319 = vunpack.c.0.s8 %v5318
        %v5320 = vlaneseq
        %v5321 = vshrl.u32 %v5320, 7
        %v5322 = vsub.s32 %v5319, %v5321
        %v5323 = vrot.slane %v5316, %v5322
        %v5325 = vadd.f32 %v5278, %v5323
        %5326 = vst.msk [vmem:[#allocation3] sm:$0x3] %vm609, %v5325
        %v5327 = vld [vmem:[%s522] sm:$0x7]
        %s5328 = sld [smem:[#allocation5 + $0x5c]]
        %v5329 = vld [vmem:[#allocation3] sm:$0x3]
        %v5331 = vlaneseq
        %v5332 = vshrl.u32 %v5331, 7
        %v5333 = vsub.s32 0, %v5332
        %v5334 = vrot.slane %v5327, %v5333
        %v5335 = vlaneseq
        %v5336 = vshrl.u32 %v5335, 7
        %v5337 = vsub.s32 1, %v5336
        %v5338 = vrot.slane %v5327, %v5337
        %v5339 = vlaneseq
        %v5340 = vshrl.u32 %v5339, 7
        %v5341 = vsub.s32 2, %v5340
        %v5342 = vrot.slane %v5327, %v5341
        %5343 = vrot.lane.b32.xlu0 %v5334, 31
        %v5344 = vpop.permute.xlu0 %5343
        %5345 = vrot.lane.b32.xlu0 %v5338, 31
        %v5346 = vpop.permute.xlu0 %5345
        %5347 = vrot.lane.b32.xlu0 %v5342, 31
        %v5348 = vpop.permute.xlu0 %5347
        %v5349 = vsel %vm2856, %v5344, %v5346
        %v5350 = vsel %vm2856, %v5346, %v5348
        %v5353 = vsel %vm565, %v5349, 0.0
        %v5354 = vsel %vm566, %v5350, 0.0
        %v5355 = vstv %s5328
        %v5356 = vmul.f32 %v5355, %v5353
        %v5357 = vmul.f32 %v5355, %v5354
        %v5360 = vcombine.low %v5356, %v5357
        %v5362 = vunpack.c.l.s4 1966171168
        %v5363 = vunpack.c.0.s8 %v5362
        %v5364 = vlaneseq
        %v5365 = vshrl.u32 %v5364, 7
        %v5366 = vsub.s32 %v5363, %v5365
        %v5367 = vrot.slane %v5360, %v5366
        %v5369 = vunpack.c.l.s4 1966171168
        %v5370 = vunpack.c.0.s8 %v5369
        %v5371 = vlaneseq
        %v5372 = vshrl.u32 %v5371, 7
        %v5373 = vsub.s32 %v5370, %v5372
        %v5374 = vrot.slane %v5367, %v5373
        %v5376 = vadd.f32 %v5329, %v5374
        %5377 = vst.msk [vmem:[#allocation3] sm:$0x3] %vm609, %v5376
        %v5378 = vld [vmem:[%s522] sm:$0x7]
        %s5379 = sld [smem:[#allocation5 + $0x5d]]
        %v5380 = vld [vmem:[#allocation3] sm:$0x3]
        %v5382 = vlaneseq
        %v5383 = vshrl.u32 %v5382, 7
        %v5384 = vsub.s32 0, %v5383
        %v5385 = vrot.slane %v5378, %v5384
        %v5386 = vlaneseq
        %v5387 = vshrl.u32 %v5386, 7
        %v5388 = vsub.s32 1, %v5387
        %v5389 = vrot.slane %v5378, %v5388
        %v5390 = vlaneseq
        %v5391 = vshrl.u32 %v5390, 7
        %v5392 = vsub.s32 2, %v5391
        %v5393 = vrot.slane %v5378, %v5392
        %5394 = vrot.lane.b32.xlu0 %v5385, 30
        %v5395 = vpop.permute.xlu0 %5394
        %5396 = vrot.lane.b32.xlu0 %v5389, 30
        %v5397 = vpop.permute.xlu0 %5396
        %5398 = vrot.lane.b32.xlu0 %v5393, 30
        %v5399 = vpop.permute.xlu0 %5398
        %v5400 = vsel %vm2908, %v5395, %v5397
        %v5401 = vsel %vm2908, %v5397, %v5399
        %v5404 = vsel %vm573, %v5400, 0.0
        %v5405 = vsel %vm574, %v5401, 0.0
        %v5406 = vstv %s5379
        %v5407 = vmul.f32 %v5406, %v5404
        %v5408 = vmul.f32 %v5406, %v5405
        %v5411 = vcombine.low %v5407, %v5408
        %v5413 = vunpack.c.l.s4 1966171168
        %v5414 = vunpack.c.0.s8 %v5413
        %v5415 = vlaneseq
        %v5416 = vshrl.u32 %v5415, 7
        %v5417 = vsub.s32 %v5414, %v5416
        %v5418 = vrot.slane %v5411, %v5417
        %v5420 = vunpack.c.l.s4 1966171168
        %v5421 = vunpack.c.0.s8 %v5420
        %v5422 = vlaneseq
        %v5423 = vshrl.u32 %v5422, 7
        %v5424 = vsub.s32 %v5421, %v5423
        %v5425 = vrot.slane %v5418, %v5424
        %v5427 = vadd.f32 %v5380, %v5425
        %5428 = vst.msk [vmem:[#allocation3] sm:$0x3] %vm609, %v5427
        %v5429 = vld [vmem:[%s522] sm:$0x7]
        %s5430 = sld [smem:[#allocation5 + $0x5e]]
        %v5431 = vld [vmem:[#allocation3] sm:$0x3]
        %v5433 = vlaneseq
        %v5434 = vshrl.u32 %v5433, 7
        %v5435 = vsub.s32 0, %v5434
        %v5436 = vrot.slane %v5429, %v5435
        %v5437 = vlaneseq
        %v5438 = vshrl.u32 %v5437, 7
        %v5439 = vsub.s32 1, %v5438
        %v5440 = vrot.slane %v5429, %v5439
        %v5441 = vlaneseq
        %v5442 = vshrl.u32 %v5441, 7
        %v5443 = vsub.s32 2, %v5442
        %v5444 = vrot.slane %v5429, %v5443
        %5445 = vrot.lane.b32.xlu0 %v5436, 29
        %v5446 = vpop.permute.xlu0 %5445
        %5447 = vrot.lane.b32.xlu0 %v5440, 29
        %v5448 = vpop.permute.xlu0 %5447
        %5449 = vrot.lane.b32.xlu0 %v5444, 29
        %v5450 = vpop.permute.xlu0 %5449
        %v5451 = vsel %vm2960, %v5446, %v5448
        %v5452 = vsel %vm2960, %v5448, %v5450
        %v5455 = vsel %vm579, %v5451, 0.0
        %v5456 = vsel %vm580, %v5452, 0.0
        %v5457 = vstv %s5430
        %v5458 = vmul.f32 %v5457, %v5455
        %v5459 = vmul.f32 %v5457, %v5456
        %v5462 = vcombine.low %v5458, %v5459
        %v5464 = vunpack.c.l.s4 1966171168
        %v5465 = vunpack.c.0.s8 %v5464
        %v5466 = vlaneseq
        %v5467 = vshrl.u32 %v5466, 7
        %v5468 = vsub.s32 %v5465, %v5467
        %v5469 = vrot.slane %v5462, %v5468
        %v5471 = vunpack.c.l.s4 1966171168
        %v5472 = vunpack.c.0.s8 %v5471
        %v5473 = vlaneseq
        %v5474 = vshrl.u32 %v5473, 7
        %v5475 = vsub.s32 %v5472, %v5474
        %v5476 = vrot.slane %v5469, %v5475
        %v5478 = vadd.f32 %v5431, %v5476
        %5479 = vst.msk [vmem:[#allocation3] sm:$0x3] %vm609, %v5478
        %v5480 = vld [vmem:[%s522] sm:$0x7]
        %s5481 = sld [smem:[#allocation5 + $0x5f]]
        %v5482 = vld [vmem:[#allocation3] sm:$0x3]
        %v5484 = vlaneseq
        %v5485 = vshrl.u32 %v5484, 7
        %v5486 = vsub.s32 0, %v5485
        %v5487 = vrot.slane %v5480, %v5486
        %v5488 = vlaneseq
        %v5489 = vshrl.u32 %v5488, 7
        %v5490 = vsub.s32 1, %v5489
        %v5491 = vrot.slane %v5480, %v5490
        %v5492 = vlaneseq
        %v5493 = vshrl.u32 %v5492, 7
        %v5494 = vsub.s32 2, %v5493
        %v5495 = vrot.slane %v5480, %v5494
        %5496 = vrot.lane.b32.xlu0 %v5487, 28
        %v5497 = vpop.permute.xlu0 %5496
        %5498 = vrot.lane.b32.xlu0 %v5491, 28
        %v5499 = vpop.permute.xlu0 %5498
        %5500 = vrot.lane.b32.xlu0 %v5495, 28
        %v5501 = vpop.permute.xlu0 %5500
        %v5502 = vsel %vm3012, %v5497, %v5499
        %v5503 = vsel %vm3012, %v5499, %v5501
        %v5506 = vsel %vm587, %v5502, 0.0
        %v5507 = vsel %vm588, %v5503, 0.0
        %v5508 = vstv %s5481
        %v5509 = vmul.f32 %v5508, %v5506
        %v5510 = vmul.f32 %v5508, %v5507
        %v5513 = vcombine.low %v5509, %v5510
        %v5515 = vunpack.c.l.s4 1966171168
        %v5516 = vunpack.c.0.s8 %v5515
        %v5517 = vlaneseq
        %v5518 = vshrl.u32 %v5517, 7
        %v5519 = vsub.s32 %v5516, %v5518
        %v5520 = vrot.slane %v5513, %v5519
        %v5522 = vunpack.c.l.s4 1966171168
        %v5523 = vunpack.c.0.s8 %v5522
        %v5524 = vlaneseq
        %v5525 = vshrl.u32 %v5524, 7
        %v5526 = vsub.s32 %v5523, %v5525
        %v5527 = vrot.slane %v5520, %v5526
        %v5529 = vadd.f32 %v5482, %v5527
        %5530 = vst.msk [vmem:[#allocation3] sm:$0x3] %vm609, %v5529
        %v5531 = vld [vmem:[%s522] sm:$0x7]
        %s5532 = sld [smem:[#allocation5 + $0x60]]
        %v5533 = vld [vmem:[#allocation3] sm:$0x3]
        %v5535 = vlaneseq
        %v5536 = vshrl.u32 %v5535, 7
        %v5537 = vsub.s32 0, %v5536
        %v5538 = vrot.slane %v5531, %v5537
        %v5539 = vlaneseq
        %v5540 = vshrl.u32 %v5539, 7
        %v5541 = vsub.s32 1, %v5540
        %v5542 = vrot.slane %v5531, %v5541
        %v5543 = vlaneseq
        %v5544 = vshrl.u32 %v5543, 7
        %v5545 = vsub.s32 2, %v5544
        %v5546 = vrot.slane %v5531, %v5545
        %5547 = vrot.lane.b32.xlu0 %v5538, 27
        %v5548 = vpop.permute.xlu0 %5547
        %5549 = vrot.lane.b32.xlu0 %v5542, 27
        %v5550 = vpop.permute.xlu0 %5549
        %5551 = vrot.lane.b32.xlu0 %v5546, 27
        %v5552 = vpop.permute.xlu0 %5551
        %v5553 = vsel %vm3064, %v5548, %v5550
        %v5554 = vsel %vm3064, %v5550, %v5552
        %v5557 = vsel %vm595, %v5553, 0.0
        %v5558 = vsel %vm596, %v5554, 0.0
        %v5559 = vstv %s5532
        %v5560 = vmul.f32 %v5559, %v5557
        %v5561 = vmul.f32 %v5559, %v5558
        %v5564 = vcombine.low %v5560, %v5561
        %v5566 = vunpack.c.l.s4 1966171168
        %v5567 = vunpack.c.0.s8 %v5566
        %v5568 = vlaneseq
        %v5569 = vshrl.u32 %v5568, 7
        %v5570 = vsub.s32 %v5567, %v5569
        %v5571 = vrot.slane %v5564, %v5570
        %v5573 = vunpack.c.l.s4 1966171168
        %v5574 = vunpack.c.0.s8 %v5573
        %v5575 = vlaneseq
        %v5576 = vshrl.u32 %v5575, 7
        %v5577 = vsub.s32 %v5574, %v5576
        %v5578 = vrot.slane %v5571, %v5577
        %v5580 = vadd.f32 %v5533, %v5578
        %5581 = vst.msk [vmem:[#allocation3] sm:$0x3] %vm609, %v5580
        %v5582 = vld [vmem:[%s522] sm:$0x7]
        %s5583 = sld [smem:[#allocation5 + $0x61]]
        %v5584 = vld [vmem:[#allocation3] sm:$0x3]
        %v5586 = vlaneseq
        %v5587 = vshrl.u32 %v5586, 7
        %v5588 = vsub.s32 0, %v5587
        %v5589 = vrot.slane %v5582, %v5588
        %v5590 = vlaneseq
        %v5591 = vshrl.u32 %v5590, 7
        %v5592 = vsub.s32 1, %v5591
        %v5593 = vrot.slane %v5582, %v5592
        %v5594 = vlaneseq
        %v5595 = vshrl.u32 %v5594, 7
        %v5596 = vsub.s32 2, %v5595
        %v5597 = vrot.slane %v5582, %v5596
        %5598 = vrot.lane.b32.xlu0 %v5589, 26
        %v5599 = vpop.permute.xlu0 %5598
        %5600 = vrot.lane.b32.xlu0 %v5593, 26
        %v5601 = vpop.permute.xlu0 %5600
        %5602 = vrot.lane.b32.xlu0 %v5597, 26
        %v5603 = vpop.permute.xlu0 %5602
        %v5604 = vsel %vm3116, %v5599, %v5601
        %v5605 = vsel %vm3116, %v5601, %v5603
        %v5608 = vsel %vm603, %v5604, 0.0
        %v5609 = vsel %vm604, %v5605, 0.0
        %v5610 = vstv %s5583
        %v5611 = vmul.f32 %v5610, %v5608
        %v5612 = vmul.f32 %v5610, %v5609
        %v5615 = vcombine.low %v5611, %v5612
        %v5617 = vunpack.c.l.s4 1966171168
        %v5618 = vunpack.c.0.s8 %v5617
        %v5619 = vlaneseq
        %v5620 = vshrl.u32 %v5619, 7
        %v5621 = vsub.s32 %v5618, %v5620
        %v5622 = vrot.slane %v5615, %v5621
        %v5624 = vunpack.c.l.s4 1966171168
        %v5625 = vunpack.c.0.s8 %v5624
        %v5626 = vlaneseq
        %v5627 = vshrl.u32 %v5626, 7
        %v5628 = vsub.s32 %v5625, %v5627
        %v5629 = vrot.slane %v5622, %v5628
        %v5631 = vadd.f32 %v5584, %v5629
        %5632 = vst.msk [vmem:[#allocation3] sm:$0x3] %vm609, %v5631
        %v5633 = vld [vmem:[#allocation3] sm:$0x3]
        %v5634 = vxor.u32 %v5633, 2147483648
        %v5635 = vmul.f32 %v5634, 1.442695
        %v5636 = vpow.pop %v5635
        %v5637 = vadd.f32 %v5636, 1.0
        %v5638 = vrcp.pop %v5637
        %v5639 = vmul.f32 1.0, %v5638
        %v5641 = vlaneseq
        %v5642 = vshrl.u32 %v5641, 7
        %v5643 = vsub.s32 0, %v5642
        %v5644 = vrot.slane %v5639, %v5643
        %v5645 = vlaneseq
        %v5646 = vshrl.u32 %v5645, 7
        %v5647 = vsub.s32 1, %v5646
        %v5648 = vrot.slane %v5639, %v5647
        %v5651 = vmul.f32 %v420, %v5644
        %v5652 = vmul.f32 %v421, %v5648
        %v5653 = vmul.f32 %v422, %v5644
        %v5654 = vmul.f32 %v423, %v5648
        %v5655 = vmul.f32 %v424, %v5644
        %v5656 = vmul.f32 %v425, %v5648
        %v5657 = vmul.f32 %v426, %v5644
        %v5658 = vmul.f32 %v427, %v5648
        %5659 = vst [vmem:[%s293] sm:$0xff] %v5651
        %5660 = vst [vmem:[%s293 + $0x8] sm:$0xff] %v5652
        %5661 = vst [vmem:[%s293 + $0x10] sm:$0xff] %v5653
        %5662 = vst [vmem:[%s293 + $0x18] sm:$0xff] %v5654
        %5663 = vst [vmem:[%s293 + $0x20] sm:$0xff] %v5655
        %5664 = vst [vmem:[%s293 + $0x28] sm:$0xff] %v5656
        %5665 = vst [vmem:[%s293 + $0x30] sm:$0xff] %v5657
        %5666 = vst [vmem:[%s293 + $0x38] sm:$0xff] %v5658
        %p5667 = scmp.lt.s32.totalorder %s20, 1
        %s5668 = scalar_select %p5667, %s20, 1
        %s5669 = smul.addr %s5668, 8
        %s5670 = smul.addr %s5669, 8
        %s5671 = scalar_lea.vmem %s7, %s5670
        // Predicated region
        $region53: #{cbam_pallas.1} parent=47 // pred_check
          %p5672 = pneg %p190
        $region54: #{cbam_pallas.1} parent=47 // pred_check_branch
          %5674 = sbr.rel (%p5672) target = $region56
        $region55: #{cbam_pallas.1} parent=47 // pred_region
          _
        $region56: #{cbam_pallas.1} parent=47 // pred_fallthru
          _
      $region48: #{cbam_pallas.1} parent=5 // pred_fallthru
        _
      %p5675 = scmp.le.s32.totalorder 2, %s15
      // Predicated region
      $region57: #{cbam_pallas.1} parent=5 // pred_check
        %p5676 = pneg %p5675
      $region58: #{cbam_pallas.1} parent=5 // pred_check_branch
        %5678 = sbr.rel (%p5676) target = $region60
      $region59: #{cbam_pallas.1} parent=5 // pred_region
        %s5679 = ssub.s32 %s15, 2
        // Predicated region
        $region61: #{cbam_pallas.1} parent=59 // pred_check
          %p5680 = pneg %p196
        $region62: #{cbam_pallas.1} parent=59 // pred_check_branch
          %5682 = sbr.rel (%p5680) target = $region64
        $region63: #{cbam_pallas.1} parent=59 // pred_region
          %p5683 = scmp.lt.s32.totalorder %s21, 1
          %s5684 = scalar_select %p5683, %s21, 1
          %s5685 = smul.addr %s5684, 8
          %s5686 = smul.addr %s5685, 8
          %s5687 = scalar_lea.vmem %s7, %s5686
        $region64: #{cbam_pallas.1} parent=59 // pred_fallthru
          _
      $region60: #{cbam_pallas.1} parent=5 // pred_fallthru
        _
    $region6: #{cbam_pallas.1} parent=1 // loop_footer
      %s19 = sadd.s32 1, %s15
    $region7: #{cbam_pallas.1} parent=1 // loop_footer_branch
      %14 = sbr.rel target = $region3
    $region8: #{cbam_pallas.1} parent=1 // loop_exit
      _
    %5688 = vsyncpa [#allocation6], 1
    %s5689 = scalar_lea.sflag [#allocation6], 1
    %5690 = vsyncpa %s5689, 1

</llo_original>
